<compile_context>
chip_gen: v7x
topology: tpu7x:2x2x1
jax: 0.10.0
libtpu: 0.0.40
codegen_flags: <defaults>
</compile_context>

<pallas_src>
import numpy as np
import jax
import jax.numpy as jnp
from jax import lax
from jax.experimental import pallas as pl
from jax.experimental.pallas import tpu as pltpu

BOARD = 8
PIX = BOARD * BOARD          # 64 pixels per board
CMID = 32                    # trunk channels
EPS = 1e-5

_TAPS = [(dy, dx) for dy in (-1, 0, 1) for dx in (-1, 0, 1)]   # 3x3, row-major


# ----------------------------------------------------------------------------
# The fused Pallas kernel.  Rows r = images_per_block * 64,
# row index = img*64 + y*8 + x (NHWC pixel order, single input channel).
# ----------------------------------------------------------------------------
def _net_kernel(x_ref, w1_ref, b1_ref, wc_ref, bc_ref, wh_ref, bh_ref,
                wp0_ref, wp1_ref, bp_ref, wv1_ref, bv1_ref, wv2_ref, bv2_ref,
                out_ref, col_ref):
    f32 = jnp.float32
    bf16 = jnp.bfloat16
    r = x_ref.shape[0]           # rows in this block
    nb = out_ref.shape[0]        # images in this block

    # --- per-row board coordinates and per-tap boundary masks (from iota;
    #     bitwise ops only, no vector integer division).
    row = lax.broadcasted_iota(jnp.int32, (r, 1), 0)
    yy = (row >> 3) & (BOARD - 1)            # y  (row = img*64 + y*8 + x)
    xx = row & (BOARD - 1)                   # x
    masks = []
    shifts = []
    for dy, dx in _TAPS:
        sy = yy + dy
        sx = xx + dx
        valid = (sy >= 0) & (sy < BOARD) & (sx >= 0) & (sx < BOARD)
        masks.append(jnp.where(valid, 1.0, 0.0).astype(f32))     # (r, 1)
        shifts.append((-(dy * BOARD + dx)) % r)                  # roll amount

    def shifted(a, t):
        s = shifts[t]
        rolled = a if s == 0 else pltpu.roll(a, shift=s, axis=0)
        return rolled * masks[t]

    # --- conv1 (1 -> 32), 3x3 pad 1, BN folded, ReLU.  Cin = 1, so the channel
    #     mix is an outer product: VPU + XLU only, no MXU.
    xb = x_ref[...] * jnp.ones((1, CMID), f32)                   # (r, 32)
    acc = jnp.zeros((r, CMID), f32)
    for t in range(9):
        acc = acc + shifted(xb, t) * w1_ref[t]                   # (r,32)*(1,32)
    h = jnp.maximum(acc + b1_ref[...], 0.0)                      # (r, 32) f32

    # --- conv2..conv4 (32 -> 32): rolls + masks build an (r, 288) im2col in
    #     scratch, then one K=288 bf16 MXU matmul per layer (f32 accumulate).
    for i in range(3):
        for t in range(9):
            col_ref[:, t * CMID:(t + 1) * CMID] = shifted(h, t)
        acc = jnp.dot(col_ref[...].astype(bf16), wc_ref[i],
                      preferred_element_type=f32)                # (r, 32)
        h = jnp.maximum(acc + bc_ref[i], 0.0)

    # --- merged policy/value 1x1 conv heads (32 -> [p0, p1, v]), BN folded, ReLU.
    hh = jnp.maximum(
        jnp.dot(h.astype(bf16), wh_ref[...], preferred_element_type=f32)
        + bh_ref[...], 0.0)                                      # (r, 3)

    # --- per-image reduction matrix (nb, r), generated from iota (no params).
    img_i = lax.broadcasted_iota(jnp.int32, (nb, r), 0)
    row_i = lax.broadcasted_iota(jnp.int32, (nb, r), 1)
    ssum = jnp.where((row_i >> 6) == img_i, 1.0, 0.0).astype(bf16)   # (nb, r)

    def vtile(w):               # replicate untiled FC weights over block images
        return w if nb == 1 else jnp.concatenate([w] * nb, axis=0)

    # --- policy head: NCHW flatten + fc_policy folded into untiled per-channel
    #     (64, 64) blocks; per-image reduction via the ssum matmul; softmax.
    fpol = hh[:, 0:1] * vtile(wp0_ref[...]) + hh[:, 1:2] * vtile(wp1_ref[...])
    logits = (jnp.dot(ssum, fpol.astype(bf16), preferred_element_type=f32)
              + bp_ref[...])                                     # (nb, 64)
    m = jnp.max(logits, axis=-1, keepdims=True)
    e = jnp.exp(logits - m)
    policy = e * pl.reciprocal(jnp.sum(e, axis=-1, keepdims=True), approx=True)

    # --- value head: fc_value_1 (64->32) + ReLU, fc_value_2 (32->1, lane-padded
    #     to 64 so the final store stays lane-dense) + tanh.
    fval = hh[:, 2:3] * vtile(wv1_ref[...])                      # (r, 32)
    v1 = jnp.maximum(
        jnp.dot(ssum, fval.astype(bf16), preferred_element_type=f32)
        + bv1_ref[...], 0.0)                                     # (nb, 32)
    v2 = jnp.tanh(
        jnp.dot(v1.astype(bf16), wv2_ref[...], preferred_element_type=f32)
        + bv2_ref[...])                                          # (nb, 64)

    # Single lane-dense output block: [policy (64) | value-padded (64)].
    out_ref[...] = jnp.concatenate([policy, v2], axis=1)         # (nb, 128)


# ----------------------------------------------------------------------------
# Deterministic synthetic parameters (shapes match the PyTorch module).
# BatchNorm (gamma, beta, running stats) and conv bias are folded into the
# weights / bias at init.  No parameter depends on the batch size.
# ----------------------------------------------------------------------------
def _bn_fold(key, cout, conv_bias):
    k1, k2, k3, k4 = jax.random.split(key, 4)
    gamma = 1.0 + 0.1 * jax.random.normal(k1, (cout,), jnp.float32)
    beta = 0.1 * jax.random.normal(k2, (cout,), jnp.float32)
    mean = 0.1 * jax.random.normal(k3, (cout,), jnp.float32)
    var = jnp.abs(jax.random.normal(k4, (cout,), jnp.float32)) + 0.5
    scale = gamma / jnp.sqrt(var + EPS)
    bias = beta - mean * scale + conv_bias * scale
    return scale, bias


def _conv3x3_folded(key, cin, cout):
    kw, kb, kbn = jax.random.split(key, 3)
    w = jax.random.normal(kw, (9, cin, cout), jnp.float32) / np.sqrt(9.0 * cin)
    cb = 0.1 * jax.random.normal(kb, (cout,), jnp.float32)
    scale, bias = _bn_fold(kbn, cout, cb)
    return w * scale[None, None, :], bias.reshape(1, cout)


def _conv1x1_folded(key, cin, cout):
    kw, kb, kbn = jax.random.split(key, 3)
    w = jax.random.normal(kw, (cin, cout), jnp.float32) / np.sqrt(float(cin))
    cb = 0.1 * jax.random.normal(kb, (cout,), jnp.float32)
    scale, bias = _bn_fold(kbn, cout, cb)
    return w * scale[None, :], bias.reshape(1, cout)


def _linear(key, fan_in, fan_out):
    kw, kb = jax.random.split(key, 2)
    w = jax.random.normal(kw, (fan_in, fan_out), jnp.float32) / np.sqrt(float(fan_in))
    b = 0.1 * jax.random.normal(kb, (fan_out,), jnp.float32)
    return w, b.reshape(1, fan_out)


def init_params(key):
    keys = jax.random.split(key, 9)

    w1, b1 = _conv3x3_folded(keys[0], 1, CMID)            # (9,1,32), (1,32)
    w2, b2 = _conv3x3_folded(keys[1], CMID, CMID)
    w3, b3 = _conv3x3_folded(keys[2], CMID, CMID)
    w4, b4 = _conv3x3_folded(keys[3], CMID, CMID)

    # Merge conv_policy (32->2) and conv_value (32->1) into one 32->3 matmul.
    wp1x1, bp1x1 = _conv1x1_folded(keys[4], CMID, 2)
    wv1x1, bv1x1 = _conv1x1_folded(keys[6], CMID, 1)
    wh = jnp.concatenate([wp1x1, wv1x1], axis=1)          # (32, 3)
    bh = jnp.concatenate([bp1x1, bv1x1], axis=1)          # (1, 3)

    # fc_policy: fold the NCHW flatten (k = c*64 + y*8 + x) into two untiled
    # per-channel (64, 64) blocks.
    wfp, bfp = _linear(keys[5], 2 * PIX, PIX)             # (128, 64), (1, 64)
    wp0 = wfp[:PIX, :]                                     # channel-0 block
    wp1 = wfp[PIX:, :]                                     # channel-1 block

    # fc_value_1 / fc_value_2 (latter padded to 64 output lanes).
    wv1, bv1 = _linear(keys[7], PIX, CMID)                 # (64, 32), (1, 32)
    wv2, bv2 = _linear(keys[8], CMID, 1)                   # (32, 1), (1, 1)
    wv2p = jnp.zeros((CMID, PIX), jnp.float32).at[:, 0:1].set(wv2)
    bv2p = jnp.zeros((1, PIX), jnp.float32).at[:, 0:1].set(bv2)

    # conv2..4 im2col weights: (9, 32, 32) -> (288, 32), stacked per layer.
    wc = jnp.stack([w2.reshape(9 * CMID, CMID),
                    w3.reshape(9 * CMID, CMID),
                    w4.reshape(9 * CMID, CMID)], axis=0)   # (3, 288, 32)

    return dict(
        w1=w1, b1=b1,                                      # conv1 (f32, VPU path)
        wc=wc.astype(jnp.bfloat16),
        bc=jnp.stack([b2, b3, b4], axis=0),                # (3, 1, 32)
        wh=wh.astype(jnp.bfloat16), bh=bh,
        wp0=wp0, wp1=wp1, bp=bfp,
        wv1=wv1, bv1=bv1,
        wv2p=wv2p.astype(jnp.bfloat16), bv2p=bv2p,
    )


# ----------------------------------------------------------------------------
# Forward pass (mirrors Net.forward); one fused pallas_call with a batch grid.
# ----------------------------------------------------------------------------
def _pick_block_images(n):
    """Images per grid block: 8 (512 rows) when the batch splits evenly,
    otherwise the whole batch as a single block."""
    if n > 8 and n % 8 == 0:
        return 8
    return n


def net_forward(params, x):
    # Accept (H, W) or (N, 1, H, W), like the PyTorch module.
    if x.ndim == 2:
        x = x[None, None]
    x = x.astype(jnp.float32)
    n = x.shape[0]
    nb = _pick_block_images(n)
    rb = nb * PIX
    x2d = x.reshape(n * PIX, 1)       # row = img*64 + y*8 + x (NCHW order, Cin=1)

    out = pl.pallas_call(
        _net_kernel,
        out_shape=jax.ShapeDtypeStruct((n, 2 * PIX), jnp.float32),
        grid_spec=pltpu.PrefetchScalarGridSpec(
            num_scalar_prefetch=0,
            grid=(n // nb,),
            in_specs=[
                pl.BlockSpec((rb, 1), lambda i: (i, 0)),                # x rows
                pl.BlockSpec((9, 1, CMID), lambda i: (0, 0, 0)),        # w1
                pl.BlockSpec((1, CMID), lambda i: (0, 0)),              # b1
                pl.BlockSpec((3, 9 * CMID, CMID), lambda i: (0, 0, 0)), # wc
                pl.BlockSpec((3, 1, CMID), lambda i: (0, 0, 0)),        # bc
                pl.BlockSpec((CMID, 3), lambda i: (0, 0)),              # wh
                pl.BlockSpec((1, 3), lambda i: (0, 0)),                 # bh
                pl.BlockSpec((PIX, PIX), lambda i: (0, 0)),             # wp0
                pl.BlockSpec((PIX, PIX), lambda i: (0, 0)),             # wp1
                pl.BlockSpec((1, PIX), lambda i: (0, 0)),               # bp
                pl.BlockSpec((PIX, CMID), lambda i: (0, 0)),            # wv1
                pl.BlockSpec((1, CMID), lambda i: (0, 0)),              # bv1
                pl.BlockSpec((CMID, PIX), lambda i: (0, 0)),            # wv2 (padded)
                pl.BlockSpec((1, PIX), lambda i: (0, 0)),               # bv2 (padded)
            ],
            out_specs=pl.BlockSpec((nb, 2 * PIX), lambda i: (i, 0)),
            scratch_shapes=[pltpu.VMEM((rb, 9 * CMID), jnp.float32)],   # im2col
        ),
        compiler_params=pltpu.CompilerParams(
            dimension_semantics=("parallel",)),
    )(x2d, params["w1"], params["b1"], params["wc"], params["bc"],
      params["wh"], params["bh"], params["wp0"], params["wp1"], params["bp"],
      params["wv1"], params["bv1"], params["wv2p"], params["bv2p"])

    policy = out[:, :PIX]             # (n, 64) softmax
    value = out[:, PIX:PIX + 1]       # (n, 1) tanh
    return policy, value


if __name__ == "__main__":
    key = jax.random.PRNGKey(0)
    kp, kx = jax.random.split(key)
    batch = 2
    params = init_params(kp)
    x = jax.random.normal(kx, (batch, 1, BOARD, BOARD), jnp.float32)   # NCHW

    fwd = jax.jit(net_forward)
    policy, value = fwd(params, x)
    jax.block_until_ready((policy, value))

    assert policy.shape == (batch, PIX), policy.shape
    assert value.shape == (batch, 1), value.shape
    assert bool(jnp.all(jnp.isfinite(policy))) and bool(jnp.all(jnp.isfinite(value)))
    # softmax rows sum to ~1 (approx reciprocal on the EUP -> slightly loose tol)
    assert bool(jnp.allclose(jnp.sum(policy, axis=-1), 1.0, atol=2e-3))
    # tanh output bounded
    assert bool(jnp.all(jnp.abs(value) <= 1.0 + 1e-6))

    print("KERNEL_OK")
</pallas_src>

<mosaic_0001>
module attributes {stable_mosaic.version = 11 : i64} {
  func.func @_net_kernel(%arg0: i32, %arg1: memref<128x1xf32, #tpu.memory_space<vmem>>, %arg2: memref<9x1x32xf32, #tpu.memory_space<vmem>>, %arg3: memref<1x32xf32, #tpu.memory_space<vmem>>, %arg4: memref<3x288x32xbf16, #tpu.memory_space<vmem>>, %arg5: memref<3x1x32xf32, #tpu.memory_space<vmem>>, %arg6: memref<32x3xbf16, #tpu.memory_space<vmem>>, %arg7: memref<1x3xf32, #tpu.memory_space<vmem>>, %arg8: memref<64x64xf32, #tpu.memory_space<vmem>>, %arg9: memref<64x64xf32, #tpu.memory_space<vmem>>, %arg10: memref<1x64xf32, #tpu.memory_space<vmem>>, %arg11: memref<64x32xf32, #tpu.memory_space<vmem>>, %arg12: memref<1x32xf32, #tpu.memory_space<vmem>>, %arg13: memref<32x64xbf16, #tpu.memory_space<vmem>>, %arg14: memref<1x64xf32, #tpu.memory_space<vmem>>, %arg15: memref<2x128xf32, #tpu.memory_space<vmem>>, %arg16: memref<128x288xf32, #tpu.memory_space<vmem>>) attributes {dimension_semantics = [#tpu.dimension_semantics<parallel>], iteration_bounds = array<i64: 1>, scalar_prefetch = 0 : i64, scratch_operands = 1 : i64, tpu.core_type = #tpu.core_type<tc>, window_params = [{transform_indices = @transform_0, window_bounds = array<i64: 128, 1>}, {pipeline_mode = #tpu.pipeline_mode<synchronous>, transform_indices = @transform_1, window_bounds = array<i64: 9, 1, 32>}, {pipeline_mode = #tpu.pipeline_mode<synchronous>, transform_indices = @transform_2, window_bounds = array<i64: 1, 32>}, {pipeline_mode = #tpu.pipeline_mode<synchronous>, transform_indices = @transform_3, window_bounds = array<i64: 3, 288, 32>}, {pipeline_mode = #tpu.pipeline_mode<synchronous>, transform_indices = @transform_4, window_bounds = array<i64: 3, 1, 32>}, {pipeline_mode = #tpu.pipeline_mode<synchronous>, transform_indices = @transform_5, window_bounds = array<i64: 32, 3>}, {pipeline_mode = #tpu.pipeline_mode<synchronous>, transform_indices = @transform_6, window_bounds = array<i64: 1, 3>}, {pipeline_mode = #tpu.pipeline_mode<synchronous>, transform_indices = @transform_7, window_bounds = array<i64: 64, 64>}, {pipeline_mode = #tpu.pipeline_mode<synchronous>, transform_indices = @transform_8, window_bounds = array<i64: 64, 64>}, {pipeline_mode = #tpu.pipeline_mode<synchronous>, transform_indices = @transform_9, window_bounds = array<i64: 1, 64>}, {pipeline_mode = #tpu.pipeline_mode<synchronous>, transform_indices = @transform_10, window_bounds = array<i64: 64, 32>}, {pipeline_mode = #tpu.pipeline_mode<synchronous>, transform_indices = @transform_11, window_bounds = array<i64: 1, 32>}, {pipeline_mode = #tpu.pipeline_mode<synchronous>, transform_indices = @transform_12, window_bounds = array<i64: 32, 64>}, {pipeline_mode = #tpu.pipeline_mode<synchronous>, transform_indices = @transform_13, window_bounds = array<i64: 1, 64>}, {transform_indices = @transform_14, window_bounds = array<i64: 2, 128>}]} {
    %0 = tpu.iota {dimensions = array<i32: 0>} : vector<128x1xi32>
    %c3_i32 = arith.constant 3 : i32
    %1 = vector.broadcast %c3_i32 : i32 to vector<128x1xi32>
    %2 = arith.shrsi %0, %1 : vector<128x1xi32>
    %c7_i32 = arith.constant 7 : i32
    %3 = vector.broadcast %c7_i32 : i32 to vector<128x1xi32>
    %4 = arith.andi %2, %3 : vector<128x1xi32>
    %c7_i32_0 = arith.constant 7 : i32
    %5 = vector.broadcast %c7_i32_0 : i32 to vector<128x1xi32>
    %6 = arith.andi %0, %5 : vector<128x1xi32>
    %c-1_i32 = arith.constant -1 : i32
    %7 = vector.broadcast %c-1_i32 : i32 to vector<128x1xi32>
    %8 = arith.addi %4, %7 : vector<128x1xi32>
    %c-1_i32_1 = arith.constant -1 : i32
    %9 = vector.broadcast %c-1_i32_1 : i32 to vector<128x1xi32>
    %10 = arith.addi %6, %9 : vector<128x1xi32>
    %c0_i32 = arith.constant 0 : i32
    %11 = vector.broadcast %c0_i32 : i32 to vector<128x1xi32>
    %12 = arith.cmpi sge, %8, %11 : vector<128x1xi32>
    %c8_i32 = arith.constant 8 : i32
    %13 = vector.broadcast %c8_i32 : i32 to vector<128x1xi32>
    %14 = arith.cmpi slt, %8, %13 : vector<128x1xi32>
    %15 = arith.andi %12, %14 : vector<128x1xi1>
    %c0_i32_2 = arith.constant 0 : i32
    %16 = vector.broadcast %c0_i32_2 : i32 to vector<128x1xi32>
    %17 = arith.cmpi sge, %10, %16 : vector<128x1xi32>
    %18 = arith.andi %15, %17 : vector<128x1xi1>
    %c8_i32_3 = arith.constant 8 : i32
    %19 = vector.broadcast %c8_i32_3 : i32 to vector<128x1xi32>
    %20 = arith.cmpi slt, %10, %19 : vector<128x1xi32>
    %21 = arith.andi %18, %20 : vector<128x1xi1>
    %cst = arith.constant 1.000000e+00 : f32
    %cst_4 = arith.constant 0.000000e+00 : f32
    %22 = vector.broadcast %cst : f32 to vector<128x1xf32>
    %23 = vector.broadcast %cst_4 : f32 to vector<128x1xf32>
    %24 = arith.select %21, %22, %23 : vector<128x1xi1>, vector<128x1xf32>
    %c-1_i32_5 = arith.constant -1 : i32
    %25 = vector.broadcast %c-1_i32_5 : i32 to vector<128x1xi32>
    %26 = arith.addi %4, %25 : vector<128x1xi32>
    %c0_i32_6 = arith.constant 0 : i32
    %27 = vector.broadcast %c0_i32_6 : i32 to vector<128x1xi32>
    %28 = arith.addi %6, %27 : vector<128x1xi32>
    %c0_i32_7 = arith.constant 0 : i32
    %29 = vector.broadcast %c0_i32_7 : i32 to vector<128x1xi32>
    %30 = arith.cmpi sge, %26, %29 : vector<128x1xi32>
    %c8_i32_8 = arith.constant 8 : i32
    %31 = vector.broadcast %c8_i32_8 : i32 to vector<128x1xi32>
    %32 = arith.cmpi slt, %26, %31 : vector<128x1xi32>
    %33 = arith.andi %30, %32 : vector<128x1xi1>
    %c0_i32_9 = arith.constant 0 : i32
    %34 = vector.broadcast %c0_i32_9 : i32 to vector<128x1xi32>
    %35 = arith.cmpi sge, %28, %34 : vector<128x1xi32>
    %36 = arith.andi %33, %35 : vector<128x1xi1>
    %c8_i32_10 = arith.constant 8 : i32
    %37 = vector.broadcast %c8_i32_10 : i32 to vector<128x1xi32>
    %38 = arith.cmpi slt, %28, %37 : vector<128x1xi32>
    %39 = arith.andi %36, %38 : vector<128x1xi1>
    %cst_11 = arith.constant 1.000000e+00 : f32
    %cst_12 = arith.constant 0.000000e+00 : f32
    %40 = vector.broadcast %cst_11 : f32 to vector<128x1xf32>
    %41 = vector.broadcast %cst_12 : f32 to vector<128x1xf32>
    %42 = arith.select %39, %40, %41 : vector<128x1xi1>, vector<128x1xf32>
    %c-1_i32_13 = arith.constant -1 : i32
    %43 = vector.broadcast %c-1_i32_13 : i32 to vector<128x1xi32>
    %44 = arith.addi %4, %43 : vector<128x1xi32>
    %c1_i32 = arith.constant 1 : i32
    %45 = vector.broadcast %c1_i32 : i32 to vector<128x1xi32>
    %46 = arith.addi %6, %45 : vector<128x1xi32>
    %c0_i32_14 = arith.constant 0 : i32
    %47 = vector.broadcast %c0_i32_14 : i32 to vector<128x1xi32>
    %48 = arith.cmpi sge, %44, %47 : vector<128x1xi32>
    %c8_i32_15 = arith.constant 8 : i32
    %49 = vector.broadcast %c8_i32_15 : i32 to vector<128x1xi32>
    %50 = arith.cmpi slt, %44, %49 : vector<128x1xi32>
    %51 = arith.andi %48, %50 : vector<128x1xi1>
    %c0_i32_16 = arith.constant 0 : i32
    %52 = vector.broadcast %c0_i32_16 : i32 to vector<128x1xi32>
    %53 = arith.cmpi sge, %46, %52 : vector<128x1xi32>
    %54 = arith.andi %51, %53 : vector<128x1xi1>
    %c8_i32_17 = arith.constant 8 : i32
    %55 = vector.broadcast %c8_i32_17 : i32 to vector<128x1xi32>
    %56 = arith.cmpi slt, %46, %55 : vector<128x1xi32>
    %57 = arith.andi %54, %56 : vector<128x1xi1>
    %cst_18 = arith.constant 1.000000e+00 : f32
    %cst_19 = arith.constant 0.000000e+00 : f32
    %58 = vector.broadcast %cst_18 : f32 to vector<128x1xf32>
    %59 = vector.broadcast %cst_19 : f32 to vector<128x1xf32>
    %60 = arith.select %57, %58, %59 : vector<128x1xi1>, vector<128x1xf32>
    %c0_i32_20 = arith.constant 0 : i32
    %61 = vector.broadcast %c0_i32_20 : i32 to vector<128x1xi32>
    %62 = arith.addi %4, %61 : vector<128x1xi32>
    %c-1_i32_21 = arith.constant -1 : i32
    %63 = vector.broadcast %c-1_i32_21 : i32 to vector<128x1xi32>
    %64 = arith.addi %6, %63 : vector<128x1xi32>
    %c0_i32_22 = arith.constant 0 : i32
    %65 = vector.broadcast %c0_i32_22 : i32 to vector<128x1xi32>
    %66 = arith.cmpi sge, %62, %65 : vector<128x1xi32>
    %c8_i32_23 = arith.constant 8 : i32
    %67 = vector.broadcast %c8_i32_23 : i32 to vector<128x1xi32>
    %68 = arith.cmpi slt, %62, %67 : vector<128x1xi32>
    %69 = arith.andi %66, %68 : vector<128x1xi1>
    %c0_i32_24 = arith.constant 0 : i32
    %70 = vector.broadcast %c0_i32_24 : i32 to vector<128x1xi32>
    %71 = arith.cmpi sge, %64, %70 : vector<128x1xi32>
    %72 = arith.andi %69, %71 : vector<128x1xi1>
    %c8_i32_25 = arith.constant 8 : i32
    %73 = vector.broadcast %c8_i32_25 : i32 to vector<128x1xi32>
    %74 = arith.cmpi slt, %64, %73 : vector<128x1xi32>
    %75 = arith.andi %72, %74 : vector<128x1xi1>
    %cst_26 = arith.constant 1.000000e+00 : f32
    %cst_27 = arith.constant 0.000000e+00 : f32
    %76 = vector.broadcast %cst_26 : f32 to vector<128x1xf32>
    %77 = vector.broadcast %cst_27 : f32 to vector<128x1xf32>
    %78 = arith.select %75, %76, %77 : vector<128x1xi1>, vector<128x1xf32>
    %c0_i32_28 = arith.constant 0 : i32
    %79 = vector.broadcast %c0_i32_28 : i32 to vector<128x1xi32>
    %80 = arith.addi %4, %79 : vector<128x1xi32>
    %c0_i32_29 = arith.constant 0 : i32
    %81 = vector.broadcast %c0_i32_29 : i32 to vector<128x1xi32>
    %82 = arith.addi %6, %81 : vector<128x1xi32>
    %c0_i32_30 = arith.constant 0 : i32
    %83 = vector.broadcast %c0_i32_30 : i32 to vector<128x1xi32>
    %84 = arith.cmpi sge, %80, %83 : vector<128x1xi32>
    %c8_i32_31 = arith.constant 8 : i32
    %85 = vector.broadcast %c8_i32_31 : i32 to vector<128x1xi32>
    %86 = arith.cmpi slt, %80, %85 : vector<128x1xi32>
    %87 = arith.andi %84, %86 : vector<128x1xi1>
    %c0_i32_32 = arith.constant 0 : i32
    %88 = vector.broadcast %c0_i32_32 : i32 to vector<128x1xi32>
    %89 = arith.cmpi sge, %82, %88 : vector<128x1xi32>
    %90 = arith.andi %87, %89 : vector<128x1xi1>
    %c8_i32_33 = arith.constant 8 : i32
    %91 = vector.broadcast %c8_i32_33 : i32 to vector<128x1xi32>
    %92 = arith.cmpi slt, %82, %91 : vector<128x1xi32>
    %93 = arith.andi %90, %92 : vector<128x1xi1>
    %cst_34 = arith.constant 1.000000e+00 : f32
    %cst_35 = arith.constant 0.000000e+00 : f32
    %94 = vector.broadcast %cst_34 : f32 to vector<128x1xf32>
    %95 = vector.broadcast %cst_35 : f32 to vector<128x1xf32>
    %96 = arith.select %93, %94, %95 : vector<128x1xi1>, vector<128x1xf32>
    %c0_i32_36 = arith.constant 0 : i32
    %97 = vector.broadcast %c0_i32_36 : i32 to vector<128x1xi32>
    %98 = arith.addi %4, %97 : vector<128x1xi32>
    %c1_i32_37 = arith.constant 1 : i32
    %99 = vector.broadcast %c1_i32_37 : i32 to vector<128x1xi32>
    %100 = arith.addi %6, %99 : vector<128x1xi32>
    %c0_i32_38 = arith.constant 0 : i32
    %101 = vector.broadcast %c0_i32_38 : i32 to vector<128x1xi32>
    %102 = arith.cmpi sge, %98, %101 : vector<128x1xi32>
    %c8_i32_39 = arith.constant 8 : i32
    %103 = vector.broadcast %c8_i32_39 : i32 to vector<128x1xi32>
    %104 = arith.cmpi slt, %98, %103 : vector<128x1xi32>
    %105 = arith.andi %102, %104 : vector<128x1xi1>
    %c0_i32_40 = arith.constant 0 : i32
    %106 = vector.broadcast %c0_i32_40 : i32 to vector<128x1xi32>
    %107 = arith.cmpi sge, %100, %106 : vector<128x1xi32>
    %108 = arith.andi %105, %107 : vector<128x1xi1>
    %c8_i32_41 = arith.constant 8 : i32
    %109 = vector.broadcast %c8_i32_41 : i32 to vector<128x1xi32>
    %110 = arith.cmpi slt, %100, %109 : vector<128x1xi32>
    %111 = arith.andi %108, %110 : vector<128x1xi1>
    %cst_42 = arith.constant 1.000000e+00 : f32
    %cst_43 = arith.constant 0.000000e+00 : f32
    %112 = vector.broadcast %cst_42 : f32 to vector<128x1xf32>
    %113 = vector.broadcast %cst_43 : f32 to vector<128x1xf32>
    %114 = arith.select %111, %112, %113 : vector<128x1xi1>, vector<128x1xf32>
    %c1_i32_44 = arith.constant 1 : i32
    %115 = vector.broadcast %c1_i32_44 : i32 to vector<128x1xi32>
    %116 = arith.addi %4, %115 : vector<128x1xi32>
    %c-1_i32_45 = arith.constant -1 : i32
    %117 = vector.broadcast %c-1_i32_45 : i32 to vector<128x1xi32>
    %118 = arith.addi %6, %117 : vector<128x1xi32>
    %c0_i32_46 = arith.constant 0 : i32
    %119 = vector.broadcast %c0_i32_46 : i32 to vector<128x1xi32>
    %120 = arith.cmpi sge, %116, %119 : vector<128x1xi32>
    %c8_i32_47 = arith.constant 8 : i32
    %121 = vector.broadcast %c8_i32_47 : i32 to vector<128x1xi32>
    %122 = arith.cmpi slt, %116, %121 : vector<128x1xi32>
    %123 = arith.andi %120, %122 : vector<128x1xi1>
    %c0_i32_48 = arith.constant 0 : i32
    %124 = vector.broadcast %c0_i32_48 : i32 to vector<128x1xi32>
    %125 = arith.cmpi sge, %118, %124 : vector<128x1xi32>
    %126 = arith.andi %123, %125 : vector<128x1xi1>
    %c8_i32_49 = arith.constant 8 : i32
    %127 = vector.broadcast %c8_i32_49 : i32 to vector<128x1xi32>
    %128 = arith.cmpi slt, %118, %127 : vector<128x1xi32>
    %129 = arith.andi %126, %128 : vector<128x1xi1>
    %cst_50 = arith.constant 1.000000e+00 : f32
    %cst_51 = arith.constant 0.000000e+00 : f32
    %130 = vector.broadcast %cst_50 : f32 to vector<128x1xf32>
    %131 = vector.broadcast %cst_51 : f32 to vector<128x1xf32>
    %132 = arith.select %129, %130, %131 : vector<128x1xi1>, vector<128x1xf32>
    %c1_i32_52 = arith.constant 1 : i32
    %133 = vector.broadcast %c1_i32_52 : i32 to vector<128x1xi32>
    %134 = arith.addi %4, %133 : vector<128x1xi32>
    %c0_i32_53 = arith.constant 0 : i32
    %135 = vector.broadcast %c0_i32_53 : i32 to vector<128x1xi32>
    %136 = arith.addi %6, %135 : vector<128x1xi32>
    %c0_i32_54 = arith.constant 0 : i32
    %137 = vector.broadcast %c0_i32_54 : i32 to vector<128x1xi32>
    %138 = arith.cmpi sge, %134, %137 : vector<128x1xi32>
    %c8_i32_55 = arith.constant 8 : i32
    %139 = vector.broadcast %c8_i32_55 : i32 to vector<128x1xi32>
    %140 = arith.cmpi slt, %134, %139 : vector<128x1xi32>
    %141 = arith.andi %138, %140 : vector<128x1xi1>
    %c0_i32_56 = arith.constant 0 : i32
    %142 = vector.broadcast %c0_i32_56 : i32 to vector<128x1xi32>
    %143 = arith.cmpi sge, %136, %142 : vector<128x1xi32>
    %144 = arith.andi %141, %143 : vector<128x1xi1>
    %c8_i32_57 = arith.constant 8 : i32
    %145 = vector.broadcast %c8_i32_57 : i32 to vector<128x1xi32>
    %146 = arith.cmpi slt, %136, %145 : vector<128x1xi32>
    %147 = arith.andi %144, %146 : vector<128x1xi1>
    %cst_58 = arith.constant 1.000000e+00 : f32
    %cst_59 = arith.constant 0.000000e+00 : f32
    %148 = vector.broadcast %cst_58 : f32 to vector<128x1xf32>
    %149 = vector.broadcast %cst_59 : f32 to vector<128x1xf32>
    %150 = arith.select %147, %148, %149 : vector<128x1xi1>, vector<128x1xf32>
    %c1_i32_60 = arith.constant 1 : i32
    %151 = vector.broadcast %c1_i32_60 : i32 to vector<128x1xi32>
    %152 = arith.addi %4, %151 : vector<128x1xi32>
    %c1_i32_61 = arith.constant 1 : i32
    %153 = vector.broadcast %c1_i32_61 : i32 to vector<128x1xi32>
    %154 = arith.addi %6, %153 : vector<128x1xi32>
    %c0_i32_62 = arith.constant 0 : i32
    %155 = vector.broadcast %c0_i32_62 : i32 to vector<128x1xi32>
    %156 = arith.cmpi sge, %152, %155 : vector<128x1xi32>
    %c8_i32_63 = arith.constant 8 : i32
    %157 = vector.broadcast %c8_i32_63 : i32 to vector<128x1xi32>
    %158 = arith.cmpi slt, %152, %157 : vector<128x1xi32>
    %159 = arith.andi %156, %158 : vector<128x1xi1>
    %c0_i32_64 = arith.constant 0 : i32
    %160 = vector.broadcast %c0_i32_64 : i32 to vector<128x1xi32>
    %161 = arith.cmpi sge, %154, %160 : vector<128x1xi32>
    %162 = arith.andi %159, %161 : vector<128x1xi1>
    %c8_i32_65 = arith.constant 8 : i32
    %163 = vector.broadcast %c8_i32_65 : i32 to vector<128x1xi32>
    %164 = arith.cmpi slt, %154, %163 : vector<128x1xi32>
    %165 = arith.andi %162, %164 : vector<128x1xi1>
    %cst_66 = arith.constant 1.000000e+00 : f32
    %cst_67 = arith.constant 0.000000e+00 : f32
    %166 = vector.broadcast %cst_66 : f32 to vector<128x1xf32>
    %167 = vector.broadcast %cst_67 : f32 to vector<128x1xf32>
    %168 = arith.select %165, %166, %167 : vector<128x1xi1>, vector<128x1xf32>
    %c0 = arith.constant 0 : index
    %c0_68 = arith.constant 0 : index
    %169 = vector.load %arg1[%c0, %c0_68] : memref<128x1xf32, #tpu.memory_space<vmem>>, vector<128x1xf32>
    %cst_69 = arith.constant 1.000000e+00 : f32
    %170 = vector.broadcast %cst_69 : f32 to vector<1x32xf32>
    %171 = vector.broadcast %169 : vector<128x1xf32> to vector<128x32xf32>
    %172 = vector.broadcast %170 : vector<1x32xf32> to vector<128x32xf32>
    %173 = arith.mulf %171, %172 : vector<128x32xf32>
    %cst_70 = arith.constant 0.000000e+00 : f32
    %174 = vector.broadcast %cst_70 : f32 to vector<128x32xf32>
    %c9_i32 = arith.constant 9 : i32
    %175 = tpu.dynamic_rotate %173 by %c9_i32 dim 0 : vector<128x32xf32>, i32 -> vector<128x32xf32>
    %176 = vector.broadcast %24 : vector<128x1xf32> to vector<128x32xf32>
    %177 = arith.mulf %175, %176 : vector<128x32xf32>
    %c0_71 = arith.constant 0 : index
    %c0_72 = arith.constant 0 : index
    %c0_73 = arith.constant 0 : index
    %178 = vector.load %arg2[%c0_71, %c0_72, %c0_73] : memref<9x1x32xf32, #tpu.memory_space<vmem>>, vector<1x1x32xf32>
    %179 = vector.shape_cast %178 : vector<1x1x32xf32> to vector<1x32xf32>
    %180 = vector.broadcast %179 : vector<1x32xf32> to vector<128x32xf32>
    %181 = arith.mulf %177, %180 : vector<128x32xf32>
    %182 = arith.addf %174, %181 : vector<128x32xf32>
    %c8_i32_74 = arith.constant 8 : i32
    %183 = tpu.dynamic_rotate %173 by %c8_i32_74 dim 0 : vector<128x32xf32>, i32 -> vector<128x32xf32>
    %184 = vector.broadcast %42 : vector<128x1xf32> to vector<128x32xf32>
    %185 = arith.mulf %183, %184 : vector<128x32xf32>
    %c1 = arith.constant 1 : index
    %c0_75 = arith.constant 0 : index
    %c0_76 = arith.constant 0 : index
    %186 = vector.load %arg2[%c1, %c0_75, %c0_76] : memref<9x1x32xf32, #tpu.memory_space<vmem>>, vector<1x1x32xf32>
    %187 = vector.shape_cast %186 : vector<1x1x32xf32> to vector<1x32xf32>
    %188 = vector.broadcast %187 : vector<1x32xf32> to vector<128x32xf32>
    %189 = arith.mulf %185, %188 : vector<128x32xf32>
    %190 = arith.addf %182, %189 : vector<128x32xf32>
    %c7_i32_77 = arith.constant 7 : i32
    %191 = tpu.dynamic_rotate %173 by %c7_i32_77 dim 0 : vector<128x32xf32>, i32 -> vector<128x32xf32>
    %192 = vector.broadcast %60 : vector<128x1xf32> to vector<128x32xf32>
    %193 = arith.mulf %191, %192 : vector<128x32xf32>
    %c2 = arith.constant 2 : index
    %c0_78 = arith.constant 0 : index
    %c0_79 = arith.constant 0 : index
    %194 = vector.load %arg2[%c2, %c0_78, %c0_79] : memref<9x1x32xf32, #tpu.memory_space<vmem>>, vector<1x1x32xf32>
    %195 = vector.shape_cast %194 : vector<1x1x32xf32> to vector<1x32xf32>
    %196 = vector.broadcast %195 : vector<1x32xf32> to vector<128x32xf32>
    %197 = arith.mulf %193, %196 : vector<128x32xf32>
    %198 = arith.addf %190, %197 : vector<128x32xf32>
    %c1_i32_80 = arith.constant 1 : i32
    %199 = tpu.dynamic_rotate %173 by %c1_i32_80 dim 0 : vector<128x32xf32>, i32 -> vector<128x32xf32>
    %200 = vector.broadcast %78 : vector<128x1xf32> to vector<128x32xf32>
    %201 = arith.mulf %199, %200 : vector<128x32xf32>
    %c3 = arith.constant 3 : index
    %c0_81 = arith.constant 0 : index
    %c0_82 = arith.constant 0 : index
    %202 = vector.load %arg2[%c3, %c0_81, %c0_82] : memref<9x1x32xf32, #tpu.memory_space<vmem>>, vector<1x1x32xf32>
    %203 = vector.shape_cast %202 : vector<1x1x32xf32> to vector<1x32xf32>
    %204 = vector.broadcast %203 : vector<1x32xf32> to vector<128x32xf32>
    %205 = arith.mulf %201, %204 : vector<128x32xf32>
    %206 = arith.addf %198, %205 : vector<128x32xf32>
    %207 = vector.broadcast %96 : vector<128x1xf32> to vector<128x32xf32>
    %208 = arith.mulf %173, %207 : vector<128x32xf32>
    %c4 = arith.constant 4 : index
    %c0_83 = arith.constant 0 : index
    %c0_84 = arith.constant 0 : index
    %209 = vector.load %arg2[%c4, %c0_83, %c0_84] : memref<9x1x32xf32, #tpu.memory_space<vmem>>, vector<1x1x32xf32>
    %210 = vector.shape_cast %209 : vector<1x1x32xf32> to vector<1x32xf32>
    %211 = vector.broadcast %210 : vector<1x32xf32> to vector<128x32xf32>
    %212 = arith.mulf %208, %211 : vector<128x32xf32>
    %213 = arith.addf %206, %212 : vector<128x32xf32>
    %c127_i32 = arith.constant 127 : i32
    %214 = tpu.dynamic_rotate %173 by %c127_i32 dim 0 : vector<128x32xf32>, i32 -> vector<128x32xf32>
    %215 = vector.broadcast %114 : vector<128x1xf32> to vector<128x32xf32>
    %216 = arith.mulf %214, %215 : vector<128x32xf32>
    %c5 = arith.constant 5 : index
    %c0_85 = arith.constant 0 : index
    %c0_86 = arith.constant 0 : index
    %217 = vector.load %arg2[%c5, %c0_85, %c0_86] : memref<9x1x32xf32, #tpu.memory_space<vmem>>, vector<1x1x32xf32>
    %218 = vector.shape_cast %217 : vector<1x1x32xf32> to vector<1x32xf32>
    %219 = vector.broadcast %218 : vector<1x32xf32> to vector<128x32xf32>
    %220 = arith.mulf %216, %219 : vector<128x32xf32>
    %221 = arith.addf %213, %220 : vector<128x32xf32>
    %c121_i32 = arith.constant 121 : i32
    %222 = tpu.dynamic_rotate %173 by %c121_i32 dim 0 : vector<128x32xf32>, i32 -> vector<128x32xf32>
    %223 = vector.broadcast %132 : vector<128x1xf32> to vector<128x32xf32>
    %224 = arith.mulf %222, %223 : vector<128x32xf32>
    %c6 = arith.constant 6 : index
    %c0_87 = arith.constant 0 : index
    %c0_88 = arith.constant 0 : index
    %225 = vector.load %arg2[%c6, %c0_87, %c0_88] : memref<9x1x32xf32, #tpu.memory_space<vmem>>, vector<1x1x32xf32>
    %226 = vector.shape_cast %225 : vector<1x1x32xf32> to vector<1x32xf32>
    %227 = vector.broadcast %226 : vector<1x32xf32> to vector<128x32xf32>
    %228 = arith.mulf %224, %227 : vector<128x32xf32>
    %229 = arith.addf %221, %228 : vector<128x32xf32>
    %c120_i32 = arith.constant 120 : i32
    %230 = tpu.dynamic_rotate %173 by %c120_i32 dim 0 : vector<128x32xf32>, i32 -> vector<128x32xf32>
    %231 = vector.broadcast %150 : vector<128x1xf32> to vector<128x32xf32>
    %232 = arith.mulf %230, %231 : vector<128x32xf32>
    %c7 = arith.constant 7 : index
    %c0_89 = arith.constant 0 : index
    %c0_90 = arith.constant 0 : index
    %233 = vector.load %arg2[%c7, %c0_89, %c0_90] : memref<9x1x32xf32, #tpu.memory_space<vmem>>, vector<1x1x32xf32>
    %234 = vector.shape_cast %233 : vector<1x1x32xf32> to vector<1x32xf32>
    %235 = vector.broadcast %234 : vector<1x32xf32> to vector<128x32xf32>
    %236 = arith.mulf %232, %235 : vector<128x32xf32>
    %237 = arith.addf %229, %236 : vector<128x32xf32>
    %c119_i32 = arith.constant 119 : i32
    %238 = tpu.dynamic_rotate %173 by %c119_i32 dim 0 : vector<128x32xf32>, i32 -> vector<128x32xf32>
    %239 = vector.broadcast %168 : vector<128x1xf32> to vector<128x32xf32>
    %240 = arith.mulf %238, %239 : vector<128x32xf32>
    %c8 = arith.constant 8 : index
    %c0_91 = arith.constant 0 : index
    %c0_92 = arith.constant 0 : index
    %241 = vector.load %arg2[%c8, %c0_91, %c0_92] : memref<9x1x32xf32, #tpu.memory_space<vmem>>, vector<1x1x32xf32>
    %242 = vector.shape_cast %241 : vector<1x1x32xf32> to vector<1x32xf32>
    %243 = vector.broadcast %242 : vector<1x32xf32> to vector<128x32xf32>
    %244 = arith.mulf %240, %243 : vector<128x32xf32>
    %245 = arith.addf %237, %244 : vector<128x32xf32>
    %c0_93 = arith.constant 0 : index
    %c0_94 = arith.constant 0 : index
    %246 = vector.load %arg3[%c0_93, %c0_94] : memref<1x32xf32, #tpu.memory_space<vmem>>, vector<1x32xf32>
    %247 = vector.broadcast %246 : vector<1x32xf32> to vector<128x32xf32>
    %248 = arith.addf %245, %247 : vector<128x32xf32>
    %cst_95 = arith.constant 0.000000e+00 : f32
    %249 = vector.broadcast %cst_95 : f32 to vector<128x32xf32>
    %250 = arith.maximumf %248, %249 : vector<128x32xf32>
    %c9_i32_96 = arith.constant 9 : i32
    %251 = tpu.dynamic_rotate %250 by %c9_i32_96 dim 0 : vector<128x32xf32>, i32 -> vector<128x32xf32>
    %252 = vector.broadcast %24 : vector<128x1xf32> to vector<128x32xf32>
    %253 = arith.mulf %251, %252 : vector<128x32xf32>
    %c0_97 = arith.constant 0 : index
    %c0_98 = arith.constant 0 : index
    %254 = vector.load %arg16[%c0_97, %c0_98] : memref<128x288xf32, #tpu.memory_space<vmem>>, vector<128x32xf32>
    tpu.vector_store %arg16[%c0_97, %c0_98], %253 {strides = array<i32>} : memref<128x288xf32, #tpu.memory_space<vmem>>, vector<128x32xf32>,
    %c8_i32_99 = arith.constant 8 : i32
    %255 = tpu.dynamic_rotate %250 by %c8_i32_99 dim 0 : vector<128x32xf32>, i32 -> vector<128x32xf32>
    %256 = vector.broadcast %42 : vector<128x1xf32> to vector<128x32xf32>
    %257 = arith.mulf %255, %256 : vector<128x32xf32>
    %c0_100 = arith.constant 0 : index
    %c32 = arith.constant 32 : index
    %258 = vector.load %arg16[%c0_100, %c32] : memref<128x288xf32, #tpu.memory_space<vmem>>, vector<128x32xf32>
    tpu.vector_store %arg16[%c0_100, %c32], %257 {strides = array<i32>} : memref<128x288xf32, #tpu.memory_space<vmem>>, vector<128x32xf32>,
    %c7_i32_101 = arith.constant 7 : i32
    %259 = tpu.dynamic_rotate %250 by %c7_i32_101 dim 0 : vector<128x32xf32>, i32 -> vector<128x32xf32>
    %260 = vector.broadcast %60 : vector<128x1xf32> to vector<128x32xf32>
    %261 = arith.mulf %259, %260 : vector<128x32xf32>
    %c0_102 = arith.constant 0 : index
    %c64 = arith.constant 64 : index
    %262 = vector.load %arg16[%c0_102, %c64] : memref<128x288xf32, #tpu.memory_space<vmem>>, vector<128x32xf32>
    tpu.vector_store %arg16[%c0_102, %c64], %261 {strides = array<i32>} : memref<128x288xf32, #tpu.memory_space<vmem>>, vector<128x32xf32>,
    %c1_i32_103 = arith.constant 1 : i32
    %263 = tpu.dynamic_rotate %250 by %c1_i32_103 dim 0 : vector<128x32xf32>, i32 -> vector<128x32xf32>
    %264 = vector.broadcast %78 : vector<128x1xf32> to vector<128x32xf32>
    %265 = arith.mulf %263, %264 : vector<128x32xf32>
    %c0_104 = arith.constant 0 : index
    %c96 = arith.constant 96 : index
    %266 = vector.load %arg16[%c0_104, %c96] : memref<128x288xf32, #tpu.memory_space<vmem>>, vector<128x32xf32>
    tpu.vector_store %arg16[%c0_104, %c96], %265 {strides = array<i32>} : memref<128x288xf32, #tpu.memory_space<vmem>>, vector<128x32xf32>,
    %267 = vector.broadcast %96 : vector<128x1xf32> to vector<128x32xf32>
    %268 = arith.mulf %250, %267 : vector<128x32xf32>
    %c0_105 = arith.constant 0 : index
    %c128 = arith.constant 128 : index
    %269 = vector.load %arg16[%c0_105, %c128] : memref<128x288xf32, #tpu.memory_space<vmem>>, vector<128x32xf32>
    tpu.vector_store %arg16[%c0_105, %c128], %268 {strides = array<i32>} : memref<128x288xf32, #tpu.memory_space<vmem>>, vector<128x32xf32>,
    %c127_i32_106 = arith.constant 127 : i32
    %270 = tpu.dynamic_rotate %250 by %c127_i32_106 dim 0 : vector<128x32xf32>, i32 -> vector<128x32xf32>
    %271 = vector.broadcast %114 : vector<128x1xf32> to vector<128x32xf32>
    %272 = arith.mulf %270, %271 : vector<128x32xf32>
    %c0_107 = arith.constant 0 : index
    %c160 = arith.constant 160 : index
    %273 = vector.load %arg16[%c0_107, %c160] : memref<128x288xf32, #tpu.memory_space<vmem>>, vector<128x32xf32>
    tpu.vector_store %arg16[%c0_107, %c160], %272 {strides = array<i32>} : memref<128x288xf32, #tpu.memory_space<vmem>>, vector<128x32xf32>,
    %c121_i32_108 = arith.constant 121 : i32
    %274 = tpu.dynamic_rotate %250 by %c121_i32_108 dim 0 : vector<128x32xf32>, i32 -> vector<128x32xf32>
    %275 = vector.broadcast %132 : vector<128x1xf32> to vector<128x32xf32>
    %276 = arith.mulf %274, %275 : vector<128x32xf32>
    %c0_109 = arith.constant 0 : index
    %c192 = arith.constant 192 : index
    %277 = vector.load %arg16[%c0_109, %c192] : memref<128x288xf32, #tpu.memory_space<vmem>>, vector<128x32xf32>
    tpu.vector_store %arg16[%c0_109, %c192], %276 {strides = array<i32>} : memref<128x288xf32, #tpu.memory_space<vmem>>, vector<128x32xf32>,
    %c120_i32_110 = arith.constant 120 : i32
    %278 = tpu.dynamic_rotate %250 by %c120_i32_110 dim 0 : vector<128x32xf32>, i32 -> vector<128x32xf32>
    %279 = vector.broadcast %150 : vector<128x1xf32> to vector<128x32xf32>
    %280 = arith.mulf %278, %279 : vector<128x32xf32>
    %c0_111 = arith.constant 0 : index
    %c224 = arith.constant 224 : index
    %281 = vector.load %arg16[%c0_111, %c224] : memref<128x288xf32, #tpu.memory_space<vmem>>, vector<128x32xf32>
    tpu.vector_store %arg16[%c0_111, %c224], %280 {strides = array<i32>} : memref<128x288xf32, #tpu.memory_space<vmem>>, vector<128x32xf32>,
    %c119_i32_112 = arith.constant 119 : i32
    %282 = tpu.dynamic_rotate %250 by %c119_i32_112 dim 0 : vector<128x32xf32>, i32 -> vector<128x32xf32>
    %283 = vector.broadcast %168 : vector<128x1xf32> to vector<128x32xf32>
    %284 = arith.mulf %282, %283 : vector<128x32xf32>
    %c0_113 = arith.constant 0 : index
    %c256 = arith.constant 256 : index
    %285 = vector.load %arg16[%c0_113, %c256] : memref<128x288xf32, #tpu.memory_space<vmem>>, vector<128x32xf32>
    tpu.vector_store %arg16[%c0_113, %c256], %284 {strides = array<i32>} : memref<128x288xf32, #tpu.memory_space<vmem>>, vector<128x32xf32>,
    %c0_114 = arith.constant 0 : index
    %c0_115 = arith.constant 0 : index
    %286 = vector.load %arg16[%c0_114, %c0_115] : memref<128x288xf32, #tpu.memory_space<vmem>>, vector<128x288xf32>
    %287 = arith.truncf %286 : vector<128x288xf32> to vector<128x288xbf16>
    %c0_116 = arith.constant 0 : index
    %c0_117 = arith.constant 0 : index
    %c0_118 = arith.constant 0 : index
    %288 = vector.load %arg4[%c0_116, %c0_117, %c0_118] : memref<3x288x32xbf16, #tpu.memory_space<vmem>>, vector<1x288x32xbf16>
    %289 = vector.shape_cast %288 : vector<1x288x32xbf16> to vector<288x32xbf16>
    %cst_119 = arith.constant dense<0.000000e+00> : vector<128x32xf32>
    %290 = tpu.matmul %287, %289, %cst_119 {dimension_numbers = #tpu.dot_dimension_numbers<[1], [0], [0], [1], [0, 0, 1, 1], [], []>} : vector<128x288xbf16>, vector<288x32xbf16>, vector<128x32xf32> -> vector<128x32xf32>
    %c0_120 = arith.constant 0 : index
    %c0_121 = arith.constant 0 : index
    %c0_122 = arith.constant 0 : index
    %291 = vector.load %arg5[%c0_120, %c0_121, %c0_122] : memref<3x1x32xf32, #tpu.memory_space<vmem>>, vector<1x1x32xf32>
    %292 = vector.shape_cast %291 : vector<1x1x32xf32> to vector<1x32xf32>
    %293 = vector.broadcast %292 : vector<1x32xf32> to vector<128x32xf32>
    %294 = arith.addf %290, %293 : vector<128x32xf32>
    %cst_123 = arith.constant 0.000000e+00 : f32
    %295 = vector.broadcast %cst_123 : f32 to vector<128x32xf32>
    %296 = arith.maximumf %294, %295 : vector<128x32xf32>
    %c9_i32_124 = arith.constant 9 : i32
    %297 = tpu.dynamic_rotate %296 by %c9_i32_124 dim 0 : vector<128x32xf32>, i32 -> vector<128x32xf32>
    %298 = vector.broadcast %24 : vector<128x1xf32> to vector<128x32xf32>
    %299 = arith.mulf %297, %298 : vector<128x32xf32>
    %c0_125 = arith.constant 0 : index
    %c0_126 = arith.constant 0 : index
    %300 = vector.load %arg16[%c0_125, %c0_126] : memref<128x288xf32, #tpu.memory_space<vmem>>, vector<128x32xf32>
    tpu.vector_store %arg16[%c0_125, %c0_126], %299 {strides = array<i32>} : memref<128x288xf32, #tpu.memory_space<vmem>>, vector<128x32xf32>,
    %c8_i32_127 = arith.constant 8 : i32
    %301 = tpu.dynamic_rotate %296 by %c8_i32_127 dim 0 : vector<128x32xf32>, i32 -> vector<128x32xf32>
    %302 = vector.broadcast %42 : vector<128x1xf32> to vector<128x32xf32>
    %303 = arith.mulf %301, %302 : vector<128x32xf32>
    %c0_128 = arith.constant 0 : index
    %c32_129 = arith.constant 32 : index
    %304 = vector.load %arg16[%c0_128, %c32_129] : memref<128x288xf32, #tpu.memory_space<vmem>>, vector<128x32xf32>
    tpu.vector_store %arg16[%c0_128, %c32_129], %303 {strides = array<i32>} : memref<128x288xf32, #tpu.memory_space<vmem>>, vector<128x32xf32>,
    %c7_i32_130 = arith.constant 7 : i32
    %305 = tpu.dynamic_rotate %296 by %c7_i32_130 dim 0 : vector<128x32xf32>, i32 -> vector<128x32xf32>
    %306 = vector.broadcast %60 : vector<128x1xf32> to vector<128x32xf32>
    %307 = arith.mulf %305, %306 : vector<128x32xf32>
    %c0_131 = arith.constant 0 : index
    %c64_132 = arith.constant 64 : index
    %308 = vector.load %arg16[%c0_131, %c64_132] : memref<128x288xf32, #tpu.memory_space<vmem>>, vector<128x32xf32>
    tpu.vector_store %arg16[%c0_131, %c64_132], %307 {strides = array<i32>} : memref<128x288xf32, #tpu.memory_space<vmem>>, vector<128x32xf32>,
    %c1_i32_133 = arith.constant 1 : i32
    %309 = tpu.dynamic_rotate %296 by %c1_i32_133 dim 0 : vector<128x32xf32>, i32 -> vector<128x32xf32>
    %310 = vector.broadcast %78 : vector<128x1xf32> to vector<128x32xf32>
    %311 = arith.mulf %309, %310 : vector<128x32xf32>
    %c0_134 = arith.constant 0 : index
    %c96_135 = arith.constant 96 : index
    %312 = vector.load %arg16[%c0_134, %c96_135] : memref<128x288xf32, #tpu.memory_space<vmem>>, vector<128x32xf32>
    tpu.vector_store %arg16[%c0_134, %c96_135], %311 {strides = array<i32>} : memref<128x288xf32, #tpu.memory_space<vmem>>, vector<128x32xf32>,
    %313 = vector.broadcast %96 : vector<128x1xf32> to vector<128x32xf32>
    %314 = arith.mulf %296, %313 : vector<128x32xf32>
    %c0_136 = arith.constant 0 : index
    %c128_137 = arith.constant 128 : index
    %315 = vector.load %arg16[%c0_136, %c128_137] : memref<128x288xf32, #tpu.memory_space<vmem>>, vector<128x32xf32>
    tpu.vector_store %arg16[%c0_136, %c128_137], %314 {strides = array<i32>} : memref<128x288xf32, #tpu.memory_space<vmem>>, vector<128x32xf32>,
    %c127_i32_138 = arith.constant 127 : i32
    %316 = tpu.dynamic_rotate %296 by %c127_i32_138 dim 0 : vector<128x32xf32>, i32 -> vector<128x32xf32>
    %317 = vector.broadcast %114 : vector<128x1xf32> to vector<128x32xf32>
    %318 = arith.mulf %316, %317 : vector<128x32xf32>
    %c0_139 = arith.constant 0 : index
    %c160_140 = arith.constant 160 : index
    %319 = vector.load %arg16[%c0_139, %c160_140] : memref<128x288xf32, #tpu.memory_space<vmem>>, vector<128x32xf32>
    tpu.vector_store %arg16[%c0_139, %c160_140], %318 {strides = array<i32>} : memref<128x288xf32, #tpu.memory_space<vmem>>, vector<128x32xf32>,
    %c121_i32_141 = arith.constant 121 : i32
    %320 = tpu.dynamic_rotate %296 by %c121_i32_141 dim 0 : vector<128x32xf32>, i32 -> vector<128x32xf32>
    %321 = vector.broadcast %132 : vector<128x1xf32> to vector<128x32xf32>
    %322 = arith.mulf %320, %321 : vector<128x32xf32>
    %c0_142 = arith.constant 0 : index
    %c192_143 = arith.constant 192 : index
    %323 = vector.load %arg16[%c0_142, %c192_143] : memref<128x288xf32, #tpu.memory_space<vmem>>, vector<128x32xf32>
    tpu.vector_store %arg16[%c0_142, %c192_143], %322 {strides = array<i32>} : memref<128x288xf32, #tpu.memory_space<vmem>>, vector<128x32xf32>,
    %c120_i32_144 = arith.constant 120 : i32
    %324 = tpu.dynamic_rotate %296 by %c120_i32_144 dim 0 : vector<128x32xf32>, i32 -> vector<128x32xf32>
    %325 = vector.broadcast %150 : vector<128x1xf32> to vector<128x32xf32>
    %326 = arith.mulf %324, %325 : vector<128x32xf32>
    %c0_145 = arith.constant 0 : index
    %c224_146 = arith.constant 224 : index
    %327 = vector.load %arg16[%c0_145, %c224_146] : memref<128x288xf32, #tpu.memory_space<vmem>>, vector<128x32xf32>
    tpu.vector_store %arg16[%c0_145, %c224_146], %326 {strides = array<i32>} : memref<128x288xf32, #tpu.memory_space<vmem>>, vector<128x32xf32>,
    %c119_i32_147 = arith.constant 119 : i32
    %328 = tpu.dynamic_rotate %296 by %c119_i32_147 dim 0 : vector<128x32xf32>, i32 -> vector<128x32xf32>
    %329 = vector.broadcast %168 : vector<128x1xf32> to vector<128x32xf32>
    %330 = arith.mulf %328, %329 : vector<128x32xf32>
    %c0_148 = arith.constant 0 : index
    %c256_149 = arith.constant 256 : index
    %331 = vector.load %arg16[%c0_148, %c256_149] : memref<128x288xf32, #tpu.memory_space<vmem>>, vector<128x32xf32>
    tpu.vector_store %arg16[%c0_148, %c256_149], %330 {strides = array<i32>} : memref<128x288xf32, #tpu.memory_space<vmem>>, vector<128x32xf32>,
    %c0_150 = arith.constant 0 : index
    %c0_151 = arith.constant 0 : index
    %332 = vector.load %arg16[%c0_150, %c0_151] : memref<128x288xf32, #tpu.memory_space<vmem>>, vector<128x288xf32>
    %333 = arith.truncf %332 : vector<128x288xf32> to vector<128x288xbf16>
    %c1_152 = arith.constant 1 : index
    %c0_153 = arith.constant 0 : index
    %c0_154 = arith.constant 0 : index
    %334 = vector.load %arg4[%c1_152, %c0_153, %c0_154] : memref<3x288x32xbf16, #tpu.memory_space<vmem>>, vector<1x288x32xbf16>
    %335 = vector.shape_cast %334 : vector<1x288x32xbf16> to vector<288x32xbf16>
    %cst_155 = arith.constant dense<0.000000e+00> : vector<128x32xf32>
    %336 = tpu.matmul %333, %335, %cst_155 {dimension_numbers = #tpu.dot_dimension_numbers<[1], [0], [0], [1], [0, 0, 1, 1], [], []>} : vector<128x288xbf16>, vector<288x32xbf16>, vector<128x32xf32> -> vector<128x32xf32>
    %c1_156 = arith.constant 1 : index
    %c0_157 = arith.constant 0 : index
    %c0_158 = arith.constant 0 : index
    %337 = vector.load %arg5[%c1_156, %c0_157, %c0_158] : memref<3x1x32xf32, #tpu.memory_space<vmem>>, vector<1x1x32xf32>
    %338 = vector.shape_cast %337 : vector<1x1x32xf32> to vector<1x32xf32>
    %339 = vector.broadcast %338 : vector<1x32xf32> to vector<128x32xf32>
    %340 = arith.addf %336, %339 : vector<128x32xf32>
    %cst_159 = arith.constant 0.000000e+00 : f32
    %341 = vector.broadcast %cst_159 : f32 to vector<128x32xf32>
    %342 = arith.maximumf %340, %341 : vector<128x32xf32>
    %c9_i32_160 = arith.constant 9 : i32
    %343 = tpu.dynamic_rotate %342 by %c9_i32_160 dim 0 : vector<128x32xf32>, i32 -> vector<128x32xf32>
    %344 = vector.broadcast %24 : vector<128x1xf32> to vector<128x32xf32>
    %345 = arith.mulf %343, %344 : vector<128x32xf32>
    %c0_161 = arith.constant 0 : index
    %c0_162 = arith.constant 0 : index
    %346 = vector.load %arg16[%c0_161, %c0_162] : memref<128x288xf32, #tpu.memory_space<vmem>>, vector<128x32xf32>
    tpu.vector_store %arg16[%c0_161, %c0_162], %345 {strides = array<i32>} : memref<128x288xf32, #tpu.memory_space<vmem>>, vector<128x32xf32>,
    %c8_i32_163 = arith.constant 8 : i32
    %347 = tpu.dynamic_rotate %342 by %c8_i32_163 dim 0 : vector<128x32xf32>, i32 -> vector<128x32xf32>
    %348 = vector.broadcast %42 : vector<128x1xf32> to vector<128x32xf32>
    %349 = arith.mulf %347, %348 : vector<128x32xf32>
    %c0_164 = arith.constant 0 : index
    %c32_165 = arith.constant 32 : index
    %350 = vector.load %arg16[%c0_164, %c32_165] : memref<128x288xf32, #tpu.memory_space<vmem>>, vector<128x32xf32>
    tpu.vector_store %arg16[%c0_164, %c32_165], %349 {strides = array<i32>} : memref<128x288xf32, #tpu.memory_space<vmem>>, vector<128x32xf32>,
    %c7_i32_166 = arith.constant 7 : i32
    %351 = tpu.dynamic_rotate %342 by %c7_i32_166 dim 0 : vector<128x32xf32>, i32 -> vector<128x32xf32>
    %352 = vector.broadcast %60 : vector<128x1xf32> to vector<128x32xf32>
    %353 = arith.mulf %351, %352 : vector<128x32xf32>
    %c0_167 = arith.constant 0 : index
    %c64_168 = arith.constant 64 : index
    %354 = vector.load %arg16[%c0_167, %c64_168] : memref<128x288xf32, #tpu.memory_space<vmem>>, vector<128x32xf32>
    tpu.vector_store %arg16[%c0_167, %c64_168], %353 {strides = array<i32>} : memref<128x288xf32, #tpu.memory_space<vmem>>, vector<128x32xf32>,
    %c1_i32_169 = arith.constant 1 : i32
    %355 = tpu.dynamic_rotate %342 by %c1_i32_169 dim 0 : vector<128x32xf32>, i32 -> vector<128x32xf32>
    %356 = vector.broadcast %78 : vector<128x1xf32> to vector<128x32xf32>
    %357 = arith.mulf %355, %356 : vector<128x32xf32>
    %c0_170 = arith.constant 0 : index
    %c96_171 = arith.constant 96 : index
    %358 = vector.load %arg16[%c0_170, %c96_171] : memref<128x288xf32, #tpu.memory_space<vmem>>, vector<128x32xf32>
    tpu.vector_store %arg16[%c0_170, %c96_171], %357 {strides = array<i32>} : memref<128x288xf32, #tpu.memory_space<vmem>>, vector<128x32xf32>,
    %359 = vector.broadcast %96 : vector<128x1xf32> to vector<128x32xf32>
    %360 = arith.mulf %342, %359 : vector<128x32xf32>
    %c0_172 = arith.constant 0 : index
    %c128_173 = arith.constant 128 : index
    %361 = vector.load %arg16[%c0_172, %c128_173] : memref<128x288xf32, #tpu.memory_space<vmem>>, vector<128x32xf32>
    tpu.vector_store %arg16[%c0_172, %c128_173], %360 {strides = array<i32>} : memref<128x288xf32, #tpu.memory_space<vmem>>, vector<128x32xf32>,
    %c127_i32_174 = arith.constant 127 : i32
    %362 = tpu.dynamic_rotate %342 by %c127_i32_174 dim 0 : vector<128x32xf32>, i32 -> vector<128x32xf32>
    %363 = vector.broadcast %114 : vector<128x1xf32> to vector<128x32xf32>
    %364 = arith.mulf %362, %363 : vector<128x32xf32>
    %c0_175 = arith.constant 0 : index
    %c160_176 = arith.constant 160 : index
    %365 = vector.load %arg16[%c0_175, %c160_176] : memref<128x288xf32, #tpu.memory_space<vmem>>, vector<128x32xf32>
    tpu.vector_store %arg16[%c0_175, %c160_176], %364 {strides = array<i32>} : memref<128x288xf32, #tpu.memory_space<vmem>>, vector<128x32xf32>,
    %c121_i32_177 = arith.constant 121 : i32
    %366 = tpu.dynamic_rotate %342 by %c121_i32_177 dim 0 : vector<128x32xf32>, i32 -> vector<128x32xf32>
    %367 = vector.broadcast %132 : vector<128x1xf32> to vector<128x32xf32>
    %368 = arith.mulf %366, %367 : vector<128x32xf32>
    %c0_178 = arith.constant 0 : index
    %c192_179 = arith.constant 192 : index
    %369 = vector.load %arg16[%c0_178, %c192_179] : memref<128x288xf32, #tpu.memory_space<vmem>>, vector<128x32xf32>
    tpu.vector_store %arg16[%c0_178, %c192_179], %368 {strides = array<i32>} : memref<128x288xf32, #tpu.memory_space<vmem>>, vector<128x32xf32>,
    %c120_i32_180 = arith.constant 120 : i32
    %370 = tpu.dynamic_rotate %342 by %c120_i32_180 dim 0 : vector<128x32xf32>, i32 -> vector<128x32xf32>
    %371 = vector.broadcast %150 : vector<128x1xf32> to vector<128x32xf32>
    %372 = arith.mulf %370, %371 : vector<128x32xf32>
    %c0_181 = arith.constant 0 : index
    %c224_182 = arith.constant 224 : index
    %373 = vector.load %arg16[%c0_181, %c224_182] : memref<128x288xf32, #tpu.memory_space<vmem>>, vector<128x32xf32>
    tpu.vector_store %arg16[%c0_181, %c224_182], %372 {strides = array<i32>} : memref<128x288xf32, #tpu.memory_space<vmem>>, vector<128x32xf32>,
    %c119_i32_183 = arith.constant 119 : i32
    %374 = tpu.dynamic_rotate %342 by %c119_i32_183 dim 0 : vector<128x32xf32>, i32 -> vector<128x32xf32>
    %375 = vector.broadcast %168 : vector<128x1xf32> to vector<128x32xf32>
    %376 = arith.mulf %374, %375 : vector<128x32xf32>
    %c0_184 = arith.constant 0 : index
    %c256_185 = arith.constant 256 : index
    %377 = vector.load %arg16[%c0_184, %c256_185] : memref<128x288xf32, #tpu.memory_space<vmem>>, vector<128x32xf32>
    tpu.vector_store %arg16[%c0_184, %c256_185], %376 {strides = array<i32>} : memref<128x288xf32, #tpu.memory_space<vmem>>, vector<128x32xf32>,
    %c0_186 = arith.constant 0 : index
    %c0_187 = arith.constant 0 : index
    %378 = vector.load %arg16[%c0_186, %c0_187] : memref<128x288xf32, #tpu.memory_space<vmem>>, vector<128x288xf32>
    %379 = arith.truncf %378 : vector<128x288xf32> to vector<128x288xbf16>
    %c2_188 = arith.constant 2 : index
    %c0_189 = arith.constant 0 : index
    %c0_190 = arith.constant 0 : index
    %380 = vector.load %arg4[%c2_188, %c0_189, %c0_190] : memref<3x288x32xbf16, #tpu.memory_space<vmem>>, vector<1x288x32xbf16>
    %381 = vector.shape_cast %380 : vector<1x288x32xbf16> to vector<288x32xbf16>
    %cst_191 = arith.constant dense<0.000000e+00> : vector<128x32xf32>
    %382 = tpu.matmul %379, %381, %cst_191 {dimension_numbers = #tpu.dot_dimension_numbers<[1], [0], [0], [1], [0, 0, 1, 1], [], []>} : vector<128x288xbf16>, vector<288x32xbf16>, vector<128x32xf32> -> vector<128x32xf32>
    %c2_192 = arith.constant 2 : index
    %c0_193 = arith.constant 0 : index
    %c0_194 = arith.constant 0 : index
    %383 = vector.load %arg5[%c2_192, %c0_193, %c0_194] : memref<3x1x32xf32, #tpu.memory_space<vmem>>, vector<1x1x32xf32>
    %384 = vector.shape_cast %383 : vector<1x1x32xf32> to vector<1x32xf32>
    %385 = vector.broadcast %384 : vector<1x32xf32> to vector<128x32xf32>
    %386 = arith.addf %382, %385 : vector<128x32xf32>
    %cst_195 = arith.constant 0.000000e+00 : f32
    %387 = vector.broadcast %cst_195 : f32 to vector<128x32xf32>
    %388 = arith.maximumf %386, %387 : vector<128x32xf32>
    %389 = arith.truncf %388 : vector<128x32xf32> to vector<128x32xbf16>
    %c0_196 = arith.constant 0 : index
    %c0_197 = arith.constant 0 : index
    %390 = vector.load %arg6[%c0_196, %c0_197] : memref<32x3xbf16, #tpu.memory_space<vmem>>, vector<32x3xbf16>
    %cst_198 = arith.constant dense<0.000000e+00> : vector<128x3xf32>
    %391 = tpu.matmul %389, %390, %cst_198 {dimension_numbers = #tpu.dot_dimension_numbers<[1], [0], [0], [1], [0, 0, 1, 1], [], []>} : vector<128x32xbf16>, vector<32x3xbf16>, vector<128x3xf32> -> vector<128x3xf32>
    %c0_199 = arith.constant 0 : index
    %c0_200 = arith.constant 0 : index
    %392 = vector.load %arg7[%c0_199, %c0_200] : memref<1x3xf32, #tpu.memory_space<vmem>>, vector<1x3xf32>
    %393 = vector.broadcast %392 : vector<1x3xf32> to vector<128x3xf32>
    %394 = arith.addf %391, %393 : vector<128x3xf32>
    %cst_201 = arith.constant 0.000000e+00 : f32
    %395 = vector.broadcast %cst_201 : f32 to vector<128x3xf32>
    %396 = arith.maximumf %394, %395 : vector<128x3xf32>
    %397 = tpu.iota {dimensions = array<i32: 0>} : vector<2x128xi32>
    %398 = tpu.iota {dimensions = array<i32: 1>} : vector<2x128xi32>
    %c6_i32 = arith.constant 6 : i32
    %399 = vector.broadcast %c6_i32 : i32 to vector<2x128xi32>
    %400 = arith.shrsi %398, %399 : vector<2x128xi32>
    %401 = arith.cmpi eq, %400, %397 : vector<2x128xi32>
    %cst_202 = arith.constant 1.000000e+00 : f32
    %cst_203 = arith.constant 0.000000e+00 : f32
    %402 = vector.broadcast %cst_202 : f32 to vector<2x128xf32>
    %403 = vector.broadcast %cst_203 : f32 to vector<2x128xf32>
    %404 = arith.select %401, %402, %403 : vector<2x128xi1>, vector<2x128xf32>
    %405 = arith.truncf %404 : vector<2x128xf32> to vector<2x128xbf16>
    %406 = vector.extract_strided_slice %396 {offsets = [0, 0], sizes = [128, 1], strides = [1, 1]} : vector<128x3xf32> to vector<128x1xf32>
    %c0_204 = arith.constant 0 : index
    %c0_205 = arith.constant 0 : index
    %407 = vector.load %arg8[%c0_204, %c0_205] : memref<64x64xf32, #tpu.memory_space<vmem>>, vector<64x64xf32>
    %408 = tpu.concatenate %407, %407 in 0 : vector<64x64xf32>, vector<64x64xf32> -> vector<128x64xf32>
    %409 = vector.broadcast %406 : vector<128x1xf32> to vector<128x64xf32>
    %410 = arith.mulf %409, %408 : vector<128x64xf32>
    %411 = vector.extract_strided_slice %396 {offsets = [0, 1], sizes = [128, 1], strides = [1, 1]} : vector<128x3xf32> to vector<128x1xf32>
    %c0_206 = arith.constant 0 : index
    %c0_207 = arith.constant 0 : index
    %412 = vector.load %arg9[%c0_206, %c0_207] : memref<64x64xf32, #tpu.memory_space<vmem>>, vector<64x64xf32>
    %413 = tpu.concatenate %412, %412 in 0 : vector<64x64xf32>, vector<64x64xf32> -> vector<128x64xf32>
    %414 = vector.broadcast %411 : vector<128x1xf32> to vector<128x64xf32>
    %415 = arith.mulf %414, %413 : vector<128x64xf32>
    %416 = arith.addf %410, %415 : vector<128x64xf32>
    %417 = arith.truncf %416 : vector<128x64xf32> to vector<128x64xbf16>
    %cst_208 = arith.constant dense<0.000000e+00> : vector<2x64xf32>
    %418 = tpu.matmul %405, %417, %cst_208 {dimension_numbers = #tpu.dot_dimension_numbers<[1], [0], [0], [1], [0, 0, 1, 1], [], []>} : vector<2x128xbf16>, vector<128x64xbf16>, vector<2x64xf32> -> vector<2x64xf32>
    %c0_209 = arith.constant 0 : index
    %c0_210 = arith.constant 0 : index
    %419 = vector.load %arg10[%c0_209, %c0_210] : memref<1x64xf32, #tpu.memory_space<vmem>>, vector<1x64xf32>
    %420 = vector.broadcast %419 : vector<1x64xf32> to vector<2x64xf32>
    %421 = arith.addf %418, %420 : vector<2x64xf32>
    %cst_211 = arith.constant dense<0xFF800000> : vector<2xf32>
    %422 = vector.multi_reduction <maximumf>, %421, %cst_211 [1] : vector<2x64xf32> to vector<2xf32>
    %423 = vector.shape_cast %422 : vector<2xf32> to vector<2x1xf32>
    %424 = vector.broadcast %423 : vector<2x1xf32> to vector<2x64xf32>
    %425 = arith.subf %421, %424 : vector<2x64xf32>
    %426 = math.exp %425 : vector<2x64xf32>
    %cst_212 = arith.constant dense<0.000000e+00> : vector<2xf32>
    %427 = vector.multi_reduction <add>, %426, %cst_212 [1] : vector<2x64xf32> to vector<2xf32>
    %428 = vector.shape_cast %427 : vector<2xf32> to vector<2x1xf32>
    %429 = tpu.reciprocal %428 {approx = true} : vector<2x1xf32> -> vector<2x1xf32>
    %430 = vector.broadcast %429 : vector<2x1xf32> to vector<2x64xf32>
    %431 = arith.mulf %426, %430 : vector<2x64xf32>
    %432 = vector.extract_strided_slice %396 {offsets = [0, 2], sizes = [128, 1], strides = [1, 1]} : vector<128x3xf32> to vector<128x1xf32>
    %c0_213 = arith.constant 0 : index
    %c0_214 = arith.constant 0 : index
    %433 = vector.load %arg11[%c0_213, %c0_214] : memref<64x32xf32, #tpu.memory_space<vmem>>, vector<64x32xf32>
    %434 = tpu.concatenate %433, %433 in 0 : vector<64x32xf32>, vector<64x32xf32> -> vector<128x32xf32>
    %435 = vector.broadcast %432 : vector<128x1xf32> to vector<128x32xf32>
    %436 = arith.mulf %435, %434 : vector<128x32xf32>
    %437 = arith.truncf %436 : vector<128x32xf32> to vector<128x32xbf16>
    %cst_215 = arith.constant dense<0.000000e+00> : vector<2x32xf32>
    %438 = tpu.matmul %405, %437, %cst_215 {dimension_numbers = #tpu.dot_dimension_numbers<[1], [0], [0], [1], [0, 0, 1, 1], [], []>} : vector<2x128xbf16>, vector<128x32xbf16>, vector<2x32xf32> -> vector<2x32xf32>
    %c0_216 = arith.constant 0 : index
    %c0_217 = arith.constant 0 : index
    %439 = vector.load %arg12[%c0_216, %c0_217] : memref<1x32xf32, #tpu.memory_space<vmem>>, vector<1x32xf32>
    %440 = vector.broadcast %439 : vector<1x32xf32> to vector<2x32xf32>
    %441 = arith.addf %438, %440 : vector<2x32xf32>
    %cst_218 = arith.constant 0.000000e+00 : f32
    %442 = vector.broadcast %cst_218 : f32 to vector<2x32xf32>
    %443 = arith.maximumf %441, %442 : vector<2x32xf32>
    %444 = arith.truncf %443 : vector<2x32xf32> to vector<2x32xbf16>
    %c0_219 = arith.constant 0 : index
    %c0_220 = arith.constant 0 : index
    %445 = vector.load %arg13[%c0_219, %c0_220] : memref<32x64xbf16, #tpu.memory_space<vmem>>, vector<32x64xbf16>
    %cst_221 = arith.constant dense<0.000000e+00> : vector<2x64xf32>
    %446 = tpu.matmul %444, %445, %cst_221 {dimension_numbers = #tpu.dot_dimension_numbers<[1], [0], [0], [1], [0, 0, 1, 1], [], []>} : vector<2x32xbf16>, vector<32x64xbf16>, vector<2x64xf32> -> vector<2x64xf32>
    %c0_222 = arith.constant 0 : index
    %c0_223 = arith.constant 0 : index
    %447 = vector.load %arg14[%c0_222, %c0_223] : memref<1x64xf32, #tpu.memory_space<vmem>>, vector<1x64xf32>
    %448 = vector.broadcast %447 : vector<1x64xf32> to vector<2x64xf32>
    %449 = arith.addf %446, %448 : vector<2x64xf32>
    %450 = math.tanh %449 : vector<2x64xf32>
    %451 = tpu.concatenate %431, %450 in 1 : vector<2x64xf32>, vector<2x64xf32> -> vector<2x128xf32>
    %c0_224 = arith.constant 0 : index
    %c0_225 = arith.constant 0 : index
    %452 = vector.load %arg15[%c0_224, %c0_225] : memref<2x128xf32, #tpu.memory_space<vmem>>, vector<2x128xf32>
    tpu.vector_store %arg15[%c0_224, %c0_225], %451 {strides = array<i32>} : memref<2x128xf32, #tpu.memory_space<vmem>>, vector<2x128xf32>,
    return
  }
  func.func @transform_0(%arg0: i32) -> (i32, i32) {
    %c0_i32 = arith.constant 0 : i32
    %c0_i32_0 = arith.constant 0 : i32
    return %arg0, %c0_i32 : i32, i32
  }
  func.func @transform_1(%arg0: i32) -> (i32, i32, i32) {
    %c0_i32 = arith.constant 0 : i32
    %c0_i32_0 = arith.constant 0 : i32
    %c0_i32_1 = arith.constant 0 : i32
    %c0_i32_2 = arith.constant 0 : i32
    return %c0_i32, %c0_i32_0, %c0_i32_1 : i32, i32, i32
  }
  func.func @transform_2(%arg0: i32) -> (i32, i32) {
    %c0_i32 = arith.constant 0 : i32
    %c0_i32_0 = arith.constant 0 : i32
    %c0_i32_1 = arith.constant 0 : i32
    return %c0_i32, %c0_i32_0 : i32, i32
  }
  func.func @transform_3(%arg0: i32) -> (i32, i32, i32) {
    %c0_i32 = arith.constant 0 : i32
    %c0_i32_0 = arith.constant 0 : i32
    %c0_i32_1 = arith.constant 0 : i32
    %c0_i32_2 = arith.constant 0 : i32
    return %c0_i32, %c0_i32_0, %c0_i32_1 : i32, i32, i32
  }
  func.func @transform_4(%arg0: i32) -> (i32, i32, i32) {
    %c0_i32 = arith.constant 0 : i32
    %c0_i32_0 = arith.constant 0 : i32
    %c0_i32_1 = arith.constant 0 : i32
    %c0_i32_2 = arith.constant 0 : i32
    return %c0_i32, %c0_i32_0, %c0_i32_1 : i32, i32, i32
  }
  func.func @transform_5(%arg0: i32) -> (i32, i32) {
    %c0_i32 = arith.constant 0 : i32
    %c0_i32_0 = arith.constant 0 : i32
    %c0_i32_1 = arith.constant 0 : i32
    return %c0_i32, %c0_i32_0 : i32, i32
  }
  func.func @transform_6(%arg0: i32) -> (i32, i32) {
    %c0_i32 = arith.constant 0 : i32
    %c0_i32_0 = arith.constant 0 : i32
    %c0_i32_1 = arith.constant 0 : i32
    return %c0_i32, %c0_i32_0 : i32, i32
  }
  func.func @transform_7(%arg0: i32) -> (i32, i32) {
    %c0_i32 = arith.constant 0 : i32
    %c0_i32_0 = arith.constant 0 : i32
    %c0_i32_1 = arith.constant 0 : i32
    return %c0_i32, %c0_i32_0 : i32, i32
  }
  func.func @transform_8(%arg0: i32) -> (i32, i32) {
    %c0_i32 = arith.constant 0 : i32
    %c0_i32_0 = arith.constant 0 : i32
    %c0_i32_1 = arith.constant 0 : i32
    return %c0_i32, %c0_i32_0 : i32, i32
  }
  func.func @transform_9(%arg0: i32) -> (i32, i32) {
    %c0_i32 = arith.constant 0 : i32
    %c0_i32_0 = arith.constant 0 : i32
    %c0_i32_1 = arith.constant 0 : i32
    return %c0_i32, %c0_i32_0 : i32, i32
  }
  func.func @transform_10(%arg0: i32) -> (i32, i32) {
    %c0_i32 = arith.constant 0 : i32
    %c0_i32_0 = arith.constant 0 : i32
    %c0_i32_1 = arith.constant 0 : i32
    return %c0_i32, %c0_i32_0 : i32, i32
  }
  func.func @transform_11(%arg0: i32) -> (i32, i32) {
    %c0_i32 = arith.constant 0 : i32
    %c0_i32_0 = arith.constant 0 : i32
    %c0_i32_1 = arith.constant 0 : i32
    return %c0_i32, %c0_i32_0 : i32, i32
  }
  func.func @transform_12(%arg0: i32) -> (i32, i32) {
    %c0_i32 = arith.constant 0 : i32
    %c0_i32_0 = arith.constant 0 : i32
    %c0_i32_1 = arith.constant 0 : i32
    return %c0_i32, %c0_i32_0 : i32, i32
  }
  func.func @transform_13(%arg0: i32) -> (i32, i32) {
    %c0_i32 = arith.constant 0 : i32
    %c0_i32_0 = arith.constant 0 : i32
    %c0_i32_1 = arith.constant 0 : i32
    return %c0_i32, %c0_i32_0 : i32, i32
  }
  func.func @transform_14(%arg0: i32) -> (i32, i32) {
    %c0_i32 = arith.constant 0 : i32
    %c0_i32_0 = arith.constant 0 : i32
    return %arg0, %c0_i32 : i32, i32
  }
}

</mosaic_0001>

<llo_original>
// kernel: net_forward.1
$region0: #{net_forward.1}
  #allocation0 [shape = 'u32[]', space=smem, size = 0x4, offset = 0x4, fixed_abs, tag = 'smem constant byte address 0x4 - core index']
  #allocation1 [shape = 'u32[144,128]{1,0:T(1,128)}', space=vmem, size = 0x12000, scoped, tag = 'internal scratch']
  #allocation2 [shape = 'f32[128,288]{1,0:T(8,128)}', space=vmem, size = 0x30000, scoped, tag = 'scratch operand']
  %s0 = inlined_call_operand.vmem [shape: f32[128,1], index: 0, kind: input, shape index: {}]
  %s1 = inlined_call_operand.vmem [shape: f32[9,1,32], index: 1, kind: input, shape index: {}]
  %s2 = inlined_call_operand.vmem [shape: f32[1,32], index: 2, kind: input, shape index: {}]
  %s3 = inlined_call_operand.vmem [shape: bf16[3,288,32], index: 3, kind: input, shape index: {}]
  %s4 = inlined_call_operand.vmem [shape: f32[3,1,32], index: 4, kind: input, shape index: {}]
  %s5 = inlined_call_operand.vmem [shape: bf16[32,3], index: 5, kind: input, shape index: {}]
  %s6 = inlined_call_operand.vmem [shape: f32[1,3], index: 6, kind: input, shape index: {}]
  %s7 = inlined_call_operand.vmem [shape: f32[64,64], index: 7, kind: input, shape index: {}]
  %s8 = inlined_call_operand.vmem [shape: f32[64,64], index: 8, kind: input, shape index: {}]
  %s9 = inlined_call_operand.vmem [shape: f32[1,64], index: 9, kind: input, shape index: {}]
  %s10 = inlined_call_operand.vmem [shape: f32[64,32], index: 10, kind: input, shape index: {}]
  %s11 = inlined_call_operand.vmem [shape: f32[1,32], index: 11, kind: input, shape index: {}]
  %s12 = inlined_call_operand.vmem [shape: bf16[32,64], index: 12, kind: input, shape index: {}]
  %s13 = inlined_call_operand.vmem [shape: f32[1,64], index: 13, kind: input, shape index: {}]
  %s14 = inlined_call_operand.vmem [shape: f32[2,128], index: 14, kind: output, shape index: {}]
  %s15 = sld [smem:[#allocation0]]
  $region66: #{net_forward.1} parent=0
    _
  %s17 = ssub.s32 1, %s15
  %s18 = scalar_select 0, %s17, %s15
  // Predicated region
  $region2: #{net_forward.1} parent=0 // pred_check
    _
  $region3: #{net_forward.1} parent=0 // pred_check_branch
    %20 = sbr.rel (0) target = $region5
  $region4: #{net_forward.1} parent=0 // pred_region
    _
  $region5: #{net_forward.1} parent=0 // pred_fallthru
    _
  // Predicated region
  $region6: #{net_forward.1} parent=0 // pred_check
    _
  $region7: #{net_forward.1} parent=0 // pred_check_branch
    %22 = sbr.rel (0) target = $region9
  $region8: #{net_forward.1} parent=0 // pred_region
    _
  $region9: #{net_forward.1} parent=0 // pred_fallthru
    _
  // Predicated region
  $region10: #{net_forward.1} parent=0 // pred_check
    _
  $region11: #{net_forward.1} parent=0 // pred_check_branch
    %24 = sbr.rel (0) target = $region13
  $region12: #{net_forward.1} parent=0 // pred_region
    _
  $region13: #{net_forward.1} parent=0 // pred_fallthru
    _
  // Predicated region
  $region14: #{net_forward.1} parent=0 // pred_check
    _
  $region15: #{net_forward.1} parent=0 // pred_check_branch
    %26 = sbr.rel (0) target = $region17
  $region16: #{net_forward.1} parent=0 // pred_region
    _
  $region17: #{net_forward.1} parent=0 // pred_fallthru
    _
  // Predicated region
  $region18: #{net_forward.1} parent=0 // pred_check
    _
  $region19: #{net_forward.1} parent=0 // pred_check_branch
    %28 = sbr.rel (0) target = $region21
  $region20: #{net_forward.1} parent=0 // pred_region
    _
  $region21: #{net_forward.1} parent=0 // pred_fallthru
    _
  // Predicated region
  $region22: #{net_forward.1} parent=0 // pred_check
    _
  $region23: #{net_forward.1} parent=0 // pred_check_branch
    %30 = sbr.rel (0) target = $region25
  $region24: #{net_forward.1} parent=0 // pred_region
    _
  $region25: #{net_forward.1} parent=0 // pred_fallthru
    _
  // Predicated region
  $region26: #{net_forward.1} parent=0 // pred_check
    _
  $region27: #{net_forward.1} parent=0 // pred_check_branch
    %32 = sbr.rel (0) target = $region29
  $region28: #{net_forward.1} parent=0 // pred_region
    _
  $region29: #{net_forward.1} parent=0 // pred_fallthru
    _
  // Predicated region
  $region30: #{net_forward.1} parent=0 // pred_check
    _
  $region31: #{net_forward.1} parent=0 // pred_check_branch
    %34 = sbr.rel (0) target = $region33
  $region32: #{net_forward.1} parent=0 // pred_region
    _
  $region33: #{net_forward.1} parent=0 // pred_fallthru
    _
  // Predicated region
  $region34: #{net_forward.1} parent=0 // pred_check
    _
  $region35: #{net_forward.1} parent=0 // pred_check_branch
    %36 = sbr.rel (0) target = $region37
  $region36: #{net_forward.1} parent=0 // pred_region
    _
  $region37: #{net_forward.1} parent=0 // pred_fallthru
    _
  // Predicated region
  $region38: #{net_forward.1} parent=0 // pred_check
    _
  $region39: #{net_forward.1} parent=0 // pred_check_branch
    %38 = sbr.rel (0) target = $region41
  $region40: #{net_forward.1} parent=0 // pred_region
    _
  $region41: #{net_forward.1} parent=0 // pred_fallthru
    _
  // Predicated region
  $region42: #{net_forward.1} parent=0 // pred_check
    _
  $region43: #{net_forward.1} parent=0 // pred_check_branch
    %40 = sbr.rel (0) target = $region45
  $region44: #{net_forward.1} parent=0 // pred_region
    _
  $region45: #{net_forward.1} parent=0 // pred_fallthru
    _
  // Predicated region
  $region46: #{net_forward.1} parent=0 // pred_check
    _
  $region47: #{net_forward.1} parent=0 // pred_check_branch
    %42 = sbr.rel (0) target = $region49
  $region48: #{net_forward.1} parent=0 // pred_region
    _
  $region49: #{net_forward.1} parent=0 // pred_fallthru
    _
  // Predicated region
  $region50: #{net_forward.1} parent=0 // pred_check
    _
  $region51: #{net_forward.1} parent=0 // pred_check_branch
    %44 = sbr.rel (0) target = $region53
  $region52: #{net_forward.1} parent=0 // pred_region
    _
  $region53: #{net_forward.1} parent=0 // pred_fallthru
    _
  // Predicated region
  $region54: #{net_forward.1} parent=0 // pred_check
    _
  $region55: #{net_forward.1} parent=0 // pred_check_branch
    %46 = sbr.rel (0) target = $region57
  $region56: #{net_forward.1} parent=0 // pred_region
    _
  $region57: #{net_forward.1} parent=0 // pred_fallthru
    _
  %v48 = vlaneseq
  %v49 = vshrl.u32 %v48, 7
  %v50 = vadd.s32 %v49, 8
  %v51 = vadd.s32 %v49, 16
  %v52 = vadd.s32 %v49, 24
  %v53 = vadd.s32 %v49, 32
  %v54 = vadd.s32 %v49, 40
  %v55 = vadd.s32 %v49, 48
  %v56 = vadd.s32 %v49, 56
  %v57 = vadd.s32 %v49, 64
  %v58 = vadd.s32 %v49, 72
  %v59 = vadd.s32 %v49, 80
  %v60 = vadd.s32 %v49, 88
  %v61 = vadd.s32 %v49, 96
  %v62 = vadd.s32 %v49, 104
  %v63 = vadd.s32 %v49, 112
  %v64 = vadd.s32 %v49, 120
  %v65 = vshra.s32 %v49, 3
  %v66 = vshra.s32 %v50, 3
  %v67 = vshra.s32 %v51, 3
  %v68 = vshra.s32 %v52, 3
  %v69 = vshra.s32 %v53, 3
  %v70 = vshra.s32 %v54, 3
  %v71 = vshra.s32 %v55, 3
  %v72 = vshra.s32 %v56, 3
  %v73 = vshra.s32 %v57, 3
  %v74 = vshra.s32 %v58, 3
  %v75 = vshra.s32 %v59, 3
  %v76 = vshra.s32 %v60, 3
  %v77 = vshra.s32 %v61, 3
  %v78 = vshra.s32 %v62, 3
  %v79 = vshra.s32 %v63, 3
  %v80 = vshra.s32 %v64, 3
  %v81 = vand.u32 %v65, 7
  %v82 = vand.u32 %v66, 7
  %v83 = vand.u32 %v67, 7
  %v84 = vand.u32 %v68, 7
  %v85 = vand.u32 %v69, 7
  %v86 = vand.u32 %v70, 7
  %v87 = vand.u32 %v71, 7
  %v88 = vand.u32 %v72, 7
  %v89 = vand.u32 %v73, 7
  %v90 = vand.u32 %v74, 7
  %v91 = vand.u32 %v75, 7
  %v92 = vand.u32 %v76, 7
  %v93 = vand.u32 %v77, 7
  %v94 = vand.u32 %v78, 7
  %v95 = vand.u32 %v79, 7
  %v96 = vand.u32 %v80, 7
  %v97 = vand.u32 %v49, 7
  %v98 = vand.u32 %v50, 7
  %v99 = vand.u32 %v51, 7
  %v100 = vand.u32 %v52, 7
  %v101 = vand.u32 %v53, 7
  %v102 = vand.u32 %v54, 7
  %v103 = vand.u32 %v55, 7
  %v104 = vand.u32 %v56, 7
  %v105 = vand.u32 %v57, 7
  %v106 = vand.u32 %v58, 7
  %v107 = vand.u32 %v59, 7
  %v108 = vand.u32 %v60, 7
  %v109 = vand.u32 %v61, 7
  %v110 = vand.u32 %v62, 7
  %v111 = vand.u32 %v63, 7
  %v112 = vand.u32 %v64, 7
  %v113 = vadd.s32 %v81, 4294967295
  %v114 = vadd.s32 %v82, 4294967295
  %v115 = vadd.s32 %v83, 4294967295
  %v116 = vadd.s32 %v84, 4294967295
  %v117 = vadd.s32 %v85, 4294967295
  %v118 = vadd.s32 %v86, 4294967295
  %v119 = vadd.s32 %v87, 4294967295
  %v120 = vadd.s32 %v88, 4294967295
  %v121 = vadd.s32 %v89, 4294967295
  %v122 = vadd.s32 %v90, 4294967295
  %v123 = vadd.s32 %v91, 4294967295
  %v124 = vadd.s32 %v92, 4294967295
  %v125 = vadd.s32 %v93, 4294967295
  %v126 = vadd.s32 %v94, 4294967295
  %v127 = vadd.s32 %v95, 4294967295
  %v128 = vadd.s32 %v96, 4294967295
  %v129 = vadd.s32 %v97, 4294967295
  %v130 = vadd.s32 %v98, 4294967295
  %v131 = vadd.s32 %v99, 4294967295
  %v132 = vadd.s32 %v100, 4294967295
  %v133 = vadd.s32 %v101, 4294967295
  %v134 = vadd.s32 %v102, 4294967295
  %v135 = vadd.s32 %v103, 4294967295
  %v136 = vadd.s32 %v104, 4294967295
  %v137 = vadd.s32 %v105, 4294967295
  %v138 = vadd.s32 %v106, 4294967295
  %v139 = vadd.s32 %v107, 4294967295
  %v140 = vadd.s32 %v108, 4294967295
  %v141 = vadd.s32 %v109, 4294967295
  %v142 = vadd.s32 %v110, 4294967295
  %v143 = vadd.s32 %v111, 4294967295
  %v144 = vadd.s32 %v112, 4294967295
  %vm145 = vcmp.ge.s32.totalorder %v113, 0
  %vm146 = vcmp.ge.s32.totalorder %v114, 0
  %vm147 = vcmp.ge.s32.totalorder %v115, 0
  %vm148 = vcmp.ge.s32.totalorder %v116, 0
  %vm149 = vcmp.ge.s32.totalorder %v117, 0
  %vm150 = vcmp.ge.s32.totalorder %v118, 0
  %vm151 = vcmp.ge.s32.totalorder %v119, 0
  %vm152 = vcmp.ge.s32.totalorder %v120, 0
  %vm153 = vcmp.ge.s32.totalorder %v121, 0
  %vm154 = vcmp.ge.s32.totalorder %v122, 0
  %vm155 = vcmp.ge.s32.totalorder %v123, 0
  %vm156 = vcmp.ge.s32.totalorder %v124, 0
  %vm157 = vcmp.ge.s32.totalorder %v125, 0
  %vm158 = vcmp.ge.s32.totalorder %v126, 0
  %vm159 = vcmp.ge.s32.totalorder %v127, 0
  %vm160 = vcmp.ge.s32.totalorder %v128, 0
  %vm161 = vcmp.lt.s32.totalorder %v113, 8
  %vm162 = vcmp.lt.s32.totalorder %v114, 8
  %vm163 = vcmp.lt.s32.totalorder %v115, 8
  %vm164 = vcmp.lt.s32.totalorder %v116, 8
  %vm165 = vcmp.lt.s32.totalorder %v117, 8
  %vm166 = vcmp.lt.s32.totalorder %v118, 8
  %vm167 = vcmp.lt.s32.totalorder %v119, 8
  %vm168 = vcmp.lt.s32.totalorder %v120, 8
  %vm169 = vcmp.lt.s32.totalorder %v121, 8
  %vm170 = vcmp.lt.s32.totalorder %v122, 8
  %vm171 = vcmp.lt.s32.totalorder %v123, 8
  %vm172 = vcmp.lt.s32.totalorder %v124, 8
  %vm173 = vcmp.lt.s32.totalorder %v125, 8
  %vm174 = vcmp.lt.s32.totalorder %v126, 8
  %vm175 = vcmp.lt.s32.totalorder %v127, 8
  %vm176 = vcmp.lt.s32.totalorder %v128, 8
  %vm177 = vmand %vm145, %vm161
  %vm178 = vmand %vm146, %vm162
  %vm179 = vmand %vm147, %vm163
  %vm180 = vmand %vm148, %vm164
  %vm181 = vmand %vm149, %vm165
  %vm182 = vmand %vm150, %vm166
  %vm183 = vmand %vm151, %vm167
  %vm184 = vmand %vm152, %vm168
  %vm185 = vmand %vm153, %vm169
  %vm186 = vmand %vm154, %vm170
  %vm187 = vmand %vm155, %vm171
  %vm188 = vmand %vm156, %vm172
  %vm189 = vmand %vm157, %vm173
  %vm190 = vmand %vm158, %vm174
  %vm191 = vmand %vm159, %vm175
  %vm192 = vmand %vm160, %vm176
  %vm193 = vcmp.ge.s32.totalorder %v129, 0
  %vm194 = vcmp.ge.s32.totalorder %v130, 0
  %vm195 = vcmp.ge.s32.totalorder %v131, 0
  %vm196 = vcmp.ge.s32.totalorder %v132, 0
  %vm197 = vcmp.ge.s32.totalorder %v133, 0
  %vm198 = vcmp.ge.s32.totalorder %v134, 0
  %vm199 = vcmp.ge.s32.totalorder %v135, 0
  %vm200 = vcmp.ge.s32.totalorder %v136, 0
  %vm201 = vcmp.ge.s32.totalorder %v137, 0
  %vm202 = vcmp.ge.s32.totalorder %v138, 0
  %vm203 = vcmp.ge.s32.totalorder %v139, 0
  %vm204 = vcmp.ge.s32.totalorder %v140, 0
  %vm205 = vcmp.ge.s32.totalorder %v141, 0
  %vm206 = vcmp.ge.s32.totalorder %v142, 0
  %vm207 = vcmp.ge.s32.totalorder %v143, 0
  %vm208 = vcmp.ge.s32.totalorder %v144, 0
  %vm209 = vmand %vm177, %vm193
  %vm210 = vmand %vm178, %vm194
  %vm211 = vmand %vm179, %vm195
  %vm212 = vmand %vm180, %vm196
  %vm213 = vmand %vm181, %vm197
  %vm214 = vmand %vm182, %vm198
  %vm215 = vmand %vm183, %vm199
  %vm216 = vmand %vm184, %vm200
  %vm217 = vmand %vm185, %vm201
  %vm218 = vmand %vm186, %vm202
  %vm219 = vmand %vm187, %vm203
  %vm220 = vmand %vm188, %vm204
  %vm221 = vmand %vm189, %vm205
  %vm222 = vmand %vm190, %vm206
  %vm223 = vmand %vm191, %vm207
  %vm224 = vmand %vm192, %vm208
  %vm225 = vcmp.lt.s32.totalorder %v129, 8
  %vm226 = vcmp.lt.s32.totalorder %v130, 8
  %vm227 = vcmp.lt.s32.totalorder %v131, 8
  %vm228 = vcmp.lt.s32.totalorder %v132, 8
  %vm229 = vcmp.lt.s32.totalorder %v133, 8
  %vm230 = vcmp.lt.s32.totalorder %v134, 8
  %vm231 = vcmp.lt.s32.totalorder %v135, 8
  %vm232 = vcmp.lt.s32.totalorder %v136, 8
  %vm233 = vcmp.lt.s32.totalorder %v137, 8
  %vm234 = vcmp.lt.s32.totalorder %v138, 8
  %vm235 = vcmp.lt.s32.totalorder %v139, 8
  %vm236 = vcmp.lt.s32.totalorder %v140, 8
  %vm237 = vcmp.lt.s32.totalorder %v141, 8
  %vm238 = vcmp.lt.s32.totalorder %v142, 8
  %vm239 = vcmp.lt.s32.totalorder %v143, 8
  %vm240 = vcmp.lt.s32.totalorder %v144, 8
  %vm241 = vmand %vm209, %vm225
  %vm242 = vmand %vm210, %vm226
  %vm243 = vmand %vm211, %vm227
  %vm244 = vmand %vm212, %vm228
  %vm245 = vmand %vm213, %vm229
  %vm246 = vmand %vm214, %vm230
  %vm247 = vmand %vm215, %vm231
  %vm248 = vmand %vm216, %vm232
  %vm249 = vmand %vm217, %vm233
  %vm250 = vmand %vm218, %vm234
  %vm251 = vmand %vm219, %vm235
  %vm252 = vmand %vm220, %vm236
  %vm253 = vmand %vm221, %vm237
  %vm254 = vmand %vm222, %vm238
  %vm255 = vmand %vm223, %vm239
  %vm256 = vmand %vm224, %vm240
  %v257 = vsel %vm241, 1.0, 0.0
  %v258 = vsel %vm242, 1.0, 0.0
  %v259 = vsel %vm243, 1.0, 0.0
  %v260 = vsel %vm244, 1.0, 0.0
  %v261 = vsel %vm245, 1.0, 0.0
  %v262 = vsel %vm246, 1.0, 0.0
  %v263 = vsel %vm247, 1.0, 0.0
  %v264 = vsel %vm248, 1.0, 0.0
  %v265 = vsel %vm249, 1.0, 0.0
  %v266 = vsel %vm250, 1.0, 0.0
  %v267 = vsel %vm251, 1.0, 0.0
  %v268 = vsel %vm252, 1.0, 0.0
  %v269 = vsel %vm253, 1.0, 0.0
  %v270 = vsel %vm254, 1.0, 0.0
  %v271 = vsel %vm255, 1.0, 0.0
  %v272 = vsel %vm256, 1.0, 0.0
  %vm273 = vcmp.ge.s32.totalorder %v97, 0
  %vm274 = vcmp.ge.s32.totalorder %v98, 0
  %vm275 = vcmp.ge.s32.totalorder %v99, 0
  %vm276 = vcmp.ge.s32.totalorder %v100, 0
  %vm277 = vcmp.ge.s32.totalorder %v101, 0
  %vm278 = vcmp.ge.s32.totalorder %v102, 0
  %vm279 = vcmp.ge.s32.totalorder %v103, 0
  %vm280 = vcmp.ge.s32.totalorder %v104, 0
  %vm281 = vcmp.ge.s32.totalorder %v105, 0
  %vm282 = vcmp.ge.s32.totalorder %v106, 0
  %vm283 = vcmp.ge.s32.totalorder %v107, 0
  %vm284 = vcmp.ge.s32.totalorder %v108, 0
  %vm285 = vcmp.ge.s32.totalorder %v109, 0
  %vm286 = vcmp.ge.s32.totalorder %v110, 0
  %vm287 = vcmp.ge.s32.totalorder %v111, 0
  %vm288 = vcmp.ge.s32.totalorder %v112, 0
  %vm289 = vmand %vm177, %vm273
  %vm290 = vmand %vm178, %vm274
  %vm291 = vmand %vm179, %vm275
  %vm292 = vmand %vm180, %vm276
  %vm293 = vmand %vm181, %vm277
  %vm294 = vmand %vm182, %vm278
  %vm295 = vmand %vm183, %vm279
  %vm296 = vmand %vm184, %vm280
  %vm297 = vmand %vm185, %vm281
  %vm298 = vmand %vm186, %vm282
  %vm299 = vmand %vm187, %vm283
  %vm300 = vmand %vm188, %vm284
  %vm301 = vmand %vm189, %vm285
  %vm302 = vmand %vm190, %vm286
  %vm303 = vmand %vm191, %vm287
  %vm304 = vmand %vm192, %vm288
  %vm305 = vcmp.lt.s32.totalorder %v97, 8
  %vm306 = vcmp.lt.s32.totalorder %v98, 8
  %vm307 = vcmp.lt.s32.totalorder %v99, 8
  %vm308 = vcmp.lt.s32.totalorder %v100, 8
  %vm309 = vcmp.lt.s32.totalorder %v101, 8
  %vm310 = vcmp.lt.s32.totalorder %v102, 8
  %vm311 = vcmp.lt.s32.totalorder %v103, 8
  %vm312 = vcmp.lt.s32.totalorder %v104, 8
  %vm313 = vcmp.lt.s32.totalorder %v105, 8
  %vm314 = vcmp.lt.s32.totalorder %v106, 8
  %vm315 = vcmp.lt.s32.totalorder %v107, 8
  %vm316 = vcmp.lt.s32.totalorder %v108, 8
  %vm317 = vcmp.lt.s32.totalorder %v109, 8
  %vm318 = vcmp.lt.s32.totalorder %v110, 8
  %vm319 = vcmp.lt.s32.totalorder %v111, 8
  %vm320 = vcmp.lt.s32.totalorder %v112, 8
  %vm321 = vmand %vm289, %vm305
  %vm322 = vmand %vm290, %vm306
  %vm323 = vmand %vm291, %vm307
  %vm324 = vmand %vm292, %vm308
  %vm325 = vmand %vm293, %vm309
  %vm326 = vmand %vm294, %vm310
  %vm327 = vmand %vm295, %vm311
  %vm328 = vmand %vm296, %vm312
  %vm329 = vmand %vm297, %vm313
  %vm330 = vmand %vm298, %vm314
  %vm331 = vmand %vm299, %vm315
  %vm332 = vmand %vm300, %vm316
  %vm333 = vmand %vm301, %vm317
  %vm334 = vmand %vm302, %vm318
  %vm335 = vmand %vm303, %vm319
  %vm336 = vmand %vm304, %vm320
  %v337 = vsel %vm321, 1.0, 0.0
  %v338 = vsel %vm322, 1.0, 0.0
  %v339 = vsel %vm323, 1.0, 0.0
  %v340 = vsel %vm324, 1.0, 0.0
  %v341 = vsel %vm325, 1.0, 0.0
  %v342 = vsel %vm326, 1.0, 0.0
  %v343 = vsel %vm327, 1.0, 0.0
  %v344 = vsel %vm328, 1.0, 0.0
  %v345 = vsel %vm329, 1.0, 0.0
  %v346 = vsel %vm330, 1.0, 0.0
  %v347 = vsel %vm331, 1.0, 0.0
  %v348 = vsel %vm332, 1.0, 0.0
  %v349 = vsel %vm333, 1.0, 0.0
  %v350 = vsel %vm334, 1.0, 0.0
  %v351 = vsel %vm335, 1.0, 0.0
  %v352 = vsel %vm336, 1.0, 0.0
  %v353 = vadd.s32 %v97, 1
  %v354 = vadd.s32 %v98, 1
  %v355 = vadd.s32 %v99, 1
  %v356 = vadd.s32 %v100, 1
  %v357 = vadd.s32 %v101, 1
  %v358 = vadd.s32 %v102, 1
  %v359 = vadd.s32 %v103, 1
  %v360 = vadd.s32 %v104, 1
  %v361 = vadd.s32 %v105, 1
  %v362 = vadd.s32 %v106, 1
  %v363 = vadd.s32 %v107, 1
  %v364 = vadd.s32 %v108, 1
  %v365 = vadd.s32 %v109, 1
  %v366 = vadd.s32 %v110, 1
  %v367 = vadd.s32 %v111, 1
  %v368 = vadd.s32 %v112, 1
  %vm369 = vcmp.ge.s32.totalorder %v353, 0
  %vm370 = vcmp.ge.s32.totalorder %v354, 0
  %vm371 = vcmp.ge.s32.totalorder %v355, 0
  %vm372 = vcmp.ge.s32.totalorder %v356, 0
  %vm373 = vcmp.ge.s32.totalorder %v357, 0
  %vm374 = vcmp.ge.s32.totalorder %v358, 0
  %vm375 = vcmp.ge.s32.totalorder %v359, 0
  %vm376 = vcmp.ge.s32.totalorder %v360, 0
  %vm377 = vcmp.ge.s32.totalorder %v361, 0
  %vm378 = vcmp.ge.s32.totalorder %v362, 0
  %vm379 = vcmp.ge.s32.totalorder %v363, 0
  %vm380 = vcmp.ge.s32.totalorder %v364, 0
  %vm381 = vcmp.ge.s32.totalorder %v365, 0
  %vm382 = vcmp.ge.s32.totalorder %v366, 0
  %vm383 = vcmp.ge.s32.totalorder %v367, 0
  %vm384 = vcmp.ge.s32.totalorder %v368, 0
  %vm385 = vmand %vm177, %vm369
  %vm386 = vmand %vm178, %vm370
  %vm387 = vmand %vm179, %vm371
  %vm388 = vmand %vm180, %vm372
  %vm389 = vmand %vm181, %vm373
  %vm390 = vmand %vm182, %vm374
  %vm391 = vmand %vm183, %vm375
  %vm392 = vmand %vm184, %vm376
  %vm393 = vmand %vm185, %vm377
  %vm394 = vmand %vm186, %vm378
  %vm395 = vmand %vm187, %vm379
  %vm396 = vmand %vm188, %vm380
  %vm397 = vmand %vm189, %vm381
  %vm398 = vmand %vm190, %vm382
  %vm399 = vmand %vm191, %vm383
  %vm400 = vmand %vm192, %vm384
  %vm401 = vcmp.lt.s32.totalorder %v353, 8
  %vm402 = vcmp.lt.s32.totalorder %v354, 8
  %vm403 = vcmp.lt.s32.totalorder %v355, 8
  %vm404 = vcmp.lt.s32.totalorder %v356, 8
  %vm405 = vcmp.lt.s32.totalorder %v357, 8
  %vm406 = vcmp.lt.s32.totalorder %v358, 8
  %vm407 = vcmp.lt.s32.totalorder %v359, 8
  %vm408 = vcmp.lt.s32.totalorder %v360, 8
  %vm409 = vcmp.lt.s32.totalorder %v361, 8
  %vm410 = vcmp.lt.s32.totalorder %v362, 8
  %vm411 = vcmp.lt.s32.totalorder %v363, 8
  %vm412 = vcmp.lt.s32.totalorder %v364, 8
  %vm413 = vcmp.lt.s32.totalorder %v365, 8
  %vm414 = vcmp.lt.s32.totalorder %v366, 8
  %vm415 = vcmp.lt.s32.totalorder %v367, 8
  %vm416 = vcmp.lt.s32.totalorder %v368, 8
  %vm417 = vmand %vm385, %vm401
  %vm418 = vmand %vm386, %vm402
  %vm419 = vmand %vm387, %vm403
  %vm420 = vmand %vm388, %vm404
  %vm421 = vmand %vm389, %vm405
  %vm422 = vmand %vm390, %vm406
  %vm423 = vmand %vm391, %vm407
  %vm424 = vmand %vm392, %vm408
  %vm425 = vmand %vm393, %vm409
  %vm426 = vmand %vm394, %vm410
  %vm427 = vmand %vm395, %vm411
  %vm428 = vmand %vm396, %vm412
  %vm429 = vmand %vm397, %vm413
  %vm430 = vmand %vm398, %vm414
  %vm431 = vmand %vm399, %vm415
  %vm432 = vmand %vm400, %vm416
  %v433 = vsel %vm417, 1.0, 0.0
  %v434 = vsel %vm418, 1.0, 0.0
  %v435 = vsel %vm419, 1.0, 0.0
  %v436 = vsel %vm420, 1.0, 0.0
  %v437 = vsel %vm421, 1.0, 0.0
  %v438 = vsel %vm422, 1.0, 0.0
  %v439 = vsel %vm423, 1.0, 0.0
  %v440 = vsel %vm424, 1.0, 0.0
  %v441 = vsel %vm425, 1.0, 0.0
  %v442 = vsel %vm426, 1.0, 0.0
  %v443 = vsel %vm427, 1.0, 0.0
  %v444 = vsel %vm428, 1.0, 0.0
  %v445 = vsel %vm429, 1.0, 0.0
  %v446 = vsel %vm430, 1.0, 0.0
  %v447 = vsel %vm431, 1.0, 0.0
  %v448 = vsel %vm432, 1.0, 0.0
  %vm449 = vcmp.ge.s32.totalorder %v81, 0
  %vm450 = vcmp.ge.s32.totalorder %v82, 0
  %vm451 = vcmp.ge.s32.totalorder %v83, 0
  %vm452 = vcmp.ge.s32.totalorder %v84, 0
  %vm453 = vcmp.ge.s32.totalorder %v85, 0
  %vm454 = vcmp.ge.s32.totalorder %v86, 0
  %vm455 = vcmp.ge.s32.totalorder %v87, 0
  %vm456 = vcmp.ge.s32.totalorder %v88, 0
  %vm457 = vcmp.ge.s32.totalorder %v89, 0
  %vm458 = vcmp.ge.s32.totalorder %v90, 0
  %vm459 = vcmp.ge.s32.totalorder %v91, 0
  %vm460 = vcmp.ge.s32.totalorder %v92, 0
  %vm461 = vcmp.ge.s32.totalorder %v93, 0
  %vm462 = vcmp.ge.s32.totalorder %v94, 0
  %vm463 = vcmp.ge.s32.totalorder %v95, 0
  %vm464 = vcmp.ge.s32.totalorder %v96, 0
  %vm465 = vcmp.lt.s32.totalorder %v81, 8
  %vm466 = vcmp.lt.s32.totalorder %v82, 8
  %vm467 = vcmp.lt.s32.totalorder %v83, 8
  %vm468 = vcmp.lt.s32.totalorder %v84, 8
  %vm469 = vcmp.lt.s32.totalorder %v85, 8
  %vm470 = vcmp.lt.s32.totalorder %v86, 8
  %vm471 = vcmp.lt.s32.totalorder %v87, 8
  %vm472 = vcmp.lt.s32.totalorder %v88, 8
  %vm473 = vcmp.lt.s32.totalorder %v89, 8
  %vm474 = vcmp.lt.s32.totalorder %v90, 8
  %vm475 = vcmp.lt.s32.totalorder %v91, 8
  %vm476 = vcmp.lt.s32.totalorder %v92, 8
  %vm477 = vcmp.lt.s32.totalorder %v93, 8
  %vm478 = vcmp.lt.s32.totalorder %v94, 8
  %vm479 = vcmp.lt.s32.totalorder %v95, 8
  %vm480 = vcmp.lt.s32.totalorder %v96, 8
  %vm481 = vmand %vm449, %vm465
  %vm482 = vmand %vm450, %vm466
  %vm483 = vmand %vm451, %vm467
  %vm484 = vmand %vm452, %vm468
  %vm485 = vmand %vm453, %vm469
  %vm486 = vmand %vm454, %vm470
  %vm487 = vmand %vm455, %vm471
  %vm488 = vmand %vm456, %vm472
  %vm489 = vmand %vm457, %vm473
  %vm490 = vmand %vm458, %vm474
  %vm491 = vmand %vm459, %vm475
  %vm492 = vmand %vm460, %vm476
  %vm493 = vmand %vm461, %vm477
  %vm494 = vmand %vm462, %vm478
  %vm495 = vmand %vm463, %vm479
  %vm496 = vmand %vm464, %vm480
  %vm497 = vmand %vm481, %vm193
  %vm498 = vmand %vm482, %vm194
  %vm499 = vmand %vm483, %vm195
  %vm500 = vmand %vm484, %vm196
  %vm501 = vmand %vm485, %vm197
  %vm502 = vmand %vm486, %vm198
  %vm503 = vmand %vm487, %vm199
  %vm504 = vmand %vm488, %vm200
  %vm505 = vmand %vm489, %vm201
  %vm506 = vmand %vm490, %vm202
  %vm507 = vmand %vm491, %vm203
  %vm508 = vmand %vm492, %vm204
  %vm509 = vmand %vm493, %vm205
  %vm510 = vmand %vm494, %vm206
  %vm511 = vmand %vm495, %vm207
  %vm512 = vmand %vm496, %vm208
  %vm513 = vmand %vm497, %vm225
  %vm514 = vmand %vm498, %vm226
  %vm515 = vmand %vm499, %vm227
  %vm516 = vmand %vm500, %vm228
  %vm517 = vmand %vm501, %vm229
  %vm518 = vmand %vm502, %vm230
  %vm519 = vmand %vm503, %vm231
  %vm520 = vmand %vm504, %vm232
  %vm521 = vmand %vm505, %vm233
  %vm522 = vmand %vm506, %vm234
  %vm523 = vmand %vm507, %vm235
  %vm524 = vmand %vm508, %vm236
  %vm525 = vmand %vm509, %vm237
  %vm526 = vmand %vm510, %vm238
  %vm527 = vmand %vm511, %vm239
  %vm528 = vmand %vm512, %vm240
  %v529 = vsel %vm513, 1.0, 0.0
  %v530 = vsel %vm514, 1.0, 0.0
  %v531 = vsel %vm515, 1.0, 0.0
  %v532 = vsel %vm516, 1.0, 0.0
  %v533 = vsel %vm517, 1.0, 0.0
  %v534 = vsel %vm518, 1.0, 0.0
  %v535 = vsel %vm519, 1.0, 0.0
  %v536 = vsel %vm520, 1.0, 0.0
  %v537 = vsel %vm521, 1.0, 0.0
  %v538 = vsel %vm522, 1.0, 0.0
  %v539 = vsel %vm523, 1.0, 0.0
  %v540 = vsel %vm524, 1.0, 0.0
  %v541 = vsel %vm525, 1.0, 0.0
  %v542 = vsel %vm526, 1.0, 0.0
  %v543 = vsel %vm527, 1.0, 0.0
  %v544 = vsel %vm528, 1.0, 0.0
  %vm545 = vmand %vm481, %vm273
  %vm546 = vmand %vm482, %vm274
  %vm547 = vmand %vm483, %vm275
  %vm548 = vmand %vm484, %vm276
  %vm549 = vmand %vm485, %vm277
  %vm550 = vmand %vm486, %vm278
  %vm551 = vmand %vm487, %vm279
  %vm552 = vmand %vm488, %vm280
  %vm553 = vmand %vm489, %vm281
  %vm554 = vmand %vm490, %vm282
  %vm555 = vmand %vm491, %vm283
  %vm556 = vmand %vm492, %vm284
  %vm557 = vmand %vm493, %vm285
  %vm558 = vmand %vm494, %vm286
  %vm559 = vmand %vm495, %vm287
  %vm560 = vmand %vm496, %vm288
  %vm561 = vmand %vm545, %vm305
  %vm562 = vmand %vm546, %vm306
  %vm563 = vmand %vm547, %vm307
  %vm564 = vmand %vm548, %vm308
  %vm565 = vmand %vm549, %vm309
  %vm566 = vmand %vm550, %vm310
  %vm567 = vmand %vm551, %vm311
  %vm568 = vmand %vm552, %vm312
  %vm569 = vmand %vm553, %vm313
  %vm570 = vmand %vm554, %vm314
  %vm571 = vmand %vm555, %vm315
  %vm572 = vmand %vm556, %vm316
  %vm573 = vmand %vm557, %vm317
  %vm574 = vmand %vm558, %vm318
  %vm575 = vmand %vm559, %vm319
  %vm576 = vmand %vm560, %vm320
  %v577 = vsel %vm561, 1.0, 0.0
  %v578 = vsel %vm562, 1.0, 0.0
  %v579 = vsel %vm563, 1.0, 0.0
  %v580 = vsel %vm564, 1.0, 0.0
  %v581 = vsel %vm565, 1.0, 0.0
  %v582 = vsel %vm566, 1.0, 0.0
  %v583 = vsel %vm567, 1.0, 0.0
  %v584 = vsel %vm568, 1.0, 0.0
  %v585 = vsel %vm569, 1.0, 0.0
  %v586 = vsel %vm570, 1.0, 0.0
  %v587 = vsel %vm571, 1.0, 0.0
  %v588 = vsel %vm572, 1.0, 0.0
  %v589 = vsel %vm573, 1.0, 0.0
  %v590 = vsel %vm574, 1.0, 0.0
  %v591 = vsel %vm575, 1.0, 0.0
  %v592 = vsel %vm576, 1.0, 0.0
  %vm593 = vmand %vm481, %vm369
  %vm594 = vmand %vm482, %vm370
  %vm595 = vmand %vm483, %vm371
  %vm596 = vmand %vm484, %vm372
  %vm597 = vmand %vm485, %vm373
  %vm598 = vmand %vm486, %vm374
  %vm599 = vmand %vm487, %vm375
  %vm600 = vmand %vm488, %vm376
  %vm601 = vmand %vm489, %vm377
  %vm602 = vmand %vm490, %vm378
  %vm603 = vmand %vm491, %vm379
  %vm604 = vmand %vm492, %vm380
  %vm605 = vmand %vm493, %vm381
  %vm606 = vmand %vm494, %vm382
  %vm607 = vmand %vm495, %vm383
  %vm608 = vmand %vm496, %vm384
  %vm609 = vmand %vm593, %vm401
  %vm610 = vmand %vm594, %vm402
  %vm611 = vmand %vm595, %vm403
  %vm612 = vmand %vm596, %vm404
  %vm613 = vmand %vm597, %vm405
  %vm614 = vmand %vm598, %vm406
  %vm615 = vmand %vm599, %vm407
  %vm616 = vmand %vm600, %vm408
  %vm617 = vmand %vm601, %vm409
  %vm618 = vmand %vm602, %vm410
  %vm619 = vmand %vm603, %vm411
  %vm620 = vmand %vm604, %vm412
  %vm621 = vmand %vm605, %vm413
  %vm622 = vmand %vm606, %vm414
  %vm623 = vmand %vm607, %vm415
  %vm624 = vmand %vm608, %vm416
  %v625 = vsel %vm609, 1.0, 0.0
  %v626 = vsel %vm610, 1.0, 0.0
  %v627 = vsel %vm611, 1.0, 0.0
  %v628 = vsel %vm612, 1.0, 0.0
  %v629 = vsel %vm613, 1.0, 0.0
  %v630 = vsel %vm614, 1.0, 0.0
  %v631 = vsel %vm615, 1.0, 0.0
  %v632 = vsel %vm616, 1.0, 0.0
  %v633 = vsel %vm617, 1.0, 0.0
  %v634 = vsel %vm618, 1.0, 0.0
  %v635 = vsel %vm619, 1.0, 0.0
  %v636 = vsel %vm620, 1.0, 0.0
  %v637 = vsel %vm621, 1.0, 0.0
  %v638 = vsel %vm622, 1.0, 0.0
  %v639 = vsel %vm623, 1.0, 0.0
  %v640 = vsel %vm624, 1.0, 0.0
  %v641 = vadd.s32 %v81, 1
  %v642 = vadd.s32 %v82, 1
  %v643 = vadd.s32 %v83, 1
  %v644 = vadd.s32 %v84, 1
  %v645 = vadd.s32 %v85, 1
  %v646 = vadd.s32 %v86, 1
  %v647 = vadd.s32 %v87, 1
  %v648 = vadd.s32 %v88, 1
  %v649 = vadd.s32 %v89, 1
  %v650 = vadd.s32 %v90, 1
  %v651 = vadd.s32 %v91, 1
  %v652 = vadd.s32 %v92, 1
  %v653 = vadd.s32 %v93, 1
  %v654 = vadd.s32 %v94, 1
  %v655 = vadd.s32 %v95, 1
  %v656 = vadd.s32 %v96, 1
  %vm657 = vcmp.ge.s32.totalorder %v641, 0
  %vm658 = vcmp.ge.s32.totalorder %v642, 0
  %vm659 = vcmp.ge.s32.totalorder %v643, 0
  %vm660 = vcmp.ge.s32.totalorder %v644, 0
  %vm661 = vcmp.ge.s32.totalorder %v645, 0
  %vm662 = vcmp.ge.s32.totalorder %v646, 0
  %vm663 = vcmp.ge.s32.totalorder %v647, 0
  %vm664 = vcmp.ge.s32.totalorder %v648, 0
  %vm665 = vcmp.ge.s32.totalorder %v649, 0
  %vm666 = vcmp.ge.s32.totalorder %v650, 0
  %vm667 = vcmp.ge.s32.totalorder %v651, 0
  %vm668 = vcmp.ge.s32.totalorder %v652, 0
  %vm669 = vcmp.ge.s32.totalorder %v653, 0
  %vm670 = vcmp.ge.s32.totalorder %v654, 0
  %vm671 = vcmp.ge.s32.totalorder %v655, 0
  %vm672 = vcmp.ge.s32.totalorder %v656, 0
  %vm673 = vcmp.lt.s32.totalorder %v641, 8
  %vm674 = vcmp.lt.s32.totalorder %v642, 8
  %vm675 = vcmp.lt.s32.totalorder %v643, 8
  %vm676 = vcmp.lt.s32.totalorder %v644, 8
  %vm677 = vcmp.lt.s32.totalorder %v645, 8
  %vm678 = vcmp.lt.s32.totalorder %v646, 8
  %vm679 = vcmp.lt.s32.totalorder %v647, 8
  %vm680 = vcmp.lt.s32.totalorder %v648, 8
  %vm681 = vcmp.lt.s32.totalorder %v649, 8
  %vm682 = vcmp.lt.s32.totalorder %v650, 8
  %vm683 = vcmp.lt.s32.totalorder %v651, 8
  %vm684 = vcmp.lt.s32.totalorder %v652, 8
  %vm685 = vcmp.lt.s32.totalorder %v653, 8
  %vm686 = vcmp.lt.s32.totalorder %v654, 8
  %vm687 = vcmp.lt.s32.totalorder %v655, 8
  %vm688 = vcmp.lt.s32.totalorder %v656, 8
  %vm689 = vmand %vm657, %vm673
  %vm690 = vmand %vm658, %vm674
  %vm691 = vmand %vm659, %vm675
  %vm692 = vmand %vm660, %vm676
  %vm693 = vmand %vm661, %vm677
  %vm694 = vmand %vm662, %vm678
  %vm695 = vmand %vm663, %vm679
  %vm696 = vmand %vm664, %vm680
  %vm697 = vmand %vm665, %vm681
  %vm698 = vmand %vm666, %vm682
  %vm699 = vmand %vm667, %vm683
  %vm700 = vmand %vm668, %vm684
  %vm701 = vmand %vm669, %vm685
  %vm702 = vmand %vm670, %vm686
  %vm703 = vmand %vm671, %vm687
  %vm704 = vmand %vm672, %vm688
  %vm705 = vmand %vm689, %vm193
  %vm706 = vmand %vm690, %vm194
  %vm707 = vmand %vm691, %vm195
  %vm708 = vmand %vm692, %vm196
  %vm709 = vmand %vm693, %vm197
  %vm710 = vmand %vm694, %vm198
  %vm711 = vmand %vm695, %vm199
  %vm712 = vmand %vm696, %vm200
  %vm713 = vmand %vm697, %vm201
  %vm714 = vmand %vm698, %vm202
  %vm715 = vmand %vm699, %vm203
  %vm716 = vmand %vm700, %vm204
  %vm717 = vmand %vm701, %vm205
  %vm718 = vmand %vm702, %vm206
  %vm719 = vmand %vm703, %vm207
  %vm720 = vmand %vm704, %vm208
  %vm721 = vmand %vm705, %vm225
  %vm722 = vmand %vm706, %vm226
  %vm723 = vmand %vm707, %vm227
  %vm724 = vmand %vm708, %vm228
  %vm725 = vmand %vm709, %vm229
  %vm726 = vmand %vm710, %vm230
  %vm727 = vmand %vm711, %vm231
  %vm728 = vmand %vm712, %vm232
  %vm729 = vmand %vm713, %vm233
  %vm730 = vmand %vm714, %vm234
  %vm731 = vmand %vm715, %vm235
  %vm732 = vmand %vm716, %vm236
  %vm733 = vmand %vm717, %vm237
  %vm734 = vmand %vm718, %vm238
  %vm735 = vmand %vm719, %vm239
  %vm736 = vmand %vm720, %vm240
  %v737 = vsel %vm721, 1.0, 0.0
  %v738 = vsel %vm722, 1.0, 0.0
  %v739 = vsel %vm723, 1.0, 0.0
  %v740 = vsel %vm724, 1.0, 0.0
  %v741 = vsel %vm725, 1.0, 0.0
  %v742 = vsel %vm726, 1.0, 0.0
  %v743 = vsel %vm727, 1.0, 0.0
  %v744 = vsel %vm728, 1.0, 0.0
  %v745 = vsel %vm729, 1.0, 0.0
  %v746 = vsel %vm730, 1.0, 0.0
  %v747 = vsel %vm731, 1.0, 0.0
  %v748 = vsel %vm732, 1.0, 0.0
  %v749 = vsel %vm733, 1.0, 0.0
  %v750 = vsel %vm734, 1.0, 0.0
  %v751 = vsel %vm735, 1.0, 0.0
  %v752 = vsel %vm736, 1.0, 0.0
  %vm753 = vmand %vm689, %vm273
  %vm754 = vmand %vm690, %vm274
  %vm755 = vmand %vm691, %vm275
  %vm756 = vmand %vm692, %vm276
  %vm757 = vmand %vm693, %vm277
  %vm758 = vmand %vm694, %vm278
  %vm759 = vmand %vm695, %vm279
  %vm760 = vmand %vm696, %vm280
  %vm761 = vmand %vm697, %vm281
  %vm762 = vmand %vm698, %vm282
  %vm763 = vmand %vm699, %vm283
  %vm764 = vmand %vm700, %vm284
  %vm765 = vmand %vm701, %vm285
  %vm766 = vmand %vm702, %vm286
  %vm767 = vmand %vm703, %vm287
  %vm768 = vmand %vm704, %vm288
  %vm769 = vmand %vm753, %vm305
  %vm770 = vmand %vm754, %vm306
  %vm771 = vmand %vm755, %vm307
  %vm772 = vmand %vm756, %vm308
  %vm773 = vmand %vm757, %vm309
  %vm774 = vmand %vm758, %vm310
  %vm775 = vmand %vm759, %vm311
  %vm776 = vmand %vm760, %vm312
  %vm777 = vmand %vm761, %vm313
  %vm778 = vmand %vm762, %vm314
  %vm779 = vmand %vm763, %vm315
  %vm780 = vmand %vm764, %vm316
  %vm781 = vmand %vm765, %vm317
  %vm782 = vmand %vm766, %vm318
  %vm783 = vmand %vm767, %vm319
  %vm784 = vmand %vm768, %vm320
  %v785 = vsel %vm769, 1.0, 0.0
  %v786 = vsel %vm770, 1.0, 0.0
  %v787 = vsel %vm771, 1.0, 0.0
  %v788 = vsel %vm772, 1.0, 0.0
  %v789 = vsel %vm773, 1.0, 0.0
  %v790 = vsel %vm774, 1.0, 0.0
  %v791 = vsel %vm775, 1.0, 0.0
  %v792 = vsel %vm776, 1.0, 0.0
  %v793 = vsel %vm777, 1.0, 0.0
  %v794 = vsel %vm778, 1.0, 0.0
  %v795 = vsel %vm779, 1.0, 0.0
  %v796 = vsel %vm780, 1.0, 0.0
  %v797 = vsel %vm781, 1.0, 0.0
  %v798 = vsel %vm782, 1.0, 0.0
  %v799 = vsel %vm783, 1.0, 0.0
  %v800 = vsel %vm784, 1.0, 0.0
  %vm801 = vmand %vm689, %vm369
  %vm802 = vmand %vm690, %vm370
  %vm803 = vmand %vm691, %vm371
  %vm804 = vmand %vm692, %vm372
  %vm805 = vmand %vm693, %vm373
  %vm806 = vmand %vm694, %vm374
  %vm807 = vmand %vm695, %vm375
  %vm808 = vmand %vm696, %vm376
  %vm809 = vmand %vm697, %vm377
  %vm810 = vmand %vm698, %vm378
  %vm811 = vmand %vm699, %vm379
  %vm812 = vmand %vm700, %vm380
  %vm813 = vmand %vm701, %vm381
  %vm814 = vmand %vm702, %vm382
  %vm815 = vmand %vm703, %vm383
  %vm816 = vmand %vm704, %vm384
  %vm817 = vmand %vm801, %vm401
  %vm818 = vmand %vm802, %vm402
  %vm819 = vmand %vm803, %vm403
  %vm820 = vmand %vm804, %vm404
  %vm821 = vmand %vm805, %vm405
  %vm822 = vmand %vm806, %vm406
  %vm823 = vmand %vm807, %vm407
  %vm824 = vmand %vm808, %vm408
  %vm825 = vmand %vm809, %vm409
  %vm826 = vmand %vm810, %vm410
  %vm827 = vmand %vm811, %vm411
  %vm828 = vmand %vm812, %vm412
  %vm829 = vmand %vm813, %vm413
  %vm830 = vmand %vm814, %vm414
  %vm831 = vmand %vm815, %vm415
  %vm832 = vmand %vm816, %vm416
  %v833 = vsel %vm817, 1.0, 0.0
  %v834 = vsel %vm818, 1.0, 0.0
  %v835 = vsel %vm819, 1.0, 0.0
  %v836 = vsel %vm820, 1.0, 0.0
  %v837 = vsel %vm821, 1.0, 0.0
  %v838 = vsel %vm822, 1.0, 0.0
  %v839 = vsel %vm823, 1.0, 0.0
  %v840 = vsel %vm824, 1.0, 0.0
  %v841 = vsel %vm825, 1.0, 0.0
  %v842 = vsel %vm826, 1.0, 0.0
  %v843 = vsel %vm827, 1.0, 0.0
  %v844 = vsel %vm828, 1.0, 0.0
  %v845 = vsel %vm829, 1.0, 0.0
  %v846 = vsel %vm830, 1.0, 0.0
  %v847 = vsel %vm831, 1.0, 0.0
  %v848 = vsel %vm832, 1.0, 0.0
  %v849 = vld [vmem:[%s0] sm:$0xff]
  %v850 = vld [vmem:[%s0 + $0x8] sm:$0xff]
  %v851 = vld [vmem:[%s0 + $0x10] sm:$0xff]
  %v852 = vld [vmem:[%s0 + $0x18] sm:$0xff]
  %v853 = vld [vmem:[%s0 + $0x20] sm:$0xff]
  %v854 = vld [vmem:[%s0 + $0x28] sm:$0xff]
  %v855 = vld [vmem:[%s0 + $0x30] sm:$0xff]
  %v856 = vld [vmem:[%s0 + $0x38] sm:$0xff]
  %v857 = vld [vmem:[%s0 + $0x40] sm:$0xff]
  %v858 = vld [vmem:[%s0 + $0x48] sm:$0xff]
  %v859 = vld [vmem:[%s0 + $0x50] sm:$0xff]
  %v860 = vld [vmem:[%s0 + $0x58] sm:$0xff]
  %v861 = vld [vmem:[%s0 + $0x60] sm:$0xff]
  %v862 = vld [vmem:[%s0 + $0x68] sm:$0xff]
  %v863 = vld [vmem:[%s0 + $0x70] sm:$0xff]
  %v864 = vld [vmem:[%s0 + $0x78] sm:$0xff]
  %866 = vset.pattern.permute.xlu0 0
  %867 = vperm.xlu0 %866, %v849
  %v868 = vpop.permute.xlu0 %867
  %871 = vset.pattern.permute.xlu0 0
  %872 = vperm.xlu0 %871, %v850
  %v873 = vpop.permute.xlu0 %872
  %876 = vset.pattern.permute.xlu0 0
  %877 = vperm.xlu0 %876, %v851
  %v878 = vpop.permute.xlu0 %877
  %881 = vset.pattern.permute.xlu0 0
  %882 = vperm.xlu0 %881, %v852
  %v883 = vpop.permute.xlu0 %882
  %886 = vset.pattern.permute.xlu0 0
  %887 = vperm.xlu0 %886, %v853
  %v888 = vpop.permute.xlu0 %887
  %891 = vset.pattern.permute.xlu0 0
  %892 = vperm.xlu0 %891, %v854
  %v893 = vpop.permute.xlu0 %892
  %896 = vset.pattern.permute.xlu0 0
  %897 = vperm.xlu0 %896, %v855
  %v898 = vpop.permute.xlu0 %897
  %901 = vset.pattern.permute.xlu0 0
  %902 = vperm.xlu0 %901, %v856
  %v903 = vpop.permute.xlu0 %902
  %906 = vset.pattern.permute.xlu0 0
  %907 = vperm.xlu0 %906, %v857
  %v908 = vpop.permute.xlu0 %907
  %911 = vset.pattern.permute.xlu0 0
  %912 = vperm.xlu0 %911, %v858
  %v913 = vpop.permute.xlu0 %912
  %916 = vset.pattern.permute.xlu0 0
  %917 = vperm.xlu0 %916, %v859
  %v918 = vpop.permute.xlu0 %917
  %921 = vset.pattern.permute.xlu0 0
  %922 = vperm.xlu0 %921, %v860
  %v923 = vpop.permute.xlu0 %922
  %926 = vset.pattern.permute.xlu0 0
  %927 = vperm.xlu0 %926, %v861
  %v928 = vpop.permute.xlu0 %927
  %931 = vset.pattern.permute.xlu0 0
  %932 = vperm.xlu0 %931, %v862
  %v933 = vpop.permute.xlu0 %932
  %936 = vset.pattern.permute.xlu0 0
  %937 = vperm.xlu0 %936, %v863
  %v938 = vpop.permute.xlu0 %937
  %941 = vset.pattern.permute.xlu0 0
  %942 = vperm.xlu0 %941, %v864
  %v943 = vpop.permute.xlu0 %942
  %v945 = vrot.slane %v868, 7
  %v946 = vrot.slane %v873, 7
  %v947 = vrot.slane %v878, 7
  %v948 = vrot.slane %v883, 7
  %v949 = vrot.slane %v888, 7
  %v950 = vrot.slane %v893, 7
  %v951 = vrot.slane %v898, 7
  %v952 = vrot.slane %v903, 7
  %v953 = vrot.slane %v908, 7
  %v954 = vrot.slane %v913, 7
  %v955 = vrot.slane %v918, 7
  %v956 = vrot.slane %v923, 7
  %v957 = vrot.slane %v928, 7
  %v958 = vrot.slane %v933, 7
  %v959 = vrot.slane %v938, 7
  %v960 = vrot.slane %v943, 7
  %vm961 = vcmp.lt.s32.totalorder %v49, 1
  %v962 = vsel %vm961, %v959, %v960
  %v963 = vsel %vm961, %v958, %v959
  %v964 = vsel %vm961, %v957, %v958
  %v965 = vsel %vm961, %v956, %v957
  %v966 = vsel %vm961, %v955, %v956
  %v967 = vsel %vm961, %v954, %v955
  %v968 = vsel %vm961, %v953, %v954
  %v969 = vsel %vm961, %v952, %v953
  %v970 = vsel %vm961, %v951, %v952
  %v971 = vsel %vm961, %v950, %v951
  %v972 = vsel %vm961, %v949, %v950
  %v973 = vsel %vm961, %v948, %v949
  %v974 = vsel %vm961, %v947, %v948
  %v975 = vsel %vm961, %v946, %v947
  %v976 = vsel %vm961, %v945, %v946
  %v977 = vsel %vm961, %v960, %v945
  %v978 = vmul.f32 %v962, %v257
  %v979 = vmul.f32 %v977, %v258
  %v980 = vmul.f32 %v976, %v259
  %v981 = vmul.f32 %v975, %v260
  %v982 = vmul.f32 %v974, %v261
  %v983 = vmul.f32 %v973, %v262
  %v984 = vmul.f32 %v972, %v263
  %v985 = vmul.f32 %v971, %v264
  %v986 = vmul.f32 %v970, %v265
  %v987 = vmul.f32 %v969, %v266
  %v988 = vmul.f32 %v968, %v267
  %v989 = vmul.f32 %v967, %v268
  %v990 = vmul.f32 %v966, %v269
  %v991 = vmul.f32 %v965, %v270
  %v992 = vmul.f32 %v964, %v271
  %v993 = vmul.f32 %v963, %v272
  %v994 = vld [vmem:[%s1] sm:$0x1]
  %v996 = vlaneseq
  %v997 = vshrl.u32 %v996, 7
  %v998 = vsub.s32 0, %v997
  %v999 = vrot.slane %v994, %v998
  %v1001 = vmul.f32 %v978, %v999
  %v1002 = vmul.f32 %v979, %v999
  %v1003 = vmul.f32 %v980, %v999
  %v1004 = vmul.f32 %v981, %v999
  %v1005 = vmul.f32 %v982, %v999
  %v1006 = vmul.f32 %v983, %v999
  %v1007 = vmul.f32 %v984, %v999
  %v1008 = vmul.f32 %v985, %v999
  %v1009 = vmul.f32 %v986, %v999
  %v1010 = vmul.f32 %v987, %v999
  %v1011 = vmul.f32 %v988, %v999
  %v1012 = vmul.f32 %v989, %v999
  %v1013 = vmul.f32 %v990, %v999
  %v1014 = vmul.f32 %v991, %v999
  %v1015 = vmul.f32 %v992, %v999
  %v1016 = vmul.f32 %v993, %v999
  %v1017 = vadd.f32 %v1001, 0.0
  %v1018 = vadd.f32 %v1002, 0.0
  %v1019 = vadd.f32 %v1003, 0.0
  %v1020 = vadd.f32 %v1004, 0.0
  %v1021 = vadd.f32 %v1005, 0.0
  %v1022 = vadd.f32 %v1006, 0.0
  %v1023 = vadd.f32 %v1007, 0.0
  %v1024 = vadd.f32 %v1008, 0.0
  %v1025 = vadd.f32 %v1009, 0.0
  %v1026 = vadd.f32 %v1010, 0.0
  %v1027 = vadd.f32 %v1011, 0.0
  %v1028 = vadd.f32 %v1012, 0.0
  %v1029 = vadd.f32 %v1013, 0.0
  %v1030 = vadd.f32 %v1014, 0.0
  %v1031 = vadd.f32 %v1015, 0.0
  %v1032 = vadd.f32 %v1016, 0.0
  %v1033 = vmul.f32 %v943, %v337
  %v1034 = vmul.f32 %v868, %v338
  %v1035 = vmul.f32 %v873, %v339
  %v1036 = vmul.f32 %v878, %v340
  %v1037 = vmul.f32 %v883, %v341
  %v1038 = vmul.f32 %v888, %v342
  %v1039 = vmul.f32 %v893, %v343
  %v1040 = vmul.f32 %v898, %v344
  %v1041 = vmul.f32 %v903, %v345
  %v1042 = vmul.f32 %v908, %v346
  %v1043 = vmul.f32 %v913, %v347
  %v1044 = vmul.f32 %v918, %v348
  %v1045 = vmul.f32 %v923, %v349
  %v1046 = vmul.f32 %v928, %v350
  %v1047 = vmul.f32 %v933, %v351
  %v1048 = vmul.f32 %v938, %v352
  %s1049 = scalar_lea.vmem %s1, 1
  %v1050 = vld [vmem:[%s1049] sm:$0x1]
  %v1052 = vlaneseq
  %v1053 = vshrl.u32 %v1052, 7
  %v1054 = vsub.s32 0, %v1053
  %v1055 = vrot.slane %v1050, %v1054
  %v1057 = vmul.f32 %v1033, %v1055
  %v1058 = vmul.f32 %v1034, %v1055
  %v1059 = vmul.f32 %v1035, %v1055
  %v1060 = vmul.f32 %v1036, %v1055
  %v1061 = vmul.f32 %v1037, %v1055
  %v1062 = vmul.f32 %v1038, %v1055
  %v1063 = vmul.f32 %v1039, %v1055
  %v1064 = vmul.f32 %v1040, %v1055
  %v1065 = vmul.f32 %v1041, %v1055
  %v1066 = vmul.f32 %v1042, %v1055
  %v1067 = vmul.f32 %v1043, %v1055
  %v1068 = vmul.f32 %v1044, %v1055
  %v1069 = vmul.f32 %v1045, %v1055
  %v1070 = vmul.f32 %v1046, %v1055
  %v1071 = vmul.f32 %v1047, %v1055
  %v1072 = vmul.f32 %v1048, %v1055
  %v1073 = vadd.f32 %v1017, %v1057
  %v1074 = vadd.f32 %v1018, %v1058
  %v1075 = vadd.f32 %v1019, %v1059
  %v1076 = vadd.f32 %v1020, %v1060
  %v1077 = vadd.f32 %v1021, %v1061
  %v1078 = vadd.f32 %v1022, %v1062
  %v1079 = vadd.f32 %v1023, %v1063
  %v1080 = vadd.f32 %v1024, %v1064
  %v1081 = vadd.f32 %v1025, %v1065
  %v1082 = vadd.f32 %v1026, %v1066
  %v1083 = vadd.f32 %v1027, %v1067
  %v1084 = vadd.f32 %v1028, %v1068
  %v1085 = vadd.f32 %v1029, %v1069
  %v1086 = vadd.f32 %v1030, %v1070
  %v1087 = vadd.f32 %v1031, %v1071
  %v1088 = vadd.f32 %v1032, %v1072
  %v1089 = vrot.slane %v868, 1
  %v1090 = vrot.slane %v873, 1
  %v1091 = vrot.slane %v878, 1
  %v1092 = vrot.slane %v883, 1
  %v1093 = vrot.slane %v888, 1
  %v1094 = vrot.slane %v893, 1
  %v1095 = vrot.slane %v898, 1
  %v1096 = vrot.slane %v903, 1
  %v1097 = vrot.slane %v908, 1
  %v1098 = vrot.slane %v913, 1
  %v1099 = vrot.slane %v918, 1
  %v1100 = vrot.slane %v923, 1
  %v1101 = vrot.slane %v928, 1
  %v1102 = vrot.slane %v933, 1
  %v1103 = vrot.slane %v938, 1
  %v1104 = vrot.slane %v943, 1
  %vm1105 = vcmp.lt.s32.totalorder %v49, 7
  %v1106 = vsel %vm1105, %v1103, %v1104
  %v1107 = vsel %vm1105, %v1102, %v1103
  %v1108 = vsel %vm1105, %v1101, %v1102
  %v1109 = vsel %vm1105, %v1100, %v1101
  %v1110 = vsel %vm1105, %v1099, %v1100
  %v1111 = vsel %vm1105, %v1098, %v1099
  %v1112 = vsel %vm1105, %v1097, %v1098
  %v1113 = vsel %vm1105, %v1096, %v1097
  %v1114 = vsel %vm1105, %v1095, %v1096
  %v1115 = vsel %vm1105, %v1094, %v1095
  %v1116 = vsel %vm1105, %v1093, %v1094
  %v1117 = vsel %vm1105, %v1092, %v1093
  %v1118 = vsel %vm1105, %v1091, %v1092
  %v1119 = vsel %vm1105, %v1090, %v1091
  %v1120 = vsel %vm1105, %v1089, %v1090
  %v1121 = vsel %vm1105, %v1104, %v1089
  %v1122 = vmul.f32 %v1121, %v433
  %v1123 = vmul.f32 %v1120, %v434
  %v1124 = vmul.f32 %v1119, %v435
  %v1125 = vmul.f32 %v1118, %v436
  %v1126 = vmul.f32 %v1117, %v437
  %v1127 = vmul.f32 %v1116, %v438
  %v1128 = vmul.f32 %v1115, %v439
  %v1129 = vmul.f32 %v1114, %v440
  %v1130 = vmul.f32 %v1113, %v441
  %v1131 = vmul.f32 %v1112, %v442
  %v1132 = vmul.f32 %v1111, %v443
  %v1133 = vmul.f32 %v1110, %v444
  %v1134 = vmul.f32 %v1109, %v445
  %v1135 = vmul.f32 %v1108, %v446
  %v1136 = vmul.f32 %v1107, %v447
  %v1137 = vmul.f32 %v1106, %v448
  %s1138 = scalar_lea.vmem %s1, 2
  %v1139 = vld [vmem:[%s1138] sm:$0x1]
  %v1141 = vlaneseq
  %v1142 = vshrl.u32 %v1141, 7
  %v1143 = vsub.s32 0, %v1142
  %v1144 = vrot.slane %v1139, %v1143
  %v1146 = vmul.f32 %v1122, %v1144
  %v1147 = vmul.f32 %v1123, %v1144
  %v1148 = vmul.f32 %v1124, %v1144
  %v1149 = vmul.f32 %v1125, %v1144
  %v1150 = vmul.f32 %v1126, %v1144
  %v1151 = vmul.f32 %v1127, %v1144
  %v1152 = vmul.f32 %v1128, %v1144
  %v1153 = vmul.f32 %v1129, %v1144
  %v1154 = vmul.f32 %v1130, %v1144
  %v1155 = vmul.f32 %v1131, %v1144
  %v1156 = vmul.f32 %v1132, %v1144
  %v1157 = vmul.f32 %v1133, %v1144
  %v1158 = vmul.f32 %v1134, %v1144
  %v1159 = vmul.f32 %v1135, %v1144
  %v1160 = vmul.f32 %v1136, %v1144
  %v1161 = vmul.f32 %v1137, %v1144
  %v1162 = vadd.f32 %v1073, %v1146
  %v1163 = vadd.f32 %v1074, %v1147
  %v1164 = vadd.f32 %v1075, %v1148
  %v1165 = vadd.f32 %v1076, %v1149
  %v1166 = vadd.f32 %v1077, %v1150
  %v1167 = vadd.f32 %v1078, %v1151
  %v1168 = vadd.f32 %v1079, %v1152
  %v1169 = vadd.f32 %v1080, %v1153
  %v1170 = vadd.f32 %v1081, %v1154
  %v1171 = vadd.f32 %v1082, %v1155
  %v1172 = vadd.f32 %v1083, %v1156
  %v1173 = vadd.f32 %v1084, %v1157
  %v1174 = vadd.f32 %v1085, %v1158
  %v1175 = vadd.f32 %v1086, %v1159
  %v1176 = vadd.f32 %v1087, %v1160
  %v1177 = vadd.f32 %v1088, %v1161
  %v1178 = vmul.f32 %v977, %v529
  %v1179 = vmul.f32 %v976, %v530
  %v1180 = vmul.f32 %v975, %v531
  %v1181 = vmul.f32 %v974, %v532
  %v1182 = vmul.f32 %v973, %v533
  %v1183 = vmul.f32 %v972, %v534
  %v1184 = vmul.f32 %v971, %v535
  %v1185 = vmul.f32 %v970, %v536
  %v1186 = vmul.f32 %v969, %v537
  %v1187 = vmul.f32 %v968, %v538
  %v1188 = vmul.f32 %v967, %v539
  %v1189 = vmul.f32 %v966, %v540
  %v1190 = vmul.f32 %v965, %v541
  %v1191 = vmul.f32 %v964, %v542
  %v1192 = vmul.f32 %v963, %v543
  %v1193 = vmul.f32 %v962, %v544
  %s1194 = scalar_lea.vmem %s1, 3
  %v1195 = vld [vmem:[%s1194] sm:$0x1]
  %v1197 = vlaneseq
  %v1198 = vshrl.u32 %v1197, 7
  %v1199 = vsub.s32 0, %v1198
  %v1200 = vrot.slane %v1195, %v1199
  %v1202 = vmul.f32 %v1178, %v1200
  %v1203 = vmul.f32 %v1179, %v1200
  %v1204 = vmul.f32 %v1180, %v1200
  %v1205 = vmul.f32 %v1181, %v1200
  %v1206 = vmul.f32 %v1182, %v1200
  %v1207 = vmul.f32 %v1183, %v1200
  %v1208 = vmul.f32 %v1184, %v1200
  %v1209 = vmul.f32 %v1185, %v1200
  %v1210 = vmul.f32 %v1186, %v1200
  %v1211 = vmul.f32 %v1187, %v1200
  %v1212 = vmul.f32 %v1188, %v1200
  %v1213 = vmul.f32 %v1189, %v1200
  %v1214 = vmul.f32 %v1190, %v1200
  %v1215 = vmul.f32 %v1191, %v1200
  %v1216 = vmul.f32 %v1192, %v1200
  %v1217 = vmul.f32 %v1193, %v1200
  %v1218 = vadd.f32 %v1162, %v1202
  %v1219 = vadd.f32 %v1163, %v1203
  %v1220 = vadd.f32 %v1164, %v1204
  %v1221 = vadd.f32 %v1165, %v1205
  %v1222 = vadd.f32 %v1166, %v1206
  %v1223 = vadd.f32 %v1167, %v1207
  %v1224 = vadd.f32 %v1168, %v1208
  %v1225 = vadd.f32 %v1169, %v1209
  %v1226 = vadd.f32 %v1170, %v1210
  %v1227 = vadd.f32 %v1171, %v1211
  %v1228 = vadd.f32 %v1172, %v1212
  %v1229 = vadd.f32 %v1173, %v1213
  %v1230 = vadd.f32 %v1174, %v1214
  %v1231 = vadd.f32 %v1175, %v1215
  %v1232 = vadd.f32 %v1176, %v1216
  %v1233 = vadd.f32 %v1177, %v1217
  %v1234 = vmul.f32 %v868, %v577
  %v1235 = vmul.f32 %v873, %v578
  %v1236 = vmul.f32 %v878, %v579
  %v1237 = vmul.f32 %v883, %v580
  %v1238 = vmul.f32 %v888, %v581
  %v1239 = vmul.f32 %v893, %v582
  %v1240 = vmul.f32 %v898, %v583
  %v1241 = vmul.f32 %v903, %v584
  %v1242 = vmul.f32 %v908, %v585
  %v1243 = vmul.f32 %v913, %v586
  %v1244 = vmul.f32 %v918, %v587
  %v1245 = vmul.f32 %v923, %v588
  %v1246 = vmul.f32 %v928, %v589
  %v1247 = vmul.f32 %v933, %v590
  %v1248 = vmul.f32 %v938, %v591
  %v1249 = vmul.f32 %v943, %v592
  %s1250 = scalar_lea.vmem %s1, 4
  %v1251 = vld [vmem:[%s1250] sm:$0x1]
  %v1253 = vlaneseq
  %v1254 = vshrl.u32 %v1253, 7
  %v1255 = vsub.s32 0, %v1254
  %v1256 = vrot.slane %v1251, %v1255
  %v1258 = vmul.f32 %v1234, %v1256
  %v1259 = vmul.f32 %v1235, %v1256
  %v1260 = vmul.f32 %v1236, %v1256
  %v1261 = vmul.f32 %v1237, %v1256
  %v1262 = vmul.f32 %v1238, %v1256
  %v1263 = vmul.f32 %v1239, %v1256
  %v1264 = vmul.f32 %v1240, %v1256
  %v1265 = vmul.f32 %v1241, %v1256
  %v1266 = vmul.f32 %v1242, %v1256
  %v1267 = vmul.f32 %v1243, %v1256
  %v1268 = vmul.f32 %v1244, %v1256
  %v1269 = vmul.f32 %v1245, %v1256
  %v1270 = vmul.f32 %v1246, %v1256
  %v1271 = vmul.f32 %v1247, %v1256
  %v1272 = vmul.f32 %v1248, %v1256
  %v1273 = vmul.f32 %v1249, %v1256
  %v1274 = vadd.f32 %v1218, %v1258
  %v1275 = vadd.f32 %v1219, %v1259
  %v1276 = vadd.f32 %v1220, %v1260
  %v1277 = vadd.f32 %v1221, %v1261
  %v1278 = vadd.f32 %v1222, %v1262
  %v1279 = vadd.f32 %v1223, %v1263
  %v1280 = vadd.f32 %v1224, %v1264
  %v1281 = vadd.f32 %v1225, %v1265
  %v1282 = vadd.f32 %v1226, %v1266
  %v1283 = vadd.f32 %v1227, %v1267
  %v1284 = vadd.f32 %v1228, %v1268
  %v1285 = vadd.f32 %v1229, %v1269
  %v1286 = vadd.f32 %v1230, %v1270
  %v1287 = vadd.f32 %v1231, %v1271
  %v1288 = vadd.f32 %v1232, %v1272
  %v1289 = vadd.f32 %v1233, %v1273
  %v1290 = vmul.f32 %v1120, %v625
  %v1291 = vmul.f32 %v1119, %v626
  %v1292 = vmul.f32 %v1118, %v627
  %v1293 = vmul.f32 %v1117, %v628
  %v1294 = vmul.f32 %v1116, %v629
  %v1295 = vmul.f32 %v1115, %v630
  %v1296 = vmul.f32 %v1114, %v631
  %v1297 = vmul.f32 %v1113, %v632
  %v1298 = vmul.f32 %v1112, %v633
  %v1299 = vmul.f32 %v1111, %v634
  %v1300 = vmul.f32 %v1110, %v635
  %v1301 = vmul.f32 %v1109, %v636
  %v1302 = vmul.f32 %v1108, %v637
  %v1303 = vmul.f32 %v1107, %v638
  %v1304 = vmul.f32 %v1106, %v639
  %v1305 = vmul.f32 %v1121, %v640
  %s1306 = scalar_lea.vmem %s1, 5
  %v1307 = vld [vmem:[%s1306] sm:$0x1]
  %v1309 = vlaneseq
  %v1310 = vshrl.u32 %v1309, 7
  %v1311 = vsub.s32 0, %v1310
  %v1312 = vrot.slane %v1307, %v1311
  %v1314 = vmul.f32 %v1290, %v1312
  %v1315 = vmul.f32 %v1291, %v1312
  %v1316 = vmul.f32 %v1292, %v1312
  %v1317 = vmul.f32 %v1293, %v1312
  %v1318 = vmul.f32 %v1294, %v1312
  %v1319 = vmul.f32 %v1295, %v1312
  %v1320 = vmul.f32 %v1296, %v1312
  %v1321 = vmul.f32 %v1297, %v1312
  %v1322 = vmul.f32 %v1298, %v1312
  %v1323 = vmul.f32 %v1299, %v1312
  %v1324 = vmul.f32 %v1300, %v1312
  %v1325 = vmul.f32 %v1301, %v1312
  %v1326 = vmul.f32 %v1302, %v1312
  %v1327 = vmul.f32 %v1303, %v1312
  %v1328 = vmul.f32 %v1304, %v1312
  %v1329 = vmul.f32 %v1305, %v1312
  %v1330 = vadd.f32 %v1274, %v1314
  %v1331 = vadd.f32 %v1275, %v1315
  %v1332 = vadd.f32 %v1276, %v1316
  %v1333 = vadd.f32 %v1277, %v1317
  %v1334 = vadd.f32 %v1278, %v1318
  %v1335 = vadd.f32 %v1279, %v1319
  %v1336 = vadd.f32 %v1280, %v1320
  %v1337 = vadd.f32 %v1281, %v1321
  %v1338 = vadd.f32 %v1282, %v1322
  %v1339 = vadd.f32 %v1283, %v1323
  %v1340 = vadd.f32 %v1284, %v1324
  %v1341 = vadd.f32 %v1285, %v1325
  %v1342 = vadd.f32 %v1286, %v1326
  %v1343 = vadd.f32 %v1287, %v1327
  %v1344 = vadd.f32 %v1288, %v1328
  %v1345 = vadd.f32 %v1289, %v1329
  %v1346 = vmul.f32 %v976, %v737
  %v1347 = vmul.f32 %v975, %v738
  %v1348 = vmul.f32 %v974, %v739
  %v1349 = vmul.f32 %v973, %v740
  %v1350 = vmul.f32 %v972, %v741
  %v1351 = vmul.f32 %v971, %v742
  %v1352 = vmul.f32 %v970, %v743
  %v1353 = vmul.f32 %v969, %v744
  %v1354 = vmul.f32 %v968, %v745
  %v1355 = vmul.f32 %v967, %v746
  %v1356 = vmul.f32 %v966, %v747
  %v1357 = vmul.f32 %v965, %v748
  %v1358 = vmul.f32 %v964, %v749
  %v1359 = vmul.f32 %v963, %v750
  %v1360 = vmul.f32 %v962, %v751
  %v1361 = vmul.f32 %v977, %v752
  %s1362 = scalar_lea.vmem %s1, 6
  %v1363 = vld [vmem:[%s1362] sm:$0x1]
  %v1365 = vlaneseq
  %v1366 = vshrl.u32 %v1365, 7
  %v1367 = vsub.s32 0, %v1366
  %v1368 = vrot.slane %v1363, %v1367
  %v1370 = vmul.f32 %v1346, %v1368
  %v1371 = vmul.f32 %v1347, %v1368
  %v1372 = vmul.f32 %v1348, %v1368
  %v1373 = vmul.f32 %v1349, %v1368
  %v1374 = vmul.f32 %v1350, %v1368
  %v1375 = vmul.f32 %v1351, %v1368
  %v1376 = vmul.f32 %v1352, %v1368
  %v1377 = vmul.f32 %v1353, %v1368
  %v1378 = vmul.f32 %v1354, %v1368
  %v1379 = vmul.f32 %v1355, %v1368
  %v1380 = vmul.f32 %v1356, %v1368
  %v1381 = vmul.f32 %v1357, %v1368
  %v1382 = vmul.f32 %v1358, %v1368
  %v1383 = vmul.f32 %v1359, %v1368
  %v1384 = vmul.f32 %v1360, %v1368
  %v1385 = vmul.f32 %v1361, %v1368
  %v1386 = vadd.f32 %v1330, %v1370
  %v1387 = vadd.f32 %v1331, %v1371
  %v1388 = vadd.f32 %v1332, %v1372
  %v1389 = vadd.f32 %v1333, %v1373
  %v1390 = vadd.f32 %v1334, %v1374
  %v1391 = vadd.f32 %v1335, %v1375
  %v1392 = vadd.f32 %v1336, %v1376
  %v1393 = vadd.f32 %v1337, %v1377
  %v1394 = vadd.f32 %v1338, %v1378
  %v1395 = vadd.f32 %v1339, %v1379
  %v1396 = vadd.f32 %v1340, %v1380
  %v1397 = vadd.f32 %v1341, %v1381
  %v1398 = vadd.f32 %v1342, %v1382
  %v1399 = vadd.f32 %v1343, %v1383
  %v1400 = vadd.f32 %v1344, %v1384
  %v1401 = vadd.f32 %v1345, %v1385
  %v1402 = vmul.f32 %v873, %v785
  %v1403 = vmul.f32 %v878, %v786
  %v1404 = vmul.f32 %v883, %v787
  %v1405 = vmul.f32 %v888, %v788
  %v1406 = vmul.f32 %v893, %v789
  %v1407 = vmul.f32 %v898, %v790
  %v1408 = vmul.f32 %v903, %v791
  %v1409 = vmul.f32 %v908, %v792
  %v1410 = vmul.f32 %v913, %v793
  %v1411 = vmul.f32 %v918, %v794
  %v1412 = vmul.f32 %v923, %v795
  %v1413 = vmul.f32 %v928, %v796
  %v1414 = vmul.f32 %v933, %v797
  %v1415 = vmul.f32 %v938, %v798
  %v1416 = vmul.f32 %v943, %v799
  %v1417 = vmul.f32 %v868, %v800
  %s1418 = scalar_lea.vmem %s1, 7
  %v1419 = vld [vmem:[%s1418] sm:$0x1]
  %v1421 = vlaneseq
  %v1422 = vshrl.u32 %v1421, 7
  %v1423 = vsub.s32 0, %v1422
  %v1424 = vrot.slane %v1419, %v1423
  %v1426 = vmul.f32 %v1402, %v1424
  %v1427 = vmul.f32 %v1403, %v1424
  %v1428 = vmul.f32 %v1404, %v1424
  %v1429 = vmul.f32 %v1405, %v1424
  %v1430 = vmul.f32 %v1406, %v1424
  %v1431 = vmul.f32 %v1407, %v1424
  %v1432 = vmul.f32 %v1408, %v1424
  %v1433 = vmul.f32 %v1409, %v1424
  %v1434 = vmul.f32 %v1410, %v1424
  %v1435 = vmul.f32 %v1411, %v1424
  %v1436 = vmul.f32 %v1412, %v1424
  %v1437 = vmul.f32 %v1413, %v1424
  %v1438 = vmul.f32 %v1414, %v1424
  %v1439 = vmul.f32 %v1415, %v1424
  %v1440 = vmul.f32 %v1416, %v1424
  %v1441 = vmul.f32 %v1417, %v1424
  %v1442 = vadd.f32 %v1386, %v1426
  %v1443 = vadd.f32 %v1387, %v1427
  %v1444 = vadd.f32 %v1388, %v1428
  %v1445 = vadd.f32 %v1389, %v1429
  %v1446 = vadd.f32 %v1390, %v1430
  %v1447 = vadd.f32 %v1391, %v1431
  %v1448 = vadd.f32 %v1392, %v1432
  %v1449 = vadd.f32 %v1393, %v1433
  %v1450 = vadd.f32 %v1394, %v1434
  %v1451 = vadd.f32 %v1395, %v1435
  %v1452 = vadd.f32 %v1396, %v1436
  %v1453 = vadd.f32 %v1397, %v1437
  %v1454 = vadd.f32 %v1398, %v1438
  %v1455 = vadd.f32 %v1399, %v1439
  %v1456 = vadd.f32 %v1400, %v1440
  %v1457 = vadd.f32 %v1401, %v1441
  %v1458 = vmul.f32 %v1119, %v833
  %v1459 = vmul.f32 %v1118, %v834
  %v1460 = vmul.f32 %v1117, %v835
  %v1461 = vmul.f32 %v1116, %v836
  %v1462 = vmul.f32 %v1115, %v837
  %v1463 = vmul.f32 %v1114, %v838
  %v1464 = vmul.f32 %v1113, %v839
  %v1465 = vmul.f32 %v1112, %v840
  %v1466 = vmul.f32 %v1111, %v841
  %v1467 = vmul.f32 %v1110, %v842
  %v1468 = vmul.f32 %v1109, %v843
  %v1469 = vmul.f32 %v1108, %v844
  %v1470 = vmul.f32 %v1107, %v845
  %v1471 = vmul.f32 %v1106, %v846
  %v1472 = vmul.f32 %v1121, %v847
  %v1473 = vmul.f32 %v1120, %v848
  %s1474 = scalar_lea.vmem %s1, 8
  %v1475 = vld [vmem:[%s1474] sm:$0x1]
  %v1477 = vlaneseq
  %v1478 = vshrl.u32 %v1477, 7
  %v1479 = vsub.s32 0, %v1478
  %v1480 = vrot.slane %v1475, %v1479
  %v1482 = vmul.f32 %v1458, %v1480
  %v1483 = vmul.f32 %v1459, %v1480
  %v1484 = vmul.f32 %v1460, %v1480
  %v1485 = vmul.f32 %v1461, %v1480
  %v1486 = vmul.f32 %v1462, %v1480
  %v1487 = vmul.f32 %v1463, %v1480
  %v1488 = vmul.f32 %v1464, %v1480
  %v1489 = vmul.f32 %v1465, %v1480
  %v1490 = vmul.f32 %v1466, %v1480
  %v1491 = vmul.f32 %v1467, %v1480
  %v1492 = vmul.f32 %v1468, %v1480
  %v1493 = vmul.f32 %v1469, %v1480
  %v1494 = vmul.f32 %v1470, %v1480
  %v1495 = vmul.f32 %v1471, %v1480
  %v1496 = vmul.f32 %v1472, %v1480
  %v1497 = vmul.f32 %v1473, %v1480
  %v1498 = vadd.f32 %v1442, %v1482
  %v1499 = vadd.f32 %v1443, %v1483
  %v1500 = vadd.f32 %v1444, %v1484
  %v1501 = vadd.f32 %v1445, %v1485
  %v1502 = vadd.f32 %v1446, %v1486
  %v1503 = vadd.f32 %v1447, %v1487
  %v1504 = vadd.f32 %v1448, %v1488
  %v1505 = vadd.f32 %v1449, %v1489
  %v1506 = vadd.f32 %v1450, %v1490
  %v1507 = vadd.f32 %v1451, %v1491
  %v1508 = vadd.f32 %v1452, %v1492
  %v1509 = vadd.f32 %v1453, %v1493
  %v1510 = vadd.f32 %v1454, %v1494
  %v1511 = vadd.f32 %v1455, %v1495
  %v1512 = vadd.f32 %v1456, %v1496
  %v1513 = vadd.f32 %v1457, %v1497
  %v1514 = vld [vmem:[%s2] sm:$0x1]
  %v1516 = vlaneseq
  %v1517 = vshrl.u32 %v1516, 7
  %v1518 = vsub.s32 0, %v1517
  %v1519 = vrot.slane %v1514, %v1518
  %v1521 = vadd.f32 %v1498, %v1519
  %v1522 = vadd.f32 %v1499, %v1519
  %v1523 = vadd.f32 %v1500, %v1519
  %v1524 = vadd.f32 %v1501, %v1519
  %v1525 = vadd.f32 %v1502, %v1519
  %v1526 = vadd.f32 %v1503, %v1519
  %v1527 = vadd.f32 %v1504, %v1519
  %v1528 = vadd.f32 %v1505, %v1519
  %v1529 = vadd.f32 %v1506, %v1519
  %v1530 = vadd.f32 %v1507, %v1519
  %v1531 = vadd.f32 %v1508, %v1519
  %v1532 = vadd.f32 %v1509, %v1519
  %v1533 = vadd.f32 %v1510, %v1519
  %v1534 = vadd.f32 %v1511, %v1519
  %v1535 = vadd.f32 %v1512, %v1519
  %v1536 = vadd.f32 %v1513, %v1519
  %v1537 = vmax.f32 %v1521, 0.0
  %v1538 = vmax.f32 %v1522, 0.0
  %v1539 = vmax.f32 %v1523, 0.0
  %v1540 = vmax.f32 %v1524, 0.0
  %v1541 = vmax.f32 %v1525, 0.0
  %v1542 = vmax.f32 %v1526, 0.0
  %v1543 = vmax.f32 %v1527, 0.0
  %v1544 = vmax.f32 %v1528, 0.0
  %v1545 = vmax.f32 %v1529, 0.0
  %v1546 = vmax.f32 %v1530, 0.0
  %v1547 = vmax.f32 %v1531, 0.0
  %v1548 = vmax.f32 %v1532, 0.0
  %v1549 = vmax.f32 %v1533, 0.0
  %v1550 = vmax.f32 %v1534, 0.0
  %v1551 = vmax.f32 %v1535, 0.0
  %v1552 = vmax.f32 %v1536, 0.0
  %v1553 = vrot.slane %v1537, 7
  %v1554 = vrot.slane %v1538, 7
  %v1555 = vrot.slane %v1539, 7
  %v1556 = vrot.slane %v1540, 7
  %v1557 = vrot.slane %v1541, 7
  %v1558 = vrot.slane %v1542, 7
  %v1559 = vrot.slane %v1543, 7
  %v1560 = vrot.slane %v1544, 7
  %v1561 = vrot.slane %v1545, 7
  %v1562 = vrot.slane %v1546, 7
  %v1563 = vrot.slane %v1547, 7
  %v1564 = vrot.slane %v1548, 7
  %v1565 = vrot.slane %v1549, 7
  %v1566 = vrot.slane %v1550, 7
  %v1567 = vrot.slane %v1551, 7
  %v1568 = vrot.slane %v1552, 7
  %v1569 = vsel %vm961, %v1567, %v1568
  %v1570 = vsel %vm961, %v1566, %v1567
  %v1571 = vsel %vm961, %v1565, %v1566
  %v1572 = vsel %vm961, %v1564, %v1565
  %v1573 = vsel %vm961, %v1563, %v1564
  %v1574 = vsel %vm961, %v1562, %v1563
  %v1575 = vsel %vm961, %v1561, %v1562
  %v1576 = vsel %vm961, %v1560, %v1561
  %v1577 = vsel %vm961, %v1559, %v1560
  %v1578 = vsel %vm961, %v1558, %v1559
  %v1579 = vsel %vm961, %v1557, %v1558
  %v1580 = vsel %vm961, %v1556, %v1557
  %v1581 = vsel %vm961, %v1555, %v1556
  %v1582 = vsel %vm961, %v1554, %v1555
  %v1583 = vsel %vm961, %v1553, %v1554
  %v1584 = vsel %vm961, %v1568, %v1553
  %v1585 = vmul.f32 %v1569, %v257
  %v1586 = vmul.f32 %v1584, %v258
  %v1587 = vmul.f32 %v1583, %v259
  %v1588 = vmul.f32 %v1582, %v260
  %v1589 = vmul.f32 %v1581, %v261
  %v1590 = vmul.f32 %v1580, %v262
  %v1591 = vmul.f32 %v1579, %v263
  %v1592 = vmul.f32 %v1578, %v264
  %v1593 = vmul.f32 %v1577, %v265
  %v1594 = vmul.f32 %v1576, %v266
  %v1595 = vmul.f32 %v1575, %v267
  %v1596 = vmul.f32 %v1574, %v268
  %v1597 = vmul.f32 %v1573, %v269
  %v1598 = vmul.f32 %v1572, %v270
  %v1599 = vmul.f32 %v1571, %v271
  %v1600 = vmul.f32 %v1570, %v272
  %vm1601 = vcmask 261120
  %1602 = vst.msk [vmem:[#allocation2] sm:$0xff] %vm1601, %v1585
  %1603 = vst.msk [vmem:[#allocation2 + $0x18] sm:$0xff] %vm1601, %v1586
  %1604 = vst.msk [vmem:[#allocation2 + $0x30] sm:$0xff] %vm1601, %v1587
  %1605 = vst.msk [vmem:[#allocation2 + $0x48] sm:$0xff] %vm1601, %v1588
  %1606 = vst.msk [vmem:[#allocation2 + $0x60] sm:$0xff] %vm1601, %v1589
  %1607 = vst.msk [vmem:[#allocation2 + $0x78] sm:$0xff] %vm1601, %v1590
  %1608 = vst.msk [vmem:[#allocation2 + $0x90] sm:$0xff] %vm1601, %v1591
  %1609 = vst.msk [vmem:[#allocation2 + $0xa8] sm:$0xff] %vm1601, %v1592
  %1610 = vst.msk [vmem:[#allocation2 + $0xc0] sm:$0xff] %vm1601, %v1593
  %1611 = vst.msk [vmem:[#allocation2 + $0xd8] sm:$0xff] %vm1601, %v1594
  %1612 = vst.msk [vmem:[#allocation2 + $0xf0] sm:$0xff] %vm1601, %v1595
  %1613 = vst.msk [vmem:[#allocation2 + $0x108] sm:$0xff] %vm1601, %v1596
  %1614 = vst.msk [vmem:[#allocation2 + $0x120] sm:$0xff] %vm1601, %v1597
  %1615 = vst.msk [vmem:[#allocation2 + $0x138] sm:$0xff] %vm1601, %v1598
  %1616 = vst.msk [vmem:[#allocation2 + $0x150] sm:$0xff] %vm1601, %v1599
  %1617 = vst.msk [vmem:[#allocation2 + $0x168] sm:$0xff] %vm1601, %v1600
  %v1618 = vmul.f32 %v1552, %v337
  %v1619 = vmul.f32 %v1537, %v338
  %v1620 = vmul.f32 %v1538, %v339
  %v1621 = vmul.f32 %v1539, %v340
  %v1622 = vmul.f32 %v1540, %v341
  %v1623 = vmul.f32 %v1541, %v342
  %v1624 = vmul.f32 %v1542, %v343
  %v1625 = vmul.f32 %v1543, %v344
  %v1626 = vmul.f32 %v1544, %v345
  %v1627 = vmul.f32 %v1545, %v346
  %v1628 = vmul.f32 %v1546, %v347
  %v1629 = vmul.f32 %v1547, %v348
  %v1630 = vmul.f32 %v1548, %v349
  %v1631 = vmul.f32 %v1549, %v350
  %v1632 = vmul.f32 %v1550, %v351
  %v1633 = vmul.f32 %v1551, %v352
  %1650 = vrot.lane.b32.xlu0 %v1618, 32
  %v1651 = vpop.permute.xlu0 %1650
  %1652 = vrot.lane.b32.xlu0 %v1619, 32
  %v1653 = vpop.permute.xlu0 %1652
  %1654 = vrot.lane.b32.xlu0 %v1620, 32
  %v1655 = vpop.permute.xlu0 %1654
  %1656 = vrot.lane.b32.xlu0 %v1621, 32
  %v1657 = vpop.permute.xlu0 %1656
  %1658 = vrot.lane.b32.xlu0 %v1622, 32
  %v1659 = vpop.permute.xlu0 %1658
  %1660 = vrot.lane.b32.xlu0 %v1623, 32
  %v1661 = vpop.permute.xlu0 %1660
  %1662 = vrot.lane.b32.xlu0 %v1624, 32
  %v1663 = vpop.permute.xlu0 %1662
  %1664 = vrot.lane.b32.xlu0 %v1625, 32
  %v1665 = vpop.permute.xlu0 %1664
  %1666 = vrot.lane.b32.xlu0 %v1626, 32
  %v1667 = vpop.permute.xlu0 %1666
  %1668 = vrot.lane.b32.xlu0 %v1627, 32
  %v1669 = vpop.permute.xlu0 %1668
  %1670 = vrot.lane.b32.xlu0 %v1628, 32
  %v1671 = vpop.permute.xlu0 %1670
  %1672 = vrot.lane.b32.xlu0 %v1629, 32
  %v1673 = vpop.permute.xlu0 %1672
  %1674 = vrot.lane.b32.xlu0 %v1630, 32
  %v1675 = vpop.permute.xlu0 %1674
  %1676 = vrot.lane.b32.xlu0 %v1631, 32
  %v1677 = vpop.permute.xlu0 %1676
  %1678 = vrot.lane.b32.xlu0 %v1632, 32
  %v1679 = vpop.permute.xlu0 %1678
  %1680 = vrot.lane.b32.xlu0 %v1633, 32
  %v1681 = vpop.permute.xlu0 %1680
  %vm1698 = vcmask 523520
  %1699 = vst.msk [vmem:[#allocation2] sm:$0xff] %vm1698, %v1651
  %1700 = vst.msk [vmem:[#allocation2 + $0x18] sm:$0xff] %vm1698, %v1653
  %1701 = vst.msk [vmem:[#allocation2 + $0x30] sm:$0xff] %vm1698, %v1655
  %1702 = vst.msk [vmem:[#allocation2 + $0x48] sm:$0xff] %vm1698, %v1657
  %1703 = vst.msk [vmem:[#allocation2 + $0x60] sm:$0xff] %vm1698, %v1659
  %1704 = vst.msk [vmem:[#allocation2 + $0x78] sm:$0xff] %vm1698, %v1661
  %1705 = vst.msk [vmem:[#allocation2 + $0x90] sm:$0xff] %vm1698, %v1663
  %1706 = vst.msk [vmem:[#allocation2 + $0xa8] sm:$0xff] %vm1698, %v1665
  %1707 = vst.msk [vmem:[#allocation2 + $0xc0] sm:$0xff] %vm1698, %v1667
  %1708 = vst.msk [vmem:[#allocation2 + $0xd8] sm:$0xff] %vm1698, %v1669
  %1709 = vst.msk [vmem:[#allocation2 + $0xf0] sm:$0xff] %vm1698, %v1671
  %1710 = vst.msk [vmem:[#allocation2 + $0x108] sm:$0xff] %vm1698, %v1673
  %1711 = vst.msk [vmem:[#allocation2 + $0x120] sm:$0xff] %vm1698, %v1675
  %1712 = vst.msk [vmem:[#allocation2 + $0x138] sm:$0xff] %vm1698, %v1677
  %1713 = vst.msk [vmem:[#allocation2 + $0x150] sm:$0xff] %vm1698, %v1679
  %1714 = vst.msk [vmem:[#allocation2 + $0x168] sm:$0xff] %vm1698, %v1681
  %v1715 = vrot.slane %v1537, 1
  %v1716 = vrot.slane %v1538, 1
  %v1717 = vrot.slane %v1539, 1
  %v1718 = vrot.slane %v1540, 1
  %v1719 = vrot.slane %v1541, 1
  %v1720 = vrot.slane %v1542, 1
  %v1721 = vrot.slane %v1543, 1
  %v1722 = vrot.slane %v1544, 1
  %v1723 = vrot.slane %v1545, 1
  %v1724 = vrot.slane %v1546, 1
  %v1725 = vrot.slane %v1547, 1
  %v1726 = vrot.slane %v1548, 1
  %v1727 = vrot.slane %v1549, 1
  %v1728 = vrot.slane %v1550, 1
  %v1729 = vrot.slane %v1551, 1
  %v1730 = vrot.slane %v1552, 1
  %v1731 = vsel %vm1105, %v1729, %v1730
  %v1732 = vsel %vm1105, %v1728, %v1729
  %v1733 = vsel %vm1105, %v1727, %v1728
  %v1734 = vsel %vm1105, %v1726, %v1727
  %v1735 = vsel %vm1105, %v1725, %v1726
  %v1736 = vsel %vm1105, %v1724, %v1725
  %v1737 = vsel %vm1105, %v1723, %v1724
  %v1738 = vsel %vm1105, %v1722, %v1723
  %v1739 = vsel %vm1105, %v1721, %v1722
  %v1740 = vsel %vm1105, %v1720, %v1721
  %v1741 = vsel %vm1105, %v1719, %v1720
  %v1742 = vsel %vm1105, %v1718, %v1719
  %v1743 = vsel %vm1105, %v1717, %v1718
  %v1744 = vsel %vm1105, %v1716, %v1717
  %v1745 = vsel %vm1105, %v1715, %v1716
  %v1746 = vsel %vm1105, %v1730, %v1715
  %v1747 = vmul.f32 %v1746, %v433
  %v1748 = vmul.f32 %v1745, %v434
  %v1749 = vmul.f32 %v1744, %v435
  %v1750 = vmul.f32 %v1743, %v436
  %v1751 = vmul.f32 %v1742, %v437
  %v1752 = vmul.f32 %v1741, %v438
  %v1753 = vmul.f32 %v1740, %v439
  %v1754 = vmul.f32 %v1739, %v440
  %v1755 = vmul.f32 %v1738, %v441
  %v1756 = vmul.f32 %v1737, %v442
  %v1757 = vmul.f32 %v1736, %v443
  %v1758 = vmul.f32 %v1735, %v444
  %v1759 = vmul.f32 %v1734, %v445
  %v1760 = vmul.f32 %v1733, %v446
  %v1761 = vmul.f32 %v1732, %v447
  %v1762 = vmul.f32 %v1731, %v448
  %1779 = vrot.lane.b32.xlu0 %v1747, 64
  %v1780 = vpop.permute.xlu0 %1779
  %1781 = vrot.lane.b32.xlu0 %v1748, 64
  %v1782 = vpop.permute.xlu0 %1781
  %1783 = vrot.lane.b32.xlu0 %v1749, 64
  %v1784 = vpop.permute.xlu0 %1783
  %1785 = vrot.lane.b32.xlu0 %v1750, 64
  %v1786 = vpop.permute.xlu0 %1785
  %1787 = vrot.lane.b32.xlu0 %v1751, 64
  %v1788 = vpop.permute.xlu0 %1787
  %1789 = vrot.lane.b32.xlu0 %v1752, 64
  %v1790 = vpop.permute.xlu0 %1789
  %1791 = vrot.lane.b32.xlu0 %v1753, 64
  %v1792 = vpop.permute.xlu0 %1791
  %1793 = vrot.lane.b32.xlu0 %v1754, 64
  %v1794 = vpop.permute.xlu0 %1793
  %1795 = vrot.lane.b32.xlu0 %v1755, 64
  %v1796 = vpop.permute.xlu0 %1795
  %1797 = vrot.lane.b32.xlu0 %v1756, 64
  %v1798 = vpop.permute.xlu0 %1797
  %1799 = vrot.lane.b32.xlu0 %v1757, 64
  %v1800 = vpop.permute.xlu0 %1799
  %1801 = vrot.lane.b32.xlu0 %v1758, 64
  %v1802 = vpop.permute.xlu0 %1801
  %1803 = vrot.lane.b32.xlu0 %v1759, 64
  %v1804 = vpop.permute.xlu0 %1803
  %1805 = vrot.lane.b32.xlu0 %v1760, 64
  %v1806 = vpop.permute.xlu0 %1805
  %1807 = vrot.lane.b32.xlu0 %v1761, 64
  %v1808 = vpop.permute.xlu0 %1807
  %1809 = vrot.lane.b32.xlu0 %v1762, 64
  %v1810 = vpop.permute.xlu0 %1809
  %vm1827 = vcmask 785920
  %1828 = vst.msk [vmem:[#allocation2] sm:$0xff] %vm1827, %v1780
  %1829 = vst.msk [vmem:[#allocation2 + $0x18] sm:$0xff] %vm1827, %v1782
  %1830 = vst.msk [vmem:[#allocation2 + $0x30] sm:$0xff] %vm1827, %v1784
  %1831 = vst.msk [vmem:[#allocation2 + $0x48] sm:$0xff] %vm1827, %v1786
  %1832 = vst.msk [vmem:[#allocation2 + $0x60] sm:$0xff] %vm1827, %v1788
  %1833 = vst.msk [vmem:[#allocation2 + $0x78] sm:$0xff] %vm1827, %v1790
  %1834 = vst.msk [vmem:[#allocation2 + $0x90] sm:$0xff] %vm1827, %v1792
  %1835 = vst.msk [vmem:[#allocation2 + $0xa8] sm:$0xff] %vm1827, %v1794
  %1836 = vst.msk [vmem:[#allocation2 + $0xc0] sm:$0xff] %vm1827, %v1796
  %1837 = vst.msk [vmem:[#allocation2 + $0xd8] sm:$0xff] %vm1827, %v1798
  %1838 = vst.msk [vmem:[#allocation2 + $0xf0] sm:$0xff] %vm1827, %v1800
  %1839 = vst.msk [vmem:[#allocation2 + $0x108] sm:$0xff] %vm1827, %v1802
  %1840 = vst.msk [vmem:[#allocation2 + $0x120] sm:$0xff] %vm1827, %v1804
  %1841 = vst.msk [vmem:[#allocation2 + $0x138] sm:$0xff] %vm1827, %v1806
  %1842 = vst.msk [vmem:[#allocation2 + $0x150] sm:$0xff] %vm1827, %v1808
  %1843 = vst.msk [vmem:[#allocation2 + $0x168] sm:$0xff] %vm1827, %v1810
  %v1844 = vmul.f32 %v1584, %v529
  %v1845 = vmul.f32 %v1583, %v530
  %v1846 = vmul.f32 %v1582, %v531
  %v1847 = vmul.f32 %v1581, %v532
  %v1848 = vmul.f32 %v1580, %v533
  %v1849 = vmul.f32 %v1579, %v534
  %v1850 = vmul.f32 %v1578, %v535
  %v1851 = vmul.f32 %v1577, %v536
  %v1852 = vmul.f32 %v1576, %v537
  %v1853 = vmul.f32 %v1575, %v538
  %v1854 = vmul.f32 %v1574, %v539
  %v1855 = vmul.f32 %v1573, %v540
  %v1856 = vmul.f32 %v1572, %v541
  %v1857 = vmul.f32 %v1571, %v542
  %v1858 = vmul.f32 %v1570, %v543
  %v1859 = vmul.f32 %v1569, %v544
  %1876 = vrot.lane.b32.xlu0 %v1844, 96
  %v1877 = vpop.permute.xlu0 %1876
  %1878 = vrot.lane.b32.xlu0 %v1845, 96
  %v1879 = vpop.permute.xlu0 %1878
  %1880 = vrot.lane.b32.xlu0 %v1846, 96
  %v1881 = vpop.permute.xlu0 %1880
  %1882 = vrot.lane.b32.xlu0 %v1847, 96
  %v1883 = vpop.permute.xlu0 %1882
  %1884 = vrot.lane.b32.xlu0 %v1848, 96
  %v1885 = vpop.permute.xlu0 %1884
  %1886 = vrot.lane.b32.xlu0 %v1849, 96
  %v1887 = vpop.permute.xlu0 %1886
  %1888 = vrot.lane.b32.xlu0 %v1850, 96
  %v1889 = vpop.permute.xlu0 %1888
  %1890 = vrot.lane.b32.xlu0 %v1851, 96
  %v1891 = vpop.permute.xlu0 %1890
  %1892 = vrot.lane.b32.xlu0 %v1852, 96
  %v1893 = vpop.permute.xlu0 %1892
  %1894 = vrot.lane.b32.xlu0 %v1853, 96
  %v1895 = vpop.permute.xlu0 %1894
  %1896 = vrot.lane.b32.xlu0 %v1854, 96
  %v1897 = vpop.permute.xlu0 %1896
  %1898 = vrot.lane.b32.xlu0 %v1855, 96
  %v1899 = vpop.permute.xlu0 %1898
  %1900 = vrot.lane.b32.xlu0 %v1856, 96
  %v1901 = vpop.permute.xlu0 %1900
  %1902 = vrot.lane.b32.xlu0 %v1857, 96
  %v1903 = vpop.permute.xlu0 %1902
  %1904 = vrot.lane.b32.xlu0 %v1858, 96
  %v1905 = vpop.permute.xlu0 %1904
  %1906 = vrot.lane.b32.xlu0 %v1859, 96
  %v1907 = vpop.permute.xlu0 %1906
  %vm1924 = vcmask 1048320
  %1925 = vst.msk [vmem:[#allocation2] sm:$0xff] %vm1924, %v1877
  %1926 = vst.msk [vmem:[#allocation2 + $0x18] sm:$0xff] %vm1924, %v1879
  %1927 = vst.msk [vmem:[#allocation2 + $0x30] sm:$0xff] %vm1924, %v1881
  %1928 = vst.msk [vmem:[#allocation2 + $0x48] sm:$0xff] %vm1924, %v1883
  %1929 = vst.msk [vmem:[#allocation2 + $0x60] sm:$0xff] %vm1924, %v1885
  %1930 = vst.msk [vmem:[#allocation2 + $0x78] sm:$0xff] %vm1924, %v1887
  %1931 = vst.msk [vmem:[#allocation2 + $0x90] sm:$0xff] %vm1924, %v1889
  %1932 = vst.msk [vmem:[#allocation2 + $0xa8] sm:$0xff] %vm1924, %v1891
  %1933 = vst.msk [vmem:[#allocation2 + $0xc0] sm:$0xff] %vm1924, %v1893
  %1934 = vst.msk [vmem:[#allocation2 + $0xd8] sm:$0xff] %vm1924, %v1895
  %1935 = vst.msk [vmem:[#allocation2 + $0xf0] sm:$0xff] %vm1924, %v1897
  %1936 = vst.msk [vmem:[#allocation2 + $0x108] sm:$0xff] %vm1924, %v1899
  %1937 = vst.msk [vmem:[#allocation2 + $0x120] sm:$0xff] %vm1924, %v1901
  %1938 = vst.msk [vmem:[#allocation2 + $0x138] sm:$0xff] %vm1924, %v1903
  %1939 = vst.msk [vmem:[#allocation2 + $0x150] sm:$0xff] %vm1924, %v1905
  %1940 = vst.msk [vmem:[#allocation2 + $0x168] sm:$0xff] %vm1924, %v1907
  %v1941 = vmul.f32 %v1537, %v577
  %v1942 = vmul.f32 %v1538, %v578
  %v1943 = vmul.f32 %v1539, %v579
  %v1944 = vmul.f32 %v1540, %v580
  %v1945 = vmul.f32 %v1541, %v581
  %v1946 = vmul.f32 %v1542, %v582
  %v1947 = vmul.f32 %v1543, %v583
  %v1948 = vmul.f32 %v1544, %v584
  %v1949 = vmul.f32 %v1545, %v585
  %v1950 = vmul.f32 %v1546, %v586
  %v1951 = vmul.f32 %v1547, %v587
  %v1952 = vmul.f32 %v1548, %v588
  %v1953 = vmul.f32 %v1549, %v589
  %v1954 = vmul.f32 %v1550, %v590
  %v1955 = vmul.f32 %v1551, %v591
  %v1956 = vmul.f32 %v1552, %v592
  %1957 = vst.msk [vmem:[#allocation2 + $0x8] sm:$0xff] %vm1601, %v1941
  %1958 = vst.msk [vmem:[#allocation2 + $0x20] sm:$0xff] %vm1601, %v1942
  %1959 = vst.msk [vmem:[#allocation2 + $0x38] sm:$0xff] %vm1601, %v1943
  %1960 = vst.msk [vmem:[#allocation2 + $0x50] sm:$0xff] %vm1601, %v1944
  %1961 = vst.msk [vmem:[#allocation2 + $0x68] sm:$0xff] %vm1601, %v1945
  %1962 = vst.msk [vmem:[#allocation2 + $0x80] sm:$0xff] %vm1601, %v1946
  %1963 = vst.msk [vmem:[#allocation2 + $0x98] sm:$0xff] %vm1601, %v1947
  %1964 = vst.msk [vmem:[#allocation2 + $0xb0] sm:$0xff] %vm1601, %v1948
  %1965 = vst.msk [vmem:[#allocation2 + $0xc8] sm:$0xff] %vm1601, %v1949
  %1966 = vst.msk [vmem:[#allocation2 + $0xe0] sm:$0xff] %vm1601, %v1950
  %1967 = vst.msk [vmem:[#allocation2 + $0xf8] sm:$0xff] %vm1601, %v1951
  %1968 = vst.msk [vmem:[#allocation2 + $0x110] sm:$0xff] %vm1601, %v1952
  %1969 = vst.msk [vmem:[#allocation2 + $0x128] sm:$0xff] %vm1601, %v1953
  %1970 = vst.msk [vmem:[#allocation2 + $0x140] sm:$0xff] %vm1601, %v1954
  %1971 = vst.msk [vmem:[#allocation2 + $0x158] sm:$0xff] %vm1601, %v1955
  %1972 = vst.msk [vmem:[#allocation2 + $0x170] sm:$0xff] %vm1601, %v1956
  %v1973 = vmul.f32 %v1745, %v625
  %v1974 = vmul.f32 %v1744, %v626
  %v1975 = vmul.f32 %v1743, %v627
  %v1976 = vmul.f32 %v1742, %v628
  %v1977 = vmul.f32 %v1741, %v629
  %v1978 = vmul.f32 %v1740, %v630
  %v1979 = vmul.f32 %v1739, %v631
  %v1980 = vmul.f32 %v1738, %v632
  %v1981 = vmul.f32 %v1737, %v633
  %v1982 = vmul.f32 %v1736, %v634
  %v1983 = vmul.f32 %v1735, %v635
  %v1984 = vmul.f32 %v1734, %v636
  %v1985 = vmul.f32 %v1733, %v637
  %v1986 = vmul.f32 %v1732, %v638
  %v1987 = vmul.f32 %v1731, %v639
  %v1988 = vmul.f32 %v1746, %v640
  %2005 = vrot.lane.b32.xlu0 %v1973, 32
  %v2006 = vpop.permute.xlu0 %2005
  %2007 = vrot.lane.b32.xlu0 %v1974, 32
  %v2008 = vpop.permute.xlu0 %2007
  %2009 = vrot.lane.b32.xlu0 %v1975, 32
  %v2010 = vpop.permute.xlu0 %2009
  %2011 = vrot.lane.b32.xlu0 %v1976, 32
  %v2012 = vpop.permute.xlu0 %2011
  %2013 = vrot.lane.b32.xlu0 %v1977, 32
  %v2014 = vpop.permute.xlu0 %2013
  %2015 = vrot.lane.b32.xlu0 %v1978, 32
  %v2016 = vpop.permute.xlu0 %2015
  %2017 = vrot.lane.b32.xlu0 %v1979, 32
  %v2018 = vpop.permute.xlu0 %2017
  %2019 = vrot.lane.b32.xlu0 %v1980, 32
  %v2020 = vpop.permute.xlu0 %2019
  %2021 = vrot.lane.b32.xlu0 %v1981, 32
  %v2022 = vpop.permute.xlu0 %2021
  %2023 = vrot.lane.b32.xlu0 %v1982, 32
  %v2024 = vpop.permute.xlu0 %2023
  %2025 = vrot.lane.b32.xlu0 %v1983, 32
  %v2026 = vpop.permute.xlu0 %2025
  %2027 = vrot.lane.b32.xlu0 %v1984, 32
  %v2028 = vpop.permute.xlu0 %2027
  %2029 = vrot.lane.b32.xlu0 %v1985, 32
  %v2030 = vpop.permute.xlu0 %2029
  %2031 = vrot.lane.b32.xlu0 %v1986, 32
  %v2032 = vpop.permute.xlu0 %2031
  %2033 = vrot.lane.b32.xlu0 %v1987, 32
  %v2034 = vpop.permute.xlu0 %2033
  %2035 = vrot.lane.b32.xlu0 %v1988, 32
  %v2036 = vpop.permute.xlu0 %2035
  %2053 = vst.msk [vmem:[#allocation2 + $0x8] sm:$0xff] %vm1698, %v2006
  %2054 = vst.msk [vmem:[#allocation2 + $0x20] sm:$0xff] %vm1698, %v2008
  %2055 = vst.msk [vmem:[#allocation2 + $0x38] sm:$0xff] %vm1698, %v2010
  %2056 = vst.msk [vmem:[#allocation2 + $0x50] sm:$0xff] %vm1698, %v2012
  %2057 = vst.msk [vmem:[#allocation2 + $0x68] sm:$0xff] %vm1698, %v2014
  %2058 = vst.msk [vmem:[#allocation2 + $0x80] sm:$0xff] %vm1698, %v2016
  %2059 = vst.msk [vmem:[#allocation2 + $0x98] sm:$0xff] %vm1698, %v2018
  %2060 = vst.msk [vmem:[#allocation2 + $0xb0] sm:$0xff] %vm1698, %v2020
  %2061 = vst.msk [vmem:[#allocation2 + $0xc8] sm:$0xff] %vm1698, %v2022
  %2062 = vst.msk [vmem:[#allocation2 + $0xe0] sm:$0xff] %vm1698, %v2024
  %2063 = vst.msk [vmem:[#allocation2 + $0xf8] sm:$0xff] %vm1698, %v2026
  %2064 = vst.msk [vmem:[#allocation2 + $0x110] sm:$0xff] %vm1698, %v2028
  %2065 = vst.msk [vmem:[#allocation2 + $0x128] sm:$0xff] %vm1698, %v2030
  %2066 = vst.msk [vmem:[#allocation2 + $0x140] sm:$0xff] %vm1698, %v2032
  %2067 = vst.msk [vmem:[#allocation2 + $0x158] sm:$0xff] %vm1698, %v2034
  %2068 = vst.msk [vmem:[#allocation2 + $0x170] sm:$0xff] %vm1698, %v2036
  %v2069 = vmul.f32 %v1583, %v737
  %v2070 = vmul.f32 %v1582, %v738
  %v2071 = vmul.f32 %v1581, %v739
  %v2072 = vmul.f32 %v1580, %v740
  %v2073 = vmul.f32 %v1579, %v741
  %v2074 = vmul.f32 %v1578, %v742
  %v2075 = vmul.f32 %v1577, %v743
  %v2076 = vmul.f32 %v1576, %v744
  %v2077 = vmul.f32 %v1575, %v745
  %v2078 = vmul.f32 %v1574, %v746
  %v2079 = vmul.f32 %v1573, %v747
  %v2080 = vmul.f32 %v1572, %v748
  %v2081 = vmul.f32 %v1571, %v749
  %v2082 = vmul.f32 %v1570, %v750
  %v2083 = vmul.f32 %v1569, %v751
  %v2084 = vmul.f32 %v1584, %v752
  %2101 = vrot.lane.b32.xlu0 %v2069, 64
  %v2102 = vpop.permute.xlu0 %2101
  %2103 = vrot.lane.b32.xlu0 %v2070, 64
  %v2104 = vpop.permute.xlu0 %2103
  %2105 = vrot.lane.b32.xlu0 %v2071, 64
  %v2106 = vpop.permute.xlu0 %2105
  %2107 = vrot.lane.b32.xlu0 %v2072, 64
  %v2108 = vpop.permute.xlu0 %2107
  %2109 = vrot.lane.b32.xlu0 %v2073, 64
  %v2110 = vpop.permute.xlu0 %2109
  %2111 = vrot.lane.b32.xlu0 %v2074, 64
  %v2112 = vpop.permute.xlu0 %2111
  %2113 = vrot.lane.b32.xlu0 %v2075, 64
  %v2114 = vpop.permute.xlu0 %2113
  %2115 = vrot.lane.b32.xlu0 %v2076, 64
  %v2116 = vpop.permute.xlu0 %2115
  %2117 = vrot.lane.b32.xlu0 %v2077, 64
  %v2118 = vpop.permute.xlu0 %2117
  %2119 = vrot.lane.b32.xlu0 %v2078, 64
  %v2120 = vpop.permute.xlu0 %2119
  %2121 = vrot.lane.b32.xlu0 %v2079, 64
  %v2122 = vpop.permute.xlu0 %2121
  %2123 = vrot.lane.b32.xlu0 %v2080, 64
  %v2124 = vpop.permute.xlu0 %2123
  %2125 = vrot.lane.b32.xlu0 %v2081, 64
  %v2126 = vpop.permute.xlu0 %2125
  %2127 = vrot.lane.b32.xlu0 %v2082, 64
  %v2128 = vpop.permute.xlu0 %2127
  %2129 = vrot.lane.b32.xlu0 %v2083, 64
  %v2130 = vpop.permute.xlu0 %2129
  %2131 = vrot.lane.b32.xlu0 %v2084, 64
  %v2132 = vpop.permute.xlu0 %2131
  %2149 = vst.msk [vmem:[#allocation2 + $0x8] sm:$0xff] %vm1827, %v2102
  %2150 = vst.msk [vmem:[#allocation2 + $0x20] sm:$0xff] %vm1827, %v2104
  %2151 = vst.msk [vmem:[#allocation2 + $0x38] sm:$0xff] %vm1827, %v2106
  %2152 = vst.msk [vmem:[#allocation2 + $0x50] sm:$0xff] %vm1827, %v2108
  %2153 = vst.msk [vmem:[#allocation2 + $0x68] sm:$0xff] %vm1827, %v2110
  %2154 = vst.msk [vmem:[#allocation2 + $0x80] sm:$0xff] %vm1827, %v2112
  %2155 = vst.msk [vmem:[#allocation2 + $0x98] sm:$0xff] %vm1827, %v2114
  %2156 = vst.msk [vmem:[#allocation2 + $0xb0] sm:$0xff] %vm1827, %v2116
  %2157 = vst.msk [vmem:[#allocation2 + $0xc8] sm:$0xff] %vm1827, %v2118
  %2158 = vst.msk [vmem:[#allocation2 + $0xe0] sm:$0xff] %vm1827, %v2120
  %2159 = vst.msk [vmem:[#allocation2 + $0xf8] sm:$0xff] %vm1827, %v2122
  %2160 = vst.msk [vmem:[#allocation2 + $0x110] sm:$0xff] %vm1827, %v2124
  %2161 = vst.msk [vmem:[#allocation2 + $0x128] sm:$0xff] %vm1827, %v2126
  %2162 = vst.msk [vmem:[#allocation2 + $0x140] sm:$0xff] %vm1827, %v2128
  %2163 = vst.msk [vmem:[#allocation2 + $0x158] sm:$0xff] %vm1827, %v2130
  %2164 = vst.msk [vmem:[#allocation2 + $0x170] sm:$0xff] %vm1827, %v2132
  %v2165 = vmul.f32 %v1538, %v785
  %v2166 = vmul.f32 %v1539, %v786
  %v2167 = vmul.f32 %v1540, %v787
  %v2168 = vmul.f32 %v1541, %v788
  %v2169 = vmul.f32 %v1542, %v789
  %v2170 = vmul.f32 %v1543, %v790
  %v2171 = vmul.f32 %v1544, %v791
  %v2172 = vmul.f32 %v1545, %v792
  %v2173 = vmul.f32 %v1546, %v793
  %v2174 = vmul.f32 %v1547, %v794
  %v2175 = vmul.f32 %v1548, %v795
  %v2176 = vmul.f32 %v1549, %v796
  %v2177 = vmul.f32 %v1550, %v797
  %v2178 = vmul.f32 %v1551, %v798
  %v2179 = vmul.f32 %v1552, %v799
  %v2180 = vmul.f32 %v1537, %v800
  %2197 = vrot.lane.b32.xlu0 %v2165, 96
  %v2198 = vpop.permute.xlu0 %2197
  %2199 = vrot.lane.b32.xlu0 %v2166, 96
  %v2200 = vpop.permute.xlu0 %2199
  %2201 = vrot.lane.b32.xlu0 %v2167, 96
  %v2202 = vpop.permute.xlu0 %2201
  %2203 = vrot.lane.b32.xlu0 %v2168, 96
  %v2204 = vpop.permute.xlu0 %2203
  %2205 = vrot.lane.b32.xlu0 %v2169, 96
  %v2206 = vpop.permute.xlu0 %2205
  %2207 = vrot.lane.b32.xlu0 %v2170, 96
  %v2208 = vpop.permute.xlu0 %2207
  %2209 = vrot.lane.b32.xlu0 %v2171, 96
  %v2210 = vpop.permute.xlu0 %2209
  %2211 = vrot.lane.b32.xlu0 %v2172, 96
  %v2212 = vpop.permute.xlu0 %2211
  %2213 = vrot.lane.b32.xlu0 %v2173, 96
  %v2214 = vpop.permute.xlu0 %2213
  %2215 = vrot.lane.b32.xlu0 %v2174, 96
  %v2216 = vpop.permute.xlu0 %2215
  %2217 = vrot.lane.b32.xlu0 %v2175, 96
  %v2218 = vpop.permute.xlu0 %2217
  %2219 = vrot.lane.b32.xlu0 %v2176, 96
  %v2220 = vpop.permute.xlu0 %2219
  %2221 = vrot.lane.b32.xlu0 %v2177, 96
  %v2222 = vpop.permute.xlu0 %2221
  %2223 = vrot.lane.b32.xlu0 %v2178, 96
  %v2224 = vpop.permute.xlu0 %2223
  %2225 = vrot.lane.b32.xlu0 %v2179, 96
  %v2226 = vpop.permute.xlu0 %2225
  %2227 = vrot.lane.b32.xlu0 %v2180, 96
  %v2228 = vpop.permute.xlu0 %2227
  %2245 = vst.msk [vmem:[#allocation2 + $0x8] sm:$0xff] %vm1924, %v2198
  %2246 = vst.msk [vmem:[#allocation2 + $0x20] sm:$0xff] %vm1924, %v2200
  %2247 = vst.msk [vmem:[#allocation2 + $0x38] sm:$0xff] %vm1924, %v2202
  %2248 = vst.msk [vmem:[#allocation2 + $0x50] sm:$0xff] %vm1924, %v2204
  %2249 = vst.msk [vmem:[#allocation2 + $0x68] sm:$0xff] %vm1924, %v2206
  %2250 = vst.msk [vmem:[#allocation2 + $0x80] sm:$0xff] %vm1924, %v2208
  %2251 = vst.msk [vmem:[#allocation2 + $0x98] sm:$0xff] %vm1924, %v2210
  %2252 = vst.msk [vmem:[#allocation2 + $0xb0] sm:$0xff] %vm1924, %v2212
  %2253 = vst.msk [vmem:[#allocation2 + $0xc8] sm:$0xff] %vm1924, %v2214
  %2254 = vst.msk [vmem:[#allocation2 + $0xe0] sm:$0xff] %vm1924, %v2216
  %2255 = vst.msk [vmem:[#allocation2 + $0xf8] sm:$0xff] %vm1924, %v2218
  %2256 = vst.msk [vmem:[#allocation2 + $0x110] sm:$0xff] %vm1924, %v2220
  %2257 = vst.msk [vmem:[#allocation2 + $0x128] sm:$0xff] %vm1924, %v2222
  %2258 = vst.msk [vmem:[#allocation2 + $0x140] sm:$0xff] %vm1924, %v2224
  %2259 = vst.msk [vmem:[#allocation2 + $0x158] sm:$0xff] %vm1924, %v2226
  %2260 = vst.msk [vmem:[#allocation2 + $0x170] sm:$0xff] %vm1924, %v2228
  %v2261 = vmul.f32 %v1744, %v833
  %v2262 = vmul.f32 %v1743, %v834
  %v2263 = vmul.f32 %v1742, %v835
  %v2264 = vmul.f32 %v1741, %v836
  %v2265 = vmul.f32 %v1740, %v837
  %v2266 = vmul.f32 %v1739, %v838
  %v2267 = vmul.f32 %v1738, %v839
  %v2268 = vmul.f32 %v1737, %v840
  %v2269 = vmul.f32 %v1736, %v841
  %v2270 = vmul.f32 %v1735, %v842
  %v2271 = vmul.f32 %v1734, %v843
  %v2272 = vmul.f32 %v1733, %v844
  %v2273 = vmul.f32 %v1732, %v845
  %v2274 = vmul.f32 %v1731, %v846
  %v2275 = vmul.f32 %v1746, %v847
  %v2276 = vmul.f32 %v1745, %v848
  %2277 = vst.msk [vmem:[#allocation2 + $0x10] sm:$0xff] %vm1601, %v2261
  %2278 = vst.msk [vmem:[#allocation2 + $0x28] sm:$0xff] %vm1601, %v2262
  %2279 = vst.msk [vmem:[#allocation2 + $0x40] sm:$0xff] %vm1601, %v2263
  %2280 = vst.msk [vmem:[#allocation2 + $0x58] sm:$0xff] %vm1601, %v2264
  %2281 = vst.msk [vmem:[#allocation2 + $0x70] sm:$0xff] %vm1601, %v2265
  %2282 = vst.msk [vmem:[#allocation2 + $0x88] sm:$0xff] %vm1601, %v2266
  %2283 = vst.msk [vmem:[#allocation2 + $0xa0] sm:$0xff] %vm1601, %v2267
  %2284 = vst.msk [vmem:[#allocation2 + $0xb8] sm:$0xff] %vm1601, %v2268
  %2285 = vst.msk [vmem:[#allocation2 + $0xd0] sm:$0xff] %vm1601, %v2269
  %2286 = vst.msk [vmem:[#allocation2 + $0xe8] sm:$0xff] %vm1601, %v2270
  %2287 = vst.msk [vmem:[#allocation2 + $0x100] sm:$0xff] %vm1601, %v2271
  %2288 = vst.msk [vmem:[#allocation2 + $0x118] sm:$0xff] %vm1601, %v2272
  %2289 = vst.msk [vmem:[#allocation2 + $0x130] sm:$0xff] %vm1601, %v2273
  %2290 = vst.msk [vmem:[#allocation2 + $0x148] sm:$0xff] %vm1601, %v2274
  %2291 = vst.msk [vmem:[#allocation2 + $0x160] sm:$0xff] %vm1601, %v2275
  %2292 = vst.msk [vmem:[#allocation2 + $0x178] sm:$0xff] %vm1601, %v2276
  %v2293 = vld [vmem:[#allocation2] sm:$0xff]
  %v2294 = vld [vmem:[#allocation2 + $0x8] sm:$0xff]
  %v2295 = vld [vmem:[#allocation2 + $0x10] sm:$0xff]
  %v2296 = vld [vmem:[#allocation2 + $0x18] sm:$0xff]
  %v2297 = vld [vmem:[#allocation2 + $0x20] sm:$0xff]
  %v2298 = vld [vmem:[#allocation2 + $0x28] sm:$0xff]
  %v2299 = vld [vmem:[#allocation2 + $0x30] sm:$0xff]
  %v2300 = vld [vmem:[#allocation2 + $0x38] sm:$0xff]
  %v2301 = vld [vmem:[#allocation2 + $0x40] sm:$0xff]
  %v2302 = vld [vmem:[#allocation2 + $0x48] sm:$0xff]
  %v2303 = vld [vmem:[#allocation2 + $0x50] sm:$0xff]
  %v2304 = vld [vmem:[#allocation2 + $0x58] sm:$0xff]
  %v2305 = vld [vmem:[#allocation2 + $0x60] sm:$0xff]
  %v2306 = vld [vmem:[#allocation2 + $0x68] sm:$0xff]
  %v2307 = vld [vmem:[#allocation2 + $0x70] sm:$0xff]
  %v2308 = vld [vmem:[#allocation2 + $0x78] sm:$0xff]
  %v2309 = vld [vmem:[#allocation2 + $0x80] sm:$0xff]
  %v2310 = vld [vmem:[#allocation2 + $0x88] sm:$0xff]
  %v2311 = vld [vmem:[#allocation2 + $0x90] sm:$0xff]
  %v2312 = vld [vmem:[#allocation2 + $0x98] sm:$0xff]
  %v2313 = vld [vmem:[#allocation2 + $0xa0] sm:$0xff]
  %v2314 = vld [vmem:[#allocation2 + $0xa8] sm:$0xff]
  %v2315 = vld [vmem:[#allocation2 + $0xb0] sm:$0xff]
  %v2316 = vld [vmem:[#allocation2 + $0xb8] sm:$0xff]
  %v2317 = vld [vmem:[#allocation2 + $0xc0] sm:$0xff]
  %v2318 = vld [vmem:[#allocation2 + $0xc8] sm:$0xff]
  %v2319 = vld [vmem:[#allocation2 + $0xd0] sm:$0xff]
  %v2320 = vld [vmem:[#allocation2 + $0xd8] sm:$0xff]
  %v2321 = vld [vmem:[#allocation2 + $0xe0] sm:$0xff]
  %v2322 = vld [vmem:[#allocation2 + $0xe8] sm:$0xff]
  %v2323 = vld [vmem:[#allocation2 + $0xf0] sm:$0xff]
  %v2324 = vld [vmem:[#allocation2 + $0xf8] sm:$0xff]
  %v2325 = vld [vmem:[#allocation2 + $0x100] sm:$0xff]
  %v2326 = vld [vmem:[#allocation2 + $0x108] sm:$0xff]
  %v2327 = vld [vmem:[#allocation2 + $0x110] sm:$0xff]
  %v2328 = vld [vmem:[#allocation2 + $0x118] sm:$0xff]
  %v2329 = vld [vmem:[#allocation2 + $0x120] sm:$0xff]
  %v2330 = vld [vmem:[#allocation2 + $0x128] sm:$0xff]
  %v2331 = vld [vmem:[#allocation2 + $0x130] sm:$0xff]
  %v2332 = vld [vmem:[#allocation2 + $0x138] sm:$0xff]
  %v2333 = vld [vmem:[#allocation2 + $0x140] sm:$0xff]
  %v2334 = vld [vmem:[#allocation2 + $0x148] sm:$0xff]
  %v2335 = vld [vmem:[#allocation2 + $0x150] sm:$0xff]
  %v2336 = vld [vmem:[#allocation2 + $0x158] sm:$0xff]
  %v2337 = vld [vmem:[#allocation2 + $0x160] sm:$0xff]
  %v2338 = vld [vmem:[#allocation2 + $0x168] sm:$0xff]
  %v2339 = vld [vmem:[#allocation2 + $0x170] sm:$0xff]
  %v2340 = vld [vmem:[#allocation2 + $0x178] sm:$0xff]
  %v2341 = vpack.c.bf16 %v2296, %v2293
  %v2342 = vpack.c.bf16 %v2297, %v2294
  %v2343 = vpack.c.bf16 %v2298, %v2295
  %v2344 = vpack.c.bf16 %v2302, %v2299
  %v2345 = vpack.c.bf16 %v2303, %v2300
  %v2346 = vpack.c.bf16 %v2304, %v2301
  %v2347 = vpack.c.bf16 %v2308, %v2305
  %v2348 = vpack.c.bf16 %v2309, %v2306
  %v2349 = vpack.c.bf16 %v2310, %v2307
  %v2350 = vpack.c.bf16 %v2314, %v2311
  %v2351 = vpack.c.bf16 %v2315, %v2312
  %v2352 = vpack.c.bf16 %v2316, %v2313
  %v2353 = vpack.c.bf16 %v2320, %v2317
  %v2354 = vpack.c.bf16 %v2321, %v2318
  %v2355 = vpack.c.bf16 %v2322, %v2319
  %v2356 = vpack.c.bf16 %v2326, %v2323
  %v2357 = vpack.c.bf16 %v2327, %v2324
  %v2358 = vpack.c.bf16 %v2328, %v2325
  %v2359 = vpack.c.bf16 %v2332, %v2329
  %v2360 = vpack.c.bf16 %v2333, %v2330
  %v2361 = vpack.c.bf16 %v2334, %v2331
  %v2362 = vpack.c.bf16 %v2338, %v2335
  %v2363 = vpack.c.bf16 %v2339, %v2336
  %v2364 = vpack.c.bf16 %v2340, %v2337
  %v2365 = vld [vmem:[%s3] sm:$0xf]
  %v2366 = vld [vmem:[%s3 + $0x4] sm:$0xf]
  %v2367 = vld [vmem:[%s3 + $0x8] sm:$0xf]
  %v2368 = vld [vmem:[%s3 + $0xc] sm:$0xf]
  %v2369 = vld [vmem:[%s3 + $0x10] sm:$0xf]
  %v2370 = vld [vmem:[%s3 + $0x14] sm:$0xf]
  %v2371 = vld [vmem:[%s3 + $0x18] sm:$0xf]
  %v2372 = vld [vmem:[%s3 + $0x1c] sm:$0xf]
  %v2373 = vld [vmem:[%s3 + $0x20] sm:$0xf]
  %v2374 = vld [vmem:[%s3 + $0x24] sm:$0xf]
  %v2375 = vld [vmem:[%s3 + $0x28] sm:$0xf]
  %v2376 = vld [vmem:[%s3 + $0x2c] sm:$0xf]
  %v2377 = vld [vmem:[%s3 + $0x30] sm:$0xf]
  %v2378 = vld [vmem:[%s3 + $0x34] sm:$0xf]
  %v2379 = vld [vmem:[%s3 + $0x38] sm:$0xf]
  %v2380 = vld [vmem:[%s3 + $0x3c] sm:$0xf]
  %v2381 = vld [vmem:[%s3 + $0x40] sm:$0xf]
  %v2382 = vld [vmem:[%s3 + $0x44] sm:$0xf]
  %v2383 = vld [vmem:[%s3 + $0x48] sm:$0xf]
  %v2384 = vld [vmem:[%s3 + $0x4c] sm:$0xf]
  %v2385 = vld [vmem:[%s3 + $0x50] sm:$0xf]
  %v2386 = vld [vmem:[%s3 + $0x54] sm:$0xf]
  %v2387 = vld [vmem:[%s3 + $0x58] sm:$0xf]
  %v2388 = vld [vmem:[%s3 + $0x5c] sm:$0xf]
  %v2389 = vld [vmem:[%s3 + $0x60] sm:$0xf]
  %v2390 = vld [vmem:[%s3 + $0x64] sm:$0xf]
  %v2391 = vld [vmem:[%s3 + $0x68] sm:$0xf]
  %v2392 = vld [vmem:[%s3 + $0x6c] sm:$0xf]
  %v2393 = vld [vmem:[%s3 + $0x70] sm:$0xf]
  %v2394 = vld [vmem:[%s3 + $0x74] sm:$0xf]
  %v2395 = vld [vmem:[%s3 + $0x78] sm:$0xf]
  %v2396 = vld [vmem:[%s3 + $0x7c] sm:$0xf]
  %v2397 = vld [vmem:[%s3 + $0x80] sm:$0xf]
  %v2398 = vld [vmem:[%s3 + $0x84] sm:$0xf]
  %v2399 = vld [vmem:[%s3 + $0x88] sm:$0xf]
  %v2400 = vld [vmem:[%s3 + $0x8c] sm:$0xf]
  %v2401 = vld [vmem:[%s4] sm:$0x1]
  %v2403 = vlaneseq
  %v2404 = vshrl.u32 %v2403, 7
  %v2405 = vsub.s32 0, %v2404
  %v2406 = vrot.slane %v2401, %v2405
  %v2444 = vunpack.c.l.b16 %v2365
  %v2445 = vunpack.c.l.b16 %v2366
  %v2446 = vunpack.c.l.b16 %v2367
  %v2447 = vunpack.c.l.b16 %v2368
  %v2448 = vunpack.c.l.b16 %v2369
  %v2449 = vunpack.c.l.b16 %v2370
  %v2450 = vunpack.c.l.b16 %v2371
  %v2451 = vunpack.c.l.b16 %v2372
  %v2452 = vunpack.c.l.b16 %v2373
  %v2453 = vunpack.c.l.b16 %v2374
  %v2454 = vunpack.c.l.b16 %v2375
  %v2455 = vunpack.c.l.b16 %v2376
  %v2456 = vunpack.c.l.b16 %v2377
  %v2457 = vunpack.c.l.b16 %v2378
  %v2458 = vunpack.c.l.b16 %v2379
  %v2459 = vunpack.c.l.b16 %v2380
  %v2460 = vunpack.c.l.b16 %v2381
  %v2461 = vunpack.c.l.b16 %v2382
  %v2462 = vunpack.c.l.b16 %v2383
  %v2463 = vunpack.c.l.b16 %v2384
  %v2464 = vunpack.c.l.b16 %v2385
  %v2465 = vunpack.c.l.b16 %v2386
  %v2466 = vunpack.c.l.b16 %v2387
  %v2467 = vunpack.c.l.b16 %v2388
  %v2468 = vunpack.c.l.b16 %v2389
  %v2469 = vunpack.c.l.b16 %v2390
  %v2470 = vunpack.c.l.b16 %v2391
  %v2471 = vunpack.c.l.b16 %v2392
  %v2472 = vunpack.c.l.b16 %v2393
  %v2473 = vunpack.c.l.b16 %v2394
  %v2474 = vunpack.c.l.b16 %v2395
  %v2475 = vunpack.c.l.b16 %v2396
  %v2476 = vunpack.c.l.b16 %v2397
  %v2477 = vunpack.c.l.b16 %v2398
  %v2478 = vunpack.c.l.b16 %v2399
  %v2479 = vunpack.c.l.b16 %v2400
  %v2480 = vpack.c.b16 %v2445, %v2444
  %v2481 = vpack.c.b16 %v2447, %v2446
  %v2482 = vpack.c.b16 %v2449, %v2448
  %v2483 = vpack.c.b16 %v2451, %v2450
  %v2484 = vpack.c.b16 %v2453, %v2452
  %v2485 = vpack.c.b16 %v2455, %v2454
  %v2486 = vpack.c.b16 %v2457, %v2456
  %v2487 = vpack.c.b16 %v2459, %v2458
  %v2488 = vpack.c.b16 %v2461, %v2460
  %v2489 = vpack.c.b16 %v2463, %v2462
  %v2490 = vpack.c.b16 %v2465, %v2464
  %v2491 = vpack.c.b16 %v2467, %v2466
  %v2492 = vpack.c.b16 %v2469, %v2468
  %v2493 = vpack.c.b16 %v2471, %v2470
  %v2494 = vpack.c.b16 %v2473, %v2472
  %v2495 = vpack.c.b16 %v2475, %v2474
  %v2496 = vpack.c.b16 %v2477, %v2476
  %v2497 = vpack.c.b16 %v2479, %v2478
  %v2517 = vsel %vm1601, %v2343, 0
  %v2520 = vsel %vm1601, %v2346, 0
  %v2523 = vsel %vm1601, %v2349, 0
  %v2526 = vsel %vm1601, %v2352, 0
  %v2529 = vsel %vm1601, %v2355, 0
  %v2532 = vsel %vm1601, %v2358, 0
  %v2535 = vsel %vm1601, %v2361, 0
  %v2538 = vsel %vm1601, %v2364, 0
  %2540 = vmatprep.subr.bf16.mxu0 0
  %2541 = vmatpush1.bf16.msra.mxu0 %v2480
  %2542 = vmatprep.subr.bf16.mxu0 0
  %2543 = vmatpush1.bf16.msra.mxu0 %v2481
  %2544 = vmatprep.subr.bf16.mxu0 0
  %2545 = vmatpush1.bf16.msra.mxu0 %v2482
  %2546 = vmatprep.subr.bf16.mxu0 0
  %2547 = vmatpush1.bf16.msra.mxu0 %v2483
  %2548 = vmatprep.subr.bf16.mxu0 0
  %2549 = vmatpush1.bf16.msra.mxu0 %v2484
  %2550 = vmatprep.subr.bf16.mxu0 0
  %2551 = vmatpush1.bf16.msra.mxu0 %v2485
  %2552 = vmatprep.subr.bf16.mxu0 0
  %2553 = vmatpush1.bf16.msra.mxu0 %v2486
  %2554 = vmatprep.subr.bf16.mxu0 0
  %2555 = vmatpush1.bf16.msra.mxu0 %v2487
  %2556 = vmatprep.subr.bf16.mxu0 0
  %2557 = vmatpush1.bf16.msra.mxu0 %v2488
  %2558 = vmatprep.subr.bf16.mxu0 0
  %2559 = vmatpush1.bf16.msra.mxu0 %v2489
  %2560 = vmatprep.subr.bf16.mxu0 0
  %2561 = vmatpush1.bf16.msra.mxu0 %v2490
  %2562 = vmatprep.subr.bf16.mxu0 0
  %2563 = vmatpush1.bf16.msra.mxu0 %v2491
  %2564 = vmatprep.subr.bf16.mxu0 0
  %2565 = vmatpush1.bf16.msra.mxu0 %v2492
  %2566 = vmatprep.subr.bf16.mxu0 0
  %2567 = vmatpush1.bf16.msra.mxu0 %v2493
  %2568 = vmatprep.subr.bf16.mxu0 0
  %2569 = vmatpush1.bf16.msra.mxu0 %v2494
  %2570 = vmatprep.subr.bf16.mxu0 0
  %2571 = vmatpush1.bf16.msra.mxu0 %v2495
  %2572 = vmatprep.mubr.bf16.mxu0 %v2342
  %2573 = vmatmul.mubr.bf16.gmra.mrb[0].mxu0 %v2341
  %v2574 = vpop.f32.mrb[0].mxu0
  %v2575 = vadd.f32 %v2406, %v2574
  %v2576 = vpop.f32.mrb[0].mxu0
  %v2577 = vpop.f32.mrb[0].mxu0
  %v2578 = vadd.f32 %v2406, %v2577
  %v2579 = vpop.f32.mrb[0].mxu0
  %2580 = vmatprep.mubr.bf16.mxu0 %v2345
  %2581 = vmatmul.mubr.bf16.gmra.mrb[0].mxu0 %v2344
  %v2582 = vpop.f32.mrb[0].mxu0
  %v2583 = vadd.f32 %v2406, %v2582
  %v2584 = vpop.f32.mrb[0].mxu0
  %v2585 = vpop.f32.mrb[0].mxu0
  %v2586 = vadd.f32 %v2406, %v2585
  %v2587 = vpop.f32.mrb[0].mxu0
  %2588 = vmatprep.mubr.bf16.mxu0 %v2348
  %2589 = vmatmul.mubr.bf16.gmra.mrb[0].mxu0 %v2347
  %v2590 = vpop.f32.mrb[0].mxu0
  %v2591 = vadd.f32 %v2406, %v2590
  %v2592 = vpop.f32.mrb[0].mxu0
  %v2593 = vpop.f32.mrb[0].mxu0
  %v2594 = vadd.f32 %v2406, %v2593
  %v2595 = vpop.f32.mrb[0].mxu0
  %2596 = vmatprep.mubr.bf16.mxu0 %v2351
  %2597 = vmatmul.mubr.bf16.gmra.mrb[0].mxu0 %v2350
  %v2598 = vpop.f32.mrb[0].mxu0
  %v2599 = vadd.f32 %v2406, %v2598
  %v2600 = vpop.f32.mrb[0].mxu0
  %v2601 = vpop.f32.mrb[0].mxu0
  %v2602 = vadd.f32 %v2406, %v2601
  %v2603 = vpop.f32.mrb[0].mxu0
  %2604 = vmatprep.mubr.bf16.mxu0 %v2354
  %2605 = vmatmul.mubr.bf16.gmra.mrb[0].mxu0 %v2353
  %v2606 = vpop.f32.mrb[0].mxu0
  %v2607 = vadd.f32 %v2406, %v2606
  %v2608 = vpop.f32.mrb[0].mxu0
  %v2609 = vpop.f32.mrb[0].mxu0
  %v2610 = vadd.f32 %v2406, %v2609
  %v2611 = vpop.f32.mrb[0].mxu0
  %2612 = vmatprep.mubr.bf16.mxu0 %v2357
  %2613 = vmatmul.mubr.bf16.gmra.mrb[0].mxu0 %v2356
  %v2614 = vpop.f32.mrb[0].mxu0
  %v2615 = vadd.f32 %v2406, %v2614
  %v2616 = vpop.f32.mrb[0].mxu0
  %v2617 = vpop.f32.mrb[0].mxu0
  %v2618 = vadd.f32 %v2406, %v2617
  %v2619 = vpop.f32.mrb[0].mxu0
  %2620 = vmatprep.mubr.bf16.mxu0 %v2360
  %2621 = vmatmul.mubr.bf16.gmra.mrb[0].mxu0 %v2359
  %v2622 = vpop.f32.mrb[0].mxu0
  %v2623 = vadd.f32 %v2406, %v2622
  %v2624 = vpop.f32.mrb[0].mxu0
  %v2625 = vpop.f32.mrb[0].mxu0
  %v2626 = vadd.f32 %v2406, %v2625
  %v2627 = vpop.f32.mrb[0].mxu0
  %2628 = vmatprep.mubr.bf16.mxu0 %v2363
  %2629 = vmatmul.mubr.bf16.gmra.mrb[0].mxu0 %v2362
  %v2630 = vpop.f32.mrb[0].mxu0
  %v2631 = vadd.f32 %v2406, %v2630
  %v2632 = vpop.f32.mrb[0].mxu0
  %v2633 = vpop.f32.mrb[0].mxu0
  %v2634 = vadd.f32 %v2406, %v2633
  %v2635 = vpop.f32.mrb[0].mxu0
  %2636 = vdwg.mxu0
  %2637 = vmatprep.subr.bf16.mxu0 0
  %2638 = vmatpush1.bf16.msra.mxu0 %v2496
  %2639 = vmatprep.subr.bf16.mxu0 0
  %2640 = vmatpush1.bf16.msra.mxu0 %v2497
  %2641 = vmatprep.subr.bf16.mxu0 0
  %2642 = vmatpush1.bf16.msra.mxu0 0
  %2643 = vmatprep.subr.bf16.mxu0 0
  %2644 = vmatpush1.bf16.msra.mxu0 0
  %2645 = vmatprep.subr.bf16.mxu0 0
  %2646 = vmatpush1.bf16.msra.mxu0 0
  %2647 = vmatprep.subr.bf16.mxu0 0
  %2648 = vmatpush1.bf16.msra.mxu0 0
  %2649 = vmatprep.subr.bf16.mxu0 0
  %2650 = vmatpush1.bf16.msra.mxu0 0
  %2651 = vmatprep.subr.bf16.mxu0 0
  %2652 = vmatpush1.bf16.msra.mxu0 0
  %2653 = vmatprep.subr.bf16.mxu0 0
  %2654 = vmatpush1.bf16.msra.mxu0 0
  %2655 = vmatprep.subr.bf16.mxu0 0
  %2656 = vmatpush1.bf16.msra.mxu0 0
  %2657 = vmatprep.subr.bf16.mxu0 0
  %2658 = vmatpush1.bf16.msra.mxu0 0
  %2659 = vmatprep.subr.bf16.mxu0 0
  %2660 = vmatpush1.bf16.msra.mxu0 0
  %2661 = vmatprep.subr.bf16.mxu0 0
  %2662 = vmatpush1.bf16.msra.mxu0 0
  %2663 = vmatprep.subr.bf16.mxu0 0
  %2664 = vmatpush1.bf16.msra.mxu0 0
  %2665 = vmatprep.subr.bf16.mxu0 0
  %2666 = vmatpush1.bf16.msra.mxu0 0
  %2667 = vmatprep.subr.bf16.mxu0 0
  %2668 = vmatpush1.bf16.msra.mxu0 0
  %2669 = vmatprep.mubr.bf16.mxu0 0
  %2670 = vmatmul.mubr.bf16.gmra.mrb[0].mxu0 %v2517
  %v2671 = vpop.f32.mrb[0].mxu0
  %v2672 = vadd.f32 %v2575, %v2671
  %v2673 = vpop.f32.mrb[0].mxu0
  %v2674 = vpop.f32.mrb[0].mxu0
  %v2675 = vadd.f32 %v2578, %v2674
  %v2676 = vpop.f32.mrb[0].mxu0
  %2677 = vmatprep.mubr.bf16.mxu0 0
  %2678 = vmatmul.mubr.bf16.gmra.mrb[0].mxu0 %v2520
  %v2679 = vpop.f32.mrb[0].mxu0
  %v2680 = vadd.f32 %v2583, %v2679
  %v2681 = vpop.f32.mrb[0].mxu0
  %v2682 = vpop.f32.mrb[0].mxu0
  %v2683 = vadd.f32 %v2586, %v2682
  %v2684 = vpop.f32.mrb[0].mxu0
  %2685 = vmatprep.mubr.bf16.mxu0 0
  %2686 = vmatmul.mubr.bf16.gmra.mrb[0].mxu0 %v2523
  %v2687 = vpop.f32.mrb[0].mxu0
  %v2688 = vadd.f32 %v2591, %v2687
  %v2689 = vpop.f32.mrb[0].mxu0
  %v2690 = vpop.f32.mrb[0].mxu0
  %v2691 = vadd.f32 %v2594, %v2690
  %v2692 = vpop.f32.mrb[0].mxu0
  %2693 = vmatprep.mubr.bf16.mxu0 0
  %2694 = vmatmul.mubr.bf16.gmra.mrb[0].mxu0 %v2526
  %v2695 = vpop.f32.mrb[0].mxu0
  %v2696 = vadd.f32 %v2599, %v2695
  %v2697 = vpop.f32.mrb[0].mxu0
  %v2698 = vpop.f32.mrb[0].mxu0
  %v2699 = vadd.f32 %v2602, %v2698
  %v2700 = vpop.f32.mrb[0].mxu0
  %2701 = vmatprep.mubr.bf16.mxu0 0
  %2702 = vmatmul.mubr.bf16.gmra.mrb[0].mxu0 %v2529
  %v2703 = vpop.f32.mrb[0].mxu0
  %v2704 = vadd.f32 %v2607, %v2703
  %v2705 = vpop.f32.mrb[0].mxu0
  %v2706 = vpop.f32.mrb[0].mxu0
  %v2707 = vadd.f32 %v2610, %v2706
  %v2708 = vpop.f32.mrb[0].mxu0
  %2709 = vmatprep.mubr.bf16.mxu0 0
  %2710 = vmatmul.mubr.bf16.gmra.mrb[0].mxu0 %v2532
  %v2711 = vpop.f32.mrb[0].mxu0
  %v2712 = vadd.f32 %v2615, %v2711
  %v2713 = vpop.f32.mrb[0].mxu0
  %v2714 = vpop.f32.mrb[0].mxu0
  %v2715 = vadd.f32 %v2618, %v2714
  %v2716 = vpop.f32.mrb[0].mxu0
  %2717 = vmatprep.mubr.bf16.mxu0 0
  %2718 = vmatmul.mubr.bf16.gmra.mrb[0].mxu0 %v2535
  %v2719 = vpop.f32.mrb[0].mxu0
  %v2720 = vadd.f32 %v2623, %v2719
  %v2721 = vpop.f32.mrb[0].mxu0
  %v2722 = vpop.f32.mrb[0].mxu0
  %v2723 = vadd.f32 %v2626, %v2722
  %v2724 = vpop.f32.mrb[0].mxu0
  %2725 = vmatprep.mubr.bf16.mxu0 0
  %2726 = vmatmul.mubr.bf16.gmra.mrb[0].mxu0 %v2538
  %v2727 = vpop.f32.mrb[0].mxu0
  %v2728 = vadd.f32 %v2631, %v2727
  %v2729 = vpop.f32.mrb[0].mxu0
  %v2730 = vpop.f32.mrb[0].mxu0
  %v2731 = vadd.f32 %v2634, %v2730
  %v2732 = vpop.f32.mrb[0].mxu0
  %2733 = vdwg.mxu0
  %v2734 = vmax.f32 %v2672, 0.0
  %v2735 = vmax.f32 %v2675, 0.0
  %v2736 = vmax.f32 %v2680, 0.0
  %v2737 = vmax.f32 %v2683, 0.0
  %v2738 = vmax.f32 %v2688, 0.0
  %v2739 = vmax.f32 %v2691, 0.0
  %v2740 = vmax.f32 %v2696, 0.0
  %v2741 = vmax.f32 %v2699, 0.0
  %v2742 = vmax.f32 %v2704, 0.0
  %v2743 = vmax.f32 %v2707, 0.0
  %v2744 = vmax.f32 %v2712, 0.0
  %v2745 = vmax.f32 %v2715, 0.0
  %v2746 = vmax.f32 %v2720, 0.0
  %v2747 = vmax.f32 %v2723, 0.0
  %v2748 = vmax.f32 %v2728, 0.0
  %v2749 = vmax.f32 %v2731, 0.0
  %v2750 = vrot.slane %v2734, 7
  %v2751 = vrot.slane %v2735, 7
  %v2752 = vrot.slane %v2736, 7
  %v2753 = vrot.slane %v2737, 7
  %v2754 = vrot.slane %v2738, 7
  %v2755 = vrot.slane %v2739, 7
  %v2756 = vrot.slane %v2740, 7
  %v2757 = vrot.slane %v2741, 7
  %v2758 = vrot.slane %v2742, 7
  %v2759 = vrot.slane %v2743, 7
  %v2760 = vrot.slane %v2744, 7
  %v2761 = vrot.slane %v2745, 7
  %v2762 = vrot.slane %v2746, 7
  %v2763 = vrot.slane %v2747, 7
  %v2764 = vrot.slane %v2748, 7
  %v2765 = vrot.slane %v2749, 7
  %v2766 = vsel %vm961, %v2764, %v2765
  %v2767 = vsel %vm961, %v2763, %v2764
  %v2768 = vsel %vm961, %v2762, %v2763
  %v2769 = vsel %vm961, %v2761, %v2762
  %v2770 = vsel %vm961, %v2760, %v2761
  %v2771 = vsel %vm961, %v2759, %v2760
  %v2772 = vsel %vm961, %v2758, %v2759
  %v2773 = vsel %vm961, %v2757, %v2758
  %v2774 = vsel %vm961, %v2756, %v2757
  %v2775 = vsel %vm961, %v2755, %v2756
  %v2776 = vsel %vm961, %v2754, %v2755
  %v2777 = vsel %vm961, %v2753, %v2754
  %v2778 = vsel %vm961, %v2752, %v2753
  %v2779 = vsel %vm961, %v2751, %v2752
  %v2780 = vsel %vm961, %v2750, %v2751
  %v2781 = vsel %vm961, %v2765, %v2750
  %v2782 = vmul.f32 %v2766, %v257
  %v2783 = vmul.f32 %v2781, %v258
  %v2784 = vmul.f32 %v2780, %v259
  %v2785 = vmul.f32 %v2779, %v260
  %v2786 = vmul.f32 %v2778, %v261
  %v2787 = vmul.f32 %v2777, %v262
  %v2788 = vmul.f32 %v2776, %v263
  %v2789 = vmul.f32 %v2775, %v264
  %v2790 = vmul.f32 %v2774, %v265
  %v2791 = vmul.f32 %v2773, %v266
  %v2792 = vmul.f32 %v2772, %v267
  %v2793 = vmul.f32 %v2771, %v268
  %v2794 = vmul.f32 %v2770, %v269
  %v2795 = vmul.f32 %v2769, %v270
  %v2796 = vmul.f32 %v2768, %v271
  %v2797 = vmul.f32 %v2767, %v272
  %2798 = vst.msk [vmem:[#allocation2] sm:$0xff] %vm1601, %v2782
  %2799 = vst.msk [vmem:[#allocation2 + $0x18] sm:$0xff] %vm1601, %v2783
  %2800 = vst.msk [vmem:[#allocation2 + $0x30] sm:$0xff] %vm1601, %v2784
  %2801 = vst.msk [vmem:[#allocation2 + $0x48] sm:$0xff] %vm1601, %v2785
  %2802 = vst.msk [vmem:[#allocation2 + $0x60] sm:$0xff] %vm1601, %v2786
  %2803 = vst.msk [vmem:[#allocation2 + $0x78] sm:$0xff] %vm1601, %v2787
  %2804 = vst.msk [vmem:[#allocation2 + $0x90] sm:$0xff] %vm1601, %v2788
  %2805 = vst.msk [vmem:[#allocation2 + $0xa8] sm:$0xff] %vm1601, %v2789
  %2806 = vst.msk [vmem:[#allocation2 + $0xc0] sm:$0xff] %vm1601, %v2790
  %2807 = vst.msk [vmem:[#allocation2 + $0xd8] sm:$0xff] %vm1601, %v2791
  %2808 = vst.msk [vmem:[#allocation2 + $0xf0] sm:$0xff] %vm1601, %v2792
  %2809 = vst.msk [vmem:[#allocation2 + $0x108] sm:$0xff] %vm1601, %v2793
  %2810 = vst.msk [vmem:[#allocation2 + $0x120] sm:$0xff] %vm1601, %v2794
  %2811 = vst.msk [vmem:[#allocation2 + $0x138] sm:$0xff] %vm1601, %v2795
  %2812 = vst.msk [vmem:[#allocation2 + $0x150] sm:$0xff] %vm1601, %v2796
  %2813 = vst.msk [vmem:[#allocation2 + $0x168] sm:$0xff] %vm1601, %v2797
  %v2814 = vmul.f32 %v2749, %v337
  %v2815 = vmul.f32 %v2734, %v338
  %v2816 = vmul.f32 %v2735, %v339
  %v2817 = vmul.f32 %v2736, %v340
  %v2818 = vmul.f32 %v2737, %v341
  %v2819 = vmul.f32 %v2738, %v342
  %v2820 = vmul.f32 %v2739, %v343
  %v2821 = vmul.f32 %v2740, %v344
  %v2822 = vmul.f32 %v2741, %v345
  %v2823 = vmul.f32 %v2742, %v346
  %v2824 = vmul.f32 %v2743, %v347
  %v2825 = vmul.f32 %v2744, %v348
  %v2826 = vmul.f32 %v2745, %v349
  %v2827 = vmul.f32 %v2746, %v350
  %v2828 = vmul.f32 %v2747, %v351
  %v2829 = vmul.f32 %v2748, %v352
  %2846 = vrot.lane.b32.xlu0 %v2814, 32
  %v2847 = vpop.permute.xlu0 %2846
  %2848 = vrot.lane.b32.xlu0 %v2815, 32
  %v2849 = vpop.permute.xlu0 %2848
  %2850 = vrot.lane.b32.xlu0 %v2816, 32
  %v2851 = vpop.permute.xlu0 %2850
  %2852 = vrot.lane.b32.xlu0 %v2817, 32
  %v2853 = vpop.permute.xlu0 %2852
  %2854 = vrot.lane.b32.xlu0 %v2818, 32
  %v2855 = vpop.permute.xlu0 %2854
  %2856 = vrot.lane.b32.xlu0 %v2819, 32
  %v2857 = vpop.permute.xlu0 %2856
  %2858 = vrot.lane.b32.xlu0 %v2820, 32
  %v2859 = vpop.permute.xlu0 %2858
  %2860 = vrot.lane.b32.xlu0 %v2821, 32
  %v2861 = vpop.permute.xlu0 %2860
  %2862 = vrot.lane.b32.xlu0 %v2822, 32
  %v2863 = vpop.permute.xlu0 %2862
  %2864 = vrot.lane.b32.xlu0 %v2823, 32
  %v2865 = vpop.permute.xlu0 %2864
  %2866 = vrot.lane.b32.xlu0 %v2824, 32
  %v2867 = vpop.permute.xlu0 %2866
  %2868 = vrot.lane.b32.xlu0 %v2825, 32
  %v2869 = vpop.permute.xlu0 %2868
  %2870 = vrot.lane.b32.xlu0 %v2826, 32
  %v2871 = vpop.permute.xlu0 %2870
  %2872 = vrot.lane.b32.xlu0 %v2827, 32
  %v2873 = vpop.permute.xlu0 %2872
  %2874 = vrot.lane.b32.xlu0 %v2828, 32
  %v2875 = vpop.permute.xlu0 %2874
  %2876 = vrot.lane.b32.xlu0 %v2829, 32
  %v2877 = vpop.permute.xlu0 %2876
  %2894 = vst.msk [vmem:[#allocation2] sm:$0xff] %vm1698, %v2847
  %2895 = vst.msk [vmem:[#allocation2 + $0x18] sm:$0xff] %vm1698, %v2849
  %2896 = vst.msk [vmem:[#allocation2 + $0x30] sm:$0xff] %vm1698, %v2851
  %2897 = vst.msk [vmem:[#allocation2 + $0x48] sm:$0xff] %vm1698, %v2853
  %2898 = vst.msk [vmem:[#allocation2 + $0x60] sm:$0xff] %vm1698, %v2855
  %2899 = vst.msk [vmem:[#allocation2 + $0x78] sm:$0xff] %vm1698, %v2857
  %2900 = vst.msk [vmem:[#allocation2 + $0x90] sm:$0xff] %vm1698, %v2859
  %2901 = vst.msk [vmem:[#allocation2 + $0xa8] sm:$0xff] %vm1698, %v2861
  %2902 = vst.msk [vmem:[#allocation2 + $0xc0] sm:$0xff] %vm1698, %v2863
  %2903 = vst.msk [vmem:[#allocation2 + $0xd8] sm:$0xff] %vm1698, %v2865
  %2904 = vst.msk [vmem:[#allocation2 + $0xf0] sm:$0xff] %vm1698, %v2867
  %2905 = vst.msk [vmem:[#allocation2 + $0x108] sm:$0xff] %vm1698, %v2869
  %2906 = vst.msk [vmem:[#allocation2 + $0x120] sm:$0xff] %vm1698, %v2871
  %2907 = vst.msk [vmem:[#allocation2 + $0x138] sm:$0xff] %vm1698, %v2873
  %2908 = vst.msk [vmem:[#allocation2 + $0x150] sm:$0xff] %vm1698, %v2875
  %2909 = vst.msk [vmem:[#allocation2 + $0x168] sm:$0xff] %vm1698, %v2877
  %v2910 = vrot.slane %v2734, 1
  %v2911 = vrot.slane %v2735, 1
  %v2912 = vrot.slane %v2736, 1
  %v2913 = vrot.slane %v2737, 1
  %v2914 = vrot.slane %v2738, 1
  %v2915 = vrot.slane %v2739, 1
  %v2916 = vrot.slane %v2740, 1
  %v2917 = vrot.slane %v2741, 1
  %v2918 = vrot.slane %v2742, 1
  %v2919 = vrot.slane %v2743, 1
  %v2920 = vrot.slane %v2744, 1
  %v2921 = vrot.slane %v2745, 1
  %v2922 = vrot.slane %v2746, 1
  %v2923 = vrot.slane %v2747, 1
  %v2924 = vrot.slane %v2748, 1
  %v2925 = vrot.slane %v2749, 1
  %v2926 = vsel %vm1105, %v2924, %v2925
  %v2927 = vsel %vm1105, %v2923, %v2924
  %v2928 = vsel %vm1105, %v2922, %v2923
  %v2929 = vsel %vm1105, %v2921, %v2922
  %v2930 = vsel %vm1105, %v2920, %v2921
  %v2931 = vsel %vm1105, %v2919, %v2920
  %v2932 = vsel %vm1105, %v2918, %v2919
  %v2933 = vsel %vm1105, %v2917, %v2918
  %v2934 = vsel %vm1105, %v2916, %v2917
  %v2935 = vsel %vm1105, %v2915, %v2916
  %v2936 = vsel %vm1105, %v2914, %v2915
  %v2937 = vsel %vm1105, %v2913, %v2914
  %v2938 = vsel %vm1105, %v2912, %v2913
  %v2939 = vsel %vm1105, %v2911, %v2912
  %v2940 = vsel %vm1105, %v2910, %v2911
  %v2941 = vsel %vm1105, %v2925, %v2910
  %v2942 = vmul.f32 %v2941, %v433
  %v2943 = vmul.f32 %v2940, %v434
  %v2944 = vmul.f32 %v2939, %v435
  %v2945 = vmul.f32 %v2938, %v436
  %v2946 = vmul.f32 %v2937, %v437
  %v2947 = vmul.f32 %v2936, %v438
  %v2948 = vmul.f32 %v2935, %v439
  %v2949 = vmul.f32 %v2934, %v440
  %v2950 = vmul.f32 %v2933, %v441
  %v2951 = vmul.f32 %v2932, %v442
  %v2952 = vmul.f32 %v2931, %v443
  %v2953 = vmul.f32 %v2930, %v444
  %v2954 = vmul.f32 %v2929, %v445
  %v2955 = vmul.f32 %v2928, %v446
  %v2956 = vmul.f32 %v2927, %v447
  %v2957 = vmul.f32 %v2926, %v448
  %2974 = vrot.lane.b32.xlu0 %v2942, 64
  %v2975 = vpop.permute.xlu0 %2974
  %2976 = vrot.lane.b32.xlu0 %v2943, 64
  %v2977 = vpop.permute.xlu0 %2976
  %2978 = vrot.lane.b32.xlu0 %v2944, 64
  %v2979 = vpop.permute.xlu0 %2978
  %2980 = vrot.lane.b32.xlu0 %v2945, 64
  %v2981 = vpop.permute.xlu0 %2980
  %2982 = vrot.lane.b32.xlu0 %v2946, 64
  %v2983 = vpop.permute.xlu0 %2982
  %2984 = vrot.lane.b32.xlu0 %v2947, 64
  %v2985 = vpop.permute.xlu0 %2984
  %2986 = vrot.lane.b32.xlu0 %v2948, 64
  %v2987 = vpop.permute.xlu0 %2986
  %2988 = vrot.lane.b32.xlu0 %v2949, 64
  %v2989 = vpop.permute.xlu0 %2988
  %2990 = vrot.lane.b32.xlu0 %v2950, 64
  %v2991 = vpop.permute.xlu0 %2990
  %2992 = vrot.lane.b32.xlu0 %v2951, 64
  %v2993 = vpop.permute.xlu0 %2992
  %2994 = vrot.lane.b32.xlu0 %v2952, 64
  %v2995 = vpop.permute.xlu0 %2994
  %2996 = vrot.lane.b32.xlu0 %v2953, 64
  %v2997 = vpop.permute.xlu0 %2996
  %2998 = vrot.lane.b32.xlu0 %v2954, 64
  %v2999 = vpop.permute.xlu0 %2998
  %3000 = vrot.lane.b32.xlu0 %v2955, 64
  %v3001 = vpop.permute.xlu0 %3000
  %3002 = vrot.lane.b32.xlu0 %v2956, 64
  %v3003 = vpop.permute.xlu0 %3002
  %3004 = vrot.lane.b32.xlu0 %v2957, 64
  %v3005 = vpop.permute.xlu0 %3004
  %3022 = vst.msk [vmem:[#allocation2] sm:$0xff] %vm1827, %v2975
  %3023 = vst.msk [vmem:[#allocation2 + $0x18] sm:$0xff] %vm1827, %v2977
  %3024 = vst.msk [vmem:[#allocation2 + $0x30] sm:$0xff] %vm1827, %v2979
  %3025 = vst.msk [vmem:[#allocation2 + $0x48] sm:$0xff] %vm1827, %v2981
  %3026 = vst.msk [vmem:[#allocation2 + $0x60] sm:$0xff] %vm1827, %v2983
  %3027 = vst.msk [vmem:[#allocation2 + $0x78] sm:$0xff] %vm1827, %v2985
  %3028 = vst.msk [vmem:[#allocation2 + $0x90] sm:$0xff] %vm1827, %v2987
  %3029 = vst.msk [vmem:[#allocation2 + $0xa8] sm:$0xff] %vm1827, %v2989
  %3030 = vst.msk [vmem:[#allocation2 + $0xc0] sm:$0xff] %vm1827, %v2991
  %3031 = vst.msk [vmem:[#allocation2 + $0xd8] sm:$0xff] %vm1827, %v2993
  %3032 = vst.msk [vmem:[#allocation2 + $0xf0] sm:$0xff] %vm1827, %v2995
  %3033 = vst.msk [vmem:[#allocation2 + $0x108] sm:$0xff] %vm1827, %v2997
  %3034 = vst.msk [vmem:[#allocation2 + $0x120] sm:$0xff] %vm1827, %v2999
  %3035 = vst.msk [vmem:[#allocation2 + $0x138] sm:$0xff] %vm1827, %v3001
  %3036 = vst.msk [vmem:[#allocation2 + $0x150] sm:$0xff] %vm1827, %v3003
  %3037 = vst.msk [vmem:[#allocation2 + $0x168] sm:$0xff] %vm1827, %v3005
  %v3038 = vmul.f32 %v2781, %v529
  %v3039 = vmul.f32 %v2780, %v530
  %v3040 = vmul.f32 %v2779, %v531
  %v3041 = vmul.f32 %v2778, %v532
  %v3042 = vmul.f32 %v2777, %v533
  %v3043 = vmul.f32 %v2776, %v534
  %v3044 = vmul.f32 %v2775, %v535
  %v3045 = vmul.f32 %v2774, %v536
  %v3046 = vmul.f32 %v2773, %v537
  %v3047 = vmul.f32 %v2772, %v538
  %v3048 = vmul.f32 %v2771, %v539
  %v3049 = vmul.f32 %v2770, %v540
  %v3050 = vmul.f32 %v2769, %v541
  %v3051 = vmul.f32 %v2768, %v542
  %v3052 = vmul.f32 %v2767, %v543
  %v3053 = vmul.f32 %v2766, %v544
  %3070 = vrot.lane.b32.xlu0 %v3038, 96
  %v3071 = vpop.permute.xlu0 %3070
  %3072 = vrot.lane.b32.xlu0 %v3039, 96
  %v3073 = vpop.permute.xlu0 %3072
  %3074 = vrot.lane.b32.xlu0 %v3040, 96
  %v3075 = vpop.permute.xlu0 %3074
  %3076 = vrot.lane.b32.xlu0 %v3041, 96
  %v3077 = vpop.permute.xlu0 %3076
  %3078 = vrot.lane.b32.xlu0 %v3042, 96
  %v3079 = vpop.permute.xlu0 %3078
  %3080 = vrot.lane.b32.xlu0 %v3043, 96
  %v3081 = vpop.permute.xlu0 %3080
  %3082 = vrot.lane.b32.xlu0 %v3044, 96
  %v3083 = vpop.permute.xlu0 %3082
  %3084 = vrot.lane.b32.xlu0 %v3045, 96
  %v3085 = vpop.permute.xlu0 %3084
  %3086 = vrot.lane.b32.xlu0 %v3046, 96
  %v3087 = vpop.permute.xlu0 %3086
  %3088 = vrot.lane.b32.xlu0 %v3047, 96
  %v3089 = vpop.permute.xlu0 %3088
  %3090 = vrot.lane.b32.xlu0 %v3048, 96
  %v3091 = vpop.permute.xlu0 %3090
  %3092 = vrot.lane.b32.xlu0 %v3049, 96
  %v3093 = vpop.permute.xlu0 %3092
  %3094 = vrot.lane.b32.xlu0 %v3050, 96
  %v3095 = vpop.permute.xlu0 %3094
  %3096 = vrot.lane.b32.xlu0 %v3051, 96
  %v3097 = vpop.permute.xlu0 %3096
  %3098 = vrot.lane.b32.xlu0 %v3052, 96
  %v3099 = vpop.permute.xlu0 %3098
  %3100 = vrot.lane.b32.xlu0 %v3053, 96
  %v3101 = vpop.permute.xlu0 %3100
  %3118 = vst.msk [vmem:[#allocation2] sm:$0xff] %vm1924, %v3071
  %3119 = vst.msk [vmem:[#allocation2 + $0x18] sm:$0xff] %vm1924, %v3073
  %3120 = vst.msk [vmem:[#allocation2 + $0x30] sm:$0xff] %vm1924, %v3075
  %3121 = vst.msk [vmem:[#allocation2 + $0x48] sm:$0xff] %vm1924, %v3077
  %3122 = vst.msk [vmem:[#allocation2 + $0x60] sm:$0xff] %vm1924, %v3079
  %3123 = vst.msk [vmem:[#allocation2 + $0x78] sm:$0xff] %vm1924, %v3081
  %3124 = vst.msk [vmem:[#allocation2 + $0x90] sm:$0xff] %vm1924, %v3083
  %3125 = vst.msk [vmem:[#allocation2 + $0xa8] sm:$0xff] %vm1924, %v3085
  %3126 = vst.msk [vmem:[#allocation2 + $0xc0] sm:$0xff] %vm1924, %v3087
  %3127 = vst.msk [vmem:[#allocation2 + $0xd8] sm:$0xff] %vm1924, %v3089
  %3128 = vst.msk [vmem:[#allocation2 + $0xf0] sm:$0xff] %vm1924, %v3091
  %3129 = vst.msk [vmem:[#allocation2 + $0x108] sm:$0xff] %vm1924, %v3093
  %3130 = vst.msk [vmem:[#allocation2 + $0x120] sm:$0xff] %vm1924, %v3095
  %3131 = vst.msk [vmem:[#allocation2 + $0x138] sm:$0xff] %vm1924, %v3097
  %3132 = vst.msk [vmem:[#allocation2 + $0x150] sm:$0xff] %vm1924, %v3099
  %3133 = vst.msk [vmem:[#allocation2 + $0x168] sm:$0xff] %vm1924, %v3101
  %v3134 = vmul.f32 %v2734, %v577
  %v3135 = vmul.f32 %v2735, %v578
  %v3136 = vmul.f32 %v2736, %v579
  %v3137 = vmul.f32 %v2737, %v580
  %v3138 = vmul.f32 %v2738, %v581
  %v3139 = vmul.f32 %v2739, %v582
  %v3140 = vmul.f32 %v2740, %v583
  %v3141 = vmul.f32 %v2741, %v584
  %v3142 = vmul.f32 %v2742, %v585
  %v3143 = vmul.f32 %v2743, %v586
  %v3144 = vmul.f32 %v2744, %v587
  %v3145 = vmul.f32 %v2745, %v588
  %v3146 = vmul.f32 %v2746, %v589
  %v3147 = vmul.f32 %v2747, %v590
  %v3148 = vmul.f32 %v2748, %v591
  %v3149 = vmul.f32 %v2749, %v592
  %3150 = vst.msk [vmem:[#allocation2 + $0x8] sm:$0xff] %vm1601, %v3134
  %3151 = vst.msk [vmem:[#allocation2 + $0x20] sm:$0xff] %vm1601, %v3135
  %3152 = vst.msk [vmem:[#allocation2 + $0x38] sm:$0xff] %vm1601, %v3136
  %3153 = vst.msk [vmem:[#allocation2 + $0x50] sm:$0xff] %vm1601, %v3137
  %3154 = vst.msk [vmem:[#allocation2 + $0x68] sm:$0xff] %vm1601, %v3138
  %3155 = vst.msk [vmem:[#allocation2 + $0x80] sm:$0xff] %vm1601, %v3139
  %3156 = vst.msk [vmem:[#allocation2 + $0x98] sm:$0xff] %vm1601, %v3140
  %3157 = vst.msk [vmem:[#allocation2 + $0xb0] sm:$0xff] %vm1601, %v3141
  %3158 = vst.msk [vmem:[#allocation2 + $0xc8] sm:$0xff] %vm1601, %v3142
  %3159 = vst.msk [vmem:[#allocation2 + $0xe0] sm:$0xff] %vm1601, %v3143
  %3160 = vst.msk [vmem:[#allocation2 + $0xf8] sm:$0xff] %vm1601, %v3144
  %3161 = vst.msk [vmem:[#allocation2 + $0x110] sm:$0xff] %vm1601, %v3145
  %3162 = vst.msk [vmem:[#allocation2 + $0x128] sm:$0xff] %vm1601, %v3146
  %3163 = vst.msk [vmem:[#allocation2 + $0x140] sm:$0xff] %vm1601, %v3147
  %3164 = vst.msk [vmem:[#allocation2 + $0x158] sm:$0xff] %vm1601, %v3148
  %3165 = vst.msk [vmem:[#allocation2 + $0x170] sm:$0xff] %vm1601, %v3149
  %v3166 = vmul.f32 %v2940, %v625
  %v3167 = vmul.f32 %v2939, %v626
  %v3168 = vmul.f32 %v2938, %v627
  %v3169 = vmul.f32 %v2937, %v628
  %v3170 = vmul.f32 %v2936, %v629
  %v3171 = vmul.f32 %v2935, %v630
  %v3172 = vmul.f32 %v2934, %v631
  %v3173 = vmul.f32 %v2933, %v632
  %v3174 = vmul.f32 %v2932, %v633
  %v3175 = vmul.f32 %v2931, %v634
  %v3176 = vmul.f32 %v2930, %v635
  %v3177 = vmul.f32 %v2929, %v636
  %v3178 = vmul.f32 %v2928, %v637
  %v3179 = vmul.f32 %v2927, %v638
  %v3180 = vmul.f32 %v2926, %v639
  %v3181 = vmul.f32 %v2941, %v640
  %3198 = vrot.lane.b32.xlu0 %v3166, 32
  %v3199 = vpop.permute.xlu0 %3198
  %3200 = vrot.lane.b32.xlu0 %v3167, 32
  %v3201 = vpop.permute.xlu0 %3200
  %3202 = vrot.lane.b32.xlu0 %v3168, 32
  %v3203 = vpop.permute.xlu0 %3202
  %3204 = vrot.lane.b32.xlu0 %v3169, 32
  %v3205 = vpop.permute.xlu0 %3204
  %3206 = vrot.lane.b32.xlu0 %v3170, 32
  %v3207 = vpop.permute.xlu0 %3206
  %3208 = vrot.lane.b32.xlu0 %v3171, 32
  %v3209 = vpop.permute.xlu0 %3208
  %3210 = vrot.lane.b32.xlu0 %v3172, 32
  %v3211 = vpop.permute.xlu0 %3210
  %3212 = vrot.lane.b32.xlu0 %v3173, 32
  %v3213 = vpop.permute.xlu0 %3212
  %3214 = vrot.lane.b32.xlu0 %v3174, 32
  %v3215 = vpop.permute.xlu0 %3214
  %3216 = vrot.lane.b32.xlu0 %v3175, 32
  %v3217 = vpop.permute.xlu0 %3216
  %3218 = vrot.lane.b32.xlu0 %v3176, 32
  %v3219 = vpop.permute.xlu0 %3218
  %3220 = vrot.lane.b32.xlu0 %v3177, 32
  %v3221 = vpop.permute.xlu0 %3220
  %3222 = vrot.lane.b32.xlu0 %v3178, 32
  %v3223 = vpop.permute.xlu0 %3222
  %3224 = vrot.lane.b32.xlu0 %v3179, 32
  %v3225 = vpop.permute.xlu0 %3224
  %3226 = vrot.lane.b32.xlu0 %v3180, 32
  %v3227 = vpop.permute.xlu0 %3226
  %3228 = vrot.lane.b32.xlu0 %v3181, 32
  %v3229 = vpop.permute.xlu0 %3228
  %3246 = vst.msk [vmem:[#allocation2 + $0x8] sm:$0xff] %vm1698, %v3199
  %3247 = vst.msk [vmem:[#allocation2 + $0x20] sm:$0xff] %vm1698, %v3201
  %3248 = vst.msk [vmem:[#allocation2 + $0x38] sm:$0xff] %vm1698, %v3203
  %3249 = vst.msk [vmem:[#allocation2 + $0x50] sm:$0xff] %vm1698, %v3205
  %3250 = vst.msk [vmem:[#allocation2 + $0x68] sm:$0xff] %vm1698, %v3207
  %3251 = vst.msk [vmem:[#allocation2 + $0x80] sm:$0xff] %vm1698, %v3209
  %3252 = vst.msk [vmem:[#allocation2 + $0x98] sm:$0xff] %vm1698, %v3211
  %3253 = vst.msk [vmem:[#allocation2 + $0xb0] sm:$0xff] %vm1698, %v3213
  %3254 = vst.msk [vmem:[#allocation2 + $0xc8] sm:$0xff] %vm1698, %v3215
  %3255 = vst.msk [vmem:[#allocation2 + $0xe0] sm:$0xff] %vm1698, %v3217
  %3256 = vst.msk [vmem:[#allocation2 + $0xf8] sm:$0xff] %vm1698, %v3219
  %3257 = vst.msk [vmem:[#allocation2 + $0x110] sm:$0xff] %vm1698, %v3221
  %3258 = vst.msk [vmem:[#allocation2 + $0x128] sm:$0xff] %vm1698, %v3223
  %3259 = vst.msk [vmem:[#allocation2 + $0x140] sm:$0xff] %vm1698, %v3225
  %3260 = vst.msk [vmem:[#allocation2 + $0x158] sm:$0xff] %vm1698, %v3227
  %3261 = vst.msk [vmem:[#allocation2 + $0x170] sm:$0xff] %vm1698, %v3229
  %v3262 = vmul.f32 %v2780, %v737
  %v3263 = vmul.f32 %v2779, %v738
  %v3264 = vmul.f32 %v2778, %v739
  %v3265 = vmul.f32 %v2777, %v740
  %v3266 = vmul.f32 %v2776, %v741
  %v3267 = vmul.f32 %v2775, %v742
  %v3268 = vmul.f32 %v2774, %v743
  %v3269 = vmul.f32 %v2773, %v744
  %v3270 = vmul.f32 %v2772, %v745
  %v3271 = vmul.f32 %v2771, %v746
  %v3272 = vmul.f32 %v2770, %v747
  %v3273 = vmul.f32 %v2769, %v748
  %v3274 = vmul.f32 %v2768, %v749
  %v3275 = vmul.f32 %v2767, %v750
  %v3276 = vmul.f32 %v2766, %v751
  %v3277 = vmul.f32 %v2781, %v752
  %3294 = vrot.lane.b32.xlu0 %v3262, 64
  %v3295 = vpop.permute.xlu0 %3294
  %3296 = vrot.lane.b32.xlu0 %v3263, 64
  %v3297 = vpop.permute.xlu0 %3296
  %3298 = vrot.lane.b32.xlu0 %v3264, 64
  %v3299 = vpop.permute.xlu0 %3298
  %3300 = vrot.lane.b32.xlu0 %v3265, 64
  %v3301 = vpop.permute.xlu0 %3300
  %3302 = vrot.lane.b32.xlu0 %v3266, 64
  %v3303 = vpop.permute.xlu0 %3302
  %3304 = vrot.lane.b32.xlu0 %v3267, 64
  %v3305 = vpop.permute.xlu0 %3304
  %3306 = vrot.lane.b32.xlu0 %v3268, 64
  %v3307 = vpop.permute.xlu0 %3306
  %3308 = vrot.lane.b32.xlu0 %v3269, 64
  %v3309 = vpop.permute.xlu0 %3308
  %3310 = vrot.lane.b32.xlu0 %v3270, 64
  %v3311 = vpop.permute.xlu0 %3310
  %3312 = vrot.lane.b32.xlu0 %v3271, 64
  %v3313 = vpop.permute.xlu0 %3312
  %3314 = vrot.lane.b32.xlu0 %v3272, 64
  %v3315 = vpop.permute.xlu0 %3314
  %3316 = vrot.lane.b32.xlu0 %v3273, 64
  %v3317 = vpop.permute.xlu0 %3316
  %3318 = vrot.lane.b32.xlu0 %v3274, 64
  %v3319 = vpop.permute.xlu0 %3318
  %3320 = vrot.lane.b32.xlu0 %v3275, 64
  %v3321 = vpop.permute.xlu0 %3320
  %3322 = vrot.lane.b32.xlu0 %v3276, 64
  %v3323 = vpop.permute.xlu0 %3322
  %3324 = vrot.lane.b32.xlu0 %v3277, 64
  %v3325 = vpop.permute.xlu0 %3324
  %3342 = vst.msk [vmem:[#allocation2 + $0x8] sm:$0xff] %vm1827, %v3295
  %3343 = vst.msk [vmem:[#allocation2 + $0x20] sm:$0xff] %vm1827, %v3297
  %3344 = vst.msk [vmem:[#allocation2 + $0x38] sm:$0xff] %vm1827, %v3299
  %3345 = vst.msk [vmem:[#allocation2 + $0x50] sm:$0xff] %vm1827, %v3301
  %3346 = vst.msk [vmem:[#allocation2 + $0x68] sm:$0xff] %vm1827, %v3303
  %3347 = vst.msk [vmem:[#allocation2 + $0x80] sm:$0xff] %vm1827, %v3305
  %3348 = vst.msk [vmem:[#allocation2 + $0x98] sm:$0xff] %vm1827, %v3307
  %3349 = vst.msk [vmem:[#allocation2 + $0xb0] sm:$0xff] %vm1827, %v3309
  %3350 = vst.msk [vmem:[#allocation2 + $0xc8] sm:$0xff] %vm1827, %v3311
  %3351 = vst.msk [vmem:[#allocation2 + $0xe0] sm:$0xff] %vm1827, %v3313
  %3352 = vst.msk [vmem:[#allocation2 + $0xf8] sm:$0xff] %vm1827, %v3315
  %3353 = vst.msk [vmem:[#allocation2 + $0x110] sm:$0xff] %vm1827, %v3317
  %3354 = vst.msk [vmem:[#allocation2 + $0x128] sm:$0xff] %vm1827, %v3319
  %3355 = vst.msk [vmem:[#allocation2 + $0x140] sm:$0xff] %vm1827, %v3321
  %3356 = vst.msk [vmem:[#allocation2 + $0x158] sm:$0xff] %vm1827, %v3323
  %3357 = vst.msk [vmem:[#allocation2 + $0x170] sm:$0xff] %vm1827, %v3325
  %v3358 = vmul.f32 %v2735, %v785
  %v3359 = vmul.f32 %v2736, %v786
  %v3360 = vmul.f32 %v2737, %v787
  %v3361 = vmul.f32 %v2738, %v788
  %v3362 = vmul.f32 %v2739, %v789
  %v3363 = vmul.f32 %v2740, %v790
  %v3364 = vmul.f32 %v2741, %v791
  %v3365 = vmul.f32 %v2742, %v792
  %v3366 = vmul.f32 %v2743, %v793
  %v3367 = vmul.f32 %v2744, %v794
  %v3368 = vmul.f32 %v2745, %v795
  %v3369 = vmul.f32 %v2746, %v796
  %v3370 = vmul.f32 %v2747, %v797
  %v3371 = vmul.f32 %v2748, %v798
  %v3372 = vmul.f32 %v2749, %v799
  %v3373 = vmul.f32 %v2734, %v800
  %3390 = vrot.lane.b32.xlu0 %v3358, 96
  %v3391 = vpop.permute.xlu0 %3390
  %3392 = vrot.lane.b32.xlu0 %v3359, 96
  %v3393 = vpop.permute.xlu0 %3392
  %3394 = vrot.lane.b32.xlu0 %v3360, 96
  %v3395 = vpop.permute.xlu0 %3394
  %3396 = vrot.lane.b32.xlu0 %v3361, 96
  %v3397 = vpop.permute.xlu0 %3396
  %3398 = vrot.lane.b32.xlu0 %v3362, 96
  %v3399 = vpop.permute.xlu0 %3398
  %3400 = vrot.lane.b32.xlu0 %v3363, 96
  %v3401 = vpop.permute.xlu0 %3400
  %3402 = vrot.lane.b32.xlu0 %v3364, 96
  %v3403 = vpop.permute.xlu0 %3402
  %3404 = vrot.lane.b32.xlu0 %v3365, 96
  %v3405 = vpop.permute.xlu0 %3404
  %3406 = vrot.lane.b32.xlu0 %v3366, 96
  %v3407 = vpop.permute.xlu0 %3406
  %3408 = vrot.lane.b32.xlu0 %v3367, 96
  %v3409 = vpop.permute.xlu0 %3408
  %3410 = vrot.lane.b32.xlu0 %v3368, 96
  %v3411 = vpop.permute.xlu0 %3410
  %3412 = vrot.lane.b32.xlu0 %v3369, 96
  %v3413 = vpop.permute.xlu0 %3412
  %3414 = vrot.lane.b32.xlu0 %v3370, 96
  %v3415 = vpop.permute.xlu0 %3414
  %3416 = vrot.lane.b32.xlu0 %v3371, 96
  %v3417 = vpop.permute.xlu0 %3416
  %3418 = vrot.lane.b32.xlu0 %v3372, 96
  %v3419 = vpop.permute.xlu0 %3418
  %3420 = vrot.lane.b32.xlu0 %v3373, 96
  %v3421 = vpop.permute.xlu0 %3420
  %3438 = vst.msk [vmem:[#allocation2 + $0x8] sm:$0xff] %vm1924, %v3391
  %3439 = vst.msk [vmem:[#allocation2 + $0x20] sm:$0xff] %vm1924, %v3393
  %3440 = vst.msk [vmem:[#allocation2 + $0x38] sm:$0xff] %vm1924, %v3395
  %3441 = vst.msk [vmem:[#allocation2 + $0x50] sm:$0xff] %vm1924, %v3397
  %3442 = vst.msk [vmem:[#allocation2 + $0x68] sm:$0xff] %vm1924, %v3399
  %3443 = vst.msk [vmem:[#allocation2 + $0x80] sm:$0xff] %vm1924, %v3401
  %3444 = vst.msk [vmem:[#allocation2 + $0x98] sm:$0xff] %vm1924, %v3403
  %3445 = vst.msk [vmem:[#allocation2 + $0xb0] sm:$0xff] %vm1924, %v3405
  %3446 = vst.msk [vmem:[#allocation2 + $0xc8] sm:$0xff] %vm1924, %v3407
  %3447 = vst.msk [vmem:[#allocation2 + $0xe0] sm:$0xff] %vm1924, %v3409
  %3448 = vst.msk [vmem:[#allocation2 + $0xf8] sm:$0xff] %vm1924, %v3411
  %3449 = vst.msk [vmem:[#allocation2 + $0x110] sm:$0xff] %vm1924, %v3413
  %3450 = vst.msk [vmem:[#allocation2 + $0x128] sm:$0xff] %vm1924, %v3415
  %3451 = vst.msk [vmem:[#allocation2 + $0x140] sm:$0xff] %vm1924, %v3417
  %3452 = vst.msk [vmem:[#allocation2 + $0x158] sm:$0xff] %vm1924, %v3419
  %3453 = vst.msk [vmem:[#allocation2 + $0x170] sm:$0xff] %vm1924, %v3421
  %v3454 = vmul.f32 %v2939, %v833
  %v3455 = vmul.f32 %v2938, %v834
  %v3456 = vmul.f32 %v2937, %v835
  %v3457 = vmul.f32 %v2936, %v836
  %v3458 = vmul.f32 %v2935, %v837
  %v3459 = vmul.f32 %v2934, %v838
  %v3460 = vmul.f32 %v2933, %v839
  %v3461 = vmul.f32 %v2932, %v840
  %v3462 = vmul.f32 %v2931, %v841
  %v3463 = vmul.f32 %v2930, %v842
  %v3464 = vmul.f32 %v2929, %v843
  %v3465 = vmul.f32 %v2928, %v844
  %v3466 = vmul.f32 %v2927, %v845
  %v3467 = vmul.f32 %v2926, %v846
  %v3468 = vmul.f32 %v2941, %v847
  %v3469 = vmul.f32 %v2940, %v848
  %3470 = vst.msk [vmem:[#allocation2 + $0x10] sm:$0xff] %vm1601, %v3454
  %3471 = vst.msk [vmem:[#allocation2 + $0x28] sm:$0xff] %vm1601, %v3455
  %3472 = vst.msk [vmem:[#allocation2 + $0x40] sm:$0xff] %vm1601, %v3456
  %3473 = vst.msk [vmem:[#allocation2 + $0x58] sm:$0xff] %vm1601, %v3457
  %3474 = vst.msk [vmem:[#allocation2 + $0x70] sm:$0xff] %vm1601, %v3458
  %3475 = vst.msk [vmem:[#allocation2 + $0x88] sm:$0xff] %vm1601, %v3459
  %3476 = vst.msk [vmem:[#allocation2 + $0xa0] sm:$0xff] %vm1601, %v3460
  %3477 = vst.msk [vmem:[#allocation2 + $0xb8] sm:$0xff] %vm1601, %v3461
  %3478 = vst.msk [vmem:[#allocation2 + $0xd0] sm:$0xff] %vm1601, %v3462
  %3479 = vst.msk [vmem:[#allocation2 + $0xe8] sm:$0xff] %vm1601, %v3463
  %3480 = vst.msk [vmem:[#allocation2 + $0x100] sm:$0xff] %vm1601, %v3464
  %3481 = vst.msk [vmem:[#allocation2 + $0x118] sm:$0xff] %vm1601, %v3465
  %3482 = vst.msk [vmem:[#allocation2 + $0x130] sm:$0xff] %vm1601, %v3466
  %3483 = vst.msk [vmem:[#allocation2 + $0x148] sm:$0xff] %vm1601, %v3467
  %3484 = vst.msk [vmem:[#allocation2 + $0x160] sm:$0xff] %vm1601, %v3468
  %3485 = vst.msk [vmem:[#allocation2 + $0x178] sm:$0xff] %vm1601, %v3469
  %v3486 = vld [vmem:[#allocation2] sm:$0xff]
  %v3487 = vld [vmem:[#allocation2 + $0x8] sm:$0xff]
  %v3488 = vld [vmem:[#allocation2 + $0x10] sm:$0xff]
  %v3489 = vld [vmem:[#allocation2 + $0x18] sm:$0xff]
  %v3490 = vld [vmem:[#allocation2 + $0x20] sm:$0xff]
  %v3491 = vld [vmem:[#allocation2 + $0x28] sm:$0xff]
  %v3492 = vld [vmem:[#allocation2 + $0x30] sm:$0xff]
  %v3493 = vld [vmem:[#allocation2 + $0x38] sm:$0xff]
  %v3494 = vld [vmem:[#allocation2 + $0x40] sm:$0xff]
  %v3495 = vld [vmem:[#allocation2 + $0x48] sm:$0xff]
  %v3496 = vld [vmem:[#allocation2 + $0x50] sm:$0xff]
  %v3497 = vld [vmem:[#allocation2 + $0x58] sm:$0xff]
  %v3498 = vld [vmem:[#allocation2 + $0x60] sm:$0xff]
  %v3499 = vld [vmem:[#allocation2 + $0x68] sm:$0xff]
  %v3500 = vld [vmem:[#allocation2 + $0x70] sm:$0xff]
  %v3501 = vld [vmem:[#allocation2 + $0x78] sm:$0xff]
  %v3502 = vld [vmem:[#allocation2 + $0x80] sm:$0xff]
  %v3503 = vld [vmem:[#allocation2 + $0x88] sm:$0xff]
  %v3504 = vld [vmem:[#allocation2 + $0x90] sm:$0xff]
  %v3505 = vld [vmem:[#allocation2 + $0x98] sm:$0xff]
  %v3506 = vld [vmem:[#allocation2 + $0xa0] sm:$0xff]
  %v3507 = vld [vmem:[#allocation2 + $0xa8] sm:$0xff]
  %v3508 = vld [vmem:[#allocation2 + $0xb0] sm:$0xff]
  %v3509 = vld [vmem:[#allocation2 + $0xb8] sm:$0xff]
  %v3510 = vld [vmem:[#allocation2 + $0xc0] sm:$0xff]
  %v3511 = vld [vmem:[#allocation2 + $0xc8] sm:$0xff]
  %v3512 = vld [vmem:[#allocation2 + $0xd0] sm:$0xff]
  %v3513 = vld [vmem:[#allocation2 + $0xd8] sm:$0xff]
  %v3514 = vld [vmem:[#allocation2 + $0xe0] sm:$0xff]
  %v3515 = vld [vmem:[#allocation2 + $0xe8] sm:$0xff]
  %v3516 = vld [vmem:[#allocation2 + $0xf0] sm:$0xff]
  %v3517 = vld [vmem:[#allocation2 + $0xf8] sm:$0xff]
  %v3518 = vld [vmem:[#allocation2 + $0x100] sm:$0xff]
  %v3519 = vld [vmem:[#allocation2 + $0x108] sm:$0xff]
  %v3520 = vld [vmem:[#allocation2 + $0x110] sm:$0xff]
  %v3521 = vld [vmem:[#allocation2 + $0x118] sm:$0xff]
  %v3522 = vld [vmem:[#allocation2 + $0x120] sm:$0xff]
  %v3523 = vld [vmem:[#allocation2 + $0x128] sm:$0xff]
  %v3524 = vld [vmem:[#allocation2 + $0x130] sm:$0xff]
  %v3525 = vld [vmem:[#allocation2 + $0x138] sm:$0xff]
  %v3526 = vld [vmem:[#allocation2 + $0x140] sm:$0xff]
  %v3527 = vld [vmem:[#allocation2 + $0x148] sm:$0xff]
  %v3528 = vld [vmem:[#allocation2 + $0x150] sm:$0xff]
  %v3529 = vld [vmem:[#allocation2 + $0x158] sm:$0xff]
  %v3530 = vld [vmem:[#allocation2 + $0x160] sm:$0xff]
  %v3531 = vld [vmem:[#allocation2 + $0x168] sm:$0xff]
  %v3532 = vld [vmem:[#allocation2 + $0x170] sm:$0xff]
  %v3533 = vld [vmem:[#allocation2 + $0x178] sm:$0xff]
  %v3534 = vpack.c.bf16 %v3489, %v3486
  %v3535 = vpack.c.bf16 %v3490, %v3487
  %v3536 = vpack.c.bf16 %v3491, %v3488
  %v3537 = vpack.c.bf16 %v3495, %v3492
  %v3538 = vpack.c.bf16 %v3496, %v3493
  %v3539 = vpack.c.bf16 %v3497, %v3494
  %v3540 = vpack.c.bf16 %v3501, %v3498
  %v3541 = vpack.c.bf16 %v3502, %v3499
  %v3542 = vpack.c.bf16 %v3503, %v3500
  %v3543 = vpack.c.bf16 %v3507, %v3504
  %v3544 = vpack.c.bf16 %v3508, %v3505
  %v3545 = vpack.c.bf16 %v3509, %v3506
  %v3546 = vpack.c.bf16 %v3513, %v3510
  %v3547 = vpack.c.bf16 %v3514, %v3511
  %v3548 = vpack.c.bf16 %v3515, %v3512
  %v3549 = vpack.c.bf16 %v3519, %v3516
  %v3550 = vpack.c.bf16 %v3520, %v3517
  %v3551 = vpack.c.bf16 %v3521, %v3518
  %v3552 = vpack.c.bf16 %v3525, %v3522
  %v3553 = vpack.c.bf16 %v3526, %v3523
  %v3554 = vpack.c.bf16 %v3527, %v3524
  %v3555 = vpack.c.bf16 %v3531, %v3528
  %v3556 = vpack.c.bf16 %v3532, %v3529
  %v3557 = vpack.c.bf16 %v3533, %v3530
  %s3558 = scalar_lea.vmem %s3, 144
  %v3559 = vld [vmem:[%s3558] sm:$0xf]
  %v3560 = vld [vmem:[%s3558 + $0x4] sm:$0xf]
  %v3561 = vld [vmem:[%s3558 + $0x8] sm:$0xf]
  %v3562 = vld [vmem:[%s3558 + $0xc] sm:$0xf]
  %v3563 = vld [vmem:[%s3558 + $0x10] sm:$0xf]
  %v3564 = vld [vmem:[%s3558 + $0x14] sm:$0xf]
  %v3565 = vld [vmem:[%s3558 + $0x18] sm:$0xf]
  %v3566 = vld [vmem:[%s3558 + $0x1c] sm:$0xf]
  %v3567 = vld [vmem:[%s3558 + $0x20] sm:$0xf]
  %v3568 = vld [vmem:[%s3558 + $0x24] sm:$0xf]
  %v3569 = vld [vmem:[%s3558 + $0x28] sm:$0xf]
  %v3570 = vld [vmem:[%s3558 + $0x2c] sm:$0xf]
  %v3571 = vld [vmem:[%s3558 + $0x30] sm:$0xf]
  %v3572 = vld [vmem:[%s3558 + $0x34] sm:$0xf]
  %v3573 = vld [vmem:[%s3558 + $0x38] sm:$0xf]
  %v3574 = vld [vmem:[%s3558 + $0x3c] sm:$0xf]
  %v3575 = vld [vmem:[%s3558 + $0x40] sm:$0xf]
  %v3576 = vld [vmem:[%s3558 + $0x44] sm:$0xf]
  %v3577 = vld [vmem:[%s3558 + $0x48] sm:$0xf]
  %v3578 = vld [vmem:[%s3558 + $0x4c] sm:$0xf]
  %v3579 = vld [vmem:[%s3558 + $0x50] sm:$0xf]
  %v3580 = vld [vmem:[%s3558 + $0x54] sm:$0xf]
  %v3581 = vld [vmem:[%s3558 + $0x58] sm:$0xf]
  %v3582 = vld [vmem:[%s3558 + $0x5c] sm:$0xf]
  %v3583 = vld [vmem:[%s3558 + $0x60] sm:$0xf]
  %v3584 = vld [vmem:[%s3558 + $0x64] sm:$0xf]
  %v3585 = vld [vmem:[%s3558 + $0x68] sm:$0xf]
  %v3586 = vld [vmem:[%s3558 + $0x6c] sm:$0xf]
  %v3587 = vld [vmem:[%s3558 + $0x70] sm:$0xf]
  %v3588 = vld [vmem:[%s3558 + $0x74] sm:$0xf]
  %v3589 = vld [vmem:[%s3558 + $0x78] sm:$0xf]
  %v3590 = vld [vmem:[%s3558 + $0x7c] sm:$0xf]
  %v3591 = vld [vmem:[%s3558 + $0x80] sm:$0xf]
  %v3592 = vld [vmem:[%s3558 + $0x84] sm:$0xf]
  %v3593 = vld [vmem:[%s3558 + $0x88] sm:$0xf]
  %v3594 = vld [vmem:[%s3558 + $0x8c] sm:$0xf]
  %s3595 = scalar_lea.vmem %s4, 1
  %v3596 = vld [vmem:[%s3595] sm:$0x1]
  %v3598 = vlaneseq
  %v3599 = vshrl.u32 %v3598, 7
  %v3600 = vsub.s32 0, %v3599
  %v3601 = vrot.slane %v3596, %v3600
  %v3639 = vunpack.c.l.b16 %v3559
  %v3640 = vunpack.c.l.b16 %v3560
  %v3641 = vunpack.c.l.b16 %v3561
  %v3642 = vunpack.c.l.b16 %v3562
  %v3643 = vunpack.c.l.b16 %v3563
  %v3644 = vunpack.c.l.b16 %v3564
  %v3645 = vunpack.c.l.b16 %v3565
  %v3646 = vunpack.c.l.b16 %v3566
  %v3647 = vunpack.c.l.b16 %v3567
  %v3648 = vunpack.c.l.b16 %v3568
  %v3649 = vunpack.c.l.b16 %v3569
  %v3650 = vunpack.c.l.b16 %v3570
  %v3651 = vunpack.c.l.b16 %v3571
  %v3652 = vunpack.c.l.b16 %v3572
  %v3653 = vunpack.c.l.b16 %v3573
  %v3654 = vunpack.c.l.b16 %v3574
  %v3655 = vunpack.c.l.b16 %v3575
  %v3656 = vunpack.c.l.b16 %v3576
  %v3657 = vunpack.c.l.b16 %v3577
  %v3658 = vunpack.c.l.b16 %v3578
  %v3659 = vunpack.c.l.b16 %v3579
  %v3660 = vunpack.c.l.b16 %v3580
  %v3661 = vunpack.c.l.b16 %v3581
  %v3662 = vunpack.c.l.b16 %v3582
  %v3663 = vunpack.c.l.b16 %v3583
  %v3664 = vunpack.c.l.b16 %v3584
  %v3665 = vunpack.c.l.b16 %v3585
  %v3666 = vunpack.c.l.b16 %v3586
  %v3667 = vunpack.c.l.b16 %v3587
  %v3668 = vunpack.c.l.b16 %v3588
  %v3669 = vunpack.c.l.b16 %v3589
  %v3670 = vunpack.c.l.b16 %v3590
  %v3671 = vunpack.c.l.b16 %v3591
  %v3672 = vunpack.c.l.b16 %v3592
  %v3673 = vunpack.c.l.b16 %v3593
  %v3674 = vunpack.c.l.b16 %v3594
  %v3675 = vpack.c.b16 %v3640, %v3639
  %v3676 = vpack.c.b16 %v3642, %v3641
  %v3677 = vpack.c.b16 %v3644, %v3643
  %v3678 = vpack.c.b16 %v3646, %v3645
  %v3679 = vpack.c.b16 %v3648, %v3647
  %v3680 = vpack.c.b16 %v3650, %v3649
  %v3681 = vpack.c.b16 %v3652, %v3651
  %v3682 = vpack.c.b16 %v3654, %v3653
  %v3683 = vpack.c.b16 %v3656, %v3655
  %v3684 = vpack.c.b16 %v3658, %v3657
  %v3685 = vpack.c.b16 %v3660, %v3659
  %v3686 = vpack.c.b16 %v3662, %v3661
  %v3687 = vpack.c.b16 %v3664, %v3663
  %v3688 = vpack.c.b16 %v3666, %v3665
  %v3689 = vpack.c.b16 %v3668, %v3667
  %v3690 = vpack.c.b16 %v3670, %v3669
  %v3691 = vpack.c.b16 %v3672, %v3671
  %v3692 = vpack.c.b16 %v3674, %v3673
  %v3712 = vsel %vm1601, %v3536, 0
  %v3715 = vsel %vm1601, %v3539, 0
  %v3718 = vsel %vm1601, %v3542, 0
  %v3721 = vsel %vm1601, %v3545, 0
  %v3724 = vsel %vm1601, %v3548, 0
  %v3727 = vsel %vm1601, %v3551, 0
  %v3730 = vsel %vm1601, %v3554, 0
  %v3733 = vsel %vm1601, %v3557, 0
  %3735 = vmatprep.subr.bf16.mxu0 0
  %3736 = vmatpush1.bf16.msra.mxu0 %v3675
  %3737 = vmatprep.subr.bf16.mxu0 0
  %3738 = vmatpush1.bf16.msra.mxu0 %v3676
  %3739 = vmatprep.subr.bf16.mxu0 0
  %3740 = vmatpush1.bf16.msra.mxu0 %v3677
  %3741 = vmatprep.subr.bf16.mxu0 0
  %3742 = vmatpush1.bf16.msra.mxu0 %v3678
  %3743 = vmatprep.subr.bf16.mxu0 0
  %3744 = vmatpush1.bf16.msra.mxu0 %v3679
  %3745 = vmatprep.subr.bf16.mxu0 0
  %3746 = vmatpush1.bf16.msra.mxu0 %v3680
  %3747 = vmatprep.subr.bf16.mxu0 0
  %3748 = vmatpush1.bf16.msra.mxu0 %v3681
  %3749 = vmatprep.subr.bf16.mxu0 0
  %3750 = vmatpush1.bf16.msra.mxu0 %v3682
  %3751 = vmatprep.subr.bf16.mxu0 0
  %3752 = vmatpush1.bf16.msra.mxu0 %v3683
  %3753 = vmatprep.subr.bf16.mxu0 0
  %3754 = vmatpush1.bf16.msra.mxu0 %v3684
  %3755 = vmatprep.subr.bf16.mxu0 0
  %3756 = vmatpush1.bf16.msra.mxu0 %v3685
  %3757 = vmatprep.subr.bf16.mxu0 0
  %3758 = vmatpush1.bf16.msra.mxu0 %v3686
  %3759 = vmatprep.subr.bf16.mxu0 0
  %3760 = vmatpush1.bf16.msra.mxu0 %v3687
  %3761 = vmatprep.subr.bf16.mxu0 0
  %3762 = vmatpush1.bf16.msra.mxu0 %v3688
  %3763 = vmatprep.subr.bf16.mxu0 0
  %3764 = vmatpush1.bf16.msra.mxu0 %v3689
  %3765 = vmatprep.subr.bf16.mxu0 0
  %3766 = vmatpush1.bf16.msra.mxu0 %v3690
  %3767 = vmatprep.mubr.bf16.mxu0 %v3535
  %3768 = vmatmul.mubr.bf16.gmra.mrb[0].mxu0 %v3534
  %v3769 = vpop.f32.mrb[0].mxu0
  %v3770 = vadd.f32 %v3601, %v3769
  %v3771 = vpop.f32.mrb[0].mxu0
  %v3772 = vpop.f32.mrb[0].mxu0
  %v3773 = vadd.f32 %v3601, %v3772
  %v3774 = vpop.f32.mrb[0].mxu0
  %3775 = vmatprep.mubr.bf16.mxu0 %v3538
  %3776 = vmatmul.mubr.bf16.gmra.mrb[0].mxu0 %v3537
  %v3777 = vpop.f32.mrb[0].mxu0
  %v3778 = vadd.f32 %v3601, %v3777
  %v3779 = vpop.f32.mrb[0].mxu0
  %v3780 = vpop.f32.mrb[0].mxu0
  %v3781 = vadd.f32 %v3601, %v3780
  %v3782 = vpop.f32.mrb[0].mxu0
  %3783 = vmatprep.mubr.bf16.mxu0 %v3541
  %3784 = vmatmul.mubr.bf16.gmra.mrb[0].mxu0 %v3540
  %v3785 = vpop.f32.mrb[0].mxu0
  %v3786 = vadd.f32 %v3601, %v3785
  %v3787 = vpop.f32.mrb[0].mxu0
  %v3788 = vpop.f32.mrb[0].mxu0
  %v3789 = vadd.f32 %v3601, %v3788
  %v3790 = vpop.f32.mrb[0].mxu0
  %3791 = vmatprep.mubr.bf16.mxu0 %v3544
  %3792 = vmatmul.mubr.bf16.gmra.mrb[0].mxu0 %v3543
  %v3793 = vpop.f32.mrb[0].mxu0
  %v3794 = vadd.f32 %v3601, %v3793
  %v3795 = vpop.f32.mrb[0].mxu0
  %v3796 = vpop.f32.mrb[0].mxu0
  %v3797 = vadd.f32 %v3601, %v3796
  %v3798 = vpop.f32.mrb[0].mxu0
  %3799 = vmatprep.mubr.bf16.mxu0 %v3547
  %3800 = vmatmul.mubr.bf16.gmra.mrb[0].mxu0 %v3546
  %v3801 = vpop.f32.mrb[0].mxu0
  %v3802 = vadd.f32 %v3601, %v3801
  %v3803 = vpop.f32.mrb[0].mxu0
  %v3804 = vpop.f32.mrb[0].mxu0
  %v3805 = vadd.f32 %v3601, %v3804
  %v3806 = vpop.f32.mrb[0].mxu0
  %3807 = vmatprep.mubr.bf16.mxu0 %v3550
  %3808 = vmatmul.mubr.bf16.gmra.mrb[0].mxu0 %v3549
  %v3809 = vpop.f32.mrb[0].mxu0
  %v3810 = vadd.f32 %v3601, %v3809
  %v3811 = vpop.f32.mrb[0].mxu0
  %v3812 = vpop.f32.mrb[0].mxu0
  %v3813 = vadd.f32 %v3601, %v3812
  %v3814 = vpop.f32.mrb[0].mxu0
  %3815 = vmatprep.mubr.bf16.mxu0 %v3553
  %3816 = vmatmul.mubr.bf16.gmra.mrb[0].mxu0 %v3552
  %v3817 = vpop.f32.mrb[0].mxu0
  %v3818 = vadd.f32 %v3601, %v3817
  %v3819 = vpop.f32.mrb[0].mxu0
  %v3820 = vpop.f32.mrb[0].mxu0
  %v3821 = vadd.f32 %v3601, %v3820
  %v3822 = vpop.f32.mrb[0].mxu0
  %3823 = vmatprep.mubr.bf16.mxu0 %v3556
  %3824 = vmatmul.mubr.bf16.gmra.mrb[0].mxu0 %v3555
  %v3825 = vpop.f32.mrb[0].mxu0
  %v3826 = vadd.f32 %v3601, %v3825
  %v3827 = vpop.f32.mrb[0].mxu0
  %v3828 = vpop.f32.mrb[0].mxu0
  %v3829 = vadd.f32 %v3601, %v3828
  %v3830 = vpop.f32.mrb[0].mxu0
  %3831 = vdwg.mxu0
  %3832 = vmatprep.subr.bf16.mxu0 0
  %3833 = vmatpush1.bf16.msra.mxu0 %v3691
  %3834 = vmatprep.subr.bf16.mxu0 0
  %3835 = vmatpush1.bf16.msra.mxu0 %v3692
  %3836 = vmatprep.subr.bf16.mxu0 0
  %3837 = vmatpush1.bf16.msra.mxu0 0
  %3838 = vmatprep.subr.bf16.mxu0 0
  %3839 = vmatpush1.bf16.msra.mxu0 0
  %3840 = vmatprep.subr.bf16.mxu0 0
  %3841 = vmatpush1.bf16.msra.mxu0 0
  %3842 = vmatprep.subr.bf16.mxu0 0
  %3843 = vmatpush1.bf16.msra.mxu0 0
  %3844 = vmatprep.subr.bf16.mxu0 0
  %3845 = vmatpush1.bf16.msra.mxu0 0
  %3846 = vmatprep.subr.bf16.mxu0 0
  %3847 = vmatpush1.bf16.msra.mxu0 0
  %3848 = vmatprep.subr.bf16.mxu0 0
  %3849 = vmatpush1.bf16.msra.mxu0 0
  %3850 = vmatprep.subr.bf16.mxu0 0
  %3851 = vmatpush1.bf16.msra.mxu0 0
  %3852 = vmatprep.subr.bf16.mxu0 0
  %3853 = vmatpush1.bf16.msra.mxu0 0
  %3854 = vmatprep.subr.bf16.mxu0 0
  %3855 = vmatpush1.bf16.msra.mxu0 0
  %3856 = vmatprep.subr.bf16.mxu0 0
  %3857 = vmatpush1.bf16.msra.mxu0 0
  %3858 = vmatprep.subr.bf16.mxu0 0
  %3859 = vmatpush1.bf16.msra.mxu0 0
  %3860 = vmatprep.subr.bf16.mxu0 0
  %3861 = vmatpush1.bf16.msra.mxu0 0
  %3862 = vmatprep.subr.bf16.mxu0 0
  %3863 = vmatpush1.bf16.msra.mxu0 0
  %3864 = vmatprep.mubr.bf16.mxu0 0
  %3865 = vmatmul.mubr.bf16.gmra.mrb[0].mxu0 %v3712
  %v3866 = vpop.f32.mrb[0].mxu0
  %v3867 = vadd.f32 %v3770, %v3866
  %v3868 = vpop.f32.mrb[0].mxu0
  %v3869 = vpop.f32.mrb[0].mxu0
  %v3870 = vadd.f32 %v3773, %v3869
  %v3871 = vpop.f32.mrb[0].mxu0
  %3872 = vmatprep.mubr.bf16.mxu0 0
  %3873 = vmatmul.mubr.bf16.gmra.mrb[0].mxu0 %v3715
  %v3874 = vpop.f32.mrb[0].mxu0
  %v3875 = vadd.f32 %v3778, %v3874
  %v3876 = vpop.f32.mrb[0].mxu0
  %v3877 = vpop.f32.mrb[0].mxu0
  %v3878 = vadd.f32 %v3781, %v3877
  %v3879 = vpop.f32.mrb[0].mxu0
  %3880 = vmatprep.mubr.bf16.mxu0 0
  %3881 = vmatmul.mubr.bf16.gmra.mrb[0].mxu0 %v3718
  %v3882 = vpop.f32.mrb[0].mxu0
  %v3883 = vadd.f32 %v3786, %v3882
  %v3884 = vpop.f32.mrb[0].mxu0
  %v3885 = vpop.f32.mrb[0].mxu0
  %v3886 = vadd.f32 %v3789, %v3885
  %v3887 = vpop.f32.mrb[0].mxu0
  %3888 = vmatprep.mubr.bf16.mxu0 0
  %3889 = vmatmul.mubr.bf16.gmra.mrb[0].mxu0 %v3721
  %v3890 = vpop.f32.mrb[0].mxu0
  %v3891 = vadd.f32 %v3794, %v3890
  %v3892 = vpop.f32.mrb[0].mxu0
  %v3893 = vpop.f32.mrb[0].mxu0
  %v3894 = vadd.f32 %v3797, %v3893
  %v3895 = vpop.f32.mrb[0].mxu0
  %3896 = vmatprep.mubr.bf16.mxu0 0
  %3897 = vmatmul.mubr.bf16.gmra.mrb[0].mxu0 %v3724
  %v3898 = vpop.f32.mrb[0].mxu0
  %v3899 = vadd.f32 %v3802, %v3898
  %v3900 = vpop.f32.mrb[0].mxu0
  %v3901 = vpop.f32.mrb[0].mxu0
  %v3902 = vadd.f32 %v3805, %v3901
  %v3903 = vpop.f32.mrb[0].mxu0
  %3904 = vmatprep.mubr.bf16.mxu0 0
  %3905 = vmatmul.mubr.bf16.gmra.mrb[0].mxu0 %v3727
  %v3906 = vpop.f32.mrb[0].mxu0
  %v3907 = vadd.f32 %v3810, %v3906
  %v3908 = vpop.f32.mrb[0].mxu0
  %v3909 = vpop.f32.mrb[0].mxu0
  %v3910 = vadd.f32 %v3813, %v3909
  %v3911 = vpop.f32.mrb[0].mxu0
  %3912 = vmatprep.mubr.bf16.mxu0 0
  %3913 = vmatmul.mubr.bf16.gmra.mrb[0].mxu0 %v3730
  %v3914 = vpop.f32.mrb[0].mxu0
  %v3915 = vadd.f32 %v3818, %v3914
  %v3916 = vpop.f32.mrb[0].mxu0
  %v3917 = vpop.f32.mrb[0].mxu0
  %v3918 = vadd.f32 %v3821, %v3917
  %v3919 = vpop.f32.mrb[0].mxu0
  %3920 = vmatprep.mubr.bf16.mxu0 0
  %3921 = vmatmul.mubr.bf16.gmra.mrb[0].mxu0 %v3733
  %v3922 = vpop.f32.mrb[0].mxu0
  %v3923 = vadd.f32 %v3826, %v3922
  %v3924 = vpop.f32.mrb[0].mxu0
  %v3925 = vpop.f32.mrb[0].mxu0
  %v3926 = vadd.f32 %v3829, %v3925
  %v3927 = vpop.f32.mrb[0].mxu0
  %3928 = vdwg.mxu0
  %v3929 = vmax.f32 %v3867, 0.0
  %v3930 = vmax.f32 %v3870, 0.0
  %v3931 = vmax.f32 %v3875, 0.0
  %v3932 = vmax.f32 %v3878, 0.0
  %v3933 = vmax.f32 %v3883, 0.0
  %v3934 = vmax.f32 %v3886, 0.0
  %v3935 = vmax.f32 %v3891, 0.0
  %v3936 = vmax.f32 %v3894, 0.0
  %v3937 = vmax.f32 %v3899, 0.0
  %v3938 = vmax.f32 %v3902, 0.0
  %v3939 = vmax.f32 %v3907, 0.0
  %v3940 = vmax.f32 %v3910, 0.0
  %v3941 = vmax.f32 %v3915, 0.0
  %v3942 = vmax.f32 %v3918, 0.0
  %v3943 = vmax.f32 %v3923, 0.0
  %v3944 = vmax.f32 %v3926, 0.0
  %v3945 = vrot.slane %v3929, 7
  %v3946 = vrot.slane %v3930, 7
  %v3947 = vrot.slane %v3931, 7
  %v3948 = vrot.slane %v3932, 7
  %v3949 = vrot.slane %v3933, 7
  %v3950 = vrot.slane %v3934, 7
  %v3951 = vrot.slane %v3935, 7
  %v3952 = vrot.slane %v3936, 7
  %v3953 = vrot.slane %v3937, 7
  %v3954 = vrot.slane %v3938, 7
  %v3955 = vrot.slane %v3939, 7
  %v3956 = vrot.slane %v3940, 7
  %v3957 = vrot.slane %v3941, 7
  %v3958 = vrot.slane %v3942, 7
  %v3959 = vrot.slane %v3943, 7
  %v3960 = vrot.slane %v3944, 7
  %v3961 = vsel %vm961, %v3959, %v3960
  %v3962 = vsel %vm961, %v3958, %v3959
  %v3963 = vsel %vm961, %v3957, %v3958
  %v3964 = vsel %vm961, %v3956, %v3957
  %v3965 = vsel %vm961, %v3955, %v3956
  %v3966 = vsel %vm961, %v3954, %v3955
  %v3967 = vsel %vm961, %v3953, %v3954
  %v3968 = vsel %vm961, %v3952, %v3953
  %v3969 = vsel %vm961, %v3951, %v3952
  %v3970 = vsel %vm961, %v3950, %v3951
  %v3971 = vsel %vm961, %v3949, %v3950
  %v3972 = vsel %vm961, %v3948, %v3949
  %v3973 = vsel %vm961, %v3947, %v3948
  %v3974 = vsel %vm961, %v3946, %v3947
  %v3975 = vsel %vm961, %v3945, %v3946
  %v3976 = vsel %vm961, %v3960, %v3945
  %v3977 = vmul.f32 %v3961, %v257
  %v3978 = vmul.f32 %v3976, %v258
  %v3979 = vmul.f32 %v3975, %v259
  %v3980 = vmul.f32 %v3974, %v260
  %v3981 = vmul.f32 %v3973, %v261
  %v3982 = vmul.f32 %v3972, %v262
  %v3983 = vmul.f32 %v3971, %v263
  %v3984 = vmul.f32 %v3970, %v264
  %v3985 = vmul.f32 %v3969, %v265
  %v3986 = vmul.f32 %v3968, %v266
  %v3987 = vmul.f32 %v3967, %v267
  %v3988 = vmul.f32 %v3966, %v268
  %v3989 = vmul.f32 %v3965, %v269
  %v3990 = vmul.f32 %v3964, %v270
  %v3991 = vmul.f32 %v3963, %v271
  %v3992 = vmul.f32 %v3962, %v272
  %3993 = vst.msk [vmem:[#allocation2] sm:$0xff] %vm1601, %v3977
  %3994 = vst.msk [vmem:[#allocation2 + $0x18] sm:$0xff] %vm1601, %v3978
  %3995 = vst.msk [vmem:[#allocation2 + $0x30] sm:$0xff] %vm1601, %v3979
  %3996 = vst.msk [vmem:[#allocation2 + $0x48] sm:$0xff] %vm1601, %v3980
  %3997 = vst.msk [vmem:[#allocation2 + $0x60] sm:$0xff] %vm1601, %v3981
  %3998 = vst.msk [vmem:[#allocation2 + $0x78] sm:$0xff] %vm1601, %v3982
  %3999 = vst.msk [vmem:[#allocation2 + $0x90] sm:$0xff] %vm1601, %v3983
  %4000 = vst.msk [vmem:[#allocation2 + $0xa8] sm:$0xff] %vm1601, %v3984
  %4001 = vst.msk [vmem:[#allocation2 + $0xc0] sm:$0xff] %vm1601, %v3985
  %4002 = vst.msk [vmem:[#allocation2 + $0xd8] sm:$0xff] %vm1601, %v3986
  %4003 = vst.msk [vmem:[#allocation2 + $0xf0] sm:$0xff] %vm1601, %v3987
  %4004 = vst.msk [vmem:[#allocation2 + $0x108] sm:$0xff] %vm1601, %v3988
  %4005 = vst.msk [vmem:[#allocation2 + $0x120] sm:$0xff] %vm1601, %v3989
  %4006 = vst.msk [vmem:[#allocation2 + $0x138] sm:$0xff] %vm1601, %v3990
  %4007 = vst.msk [vmem:[#allocation2 + $0x150] sm:$0xff] %vm1601, %v3991
  %4008 = vst.msk [vmem:[#allocation2 + $0x168] sm:$0xff] %vm1601, %v3992
  %v4009 = vmul.f32 %v3944, %v337
  %v4010 = vmul.f32 %v3929, %v338
  %v4011 = vmul.f32 %v3930, %v339
  %v4012 = vmul.f32 %v3931, %v340
  %v4013 = vmul.f32 %v3932, %v341
  %v4014 = vmul.f32 %v3933, %v342
  %v4015 = vmul.f32 %v3934, %v343
  %v4016 = vmul.f32 %v3935, %v344
  %v4017 = vmul.f32 %v3936, %v345
  %v4018 = vmul.f32 %v3937, %v346
  %v4019 = vmul.f32 %v3938, %v347
  %v4020 = vmul.f32 %v3939, %v348
  %v4021 = vmul.f32 %v3940, %v349
  %v4022 = vmul.f32 %v3941, %v350
  %v4023 = vmul.f32 %v3942, %v351
  %v4024 = vmul.f32 %v3943, %v352
  %4041 = vrot.lane.b32.xlu0 %v4009, 32
  %v4042 = vpop.permute.xlu0 %4041
  %4043 = vrot.lane.b32.xlu0 %v4010, 32
  %v4044 = vpop.permute.xlu0 %4043
  %4045 = vrot.lane.b32.xlu0 %v4011, 32
  %v4046 = vpop.permute.xlu0 %4045
  %4047 = vrot.lane.b32.xlu0 %v4012, 32
  %v4048 = vpop.permute.xlu0 %4047
  %4049 = vrot.lane.b32.xlu0 %v4013, 32
  %v4050 = vpop.permute.xlu0 %4049
  %4051 = vrot.lane.b32.xlu0 %v4014, 32
  %v4052 = vpop.permute.xlu0 %4051
  %4053 = vrot.lane.b32.xlu0 %v4015, 32
  %v4054 = vpop.permute.xlu0 %4053
  %4055 = vrot.lane.b32.xlu0 %v4016, 32
  %v4056 = vpop.permute.xlu0 %4055
  %4057 = vrot.lane.b32.xlu0 %v4017, 32
  %v4058 = vpop.permute.xlu0 %4057
  %4059 = vrot.lane.b32.xlu0 %v4018, 32
  %v4060 = vpop.permute.xlu0 %4059
  %4061 = vrot.lane.b32.xlu0 %v4019, 32
  %v4062 = vpop.permute.xlu0 %4061
  %4063 = vrot.lane.b32.xlu0 %v4020, 32
  %v4064 = vpop.permute.xlu0 %4063
  %4065 = vrot.lane.b32.xlu0 %v4021, 32
  %v4066 = vpop.permute.xlu0 %4065
  %4067 = vrot.lane.b32.xlu0 %v4022, 32
  %v4068 = vpop.permute.xlu0 %4067
  %4069 = vrot.lane.b32.xlu0 %v4023, 32
  %v4070 = vpop.permute.xlu0 %4069
  %4071 = vrot.lane.b32.xlu0 %v4024, 32
  %v4072 = vpop.permute.xlu0 %4071
  %4089 = vst.msk [vmem:[#allocation2] sm:$0xff] %vm1698, %v4042
  %4090 = vst.msk [vmem:[#allocation2 + $0x18] sm:$0xff] %vm1698, %v4044
  %4091 = vst.msk [vmem:[#allocation2 + $0x30] sm:$0xff] %vm1698, %v4046
  %4092 = vst.msk [vmem:[#allocation2 + $0x48] sm:$0xff] %vm1698, %v4048
  %4093 = vst.msk [vmem:[#allocation2 + $0x60] sm:$0xff] %vm1698, %v4050
  %4094 = vst.msk [vmem:[#allocation2 + $0x78] sm:$0xff] %vm1698, %v4052
  %4095 = vst.msk [vmem:[#allocation2 + $0x90] sm:$0xff] %vm1698, %v4054
  %4096 = vst.msk [vmem:[#allocation2 + $0xa8] sm:$0xff] %vm1698, %v4056
  %4097 = vst.msk [vmem:[#allocation2 + $0xc0] sm:$0xff] %vm1698, %v4058
  %4098 = vst.msk [vmem:[#allocation2 + $0xd8] sm:$0xff] %vm1698, %v4060
  %4099 = vst.msk [vmem:[#allocation2 + $0xf0] sm:$0xff] %vm1698, %v4062
  %4100 = vst.msk [vmem:[#allocation2 + $0x108] sm:$0xff] %vm1698, %v4064
  %4101 = vst.msk [vmem:[#allocation2 + $0x120] sm:$0xff] %vm1698, %v4066
  %4102 = vst.msk [vmem:[#allocation2 + $0x138] sm:$0xff] %vm1698, %v4068
  %4103 = vst.msk [vmem:[#allocation2 + $0x150] sm:$0xff] %vm1698, %v4070
  %4104 = vst.msk [vmem:[#allocation2 + $0x168] sm:$0xff] %vm1698, %v4072
  %v4105 = vrot.slane %v3929, 1
  %v4106 = vrot.slane %v3930, 1
  %v4107 = vrot.slane %v3931, 1
  %v4108 = vrot.slane %v3932, 1
  %v4109 = vrot.slane %v3933, 1
  %v4110 = vrot.slane %v3934, 1
  %v4111 = vrot.slane %v3935, 1
  %v4112 = vrot.slane %v3936, 1
  %v4113 = vrot.slane %v3937, 1
  %v4114 = vrot.slane %v3938, 1
  %v4115 = vrot.slane %v3939, 1
  %v4116 = vrot.slane %v3940, 1
  %v4117 = vrot.slane %v3941, 1
  %v4118 = vrot.slane %v3942, 1
  %v4119 = vrot.slane %v3943, 1
  %v4120 = vrot.slane %v3944, 1
  %v4121 = vsel %vm1105, %v4119, %v4120
  %v4122 = vsel %vm1105, %v4118, %v4119
  %v4123 = vsel %vm1105, %v4117, %v4118
  %v4124 = vsel %vm1105, %v4116, %v4117
  %v4125 = vsel %vm1105, %v4115, %v4116
  %v4126 = vsel %vm1105, %v4114, %v4115
  %v4127 = vsel %vm1105, %v4113, %v4114
  %v4128 = vsel %vm1105, %v4112, %v4113
  %v4129 = vsel %vm1105, %v4111, %v4112
  %v4130 = vsel %vm1105, %v4110, %v4111
  %v4131 = vsel %vm1105, %v4109, %v4110
  %v4132 = vsel %vm1105, %v4108, %v4109
  %v4133 = vsel %vm1105, %v4107, %v4108
  %v4134 = vsel %vm1105, %v4106, %v4107
  %v4135 = vsel %vm1105, %v4105, %v4106
  %v4136 = vsel %vm1105, %v4120, %v4105
  %v4137 = vmul.f32 %v4136, %v433
  %v4138 = vmul.f32 %v4135, %v434
  %v4139 = vmul.f32 %v4134, %v435
  %v4140 = vmul.f32 %v4133, %v436
  %v4141 = vmul.f32 %v4132, %v437
  %v4142 = vmul.f32 %v4131, %v438
  %v4143 = vmul.f32 %v4130, %v439
  %v4144 = vmul.f32 %v4129, %v440
  %v4145 = vmul.f32 %v4128, %v441
  %v4146 = vmul.f32 %v4127, %v442
  %v4147 = vmul.f32 %v4126, %v443
  %v4148 = vmul.f32 %v4125, %v444
  %v4149 = vmul.f32 %v4124, %v445
  %v4150 = vmul.f32 %v4123, %v446
  %v4151 = vmul.f32 %v4122, %v447
  %v4152 = vmul.f32 %v4121, %v448
  %4169 = vrot.lane.b32.xlu0 %v4137, 64
  %v4170 = vpop.permute.xlu0 %4169
  %4171 = vrot.lane.b32.xlu0 %v4138, 64
  %v4172 = vpop.permute.xlu0 %4171
  %4173 = vrot.lane.b32.xlu0 %v4139, 64
  %v4174 = vpop.permute.xlu0 %4173
  %4175 = vrot.lane.b32.xlu0 %v4140, 64
  %v4176 = vpop.permute.xlu0 %4175
  %4177 = vrot.lane.b32.xlu0 %v4141, 64
  %v4178 = vpop.permute.xlu0 %4177
  %4179 = vrot.lane.b32.xlu0 %v4142, 64
  %v4180 = vpop.permute.xlu0 %4179
  %4181 = vrot.lane.b32.xlu0 %v4143, 64
  %v4182 = vpop.permute.xlu0 %4181
  %4183 = vrot.lane.b32.xlu0 %v4144, 64
  %v4184 = vpop.permute.xlu0 %4183
  %4185 = vrot.lane.b32.xlu0 %v4145, 64
  %v4186 = vpop.permute.xlu0 %4185
  %4187 = vrot.lane.b32.xlu0 %v4146, 64
  %v4188 = vpop.permute.xlu0 %4187
  %4189 = vrot.lane.b32.xlu0 %v4147, 64
  %v4190 = vpop.permute.xlu0 %4189
  %4191 = vrot.lane.b32.xlu0 %v4148, 64
  %v4192 = vpop.permute.xlu0 %4191
  %4193 = vrot.lane.b32.xlu0 %v4149, 64
  %v4194 = vpop.permute.xlu0 %4193
  %4195 = vrot.lane.b32.xlu0 %v4150, 64
  %v4196 = vpop.permute.xlu0 %4195
  %4197 = vrot.lane.b32.xlu0 %v4151, 64
  %v4198 = vpop.permute.xlu0 %4197
  %4199 = vrot.lane.b32.xlu0 %v4152, 64
  %v4200 = vpop.permute.xlu0 %4199
  %4217 = vst.msk [vmem:[#allocation2] sm:$0xff] %vm1827, %v4170
  %4218 = vst.msk [vmem:[#allocation2 + $0x18] sm:$0xff] %vm1827, %v4172
  %4219 = vst.msk [vmem:[#allocation2 + $0x30] sm:$0xff] %vm1827, %v4174
  %4220 = vst.msk [vmem:[#allocation2 + $0x48] sm:$0xff] %vm1827, %v4176
  %4221 = vst.msk [vmem:[#allocation2 + $0x60] sm:$0xff] %vm1827, %v4178
  %4222 = vst.msk [vmem:[#allocation2 + $0x78] sm:$0xff] %vm1827, %v4180
  %4223 = vst.msk [vmem:[#allocation2 + $0x90] sm:$0xff] %vm1827, %v4182
  %4224 = vst.msk [vmem:[#allocation2 + $0xa8] sm:$0xff] %vm1827, %v4184
  %4225 = vst.msk [vmem:[#allocation2 + $0xc0] sm:$0xff] %vm1827, %v4186
  %4226 = vst.msk [vmem:[#allocation2 + $0xd8] sm:$0xff] %vm1827, %v4188
  %4227 = vst.msk [vmem:[#allocation2 + $0xf0] sm:$0xff] %vm1827, %v4190
  %4228 = vst.msk [vmem:[#allocation2 + $0x108] sm:$0xff] %vm1827, %v4192
  %4229 = vst.msk [vmem:[#allocation2 + $0x120] sm:$0xff] %vm1827, %v4194
  %4230 = vst.msk [vmem:[#allocation2 + $0x138] sm:$0xff] %vm1827, %v4196
  %4231 = vst.msk [vmem:[#allocation2 + $0x150] sm:$0xff] %vm1827, %v4198
  %4232 = vst.msk [vmem:[#allocation2 + $0x168] sm:$0xff] %vm1827, %v4200
  %v4233 = vmul.f32 %v3976, %v529
  %v4234 = vmul.f32 %v3975, %v530
  %v4235 = vmul.f32 %v3974, %v531
  %v4236 = vmul.f32 %v3973, %v532
  %v4237 = vmul.f32 %v3972, %v533
  %v4238 = vmul.f32 %v3971, %v534
  %v4239 = vmul.f32 %v3970, %v535
  %v4240 = vmul.f32 %v3969, %v536
  %v4241 = vmul.f32 %v3968, %v537
  %v4242 = vmul.f32 %v3967, %v538
  %v4243 = vmul.f32 %v3966, %v539
  %v4244 = vmul.f32 %v3965, %v540
  %v4245 = vmul.f32 %v3964, %v541
  %v4246 = vmul.f32 %v3963, %v542
  %v4247 = vmul.f32 %v3962, %v543
  %v4248 = vmul.f32 %v3961, %v544
  %4265 = vrot.lane.b32.xlu0 %v4233, 96
  %v4266 = vpop.permute.xlu0 %4265
  %4267 = vrot.lane.b32.xlu0 %v4234, 96
  %v4268 = vpop.permute.xlu0 %4267
  %4269 = vrot.lane.b32.xlu0 %v4235, 96
  %v4270 = vpop.permute.xlu0 %4269
  %4271 = vrot.lane.b32.xlu0 %v4236, 96
  %v4272 = vpop.permute.xlu0 %4271
  %4273 = vrot.lane.b32.xlu0 %v4237, 96
  %v4274 = vpop.permute.xlu0 %4273
  %4275 = vrot.lane.b32.xlu0 %v4238, 96
  %v4276 = vpop.permute.xlu0 %4275
  %4277 = vrot.lane.b32.xlu0 %v4239, 96
  %v4278 = vpop.permute.xlu0 %4277
  %4279 = vrot.lane.b32.xlu0 %v4240, 96
  %v4280 = vpop.permute.xlu0 %4279
  %4281 = vrot.lane.b32.xlu0 %v4241, 96
  %v4282 = vpop.permute.xlu0 %4281
  %4283 = vrot.lane.b32.xlu0 %v4242, 96
  %v4284 = vpop.permute.xlu0 %4283
  %4285 = vrot.lane.b32.xlu0 %v4243, 96
  %v4286 = vpop.permute.xlu0 %4285
  %4287 = vrot.lane.b32.xlu0 %v4244, 96
  %v4288 = vpop.permute.xlu0 %4287
  %4289 = vrot.lane.b32.xlu0 %v4245, 96
  %v4290 = vpop.permute.xlu0 %4289
  %4291 = vrot.lane.b32.xlu0 %v4246, 96
  %v4292 = vpop.permute.xlu0 %4291
  %4293 = vrot.lane.b32.xlu0 %v4247, 96
  %v4294 = vpop.permute.xlu0 %4293
  %4295 = vrot.lane.b32.xlu0 %v4248, 96
  %v4296 = vpop.permute.xlu0 %4295
  %4313 = vst.msk [vmem:[#allocation2] sm:$0xff] %vm1924, %v4266
  %4314 = vst.msk [vmem:[#allocation2 + $0x18] sm:$0xff] %vm1924, %v4268
  %4315 = vst.msk [vmem:[#allocation2 + $0x30] sm:$0xff] %vm1924, %v4270
  %4316 = vst.msk [vmem:[#allocation2 + $0x48] sm:$0xff] %vm1924, %v4272
  %4317 = vst.msk [vmem:[#allocation2 + $0x60] sm:$0xff] %vm1924, %v4274
  %4318 = vst.msk [vmem:[#allocation2 + $0x78] sm:$0xff] %vm1924, %v4276
  %4319 = vst.msk [vmem:[#allocation2 + $0x90] sm:$0xff] %vm1924, %v4278
  %4320 = vst.msk [vmem:[#allocation2 + $0xa8] sm:$0xff] %vm1924, %v4280
  %4321 = vst.msk [vmem:[#allocation2 + $0xc0] sm:$0xff] %vm1924, %v4282
  %4322 = vst.msk [vmem:[#allocation2 + $0xd8] sm:$0xff] %vm1924, %v4284
  %4323 = vst.msk [vmem:[#allocation2 + $0xf0] sm:$0xff] %vm1924, %v4286
  %4324 = vst.msk [vmem:[#allocation2 + $0x108] sm:$0xff] %vm1924, %v4288
  %4325 = vst.msk [vmem:[#allocation2 + $0x120] sm:$0xff] %vm1924, %v4290
  %4326 = vst.msk [vmem:[#allocation2 + $0x138] sm:$0xff] %vm1924, %v4292
  %4327 = vst.msk [vmem:[#allocation2 + $0x150] sm:$0xff] %vm1924, %v4294
  %4328 = vst.msk [vmem:[#allocation2 + $0x168] sm:$0xff] %vm1924, %v4296
  %v4329 = vmul.f32 %v3929, %v577
  %v4330 = vmul.f32 %v3930, %v578
  %v4331 = vmul.f32 %v3931, %v579
  %v4332 = vmul.f32 %v3932, %v580
  %v4333 = vmul.f32 %v3933, %v581
  %v4334 = vmul.f32 %v3934, %v582
  %v4335 = vmul.f32 %v3935, %v583
  %v4336 = vmul.f32 %v3936, %v584
  %v4337 = vmul.f32 %v3937, %v585
  %v4338 = vmul.f32 %v3938, %v586
  %v4339 = vmul.f32 %v3939, %v587
  %v4340 = vmul.f32 %v3940, %v588
  %v4341 = vmul.f32 %v3941, %v589
  %v4342 = vmul.f32 %v3942, %v590
  %v4343 = vmul.f32 %v3943, %v591
  %v4344 = vmul.f32 %v3944, %v592
  %4345 = vst.msk [vmem:[#allocation2 + $0x8] sm:$0xff] %vm1601, %v4329
  %4346 = vst.msk [vmem:[#allocation2 + $0x20] sm:$0xff] %vm1601, %v4330
  %4347 = vst.msk [vmem:[#allocation2 + $0x38] sm:$0xff] %vm1601, %v4331
  %4348 = vst.msk [vmem:[#allocation2 + $0x50] sm:$0xff] %vm1601, %v4332
  %4349 = vst.msk [vmem:[#allocation2 + $0x68] sm:$0xff] %vm1601, %v4333
  %4350 = vst.msk [vmem:[#allocation2 + $0x80] sm:$0xff] %vm1601, %v4334
  %4351 = vst.msk [vmem:[#allocation2 + $0x98] sm:$0xff] %vm1601, %v4335
  %4352 = vst.msk [vmem:[#allocation2 + $0xb0] sm:$0xff] %vm1601, %v4336
  %4353 = vst.msk [vmem:[#allocation2 + $0xc8] sm:$0xff] %vm1601, %v4337
  %4354 = vst.msk [vmem:[#allocation2 + $0xe0] sm:$0xff] %vm1601, %v4338
  %4355 = vst.msk [vmem:[#allocation2 + $0xf8] sm:$0xff] %vm1601, %v4339
  %4356 = vst.msk [vmem:[#allocation2 + $0x110] sm:$0xff] %vm1601, %v4340
  %4357 = vst.msk [vmem:[#allocation2 + $0x128] sm:$0xff] %vm1601, %v4341
  %4358 = vst.msk [vmem:[#allocation2 + $0x140] sm:$0xff] %vm1601, %v4342
  %4359 = vst.msk [vmem:[#allocation2 + $0x158] sm:$0xff] %vm1601, %v4343
  %4360 = vst.msk [vmem:[#allocation2 + $0x170] sm:$0xff] %vm1601, %v4344
  %v4361 = vmul.f32 %v4135, %v625
  %v4362 = vmul.f32 %v4134, %v626
  %v4363 = vmul.f32 %v4133, %v627
  %v4364 = vmul.f32 %v4132, %v628
  %v4365 = vmul.f32 %v4131, %v629
  %v4366 = vmul.f32 %v4130, %v630
  %v4367 = vmul.f32 %v4129, %v631
  %v4368 = vmul.f32 %v4128, %v632
  %v4369 = vmul.f32 %v4127, %v633
  %v4370 = vmul.f32 %v4126, %v634
  %v4371 = vmul.f32 %v4125, %v635
  %v4372 = vmul.f32 %v4124, %v636
  %v4373 = vmul.f32 %v4123, %v637
  %v4374 = vmul.f32 %v4122, %v638
  %v4375 = vmul.f32 %v4121, %v639
  %v4376 = vmul.f32 %v4136, %v640
  %4393 = vrot.lane.b32.xlu0 %v4361, 32
  %v4394 = vpop.permute.xlu0 %4393
  %4395 = vrot.lane.b32.xlu0 %v4362, 32
  %v4396 = vpop.permute.xlu0 %4395
  %4397 = vrot.lane.b32.xlu0 %v4363, 32
  %v4398 = vpop.permute.xlu0 %4397
  %4399 = vrot.lane.b32.xlu0 %v4364, 32
  %v4400 = vpop.permute.xlu0 %4399
  %4401 = vrot.lane.b32.xlu0 %v4365, 32
  %v4402 = vpop.permute.xlu0 %4401
  %4403 = vrot.lane.b32.xlu0 %v4366, 32
  %v4404 = vpop.permute.xlu0 %4403
  %4405 = vrot.lane.b32.xlu0 %v4367, 32
  %v4406 = vpop.permute.xlu0 %4405
  %4407 = vrot.lane.b32.xlu0 %v4368, 32
  %v4408 = vpop.permute.xlu0 %4407
  %4409 = vrot.lane.b32.xlu0 %v4369, 32
  %v4410 = vpop.permute.xlu0 %4409
  %4411 = vrot.lane.b32.xlu0 %v4370, 32
  %v4412 = vpop.permute.xlu0 %4411
  %4413 = vrot.lane.b32.xlu0 %v4371, 32
  %v4414 = vpop.permute.xlu0 %4413
  %4415 = vrot.lane.b32.xlu0 %v4372, 32
  %v4416 = vpop.permute.xlu0 %4415
  %4417 = vrot.lane.b32.xlu0 %v4373, 32
  %v4418 = vpop.permute.xlu0 %4417
  %4419 = vrot.lane.b32.xlu0 %v4374, 32
  %v4420 = vpop.permute.xlu0 %4419
  %4421 = vrot.lane.b32.xlu0 %v4375, 32
  %v4422 = vpop.permute.xlu0 %4421
  %4423 = vrot.lane.b32.xlu0 %v4376, 32
  %v4424 = vpop.permute.xlu0 %4423
  %4441 = vst.msk [vmem:[#allocation2 + $0x8] sm:$0xff] %vm1698, %v4394
  %4442 = vst.msk [vmem:[#allocation2 + $0x20] sm:$0xff] %vm1698, %v4396
  %4443 = vst.msk [vmem:[#allocation2 + $0x38] sm:$0xff] %vm1698, %v4398
  %4444 = vst.msk [vmem:[#allocation2 + $0x50] sm:$0xff] %vm1698, %v4400
  %4445 = vst.msk [vmem:[#allocation2 + $0x68] sm:$0xff] %vm1698, %v4402
  %4446 = vst.msk [vmem:[#allocation2 + $0x80] sm:$0xff] %vm1698, %v4404
  %4447 = vst.msk [vmem:[#allocation2 + $0x98] sm:$0xff] %vm1698, %v4406
  %4448 = vst.msk [vmem:[#allocation2 + $0xb0] sm:$0xff] %vm1698, %v4408
  %4449 = vst.msk [vmem:[#allocation2 + $0xc8] sm:$0xff] %vm1698, %v4410
  %4450 = vst.msk [vmem:[#allocation2 + $0xe0] sm:$0xff] %vm1698, %v4412
  %4451 = vst.msk [vmem:[#allocation2 + $0xf8] sm:$0xff] %vm1698, %v4414
  %4452 = vst.msk [vmem:[#allocation2 + $0x110] sm:$0xff] %vm1698, %v4416
  %4453 = vst.msk [vmem:[#allocation2 + $0x128] sm:$0xff] %vm1698, %v4418
  %4454 = vst.msk [vmem:[#allocation2 + $0x140] sm:$0xff] %vm1698, %v4420
  %4455 = vst.msk [vmem:[#allocation2 + $0x158] sm:$0xff] %vm1698, %v4422
  %4456 = vst.msk [vmem:[#allocation2 + $0x170] sm:$0xff] %vm1698, %v4424
  %v4457 = vmul.f32 %v3975, %v737
  %v4458 = vmul.f32 %v3974, %v738
  %v4459 = vmul.f32 %v3973, %v739
  %v4460 = vmul.f32 %v3972, %v740
  %v4461 = vmul.f32 %v3971, %v741
  %v4462 = vmul.f32 %v3970, %v742
  %v4463 = vmul.f32 %v3969, %v743
  %v4464 = vmul.f32 %v3968, %v744
  %v4465 = vmul.f32 %v3967, %v745
  %v4466 = vmul.f32 %v3966, %v746
  %v4467 = vmul.f32 %v3965, %v747
  %v4468 = vmul.f32 %v3964, %v748
  %v4469 = vmul.f32 %v3963, %v749
  %v4470 = vmul.f32 %v3962, %v750
  %v4471 = vmul.f32 %v3961, %v751
  %v4472 = vmul.f32 %v3976, %v752
  %4489 = vrot.lane.b32.xlu0 %v4457, 64
  %v4490 = vpop.permute.xlu0 %4489
  %4491 = vrot.lane.b32.xlu0 %v4458, 64
  %v4492 = vpop.permute.xlu0 %4491
  %4493 = vrot.lane.b32.xlu0 %v4459, 64
  %v4494 = vpop.permute.xlu0 %4493
  %4495 = vrot.lane.b32.xlu0 %v4460, 64
  %v4496 = vpop.permute.xlu0 %4495
  %4497 = vrot.lane.b32.xlu0 %v4461, 64
  %v4498 = vpop.permute.xlu0 %4497
  %4499 = vrot.lane.b32.xlu0 %v4462, 64
  %v4500 = vpop.permute.xlu0 %4499
  %4501 = vrot.lane.b32.xlu0 %v4463, 64
  %v4502 = vpop.permute.xlu0 %4501
  %4503 = vrot.lane.b32.xlu0 %v4464, 64
  %v4504 = vpop.permute.xlu0 %4503
  %4505 = vrot.lane.b32.xlu0 %v4465, 64
  %v4506 = vpop.permute.xlu0 %4505
  %4507 = vrot.lane.b32.xlu0 %v4466, 64
  %v4508 = vpop.permute.xlu0 %4507
  %4509 = vrot.lane.b32.xlu0 %v4467, 64
  %v4510 = vpop.permute.xlu0 %4509
  %4511 = vrot.lane.b32.xlu0 %v4468, 64
  %v4512 = vpop.permute.xlu0 %4511
  %4513 = vrot.lane.b32.xlu0 %v4469, 64
  %v4514 = vpop.permute.xlu0 %4513
  %4515 = vrot.lane.b32.xlu0 %v4470, 64
  %v4516 = vpop.permute.xlu0 %4515
  %4517 = vrot.lane.b32.xlu0 %v4471, 64
  %v4518 = vpop.permute.xlu0 %4517
  %4519 = vrot.lane.b32.xlu0 %v4472, 64
  %v4520 = vpop.permute.xlu0 %4519
  %4537 = vst.msk [vmem:[#allocation2 + $0x8] sm:$0xff] %vm1827, %v4490
  %4538 = vst.msk [vmem:[#allocation2 + $0x20] sm:$0xff] %vm1827, %v4492
  %4539 = vst.msk [vmem:[#allocation2 + $0x38] sm:$0xff] %vm1827, %v4494
  %4540 = vst.msk [vmem:[#allocation2 + $0x50] sm:$0xff] %vm1827, %v4496
  %4541 = vst.msk [vmem:[#allocation2 + $0x68] sm:$0xff] %vm1827, %v4498
  %4542 = vst.msk [vmem:[#allocation2 + $0x80] sm:$0xff] %vm1827, %v4500
  %4543 = vst.msk [vmem:[#allocation2 + $0x98] sm:$0xff] %vm1827, %v4502
  %4544 = vst.msk [vmem:[#allocation2 + $0xb0] sm:$0xff] %vm1827, %v4504
  %4545 = vst.msk [vmem:[#allocation2 + $0xc8] sm:$0xff] %vm1827, %v4506
  %4546 = vst.msk [vmem:[#allocation2 + $0xe0] sm:$0xff] %vm1827, %v4508
  %4547 = vst.msk [vmem:[#allocation2 + $0xf8] sm:$0xff] %vm1827, %v4510
  %4548 = vst.msk [vmem:[#allocation2 + $0x110] sm:$0xff] %vm1827, %v4512
  %4549 = vst.msk [vmem:[#allocation2 + $0x128] sm:$0xff] %vm1827, %v4514
  %4550 = vst.msk [vmem:[#allocation2 + $0x140] sm:$0xff] %vm1827, %v4516
  %4551 = vst.msk [vmem:[#allocation2 + $0x158] sm:$0xff] %vm1827, %v4518
  %4552 = vst.msk [vmem:[#allocation2 + $0x170] sm:$0xff] %vm1827, %v4520
  %v4553 = vmul.f32 %v3930, %v785
  %v4554 = vmul.f32 %v3931, %v786
  %v4555 = vmul.f32 %v3932, %v787
  %v4556 = vmul.f32 %v3933, %v788
  %v4557 = vmul.f32 %v3934, %v789
  %v4558 = vmul.f32 %v3935, %v790
  %v4559 = vmul.f32 %v3936, %v791
  %v4560 = vmul.f32 %v3937, %v792
  %v4561 = vmul.f32 %v3938, %v793
  %v4562 = vmul.f32 %v3939, %v794
  %v4563 = vmul.f32 %v3940, %v795
  %v4564 = vmul.f32 %v3941, %v796
  %v4565 = vmul.f32 %v3942, %v797
  %v4566 = vmul.f32 %v3943, %v798
  %v4567 = vmul.f32 %v3944, %v799
  %v4568 = vmul.f32 %v3929, %v800
  %4585 = vrot.lane.b32.xlu0 %v4553, 96
  %v4586 = vpop.permute.xlu0 %4585
  %4587 = vrot.lane.b32.xlu0 %v4554, 96
  %v4588 = vpop.permute.xlu0 %4587
  %4589 = vrot.lane.b32.xlu0 %v4555, 96
  %v4590 = vpop.permute.xlu0 %4589
  %4591 = vrot.lane.b32.xlu0 %v4556, 96
  %v4592 = vpop.permute.xlu0 %4591
  %4593 = vrot.lane.b32.xlu0 %v4557, 96
  %v4594 = vpop.permute.xlu0 %4593
  %4595 = vrot.lane.b32.xlu0 %v4558, 96
  %v4596 = vpop.permute.xlu0 %4595
  %4597 = vrot.lane.b32.xlu0 %v4559, 96
  %v4598 = vpop.permute.xlu0 %4597
  %4599 = vrot.lane.b32.xlu0 %v4560, 96
  %v4600 = vpop.permute.xlu0 %4599
  %4601 = vrot.lane.b32.xlu0 %v4561, 96
  %v4602 = vpop.permute.xlu0 %4601
  %4603 = vrot.lane.b32.xlu0 %v4562, 96
  %v4604 = vpop.permute.xlu0 %4603
  %4605 = vrot.lane.b32.xlu0 %v4563, 96
  %v4606 = vpop.permute.xlu0 %4605
  %4607 = vrot.lane.b32.xlu0 %v4564, 96
  %v4608 = vpop.permute.xlu0 %4607
  %4609 = vrot.lane.b32.xlu0 %v4565, 96
  %v4610 = vpop.permute.xlu0 %4609
  %4611 = vrot.lane.b32.xlu0 %v4566, 96
  %v4612 = vpop.permute.xlu0 %4611
  %4613 = vrot.lane.b32.xlu0 %v4567, 96
  %v4614 = vpop.permute.xlu0 %4613
  %4615 = vrot.lane.b32.xlu0 %v4568, 96
  %v4616 = vpop.permute.xlu0 %4615
  %4633 = vst.msk [vmem:[#allocation2 + $0x8] sm:$0xff] %vm1924, %v4586
  %4634 = vst.msk [vmem:[#allocation2 + $0x20] sm:$0xff] %vm1924, %v4588
  %4635 = vst.msk [vmem:[#allocation2 + $0x38] sm:$0xff] %vm1924, %v4590
  %4636 = vst.msk [vmem:[#allocation2 + $0x50] sm:$0xff] %vm1924, %v4592
  %4637 = vst.msk [vmem:[#allocation2 + $0x68] sm:$0xff] %vm1924, %v4594
  %4638 = vst.msk [vmem:[#allocation2 + $0x80] sm:$0xff] %vm1924, %v4596
  %4639 = vst.msk [vmem:[#allocation2 + $0x98] sm:$0xff] %vm1924, %v4598
  %4640 = vst.msk [vmem:[#allocation2 + $0xb0] sm:$0xff] %vm1924, %v4600
  %4641 = vst.msk [vmem:[#allocation2 + $0xc8] sm:$0xff] %vm1924, %v4602
  %4642 = vst.msk [vmem:[#allocation2 + $0xe0] sm:$0xff] %vm1924, %v4604
  %4643 = vst.msk [vmem:[#allocation2 + $0xf8] sm:$0xff] %vm1924, %v4606
  %4644 = vst.msk [vmem:[#allocation2 + $0x110] sm:$0xff] %vm1924, %v4608
  %4645 = vst.msk [vmem:[#allocation2 + $0x128] sm:$0xff] %vm1924, %v4610
  %4646 = vst.msk [vmem:[#allocation2 + $0x140] sm:$0xff] %vm1924, %v4612
  %4647 = vst.msk [vmem:[#allocation2 + $0x158] sm:$0xff] %vm1924, %v4614
  %4648 = vst.msk [vmem:[#allocation2 + $0x170] sm:$0xff] %vm1924, %v4616
  %v4649 = vmul.f32 %v4134, %v833
  %v4650 = vmul.f32 %v4133, %v834
  %v4651 = vmul.f32 %v4132, %v835
  %v4652 = vmul.f32 %v4131, %v836
  %v4653 = vmul.f32 %v4130, %v837
  %v4654 = vmul.f32 %v4129, %v838
  %v4655 = vmul.f32 %v4128, %v839
  %v4656 = vmul.f32 %v4127, %v840
  %v4657 = vmul.f32 %v4126, %v841
  %v4658 = vmul.f32 %v4125, %v842
  %v4659 = vmul.f32 %v4124, %v843
  %v4660 = vmul.f32 %v4123, %v844
  %v4661 = vmul.f32 %v4122, %v845
  %v4662 = vmul.f32 %v4121, %v846
  %v4663 = vmul.f32 %v4136, %v847
  %v4664 = vmul.f32 %v4135, %v848
  %4665 = vst.msk [vmem:[#allocation2 + $0x10] sm:$0xff] %vm1601, %v4649
  %4666 = vst.msk [vmem:[#allocation2 + $0x28] sm:$0xff] %vm1601, %v4650
  %4667 = vst.msk [vmem:[#allocation2 + $0x40] sm:$0xff] %vm1601, %v4651
  %4668 = vst.msk [vmem:[#allocation2 + $0x58] sm:$0xff] %vm1601, %v4652
  %4669 = vst.msk [vmem:[#allocation2 + $0x70] sm:$0xff] %vm1601, %v4653
  %4670 = vst.msk [vmem:[#allocation2 + $0x88] sm:$0xff] %vm1601, %v4654
  %4671 = vst.msk [vmem:[#allocation2 + $0xa0] sm:$0xff] %vm1601, %v4655
  %4672 = vst.msk [vmem:[#allocation2 + $0xb8] sm:$0xff] %vm1601, %v4656
  %4673 = vst.msk [vmem:[#allocation2 + $0xd0] sm:$0xff] %vm1601, %v4657
  %4674 = vst.msk [vmem:[#allocation2 + $0xe8] sm:$0xff] %vm1601, %v4658
  %4675 = vst.msk [vmem:[#allocation2 + $0x100] sm:$0xff] %vm1601, %v4659
  %4676 = vst.msk [vmem:[#allocation2 + $0x118] sm:$0xff] %vm1601, %v4660
  %4677 = vst.msk [vmem:[#allocation2 + $0x130] sm:$0xff] %vm1601, %v4661
  %4678 = vst.msk [vmem:[#allocation2 + $0x148] sm:$0xff] %vm1601, %v4662
  %4679 = vst.msk [vmem:[#allocation2 + $0x160] sm:$0xff] %vm1601, %v4663
  %4680 = vst.msk [vmem:[#allocation2 + $0x178] sm:$0xff] %vm1601, %v4664
  %v4681 = vld [vmem:[#allocation2] sm:$0xff]
  %v4682 = vld [vmem:[#allocation2 + $0x8] sm:$0xff]
  %v4683 = vld [vmem:[#allocation2 + $0x10] sm:$0xff]
  %v4684 = vld [vmem:[#allocation2 + $0x18] sm:$0xff]
  %v4685 = vld [vmem:[#allocation2 + $0x20] sm:$0xff]
  %v4686 = vld [vmem:[#allocation2 + $0x28] sm:$0xff]
  %v4687 = vld [vmem:[#allocation2 + $0x30] sm:$0xff]
  %v4688 = vld [vmem:[#allocation2 + $0x38] sm:$0xff]
  %v4689 = vld [vmem:[#allocation2 + $0x40] sm:$0xff]
  %v4690 = vld [vmem:[#allocation2 + $0x48] sm:$0xff]
  %v4691 = vld [vmem:[#allocation2 + $0x50] sm:$0xff]
  %v4692 = vld [vmem:[#allocation2 + $0x58] sm:$0xff]
  %v4693 = vld [vmem:[#allocation2 + $0x60] sm:$0xff]
  %v4694 = vld [vmem:[#allocation2 + $0x68] sm:$0xff]
  %v4695 = vld [vmem:[#allocation2 + $0x70] sm:$0xff]
  %v4696 = vld [vmem:[#allocation2 + $0x78] sm:$0xff]
  %v4697 = vld [vmem:[#allocation2 + $0x80] sm:$0xff]
  %v4698 = vld [vmem:[#allocation2 + $0x88] sm:$0xff]
  %v4699 = vld [vmem:[#allocation2 + $0x90] sm:$0xff]
  %v4700 = vld [vmem:[#allocation2 + $0x98] sm:$0xff]
  %v4701 = vld [vmem:[#allocation2 + $0xa0] sm:$0xff]
  %v4702 = vld [vmem:[#allocation2 + $0xa8] sm:$0xff]
  %v4703 = vld [vmem:[#allocation2 + $0xb0] sm:$0xff]
  %v4704 = vld [vmem:[#allocation2 + $0xb8] sm:$0xff]
  %v4705 = vld [vmem:[#allocation2 + $0xc0] sm:$0xff]
  %v4706 = vld [vmem:[#allocation2 + $0xc8] sm:$0xff]
  %v4707 = vld [vmem:[#allocation2 + $0xd0] sm:$0xff]
  %v4708 = vld [vmem:[#allocation2 + $0xd8] sm:$0xff]
  %v4709 = vld [vmem:[#allocation2 + $0xe0] sm:$0xff]
  %v4710 = vld [vmem:[#allocation2 + $0xe8] sm:$0xff]
  %v4711 = vld [vmem:[#allocation2 + $0xf0] sm:$0xff]
  %v4712 = vld [vmem:[#allocation2 + $0xf8] sm:$0xff]
  %v4713 = vld [vmem:[#allocation2 + $0x100] sm:$0xff]
  %v4714 = vld [vmem:[#allocation2 + $0x108] sm:$0xff]
  %v4715 = vld [vmem:[#allocation2 + $0x110] sm:$0xff]
  %v4716 = vld [vmem:[#allocation2 + $0x118] sm:$0xff]
  %v4717 = vld [vmem:[#allocation2 + $0x120] sm:$0xff]
  %v4718 = vld [vmem:[#allocation2 + $0x128] sm:$0xff]
  %v4719 = vld [vmem:[#allocation2 + $0x130] sm:$0xff]
  %v4720 = vld [vmem:[#allocation2 + $0x138] sm:$0xff]
  %v4721 = vld [vmem:[#allocation2 + $0x140] sm:$0xff]
  %v4722 = vld [vmem:[#allocation2 + $0x148] sm:$0xff]
  %v4723 = vld [vmem:[#allocation2 + $0x150] sm:$0xff]
  %v4724 = vld [vmem:[#allocation2 + $0x158] sm:$0xff]
  %v4725 = vld [vmem:[#allocation2 + $0x160] sm:$0xff]
  %v4726 = vld [vmem:[#allocation2 + $0x168] sm:$0xff]
  %v4727 = vld [vmem:[#allocation2 + $0x170] sm:$0xff]
  %v4728 = vld [vmem:[#allocation2 + $0x178] sm:$0xff]
  %v4729 = vpack.c.bf16 %v4684, %v4681
  %v4730 = vpack.c.bf16 %v4685, %v4682
  %v4731 = vpack.c.bf16 %v4686, %v4683
  %v4732 = vpack.c.bf16 %v4690, %v4687
  %v4733 = vpack.c.bf16 %v4691, %v4688
  %v4734 = vpack.c.bf16 %v4692, %v4689
  %v4735 = vpack.c.bf16 %v4696, %v4693
  %v4736 = vpack.c.bf16 %v4697, %v4694
  %v4737 = vpack.c.bf16 %v4698, %v4695
  %v4738 = vpack.c.bf16 %v4702, %v4699
  %v4739 = vpack.c.bf16 %v4703, %v4700
  %v4740 = vpack.c.bf16 %v4704, %v4701
  %v4741 = vpack.c.bf16 %v4708, %v4705
  %v4742 = vpack.c.bf16 %v4709, %v4706
  %v4743 = vpack.c.bf16 %v4710, %v4707
  %v4744 = vpack.c.bf16 %v4714, %v4711
  %v4745 = vpack.c.bf16 %v4715, %v4712
  %v4746 = vpack.c.bf16 %v4716, %v4713
  %v4747 = vpack.c.bf16 %v4720, %v4717
  %v4748 = vpack.c.bf16 %v4721, %v4718
  %v4749 = vpack.c.bf16 %v4722, %v4719
  %v4750 = vpack.c.bf16 %v4726, %v4723
  %v4751 = vpack.c.bf16 %v4727, %v4724
  %v4752 = vpack.c.bf16 %v4728, %v4725
  %s4753 = scalar_lea.vmem %s3, 288
  %v4754 = vld [vmem:[%s4753] sm:$0xf]
  %v4755 = vld [vmem:[%s4753 + $0x4] sm:$0xf]
  %v4756 = vld [vmem:[%s4753 + $0x8] sm:$0xf]
  %v4757 = vld [vmem:[%s4753 + $0xc] sm:$0xf]
  %v4758 = vld [vmem:[%s4753 + $0x10] sm:$0xf]
  %v4759 = vld [vmem:[%s4753 + $0x14] sm:$0xf]
  %v4760 = vld [vmem:[%s4753 + $0x18] sm:$0xf]
  %v4761 = vld [vmem:[%s4753 + $0x1c] sm:$0xf]
  %v4762 = vld [vmem:[%s4753 + $0x20] sm:$0xf]
  %v4763 = vld [vmem:[%s4753 + $0x24] sm:$0xf]
  %v4764 = vld [vmem:[%s4753 + $0x28] sm:$0xf]
  %v4765 = vld [vmem:[%s4753 + $0x2c] sm:$0xf]
  %v4766 = vld [vmem:[%s4753 + $0x30] sm:$0xf]
  %v4767 = vld [vmem:[%s4753 + $0x34] sm:$0xf]
  %v4768 = vld [vmem:[%s4753 + $0x38] sm:$0xf]
  %v4769 = vld [vmem:[%s4753 + $0x3c] sm:$0xf]
  %v4770 = vld [vmem:[%s4753 + $0x40] sm:$0xf]
  %v4771 = vld [vmem:[%s4753 + $0x44] sm:$0xf]
  %v4772 = vld [vmem:[%s4753 + $0x48] sm:$0xf]
  %v4773 = vld [vmem:[%s4753 + $0x4c] sm:$0xf]
  %v4774 = vld [vmem:[%s4753 + $0x50] sm:$0xf]
  %v4775 = vld [vmem:[%s4753 + $0x54] sm:$0xf]
  %v4776 = vld [vmem:[%s4753 + $0x58] sm:$0xf]
  %v4777 = vld [vmem:[%s4753 + $0x5c] sm:$0xf]
  %v4778 = vld [vmem:[%s4753 + $0x60] sm:$0xf]
  %v4779 = vld [vmem:[%s4753 + $0x64] sm:$0xf]
  %v4780 = vld [vmem:[%s4753 + $0x68] sm:$0xf]
  %v4781 = vld [vmem:[%s4753 + $0x6c] sm:$0xf]
  %v4782 = vld [vmem:[%s4753 + $0x70] sm:$0xf]
  %v4783 = vld [vmem:[%s4753 + $0x74] sm:$0xf]
  %v4784 = vld [vmem:[%s4753 + $0x78] sm:$0xf]
  %v4785 = vld [vmem:[%s4753 + $0x7c] sm:$0xf]
  %v4786 = vld [vmem:[%s4753 + $0x80] sm:$0xf]
  %v4787 = vld [vmem:[%s4753 + $0x84] sm:$0xf]
  %v4788 = vld [vmem:[%s4753 + $0x88] sm:$0xf]
  %v4789 = vld [vmem:[%s4753 + $0x8c] sm:$0xf]
  %s4790 = scalar_lea.vmem %s4, 2
  %v4791 = vld [vmem:[%s4790] sm:$0x1]
  %v4793 = vlaneseq
  %v4794 = vshrl.u32 %v4793, 7
  %v4795 = vsub.s32 0, %v4794
  %v4796 = vrot.slane %v4791, %v4795
  %v4834 = vunpack.c.l.b16 %v4754
  %v4835 = vunpack.c.l.b16 %v4755
  %v4836 = vunpack.c.l.b16 %v4756
  %v4837 = vunpack.c.l.b16 %v4757
  %v4838 = vunpack.c.l.b16 %v4758
  %v4839 = vunpack.c.l.b16 %v4759
  %v4840 = vunpack.c.l.b16 %v4760
  %v4841 = vunpack.c.l.b16 %v4761
  %v4842 = vunpack.c.l.b16 %v4762
  %v4843 = vunpack.c.l.b16 %v4763
  %v4844 = vunpack.c.l.b16 %v4764
  %v4845 = vunpack.c.l.b16 %v4765
  %v4846 = vunpack.c.l.b16 %v4766
  %v4847 = vunpack.c.l.b16 %v4767
  %v4848 = vunpack.c.l.b16 %v4768
  %v4849 = vunpack.c.l.b16 %v4769
  %v4850 = vunpack.c.l.b16 %v4770
  %v4851 = vunpack.c.l.b16 %v4771
  %v4852 = vunpack.c.l.b16 %v4772
  %v4853 = vunpack.c.l.b16 %v4773
  %v4854 = vunpack.c.l.b16 %v4774
  %v4855 = vunpack.c.l.b16 %v4775
  %v4856 = vunpack.c.l.b16 %v4776
  %v4857 = vunpack.c.l.b16 %v4777
  %v4858 = vunpack.c.l.b16 %v4778
  %v4859 = vunpack.c.l.b16 %v4779
  %v4860 = vunpack.c.l.b16 %v4780
  %v4861 = vunpack.c.l.b16 %v4781
  %v4862 = vunpack.c.l.b16 %v4782
  %v4863 = vunpack.c.l.b16 %v4783
  %v4864 = vunpack.c.l.b16 %v4784
  %v4865 = vunpack.c.l.b16 %v4785
  %v4866 = vunpack.c.l.b16 %v4786
  %v4867 = vunpack.c.l.b16 %v4787
  %v4868 = vunpack.c.l.b16 %v4788
  %v4869 = vunpack.c.l.b16 %v4789
  %v4870 = vpack.c.b16 %v4835, %v4834
  %v4871 = vpack.c.b16 %v4837, %v4836
  %v4872 = vpack.c.b16 %v4839, %v4838
  %v4873 = vpack.c.b16 %v4841, %v4840
  %v4874 = vpack.c.b16 %v4843, %v4842
  %v4875 = vpack.c.b16 %v4845, %v4844
  %v4876 = vpack.c.b16 %v4847, %v4846
  %v4877 = vpack.c.b16 %v4849, %v4848
  %v4878 = vpack.c.b16 %v4851, %v4850
  %v4879 = vpack.c.b16 %v4853, %v4852
  %v4880 = vpack.c.b16 %v4855, %v4854
  %v4881 = vpack.c.b16 %v4857, %v4856
  %v4882 = vpack.c.b16 %v4859, %v4858
  %v4883 = vpack.c.b16 %v4861, %v4860
  %v4884 = vpack.c.b16 %v4863, %v4862
  %v4885 = vpack.c.b16 %v4865, %v4864
  %v4886 = vpack.c.b16 %v4867, %v4866
  %v4887 = vpack.c.b16 %v4869, %v4868
  %v4907 = vsel %vm1601, %v4731, 0
  %v4910 = vsel %vm1601, %v4734, 0
  %v4913 = vsel %vm1601, %v4737, 0
  %v4916 = vsel %vm1601, %v4740, 0
  %v4919 = vsel %vm1601, %v4743, 0
  %v4922 = vsel %vm1601, %v4746, 0
  %v4925 = vsel %vm1601, %v4749, 0
  %v4928 = vsel %vm1601, %v4752, 0
  %4930 = vmatprep.subr.bf16.mxu0 0
  %4931 = vmatpush1.bf16.msra.mxu0 %v4870
  %4932 = vmatprep.subr.bf16.mxu0 0
  %4933 = vmatpush1.bf16.msra.mxu0 %v4871
  %4934 = vmatprep.subr.bf16.mxu0 0
  %4935 = vmatpush1.bf16.msra.mxu0 %v4872
  %4936 = vmatprep.subr.bf16.mxu0 0
  %4937 = vmatpush1.bf16.msra.mxu0 %v4873
  %4938 = vmatprep.subr.bf16.mxu0 0
  %4939 = vmatpush1.bf16.msra.mxu0 %v4874
  %4940 = vmatprep.subr.bf16.mxu0 0
  %4941 = vmatpush1.bf16.msra.mxu0 %v4875
  %4942 = vmatprep.subr.bf16.mxu0 0
  %4943 = vmatpush1.bf16.msra.mxu0 %v4876
  %4944 = vmatprep.subr.bf16.mxu0 0
  %4945 = vmatpush1.bf16.msra.mxu0 %v4877
  %4946 = vmatprep.subr.bf16.mxu0 0
  %4947 = vmatpush1.bf16.msra.mxu0 %v4878
  %4948 = vmatprep.subr.bf16.mxu0 0
  %4949 = vmatpush1.bf16.msra.mxu0 %v4879
  %4950 = vmatprep.subr.bf16.mxu0 0
  %4951 = vmatpush1.bf16.msra.mxu0 %v4880
  %4952 = vmatprep.subr.bf16.mxu0 0
  %4953 = vmatpush1.bf16.msra.mxu0 %v4881
  %4954 = vmatprep.subr.bf16.mxu0 0
  %4955 = vmatpush1.bf16.msra.mxu0 %v4882
  %4956 = vmatprep.subr.bf16.mxu0 0
  %4957 = vmatpush1.bf16.msra.mxu0 %v4883
  %4958 = vmatprep.subr.bf16.mxu0 0
  %4959 = vmatpush1.bf16.msra.mxu0 %v4884
  %4960 = vmatprep.subr.bf16.mxu0 0
  %4961 = vmatpush1.bf16.msra.mxu0 %v4885
  %4962 = vmatprep.mubr.bf16.mxu0 %v4730
  %4963 = vmatmul.mubr.bf16.gmra.mrb[0].mxu0 %v4729
  %v4964 = vpop.f32.mrb[0].mxu0
  %v4965 = vadd.f32 %v4796, %v4964
  %v4966 = vpop.f32.mrb[0].mxu0
  %v4967 = vpop.f32.mrb[0].mxu0
  %v4968 = vadd.f32 %v4796, %v4967
  %v4969 = vpop.f32.mrb[0].mxu0
  %4970 = vmatprep.mubr.bf16.mxu0 %v4733
  %4971 = vmatmul.mubr.bf16.gmra.mrb[0].mxu0 %v4732
  %v4972 = vpop.f32.mrb[0].mxu0
  %v4973 = vadd.f32 %v4796, %v4972
  %v4974 = vpop.f32.mrb[0].mxu0
  %v4975 = vpop.f32.mrb[0].mxu0
  %v4976 = vadd.f32 %v4796, %v4975
  %v4977 = vpop.f32.mrb[0].mxu0
  %4978 = vmatprep.mubr.bf16.mxu0 %v4736
  %4979 = vmatmul.mubr.bf16.gmra.mrb[0].mxu0 %v4735
  %v4980 = vpop.f32.mrb[0].mxu0
  %v4981 = vadd.f32 %v4796, %v4980
  %v4982 = vpop.f32.mrb[0].mxu0
  %v4983 = vpop.f32.mrb[0].mxu0
  %v4984 = vadd.f32 %v4796, %v4983
  %v4985 = vpop.f32.mrb[0].mxu0
  %4986 = vmatprep.mubr.bf16.mxu0 %v4739
  %4987 = vmatmul.mubr.bf16.gmra.mrb[0].mxu0 %v4738
  %v4988 = vpop.f32.mrb[0].mxu0
  %v4989 = vadd.f32 %v4796, %v4988
  %v4990 = vpop.f32.mrb[0].mxu0
  %v4991 = vpop.f32.mrb[0].mxu0
  %v4992 = vadd.f32 %v4796, %v4991
  %v4993 = vpop.f32.mrb[0].mxu0
  %4994 = vmatprep.mubr.bf16.mxu0 %v4742
  %4995 = vmatmul.mubr.bf16.gmra.mrb[0].mxu0 %v4741
  %v4996 = vpop.f32.mrb[0].mxu0
  %v4997 = vadd.f32 %v4796, %v4996
  %v4998 = vpop.f32.mrb[0].mxu0
  %v4999 = vpop.f32.mrb[0].mxu0
  %v5000 = vadd.f32 %v4796, %v4999
  %v5001 = vpop.f32.mrb[0].mxu0
  %5002 = vmatprep.mubr.bf16.mxu0 %v4745
  %5003 = vmatmul.mubr.bf16.gmra.mrb[0].mxu0 %v4744
  %v5004 = vpop.f32.mrb[0].mxu0
  %v5005 = vadd.f32 %v4796, %v5004
  %v5006 = vpop.f32.mrb[0].mxu0
  %v5007 = vpop.f32.mrb[0].mxu0
  %v5008 = vadd.f32 %v4796, %v5007
  %v5009 = vpop.f32.mrb[0].mxu0
  %5010 = vmatprep.mubr.bf16.mxu0 %v4748
  %5011 = vmatmul.mubr.bf16.gmra.mrb[0].mxu0 %v4747
  %v5012 = vpop.f32.mrb[0].mxu0
  %v5013 = vadd.f32 %v4796, %v5012
  %v5014 = vpop.f32.mrb[0].mxu0
  %v5015 = vpop.f32.mrb[0].mxu0
  %v5016 = vadd.f32 %v4796, %v5015
  %v5017 = vpop.f32.mrb[0].mxu0
  %5018 = vmatprep.mubr.bf16.mxu0 %v4751
  %5019 = vmatmul.mubr.bf16.gmra.mrb[0].mxu0 %v4750
  %v5020 = vpop.f32.mrb[0].mxu0
  %v5021 = vadd.f32 %v4796, %v5020
  %v5022 = vpop.f32.mrb[0].mxu0
  %v5023 = vpop.f32.mrb[0].mxu0
  %v5024 = vadd.f32 %v4796, %v5023
  %v5025 = vpop.f32.mrb[0].mxu0
  %5026 = vdwg.mxu0
  %5027 = vmatprep.subr.bf16.mxu0 0
  %5028 = vmatpush1.bf16.msra.mxu0 %v4886
  %5029 = vmatprep.subr.bf16.mxu0 0
  %5030 = vmatpush1.bf16.msra.mxu0 %v4887
  %5031 = vmatprep.subr.bf16.mxu0 0
  %5032 = vmatpush1.bf16.msra.mxu0 0
  %5033 = vmatprep.subr.bf16.mxu0 0
  %5034 = vmatpush1.bf16.msra.mxu0 0
  %5035 = vmatprep.subr.bf16.mxu0 0
  %5036 = vmatpush1.bf16.msra.mxu0 0
  %5037 = vmatprep.subr.bf16.mxu0 0
  %5038 = vmatpush1.bf16.msra.mxu0 0
  %5039 = vmatprep.subr.bf16.mxu0 0
  %5040 = vmatpush1.bf16.msra.mxu0 0
  %5041 = vmatprep.subr.bf16.mxu0 0
  %5042 = vmatpush1.bf16.msra.mxu0 0
  %5043 = vmatprep.subr.bf16.mxu0 0
  %5044 = vmatpush1.bf16.msra.mxu0 0
  %5045 = vmatprep.subr.bf16.mxu0 0
  %5046 = vmatpush1.bf16.msra.mxu0 0
  %5047 = vmatprep.subr.bf16.mxu0 0
  %5048 = vmatpush1.bf16.msra.mxu0 0
  %5049 = vmatprep.subr.bf16.mxu0 0
  %5050 = vmatpush1.bf16.msra.mxu0 0
  %5051 = vmatprep.subr.bf16.mxu0 0
  %5052 = vmatpush1.bf16.msra.mxu0 0
  %5053 = vmatprep.subr.bf16.mxu0 0
  %5054 = vmatpush1.bf16.msra.mxu0 0
  %5055 = vmatprep.subr.bf16.mxu0 0
  %5056 = vmatpush1.bf16.msra.mxu0 0
  %5057 = vmatprep.subr.bf16.mxu0 0
  %5058 = vmatpush1.bf16.msra.mxu0 0
  %5059 = vmatprep.mubr.bf16.mxu0 0
  %5060 = vmatmul.mubr.bf16.gmra.mrb[0].mxu0 %v4907
  %v5061 = vpop.f32.mrb[0].mxu0
  %v5062 = vadd.f32 %v4965, %v5061
  %v5063 = vpop.f32.mrb[0].mxu0
  %v5064 = vpop.f32.mrb[0].mxu0
  %v5065 = vadd.f32 %v4968, %v5064
  %v5066 = vpop.f32.mrb[0].mxu0
  %5067 = vmatprep.mubr.bf16.mxu0 0
  %5068 = vmatmul.mubr.bf16.gmra.mrb[0].mxu0 %v4910
  %v5069 = vpop.f32.mrb[0].mxu0
  %v5070 = vadd.f32 %v4973, %v5069
  %v5071 = vpop.f32.mrb[0].mxu0
  %v5072 = vpop.f32.mrb[0].mxu0
  %v5073 = vadd.f32 %v4976, %v5072
  %v5074 = vpop.f32.mrb[0].mxu0
  %5075 = vmatprep.mubr.bf16.mxu0 0
  %5076 = vmatmul.mubr.bf16.gmra.mrb[0].mxu0 %v4913
  %v5077 = vpop.f32.mrb[0].mxu0
  %v5078 = vadd.f32 %v4981, %v5077
  %v5079 = vpop.f32.mrb[0].mxu0
  %v5080 = vpop.f32.mrb[0].mxu0
  %v5081 = vadd.f32 %v4984, %v5080
  %v5082 = vpop.f32.mrb[0].mxu0
  %5083 = vmatprep.mubr.bf16.mxu0 0
  %5084 = vmatmul.mubr.bf16.gmra.mrb[0].mxu0 %v4916
  %v5085 = vpop.f32.mrb[0].mxu0
  %v5086 = vadd.f32 %v4989, %v5085
  %v5087 = vpop.f32.mrb[0].mxu0
  %v5088 = vpop.f32.mrb[0].mxu0
  %v5089 = vadd.f32 %v4992, %v5088
  %v5090 = vpop.f32.mrb[0].mxu0
  %5091 = vmatprep.mubr.bf16.mxu0 0
  %5092 = vmatmul.mubr.bf16.gmra.mrb[0].mxu0 %v4919
  %v5093 = vpop.f32.mrb[0].mxu0
  %v5094 = vadd.f32 %v4997, %v5093
  %v5095 = vpop.f32.mrb[0].mxu0
  %v5096 = vpop.f32.mrb[0].mxu0
  %v5097 = vadd.f32 %v5000, %v5096
  %v5098 = vpop.f32.mrb[0].mxu0
  %5099 = vmatprep.mubr.bf16.mxu0 0
  %5100 = vmatmul.mubr.bf16.gmra.mrb[0].mxu0 %v4922
  %v5101 = vpop.f32.mrb[0].mxu0
  %v5102 = vadd.f32 %v5005, %v5101
  %v5103 = vpop.f32.mrb[0].mxu0
  %v5104 = vpop.f32.mrb[0].mxu0
  %v5105 = vadd.f32 %v5008, %v5104
  %v5106 = vpop.f32.mrb[0].mxu0
  %5107 = vmatprep.mubr.bf16.mxu0 0
  %5108 = vmatmul.mubr.bf16.gmra.mrb[0].mxu0 %v4925
  %v5109 = vpop.f32.mrb[0].mxu0
  %v5110 = vadd.f32 %v5013, %v5109
  %v5111 = vpop.f32.mrb[0].mxu0
  %v5112 = vpop.f32.mrb[0].mxu0
  %v5113 = vadd.f32 %v5016, %v5112
  %v5114 = vpop.f32.mrb[0].mxu0
  %5115 = vmatprep.mubr.bf16.mxu0 0
  %5116 = vmatmul.mubr.bf16.gmra.mrb[0].mxu0 %v4928
  %v5117 = vpop.f32.mrb[0].mxu0
  %v5118 = vadd.f32 %v5021, %v5117
  %v5119 = vpop.f32.mrb[0].mxu0
  %v5120 = vpop.f32.mrb[0].mxu0
  %v5121 = vadd.f32 %v5024, %v5120
  %v5122 = vpop.f32.mrb[0].mxu0
  %5123 = vdwg.mxu0
  %v5124 = vmax.f32 %v5062, 0.0
  %v5125 = vmax.f32 %v5065, 0.0
  %v5126 = vmax.f32 %v5070, 0.0
  %v5127 = vmax.f32 %v5073, 0.0
  %v5128 = vmax.f32 %v5078, 0.0
  %v5129 = vmax.f32 %v5081, 0.0
  %v5130 = vmax.f32 %v5086, 0.0
  %v5131 = vmax.f32 %v5089, 0.0
  %v5132 = vmax.f32 %v5094, 0.0
  %v5133 = vmax.f32 %v5097, 0.0
  %v5134 = vmax.f32 %v5102, 0.0
  %v5135 = vmax.f32 %v5105, 0.0
  %v5136 = vmax.f32 %v5110, 0.0
  %v5137 = vmax.f32 %v5113, 0.0
  %v5138 = vmax.f32 %v5118, 0.0
  %v5139 = vmax.f32 %v5121, 0.0
  %v5140 = vpack.c.bf16 %v5125, %v5124
  %v5141 = vpack.c.bf16 %v5127, %v5126
  %v5142 = vpack.c.bf16 %v5129, %v5128
  %v5143 = vpack.c.bf16 %v5131, %v5130
  %v5144 = vpack.c.bf16 %v5133, %v5132
  %v5145 = vpack.c.bf16 %v5135, %v5134
  %v5146 = vpack.c.bf16 %v5137, %v5136
  %v5147 = vpack.c.bf16 %v5139, %v5138
  %v5148 = vld [vmem:[%s5] sm:$0xf]
  %v5149 = vld [vmem:[%s5 + $0x4] sm:$0xf]
  %v5150 = vld [vmem:[%s5 + $0x8] sm:$0xf]
  %v5151 = vld [vmem:[%s5 + $0xc] sm:$0xf]
  %v5152 = vld [vmem:[%s6] sm:$0x1]
  %v5154 = vlaneseq
  %v5155 = vshrl.u32 %v5154, 7
  %v5156 = vsub.s32 0, %v5155
  %v5157 = vrot.slane %v5152, %v5156
  %v5163 = vunpack.c.l.b16 %v5148
  %v5164 = vunpack.c.l.b16 %v5149
  %v5165 = vunpack.c.l.b16 %v5150
  %v5166 = vunpack.c.l.b16 %v5151
  %v5167 = vpack.c.b16 %v5164, %v5163
  %v5168 = vpack.c.b16 %v5166, %v5165
  %v5172 = vsel %vm1601, %v5140, 0
  %v5175 = vsel %vm1601, %v5141, 0
  %v5178 = vsel %vm1601, %v5142, 0
  %v5181 = vsel %vm1601, %v5143, 0
  %v5184 = vsel %vm1601, %v5144, 0
  %v5187 = vsel %vm1601, %v5145, 0
  %v5190 = vsel %vm1601, %v5146, 0
  %v5193 = vsel %vm1601, %v5147, 0
  %5195 = vmatprep.subr.bf16.mxu0 0
  %5196 = vmatpush1.bf16.msra.mxu0 %v5167
  %5197 = vmatprep.subr.bf16.mxu0 0
  %5198 = vmatpush1.bf16.msra.mxu0 %v5168
  %5199 = vmatprep.subr.bf16.mxu0 0
  %5200 = vmatpush1.bf16.msra.mxu0 0
  %5201 = vmatprep.subr.bf16.mxu0 0
  %5202 = vmatpush1.bf16.msra.mxu0 0
  %5203 = vmatprep.subr.bf16.mxu0 0
  %5204 = vmatpush1.bf16.msra.mxu0 0
  %5205 = vmatprep.subr.bf16.mxu0 0
  %5206 = vmatpush1.bf16.msra.mxu0 0
  %5207 = vmatprep.subr.bf16.mxu0 0
  %5208 = vmatpush1.bf16.msra.mxu0 0
  %5209 = vmatprep.subr.bf16.mxu0 0
  %5210 = vmatpush1.bf16.msra.mxu0 0
  %5211 = vmatprep.subr.bf16.mxu0 0
  %5212 = vmatpush1.bf16.msra.mxu0 0
  %5213 = vmatprep.subr.bf16.mxu0 0
  %5214 = vmatpush1.bf16.msra.mxu0 0
  %5215 = vmatprep.subr.bf16.mxu0 0
  %5216 = vmatpush1.bf16.msra.mxu0 0
  %5217 = vmatprep.subr.bf16.mxu0 0
  %5218 = vmatpush1.bf16.msra.mxu0 0
  %5219 = vmatprep.subr.bf16.mxu0 0
  %5220 = vmatpush1.bf16.msra.mxu0 0
  %5221 = vmatprep.subr.bf16.mxu0 0
  %5222 = vmatpush1.bf16.msra.mxu0 0
  %5223 = vmatprep.subr.bf16.mxu0 0
  %5224 = vmatpush1.bf16.msra.mxu0 0
  %5225 = vmatprep.subr.bf16.mxu0 0
  %5226 = vmatpush1.bf16.msra.mxu0 0
  %5227 = vmatprep.mubr.bf16.mxu0 0
  %5228 = vmatmul.mubr.bf16.gmra.mrb[0].mxu0 %v5172
  %v5229 = vpop.f32.mrb[0].mxu0
  %v5230 = vadd.f32 %v5157, %v5229
  %v5231 = vpop.f32.mrb[0].mxu0
  %v5232 = vpop.f32.mrb[0].mxu0
  %v5233 = vadd.f32 %v5157, %v5232
  %v5234 = vpop.f32.mrb[0].mxu0
  %5235 = vmatprep.mubr.bf16.mxu0 0
  %5236 = vmatmul.mubr.bf16.gmra.mrb[0].mxu0 %v5175
  %v5237 = vpop.f32.mrb[0].mxu0
  %v5238 = vadd.f32 %v5157, %v5237
  %v5239 = vpop.f32.mrb[0].mxu0
  %v5240 = vpop.f32.mrb[0].mxu0
  %v5241 = vadd.f32 %v5157, %v5240
  %v5242 = vpop.f32.mrb[0].mxu0
  %5243 = vmatprep.mubr.bf16.mxu0 0
  %5244 = vmatmul.mubr.bf16.gmra.mrb[0].mxu0 %v5178
  %v5245 = vpop.f32.mrb[0].mxu0
  %v5246 = vadd.f32 %v5157, %v5245
  %v5247 = vpop.f32.mrb[0].mxu0
  %v5248 = vpop.f32.mrb[0].mxu0
  %v5249 = vadd.f32 %v5157, %v5248
  %v5250 = vpop.f32.mrb[0].mxu0
  %5251 = vmatprep.mubr.bf16.mxu0 0
  %5252 = vmatmul.mubr.bf16.gmra.mrb[0].mxu0 %v5181
  %v5253 = vpop.f32.mrb[0].mxu0
  %v5254 = vadd.f32 %v5157, %v5253
  %v5255 = vpop.f32.mrb[0].mxu0
  %v5256 = vpop.f32.mrb[0].mxu0
  %v5257 = vadd.f32 %v5157, %v5256
  %v5258 = vpop.f32.mrb[0].mxu0
  %5259 = vmatprep.mubr.bf16.mxu0 0
  %5260 = vmatmul.mubr.bf16.gmra.mrb[0].mxu0 %v5184
  %v5261 = vpop.f32.mrb[0].mxu0
  %v5262 = vadd.f32 %v5157, %v5261
  %v5263 = vpop.f32.mrb[0].mxu0
  %v5264 = vpop.f32.mrb[0].mxu0
  %v5265 = vadd.f32 %v5157, %v5264
  %v5266 = vpop.f32.mrb[0].mxu0
  %5267 = vmatprep.mubr.bf16.mxu0 0
  %5268 = vmatmul.mubr.bf16.gmra.mrb[0].mxu0 %v5187
  %v5269 = vpop.f32.mrb[0].mxu0
  %v5270 = vadd.f32 %v5157, %v5269
  %v5271 = vpop.f32.mrb[0].mxu0
  %v5272 = vpop.f32.mrb[0].mxu0
  %v5273 = vadd.f32 %v5157, %v5272
  %v5274 = vpop.f32.mrb[0].mxu0
  %5275 = vmatprep.mubr.bf16.mxu0 0
  %5276 = vmatmul.mubr.bf16.gmra.mrb[0].mxu0 %v5190
  %v5277 = vpop.f32.mrb[0].mxu0
  %v5278 = vadd.f32 %v5157, %v5277
  %v5279 = vpop.f32.mrb[0].mxu0
  %v5280 = vpop.f32.mrb[0].mxu0
  %v5281 = vadd.f32 %v5157, %v5280
  %v5282 = vpop.f32.mrb[0].mxu0
  %5283 = vmatprep.mubr.bf16.mxu0 0
  %5284 = vmatmul.mubr.bf16.gmra.mrb[0].mxu0 %v5193
  %v5285 = vpop.f32.mrb[0].mxu0
  %v5286 = vadd.f32 %v5157, %v5285
  %v5287 = vpop.f32.mrb[0].mxu0
  %v5288 = vpop.f32.mrb[0].mxu0
  %v5289 = vadd.f32 %v5157, %v5288
  %v5290 = vpop.f32.mrb[0].mxu0
  %5291 = vdwg.mxu0
  %v5292 = vmax.f32 %v5230, 0.0
  %v5293 = vmax.f32 %v5233, 0.0
  %v5294 = vmax.f32 %v5238, 0.0
  %v5295 = vmax.f32 %v5241, 0.0
  %v5296 = vmax.f32 %v5246, 0.0
  %v5297 = vmax.f32 %v5249, 0.0
  %v5298 = vmax.f32 %v5254, 0.0
  %v5299 = vmax.f32 %v5257, 0.0
  %v5300 = vmax.f32 %v5262, 0.0
  %v5301 = vmax.f32 %v5265, 0.0
  %v5302 = vmax.f32 %v5270, 0.0
  %v5303 = vmax.f32 %v5273, 0.0
  %v5304 = vmax.f32 %v5278, 0.0
  %v5305 = vmax.f32 %v5281, 0.0
  %v5306 = vmax.f32 %v5286, 0.0
  %v5307 = vmax.f32 %v5289, 0.0
  %v5308 = vlaneseq
  %v5309 = vand.u32 %v5308, 127
  %v5310 = vshra.s32 %v5309, 6
  %vm5311 = vcmp.eq.s32.totalorder %v5310, %v49
  %v5312 = vsel %vm5311, 1.0, 0.0
  %v5313 = vpack.c.bf16 %v5312, %v5312
  %v5314 = vld [vmem:[%s7] sm:$0xff]
  %v5315 = vld [vmem:[%s7 + $0x8] sm:$0xff]
  %v5316 = vld [vmem:[%s7 + $0x10] sm:$0xff]
  %v5317 = vld [vmem:[%s7 + $0x18] sm:$0xff]
  %v5318 = vld [vmem:[%s7 + $0x20] sm:$0xff]
  %v5319 = vld [vmem:[%s7 + $0x28] sm:$0xff]
  %v5320 = vld [vmem:[%s7 + $0x30] sm:$0xff]
  %v5321 = vld [vmem:[%s7 + $0x38] sm:$0xff]
  %5323 = vset.pattern.permute.xlu0 0
  %5324 = vperm.xlu0 %5323, %v5292
  %v5325 = vpop.permute.xlu0 %5324
  %5328 = vset.pattern.permute.xlu0 0
  %5329 = vperm.xlu0 %5328, %v5293
  %v5330 = vpop.permute.xlu0 %5329
  %5333 = vset.pattern.permute.xlu0 0
  %5334 = vperm.xlu0 %5333, %v5294
  %v5335 = vpop.permute.xlu0 %5334
  %5338 = vset.pattern.permute.xlu0 0
  %5339 = vperm.xlu0 %5338, %v5295
  %v5340 = vpop.permute.xlu0 %5339
  %5343 = vset.pattern.permute.xlu0 0
  %5344 = vperm.xlu0 %5343, %v5296
  %v5345 = vpop.permute.xlu0 %5344
  %5348 = vset.pattern.permute.xlu0 0
  %5349 = vperm.xlu0 %5348, %v5297
  %v5350 = vpop.permute.xlu0 %5349
  %5353 = vset.pattern.permute.xlu0 0
  %5354 = vperm.xlu0 %5353, %v5298
  %v5355 = vpop.permute.xlu0 %5354
  %5358 = vset.pattern.permute.xlu0 0
  %5359 = vperm.xlu0 %5358, %v5299
  %v5360 = vpop.permute.xlu0 %5359
  %5363 = vset.pattern.permute.xlu0 0
  %5364 = vperm.xlu0 %5363, %v5300
  %v5365 = vpop.permute.xlu0 %5364
  %5368 = vset.pattern.permute.xlu0 0
  %5369 = vperm.xlu0 %5368, %v5301
  %v5370 = vpop.permute.xlu0 %5369
  %5373 = vset.pattern.permute.xlu0 0
  %5374 = vperm.xlu0 %5373, %v5302
  %v5375 = vpop.permute.xlu0 %5374
  %5378 = vset.pattern.permute.xlu0 0
  %5379 = vperm.xlu0 %5378, %v5303
  %v5380 = vpop.permute.xlu0 %5379
  %5383 = vset.pattern.permute.xlu0 0
  %5384 = vperm.xlu0 %5383, %v5304
  %v5385 = vpop.permute.xlu0 %5384
  %5388 = vset.pattern.permute.xlu0 0
  %5389 = vperm.xlu0 %5388, %v5305
  %v5390 = vpop.permute.xlu0 %5389
  %5393 = vset.pattern.permute.xlu0 0
  %5394 = vperm.xlu0 %5393, %v5306
  %v5395 = vpop.permute.xlu0 %5394
  %5398 = vset.pattern.permute.xlu0 0
  %5399 = vperm.xlu0 %5398, %v5307
  %v5400 = vpop.permute.xlu0 %5399
  %v5402 = vmul.f32 %v5325, %v5314
  %v5403 = vmul.f32 %v5330, %v5315
  %v5404 = vmul.f32 %v5335, %v5316
  %v5405 = vmul.f32 %v5340, %v5317
  %v5406 = vmul.f32 %v5345, %v5318
  %v5407 = vmul.f32 %v5350, %v5319
  %v5408 = vmul.f32 %v5355, %v5320
  %v5409 = vmul.f32 %v5360, %v5321
  %v5410 = vmul.f32 %v5365, %v5314
  %v5411 = vmul.f32 %v5370, %v5315
  %v5412 = vmul.f32 %v5375, %v5316
  %v5413 = vmul.f32 %v5380, %v5317
  %v5414 = vmul.f32 %v5385, %v5318
  %v5415 = vmul.f32 %v5390, %v5319
  %v5416 = vmul.f32 %v5395, %v5320
  %v5417 = vmul.f32 %v5400, %v5321
  %v5418 = vld [vmem:[%s8] sm:$0xff]
  %v5419 = vld [vmem:[%s8 + $0x8] sm:$0xff]
  %v5420 = vld [vmem:[%s8 + $0x10] sm:$0xff]
  %v5421 = vld [vmem:[%s8 + $0x18] sm:$0xff]
  %v5422 = vld [vmem:[%s8 + $0x20] sm:$0xff]
  %v5423 = vld [vmem:[%s8 + $0x28] sm:$0xff]
  %v5424 = vld [vmem:[%s8 + $0x30] sm:$0xff]
  %v5425 = vld [vmem:[%s8 + $0x38] sm:$0xff]
  %5426 = vset.pattern.permute.xlu0 1
  %5427 = vperm.xlu0 %5426, %v5292
  %v5428 = vpop.permute.xlu0 %5427
  %5430 = vset.pattern.permute.xlu0 1
  %5431 = vperm.xlu0 %5430, %v5293
  %v5432 = vpop.permute.xlu0 %5431
  %5434 = vset.pattern.permute.xlu0 1
  %5435 = vperm.xlu0 %5434, %v5294
  %v5436 = vpop.permute.xlu0 %5435
  %5438 = vset.pattern.permute.xlu0 1
  %5439 = vperm.xlu0 %5438, %v5295
  %v5440 = vpop.permute.xlu0 %5439
  %5442 = vset.pattern.permute.xlu0 1
  %5443 = vperm.xlu0 %5442, %v5296
  %v5444 = vpop.permute.xlu0 %5443
  %5446 = vset.pattern.permute.xlu0 1
  %5447 = vperm.xlu0 %5446, %v5297
  %v5448 = vpop.permute.xlu0 %5447
  %5450 = vset.pattern.permute.xlu0 1
  %5451 = vperm.xlu0 %5450, %v5298
  %v5452 = vpop.permute.xlu0 %5451
  %5454 = vset.pattern.permute.xlu0 1
  %5455 = vperm.xlu0 %5454, %v5299
  %v5456 = vpop.permute.xlu0 %5455
  %5458 = vset.pattern.permute.xlu0 1
  %5459 = vperm.xlu0 %5458, %v5300
  %v5460 = vpop.permute.xlu0 %5459
  %5462 = vset.pattern.permute.xlu0 1
  %5463 = vperm.xlu0 %5462, %v5301
  %v5464 = vpop.permute.xlu0 %5463
  %5466 = vset.pattern.permute.xlu0 1
  %5467 = vperm.xlu0 %5466, %v5302
  %v5468 = vpop.permute.xlu0 %5467
  %5470 = vset.pattern.permute.xlu0 1
  %5471 = vperm.xlu0 %5470, %v5303
  %v5472 = vpop.permute.xlu0 %5471
  %5474 = vset.pattern.permute.xlu0 1
  %5475 = vperm.xlu0 %5474, %v5304
  %v5476 = vpop.permute.xlu0 %5475
  %5478 = vset.pattern.permute.xlu0 1
  %5479 = vperm.xlu0 %5478, %v5305
  %v5480 = vpop.permute.xlu0 %5479
  %5482 = vset.pattern.permute.xlu0 1
  %5483 = vperm.xlu0 %5482, %v5306
  %v5484 = vpop.permute.xlu0 %5483
  %5486 = vset.pattern.permute.xlu0 1
  %5487 = vperm.xlu0 %5486, %v5307
  %v5488 = vpop.permute.xlu0 %5487
  %v5490 = vmul.f32 %v5428, %v5418
  %v5491 = vmul.f32 %v5432, %v5419
  %v5492 = vmul.f32 %v5436, %v5420
  %v5493 = vmul.f32 %v5440, %v5421
  %v5494 = vmul.f32 %v5444, %v5422
  %v5495 = vmul.f32 %v5448, %v5423
  %v5496 = vmul.f32 %v5452, %v5424
  %v5497 = vmul.f32 %v5456, %v5425
  %v5498 = vmul.f32 %v5460, %v5418
  %v5499 = vmul.f32 %v5464, %v5419
  %v5500 = vmul.f32 %v5468, %v5420
  %v5501 = vmul.f32 %v5472, %v5421
  %v5502 = vmul.f32 %v5476, %v5422
  %v5503 = vmul.f32 %v5480, %v5423
  %v5504 = vmul.f32 %v5484, %v5424
  %v5505 = vmul.f32 %v5488, %v5425
  %v5506 = vadd.f32 %v5402, %v5490
  %v5507 = vadd.f32 %v5403, %v5491
  %v5508 = vadd.f32 %v5404, %v5492
  %v5509 = vadd.f32 %v5405, %v5493
  %v5510 = vadd.f32 %v5406, %v5494
  %v5511 = vadd.f32 %v5407, %v5495
  %v5512 = vadd.f32 %v5408, %v5496
  %v5513 = vadd.f32 %v5409, %v5497
  %v5514 = vadd.f32 %v5410, %v5498
  %v5515 = vadd.f32 %v5411, %v5499
  %v5516 = vadd.f32 %v5412, %v5500
  %v5517 = vadd.f32 %v5413, %v5501
  %v5518 = vadd.f32 %v5414, %v5502
  %v5519 = vadd.f32 %v5415, %v5503
  %v5520 = vadd.f32 %v5416, %v5504
  %v5521 = vadd.f32 %v5417, %v5505
  %v5522 = vpack.c.bf16 %v5507, %v5506
  %v5523 = vpack.c.bf16 %v5509, %v5508
  %v5524 = vpack.c.bf16 %v5511, %v5510
  %v5525 = vpack.c.bf16 %v5513, %v5512
  %v5526 = vpack.c.bf16 %v5515, %v5514
  %v5527 = vpack.c.bf16 %v5517, %v5516
  %v5528 = vpack.c.bf16 %v5519, %v5518
  %v5529 = vpack.c.bf16 %v5521, %v5520
  %v5530 = vld [vmem:[%s9] sm:$0x1]
  %v5532 = vlaneseq
  %v5533 = vshrl.u32 %v5532, 7
  %v5534 = vsub.s32 0, %v5533
  %v5535 = vrot.slane %v5530, %v5534
  %5537 = vmatprep.subr.bf16.mxu0 0
  %5538 = vmatpush1.bf16.msra.mxu0 %v5522
  %5539 = vmatprep.subr.bf16.mxu0 0
  %5540 = vmatpush1.bf16.msra.mxu0 %v5523
  %5541 = vmatprep.subr.bf16.mxu0 0
  %5542 = vmatpush1.bf16.msra.mxu0 %v5524
  %5543 = vmatprep.subr.bf16.mxu0 0
  %5544 = vmatpush1.bf16.msra.mxu0 %v5525
  %5545 = vmatprep.subr.bf16.mxu0 0
  %5546 = vmatpush1.bf16.msra.mxu0 %v5526
  %5547 = vmatprep.subr.bf16.mxu0 0
  %5548 = vmatpush1.bf16.msra.mxu0 %v5527
  %5549 = vmatprep.subr.bf16.mxu0 0
  %5550 = vmatpush1.bf16.msra.mxu0 %v5528
  %5551 = vmatprep.subr.bf16.mxu0 0
  %5552 = vmatpush1.bf16.msra.mxu0 %v5529
  %5553 = vmatprep.subr.bf16.mxu0 0
  %5554 = vmatpush1.bf16.msra.mxu0 0
  %5555 = vmatprep.subr.bf16.mxu0 0
  %5556 = vmatpush1.bf16.msra.mxu0 0
  %5557 = vmatprep.subr.bf16.mxu0 0
  %5558 = vmatpush1.bf16.msra.mxu0 0
  %5559 = vmatprep.subr.bf16.mxu0 0
  %5560 = vmatpush1.bf16.msra.mxu0 0
  %5561 = vmatprep.subr.bf16.mxu0 0
  %5562 = vmatpush1.bf16.msra.mxu0 0
  %5563 = vmatprep.subr.bf16.mxu0 0
  %5564 = vmatpush1.bf16.msra.mxu0 0
  %5565 = vmatprep.subr.bf16.mxu0 0
  %5566 = vmatpush1.bf16.msra.mxu0 0
  %5567 = vmatprep.subr.bf16.mxu0 0
  %5568 = vmatpush1.bf16.msra.mxu0 0
  %5569 = vmatprep.mubr.bf16.mxu0 0
  %5570 = vmatmul.mubr.bf16.gmra.mrb[0].mxu0 %v5313
  %v5571 = vpop.f32.mrb[0].mxu0
  %v5572 = vadd.f32 %v5535, %v5571
  %v5573 = vpop.f32.mrb[0].mxu0
  %v5574 = vpop.f32.mrb[0].mxu0
  %v5575 = vpop.f32.mrb[0].mxu0
  %5576 = vdwg.mxu0
  %vm5577 = vcmask 517120
  %v5578 = vsel %vm5577, %v5572, -inf
  %5579 = vmax.xlane.f32.xlu0 %v5578
  %v5580 = vpop.xlane.xlu0 %5579
  %v5581 = vsub.f32 %v5572, %v5580
  %v5582 = vmul.f32 %v5581, 1.442695
  %v5583 = vpow.pop %v5582
  %v5584 = vsel %vm5577, %v5583, 0.0
  %5585 = vadd.xlane.f32.xlu0 %v5584
  %v5586 = vpop.xlane.xlu0 %5585
  %v5587 = vrcp.pop %v5586
  %v5588 = vmul.f32 %v5583, %v5587
  %v5589 = vld [vmem:[%s10] sm:$0xff]
  %v5590 = vld [vmem:[%s10 + $0x8] sm:$0xff]
  %v5591 = vld [vmem:[%s10 + $0x10] sm:$0xff]
  %v5592 = vld [vmem:[%s10 + $0x18] sm:$0xff]
  %v5593 = vld [vmem:[%s10 + $0x20] sm:$0xff]
  %v5594 = vld [vmem:[%s10 + $0x28] sm:$0xff]
  %v5595 = vld [vmem:[%s10 + $0x30] sm:$0xff]
  %v5596 = vld [vmem:[%s10 + $0x38] sm:$0xff]
  %5597 = vset.pattern.permute.xlu0 2
  %5598 = vperm.xlu0 %5597, %v5292
  %v5599 = vpop.permute.xlu0 %5598
  %5601 = vset.pattern.permute.xlu0 2
  %5602 = vperm.xlu0 %5601, %v5293
  %v5603 = vpop.permute.xlu0 %5602
  %5605 = vset.pattern.permute.xlu0 2
  %5606 = vperm.xlu0 %5605, %v5294
  %v5607 = vpop.permute.xlu0 %5606
  %5609 = vset.pattern.permute.xlu0 2
  %5610 = vperm.xlu0 %5609, %v5295
  %v5611 = vpop.permute.xlu0 %5610
  %5613 = vset.pattern.permute.xlu0 2
  %5614 = vperm.xlu0 %5613, %v5296
  %v5615 = vpop.permute.xlu0 %5614
  %5617 = vset.pattern.permute.xlu0 2
  %5618 = vperm.xlu0 %5617, %v5297
  %v5619 = vpop.permute.xlu0 %5618
  %5621 = vset.pattern.permute.xlu0 2
  %5622 = vperm.xlu0 %5621, %v5298
  %v5623 = vpop.permute.xlu0 %5622
  %5625 = vset.pattern.permute.xlu0 2
  %5626 = vperm.xlu0 %5625, %v5299
  %v5627 = vpop.permute.xlu0 %5626
  %5629 = vset.pattern.permute.xlu0 2
  %5630 = vperm.xlu0 %5629, %v5300
  %v5631 = vpop.permute.xlu0 %5630
  %5633 = vset.pattern.permute.xlu0 2
  %5634 = vperm.xlu0 %5633, %v5301
  %v5635 = vpop.permute.xlu0 %5634
  %5637 = vset.pattern.permute.xlu0 2
  %5638 = vperm.xlu0 %5637, %v5302
  %v5639 = vpop.permute.xlu0 %5638
  %5641 = vset.pattern.permute.xlu0 2
  %5642 = vperm.xlu0 %5641, %v5303
  %v5643 = vpop.permute.xlu0 %5642
  %5645 = vset.pattern.permute.xlu0 2
  %5646 = vperm.xlu0 %5645, %v5304
  %v5647 = vpop.permute.xlu0 %5646
  %5649 = vset.pattern.permute.xlu0 2
  %5650 = vperm.xlu0 %5649, %v5305
  %v5651 = vpop.permute.xlu0 %5650
  %5653 = vset.pattern.permute.xlu0 2
  %5654 = vperm.xlu0 %5653, %v5306
  %v5655 = vpop.permute.xlu0 %5654
  %5657 = vset.pattern.permute.xlu0 2
  %5658 = vperm.xlu0 %5657, %v5307
  %v5659 = vpop.permute.xlu0 %5658
  %v5661 = vmul.f32 %v5599, %v5589
  %v5662 = vmul.f32 %v5603, %v5590
  %v5663 = vmul.f32 %v5607, %v5591
  %v5664 = vmul.f32 %v5611, %v5592
  %v5665 = vmul.f32 %v5615, %v5593
  %v5666 = vmul.f32 %v5619, %v5594
  %v5667 = vmul.f32 %v5623, %v5595
  %v5668 = vmul.f32 %v5627, %v5596
  %v5669 = vmul.f32 %v5631, %v5589
  %v5670 = vmul.f32 %v5635, %v5590
  %v5671 = vmul.f32 %v5639, %v5591
  %v5672 = vmul.f32 %v5643, %v5592
  %v5673 = vmul.f32 %v5647, %v5593
  %v5674 = vmul.f32 %v5651, %v5594
  %v5675 = vmul.f32 %v5655, %v5595
  %v5676 = vmul.f32 %v5659, %v5596
  %v5677 = vpack.c.bf16 %v5662, %v5661
  %v5678 = vpack.c.bf16 %v5664, %v5663
  %v5679 = vpack.c.bf16 %v5666, %v5665
  %v5680 = vpack.c.bf16 %v5668, %v5667
  %v5681 = vpack.c.bf16 %v5670, %v5669
  %v5682 = vpack.c.bf16 %v5672, %v5671
  %v5683 = vpack.c.bf16 %v5674, %v5673
  %v5684 = vpack.c.bf16 %v5676, %v5675
  %v5685 = vld [vmem:[%s11] sm:$0x1]
  %v5687 = vlaneseq
  %v5688 = vshrl.u32 %v5687, 7
  %v5689 = vsub.s32 0, %v5688
  %v5690 = vrot.slane %v5685, %v5689
  %5692 = vmatprep.subr.bf16.mxu0 0
  %5693 = vmatpush1.bf16.msra.mxu0 %v5677
  %5694 = vmatprep.subr.bf16.mxu0 0
  %5695 = vmatpush1.bf16.msra.mxu0 %v5678
  %5696 = vmatprep.subr.bf16.mxu0 0
  %5697 = vmatpush1.bf16.msra.mxu0 %v5679
  %5698 = vmatprep.subr.bf16.mxu0 0
  %5699 = vmatpush1.bf16.msra.mxu0 %v5680
  %5700 = vmatprep.subr.bf16.mxu0 0
  %5701 = vmatpush1.bf16.msra.mxu0 %v5681
  %5702 = vmatprep.subr.bf16.mxu0 0
  %5703 = vmatpush1.bf16.msra.mxu0 %v5682
  %5704 = vmatprep.subr.bf16.mxu0 0
  %5705 = vmatpush1.bf16.msra.mxu0 %v5683
  %5706 = vmatprep.subr.bf16.mxu0 0
  %5707 = vmatpush1.bf16.msra.mxu0 %v5684
  %5708 = vmatprep.subr.bf16.mxu0 0
  %5709 = vmatpush1.bf16.msra.mxu0 0
  %5710 = vmatprep.subr.bf16.mxu0 0
  %5711 = vmatpush1.bf16.msra.mxu0 0
  %5712 = vmatprep.subr.bf16.mxu0 0
  %5713 = vmatpush1.bf16.msra.mxu0 0
  %5714 = vmatprep.subr.bf16.mxu0 0
  %5715 = vmatpush1.bf16.msra.mxu0 0
  %5716 = vmatprep.subr.bf16.mxu0 0
  %5717 = vmatpush1.bf16.msra.mxu0 0
  %5718 = vmatprep.subr.bf16.mxu0 0
  %5719 = vmatpush1.bf16.msra.mxu0 0
  %5720 = vmatprep.subr.bf16.mxu0 0
  %5721 = vmatpush1.bf16.msra.mxu0 0
  %5722 = vmatprep.subr.bf16.mxu0 0
  %5723 = vmatpush1.bf16.msra.mxu0 0
  %5724 = vmatprep.mubr.bf16.mxu0 0
  %5725 = vmatmul.mubr.bf16.gmra.mrb[0].mxu0 %v5313
  %v5726 = vpop.f32.mrb[0].mxu0
  %v5727 = vadd.f32 %v5690, %v5726
  %v5728 = vpop.f32.mrb[0].mxu0
  %v5729 = vpop.f32.mrb[0].mxu0
  %v5730 = vpop.f32.mrb[0].mxu0
  %5731 = vdwg.mxu0
  %v5732 = vmax.f32 %v5727, 0.0
  %v5733 = vpack.c.bf16 %v5732, %v5732
  %v5734 = vld [vmem:[%s12] sm:$0xf]
  %v5735 = vld [vmem:[%s12 + $0x4] sm:$0xf]
  %v5736 = vld [vmem:[%s12 + $0x8] sm:$0xf]
  %v5737 = vld [vmem:[%s12 + $0xc] sm:$0xf]
  %v5738 = vld [vmem:[%s13] sm:$0x1]
  %v5740 = vlaneseq
  %v5741 = vshrl.u32 %v5740, 7
  %v5742 = vsub.s32 0, %v5741
  %v5743 = vrot.slane %v5738, %v5742
  %v5749 = vunpack.c.l.b16 %v5734
  %v5750 = vunpack.c.l.b16 %v5735
  %v5751 = vunpack.c.l.b16 %v5736
  %v5752 = vunpack.c.l.b16 %v5737
  %v5753 = vpack.c.b16 %v5750, %v5749
  %v5754 = vpack.c.b16 %v5752, %v5751
  %v5758 = vsel %vm1601, %v5733, 0
  %5760 = vmatprep.subr.bf16.mxu0 0
  %5761 = vmatpush1.bf16.msra.mxu0 %v5753
  %5762 = vmatprep.subr.bf16.mxu0 0
  %5763 = vmatpush1.bf16.msra.mxu0 %v5754
  %5764 = vmatprep.subr.bf16.mxu0 0
  %5765 = vmatpush1.bf16.msra.mxu0 0
  %5766 = vmatprep.subr.bf16.mxu0 0
  %5767 = vmatpush1.bf16.msra.mxu0 0
  %5768 = vmatprep.subr.bf16.mxu0 0
  %5769 = vmatpush1.bf16.msra.mxu0 0
  %5770 = vmatprep.subr.bf16.mxu0 0
  %5771 = vmatpush1.bf16.msra.mxu0 0
  %5772 = vmatprep.subr.bf16.mxu0 0
  %5773 = vmatpush1.bf16.msra.mxu0 0
  %5774 = vmatprep.subr.bf16.mxu0 0
  %5775 = vmatpush1.bf16.msra.mxu0 0
  %5776 = vmatprep.subr.bf16.mxu0 0
  %5777 = vmatpush1.bf16.msra.mxu0 0
  %5778 = vmatprep.subr.bf16.mxu0 0
  %5779 = vmatpush1.bf16.msra.mxu0 0
  %5780 = vmatprep.subr.bf16.mxu0 0
  %5781 = vmatpush1.bf16.msra.mxu0 0
  %5782 = vmatprep.subr.bf16.mxu0 0
  %5783 = vmatpush1.bf16.msra.mxu0 0
  %5784 = vmatprep.subr.bf16.mxu0 0
  %5785 = vmatpush1.bf16.msra.mxu0 0
  %5786 = vmatprep.subr.bf16.mxu0 0
  %5787 = vmatpush1.bf16.msra.mxu0 0
  %5788 = vmatprep.subr.bf16.mxu0 0
  %5789 = vmatpush1.bf16.msra.mxu0 0
  %5790 = vmatprep.subr.bf16.mxu0 0
  %5791 = vmatpush1.bf16.msra.mxu0 0
  %5792 = vmatprep.mubr.bf16.mxu0 0
  %5793 = vmatmul.mubr.bf16.gmra.mrb[0].mxu0 %v5758
  %v5794 = vpop.f32.mrb[0].mxu0
  %v5795 = vadd.f32 %v5743, %v5794
  %v5796 = vpop.f32.mrb[0].mxu0
  %v5797 = vpop.f32.mrb[0].mxu0
  %v5798 = vpop.f32.mrb[0].mxu0
  %5799 = vdwg.mxu0
  %v5800 = vtanh.pop %v5795
  %5802 = vrot.lane.b32.xlu0 %v5800, 64
  %v5803 = vpop.permute.xlu0 %5802
  %vm5805 = vcmask 523264
  %v5806 = vsel %vm5805, %v5588, %v5803
  %5807 = vst [vmem:[%s14] sm:$0x3] %v5806
  // Predicated region
  $region58: #{net_forward.1} parent=0 // pred_check
    _
  $region59: #{net_forward.1} parent=0 // pred_check_branch
    %5809 = sbr.rel (0) target = $region61
  $region60: #{net_forward.1} parent=0 // pred_region
    _
  $region61: #{net_forward.1} parent=0 // pred_fallthru
    _
  // Predicated region
  $region62: #{net_forward.1} parent=0 // pred_check
    _
  $region63: #{net_forward.1} parent=0 // pred_check_branch
    %5811 = sbr.rel (0) target = $region65
  $region64: #{net_forward.1} parent=0 // pred_region
    _
  $region65: #{net_forward.1} parent=0 // pred_fallthru
    _

</llo_original>
